<compile_context>
chip_gen: v7x
topology: tpu7x:2x2x1
jax: 0.10.0
libtpu: 0.0.40
codegen_flags: <defaults>
</compile_context>

<pallas_src>
import functools

import numpy as np

import jax
import jax.numpy as jnp
from jax.experimental import pallas as pl
from jax.experimental.pallas import tpu as pltpu


# ----------------------------- Pallas kernels ------------------------------

def _fc0_kernel(x_ref, g_ref, wx_ref, wg_ref, b_ref, o_ref):
    """out = Wx @ x + Wg @ grid + b   (fc0 fused with get_grid()/concat)."""
    y = jnp.dot(wx_ref[...], x_ref[...], preferred_element_type=jnp.float32)
    y = y + jnp.dot(wg_ref[...], g_ref[...], preferred_element_type=jnp.float32)
    o_ref[...] = (y + b_ref[...]).astype(o_ref.dtype)


def _fourier_layer_kernel(x_ref, are_ref, aim_ref, wr_ref, wi_ref,
                          bre_ref, bim_ref, wc_ref, bc_ref, o_ref,
                          *, spatial, width, act):
    """One full Fourier layer: SpectralConv2d + 1x1 conv + bias (+ ReLU).

    x_ref / o_ref: (C, tile_b * S) token slab for tile_b batch elements.
    are/aim:       (S, K)  truncated forward 2-D DFT factors (real / imag).
    wr/wi:         (C_in, C_out, K) per-mode complex spectral weights.
    bre/bim:       (K, S)  truncated inverse 2-D DFT factors (incl. 1/(XY)
                   normalization and the irfft Hermitian doubling weights).
    wc/bc:         (C, C), (C, 1) 1x1-conv weight / bias.
    """
    n_b = x_ref.shape[1] // spatial
    for bb in range(n_b):                                  # static unroll
        sl = slice(bb * spatial, (bb + 1) * spatial)
        xb = x_ref[:, sl]                                  # (C, S)

        # Truncated forward 2-D DFT: two (C,S)@(S,K) MXU matmuls.
        xre = jnp.dot(xb, are_ref[...], preferred_element_type=jnp.float32)
        xim = jnp.dot(xb, aim_ref[...], preferred_element_type=jnp.float32)

        # Per-mode complex channel mix, unrolled over input channels.
        # Modes sit on the lane axis; each step is a handful of VPU FMAs on
        # (C_out, K) tiles -- no tiny per-mode MXU matmuls, no transposes.
        out_re = None
        out_im = None
        for ci in range(width):
            wr = wr_ref[ci]                                # (C_out, K)
            wi = wi_ref[ci]
            xr = xre[ci:ci + 1, :]                         # (1, K) -> bcast
            xi = xim[ci:ci + 1, :]
            t_re = wr * xr - wi * xi
            t_im = wr * xi + wi * xr
            out_re = t_re if out_re is None else out_re + t_re
            out_im = t_im if out_im is None else out_im + t_im

        # Truncated inverse 2-D DFT back to the spatial grid (lane-dense S).
        x1 = jnp.dot(out_re, bre_ref[...], preferred_element_type=jnp.float32)
        x1 = x1 + jnp.dot(out_im, bim_ref[...],
                          preferred_element_type=jnp.float32)

        # Fused 1x1 conv residual + bias (+ ReLU).
        y = jnp.dot(wc_ref[...], xb, preferred_element_type=jnp.float32)
        y = y + bc_ref[...] + x1
        if act:
            y = jnp.maximum(y, 0.0)
        o_ref[:, sl] = y.astype(o_ref.dtype)


def _head_kernel(x_ref, w1_ref, b1_ref, w2_ref, b2_ref, o_ref):
    """Fused fc1 + ReLU + fc2; hidden stays in VMEM, output is lane-dense.

    NOTE: at much larger width/mlp_ratio/tile_n the live hidden activation
    (hidden x tile_n f32) should be bounded by shrinking tile_n for this call.
    """
    h = jnp.dot(w1_ref[...], x_ref[...], preferred_element_type=jnp.float32)
    h = jnp.maximum(h + b1_ref[...], 0.0)
    y = jnp.dot(w2_ref[...], h, preferred_element_type=jnp.float32)
    o_ref[...] = (y + b2_ref[...]).astype(o_ref.dtype)


# --------------------------- tiling / chip helpers ---------------------------

_P1 = pltpu.CompilerParams(dimension_semantics=("parallel",))


def _min_parallel_steps():
    """>=2 parallel grid steps on multi-TensorCore chips (v7x, v4/v5p);
    1 step on single-TC chips (v5e / v6e) where extra steps are pure overhead."""
    try:
        kind = jax.devices()[0].device_kind.lower()
    except Exception:
        return 2
    single_tc = any(t in kind for t in
                    ("v5e", "v5 lite", "v5lite", "v6e", "v6 lite", "v6lite"))
    return 1 if single_tc else 2


def _token_tiling(n, min_steps):
    """Largest lane-dense token tile giving >= min_steps grid steps."""
    for t in (8192, 4096, 2048, 1024, 512, 256, 128):
        if n % t == 0 and n // t >= min_steps:
            return t
    # Fallback: single full-width step (correct even if n % 128 != 0, at the
    # cost of masked stores on the last lane tile).
    return n


def _batch_tiling(batch, min_steps):
    """Batch elements per grid step for the Fourier layer."""
    if min_steps <= 1:
        return batch
    for tb in range(batch, 0, -1):
        if batch % tb == 0 and batch // tb >= min_steps:
            return tb
    return batch


# ------------------------------ Pallas wrappers -----------------------------

def fc0_with_grid(x_cn, grid_2n, wx, wg, b_col, *, tile_n):
    cin, n = x_cn.shape
    width = wx.shape[0]
    return pl.pallas_call(
        _fc0_kernel,
        out_shape=jax.ShapeDtypeStruct((width, n), jnp.float32),
        grid=(n // tile_n,),
        in_specs=[
            pl.BlockSpec((cin, tile_n), lambda i: (0, i)),
            pl.BlockSpec((2, tile_n), lambda i: (0, i)),
            pl.BlockSpec((width, cin), lambda i: (0, 0)),
            pl.BlockSpec((width, 2), lambda i: (0, 0)),
            pl.BlockSpec((width, 1), lambda i: (0, 0)),
        ],
        out_specs=pl.BlockSpec((width, tile_n), lambda i: (0, i)),
        compiler_params=_P1,
    )(x_cn, grid_2n, wx, wg, b_col)


def fourier_layer(x_cn, factors, wr, wi, wc, bc, *, batch, spatial, act, tile_b):
    width, n = x_cn.shape
    k = wr.shape[-1]
    a_re, a_im, b_re, b_im = factors
    tile_tok = tile_b * spatial
    kern = functools.partial(_fourier_layer_kernel,
                             spatial=spatial, width=width, act=act)
    return pl.pallas_call(
        kern,
        out_shape=jax.ShapeDtypeStruct((width, n), jnp.float32),
        grid=(batch // tile_b,),
        in_specs=[
            pl.BlockSpec((width, tile_tok), lambda i: (0, i)),
            pl.BlockSpec((spatial, k), lambda i: (0, 0)),
            pl.BlockSpec((spatial, k), lambda i: (0, 0)),
            pl.BlockSpec((width, width, k), lambda i: (0, 0, 0)),
            pl.BlockSpec((width, width, k), lambda i: (0, 0, 0)),
            pl.BlockSpec((k, spatial), lambda i: (0, 0)),
            pl.BlockSpec((k, spatial), lambda i: (0, 0)),
            pl.BlockSpec((width, width), lambda i: (0, 0)),
            pl.BlockSpec((width, 1), lambda i: (0, 0)),
        ],
        out_specs=pl.BlockSpec((width, tile_tok), lambda i: (0, i)),
        input_output_aliases={0: 0},   # old slab is dead -> reuse the buffer
        compiler_params=_P1,
    )(x_cn, a_re, a_im, wr, wi, b_re, b_im, wc, bc)


def mlp_head(x_cn, w1, b1_col, w2, b2_col, *, tile_n):
    width, n = x_cn.shape
    hidden = w1.shape[0]
    out_ch = w2.shape[0]
    return pl.pallas_call(
        _head_kernel,
        out_shape=jax.ShapeDtypeStruct((out_ch, n), jnp.float32),
        grid=(n // tile_n,),
        in_specs=[
            pl.BlockSpec((width, tile_n), lambda i: (0, i)),
            pl.BlockSpec((hidden, width), lambda i: (0, 0)),
            pl.BlockSpec((hidden, 1), lambda i: (0, 0)),
            pl.BlockSpec((out_ch, hidden), lambda i: (0, 0)),
            pl.BlockSpec((out_ch, 1), lambda i: (0, 0)),
        ],
        out_specs=pl.BlockSpec((out_ch, tile_n), lambda i: (0, i)),
        compiler_params=_P1,
    )(x_cn, w1, b1_col, w2, b2_col)


# --------------------------- trace-time constants ----------------------------

def _dft_factors(size_x, size_y, modes1, modes2):
    """Truncated 2-D real-DFT / inverse factors matching rfft2 / irfft2 on the
    retained FNO modes (kx in [0,m1) U [X-m1,X), ky in [0,m2))."""
    X, Y = size_x, size_y
    kx = np.concatenate([np.arange(modes1), np.arange(X - modes1, X)]).astype(np.float64)
    ky = np.arange(modes2, dtype=np.float64)
    xs = np.arange(X, dtype=np.float64)
    ys = np.arange(Y, dtype=np.float64)

    tx = (2.0 * np.pi / X) * np.outer(xs, kx)              # (X, 2*m1)
    ty = (2.0 * np.pi / Y) * np.outer(ys, ky)              # (Y, m2)
    theta = tx[:, None, :, None] + ty[None, :, None, :]    # (X, Y, 2m1, m2)
    theta = theta.reshape(X * Y, 2 * modes1 * modes2)      # s=(x,y), k=(kx,ky)

    a_re = np.cos(theta)                                   # forward: e^{-i theta}
    a_im = -np.sin(theta)

    # irfft doubling weights along ky (DC / Nyquist count once).
    w = np.full((modes2,), 2.0)
    w[0] = 1.0
    if Y % 2 == 0 and modes2 - 1 == Y // 2:
        w[-1] = 1.0
    wk = np.tile(w, 2 * modes1)                            # ky fastest -> matches k

    b_re = (wk[:, None] * np.cos(theta.T)) / (X * Y)       # inverse: Re(H e^{+i theta})
    b_im = (-wk[:, None] * np.sin(theta.T)) / (X * Y)

    f32 = lambda a: jnp.asarray(a, jnp.float32)
    return f32(a_re), f32(a_im), f32(b_re), f32(b_im)


def _grid_slab(batch, size_x, size_y):
    """(2, N) [gridx; gridy] slab, token order (b, x, y) — a trace-time constant."""
    gx = np.linspace(0.0, 1.0, size_x)
    gy = np.linspace(0.0, 1.0, size_y)
    grid = np.stack([
        np.broadcast_to(gx[None, :, None], (batch, size_x, size_y)),
        np.broadcast_to(gy[None, None, :], (batch, size_x, size_y)),
    ], axis=0).reshape(2, batch * size_x * size_y)
    return jnp.asarray(grid, jnp.float32)


# ------------------------------- parameters ---------------------------------

def init_fno2d_params(key, in_channels, out_channels, modes1, modes2,
                      width, depth, mlp_ratio):
    """Deterministic synthetic init; weight layouts are (out, in) for W @ x."""
    keys = iter(jax.random.split(key, 3 + 6 * depth + 4))
    nk = lambda: next(keys)

    p = {}
    p["fc0_wx"] = 0.1 * jax.random.normal(nk(), (width, in_channels), jnp.float32)
    p["fc0_wg"] = 0.1 * jax.random.normal(nk(), (width, 2), jnp.float32)
    p["fc0_b"] = 0.1 * jax.random.normal(nk(), (width, 1), jnp.float32)

    scale = 1.0 / (width * width)
    m = modes1 * modes2
    p["spec_wr"], p["spec_wi"], p["conv_w"], p["conv_b"] = [], [], [], []
    for _ in range(depth):
        wr1 = scale * jax.random.uniform(nk(), (width, width, m), jnp.float32)
        wi1 = scale * jax.random.uniform(nk(), (width, width, m), jnp.float32)
        wr2 = scale * jax.random.uniform(nk(), (width, width, m), jnp.float32)
        wi2 = scale * jax.random.uniform(nk(), (width, width, m), jnp.float32)
        # mode axis = [weights1 modes | weights2 modes], ky fastest (matches DFT factors)
        p["spec_wr"].append(jnp.concatenate([wr1, wr2], axis=-1))   # (Ci, Co, 2m)
        p["spec_wi"].append(jnp.concatenate([wi1, wi2], axis=-1))
        p["conv_w"].append(0.1 * jax.random.normal(nk(), (width, width), jnp.float32))
        p["conv_b"].append(0.1 * jax.random.normal(nk(), (width, 1), jnp.float32))

    hidden = mlp_ratio * width
    p["fc1_w"] = 0.1 * jax.random.normal(nk(), (hidden, width), jnp.float32)
    p["fc1_b"] = 0.1 * jax.random.normal(nk(), (hidden, 1), jnp.float32)
    p["fc2_w"] = 0.1 * jax.random.normal(nk(), (out_channels, hidden), jnp.float32)
    p["fc2_b"] = 0.1 * jax.random.normal(nk(), (out_channels, 1), jnp.float32)
    return p


# ------------------------------- FNO2d model --------------------------------

def fno2d_forward(params, x, *, modes1, modes2, depth, out_channels):
    """x: (B, size_x, size_y, in_channels) -> (B, size_x, size_y, out_channels)."""
    b, size_x, size_y, cin = x.shape
    spatial = size_x * size_y
    n = b * spatial
    width = params["fc0_wx"].shape[0]
    assert 2 * modes1 <= size_x, "modes1 too large for size_x"
    assert modes2 <= size_y // 2 + 1, "modes2 too large for size_y"

    min_steps = _min_parallel_steps()
    tile_n = _token_tiling(n, min_steps)
    tile_b = _batch_tiling(b, min_steps)

    factors = _dft_factors(size_x, size_y, modes1, modes2)
    grid_2n = _grid_slab(b, size_x, size_y)

    # (B, X, Y, Cin) -> (Cin, N): channels on sublanes, tokens (b, x, y) on lanes.
    x_cn = jnp.transpose(x.astype(jnp.float32), (3, 0, 1, 2)).reshape(cin, n)

    # fc0 fused with get_grid()/concat.
    xf = fc0_with_grid(x_cn, grid_2n, params["fc0_wx"], params["fc0_wg"],
                       params["fc0_b"], tile_n=tile_n)

    # NOTE: padding=None path (no F.pad / crop).
    for d in range(depth):
        xf = fourier_layer(xf, factors, params["spec_wr"][d], params["spec_wi"][d],
                           params["conv_w"][d], params["conv_b"][d],
                           batch=b, spatial=spatial, act=(d < depth - 1),
                           tile_b=tile_b)

    # fused fc1 + ReLU + fc2 (lane-dense output even though out_channels=1).
    y = mlp_head(xf, params["fc1_w"], params["fc1_b"],
                 params["fc2_w"], params["fc2_b"], tile_n=tile_n)

    return jnp.transpose(y, (1, 0)).reshape(b, size_x, size_y, out_channels)


# ----------------------------------- main ------------------------------------

if __name__ == "__main__":
    in_channels = 3
    out_channels = 1
    modes1, modes2 = 6, 6
    width = 16
    depth = 4
    mlp_ratio = 4

    batch, size_x, size_y = 2, 16, 16

    key = jax.random.PRNGKey(0)
    k_param, k_in = jax.random.split(key)
    params = init_fno2d_params(k_param, in_channels, out_channels, modes1, modes2,
                               width, depth, mlp_ratio)
    x = jax.random.normal(k_in, (batch, size_x, size_y, in_channels), jnp.float32)

    fwd = jax.jit(functools.partial(fno2d_forward, modes1=modes1, modes2=modes2,
                                    depth=depth, out_channels=out_channels))
    out = fwd(params, x)
    jax.block_until_ready(out)
    assert out.shape == (batch, size_x, size_y, out_channels)
    assert out.dtype == jnp.float32
    print("KERNEL_OK")
</pallas_src>

<mosaic_0001>
module attributes {stable_mosaic.version = 11 : i64} {
  func.func @_fourier_layer_kernel(%arg0: i32, %arg1: memref<16x256xf32, #tpu.memory_space<vmem>>, %arg2: memref<256x72xf32, #tpu.memory_space<vmem>>, %arg3: memref<256x72xf32, #tpu.memory_space<vmem>>, %arg4: memref<16x16x72xf32, #tpu.memory_space<vmem>>, %arg5: memref<16x16x72xf32, #tpu.memory_space<vmem>>, %arg6: memref<72x256xf32, #tpu.memory_space<vmem>>, %arg7: memref<72x256xf32, #tpu.memory_space<vmem>>, %arg8: memref<16x16xf32, #tpu.memory_space<vmem>>, %arg9: memref<16x1xf32, #tpu.memory_space<vmem>>, %arg10: memref<16x256xf32, #tpu.memory_space<vmem>>) attributes {dimension_semantics = [#tpu.dimension_semantics<parallel>], iteration_bounds = array<i64: 2>, scalar_prefetch = 0 : i64, scratch_operands = 0 : i64, tpu.core_type = #tpu.core_type<tc>, window_params = [{transform_indices = @transform_0, window_bounds = array<i64: 16, 256>}, {pipeline_mode = #tpu.pipeline_mode<synchronous>, transform_indices = @transform_1, window_bounds = array<i64: 256, 72>}, {pipeline_mode = #tpu.pipeline_mode<synchronous>, transform_indices = @transform_2, window_bounds = array<i64: 256, 72>}, {pipeline_mode = #tpu.pipeline_mode<synchronous>, transform_indices = @transform_3, window_bounds = array<i64: 16, 16, 72>}, {pipeline_mode = #tpu.pipeline_mode<synchronous>, transform_indices = @transform_4, window_bounds = array<i64: 16, 16, 72>}, {pipeline_mode = #tpu.pipeline_mode<synchronous>, transform_indices = @transform_5, window_bounds = array<i64: 72, 256>}, {pipeline_mode = #tpu.pipeline_mode<synchronous>, transform_indices = @transform_6, window_bounds = array<i64: 72, 256>}, {pipeline_mode = #tpu.pipeline_mode<synchronous>, transform_indices = @transform_7, window_bounds = array<i64: 16, 16>}, {pipeline_mode = #tpu.pipeline_mode<synchronous>, transform_indices = @transform_8, window_bounds = array<i64: 16, 1>}, {transform_indices = @transform_9, window_bounds = array<i64: 16, 256>}]} {
    %c0 = arith.constant 0 : index
    %c0_0 = arith.constant 0 : index
    %0 = vector.load %arg1[%c0, %c0_0] : memref<16x256xf32, #tpu.memory_space<vmem>>, vector<16x256xf32>
    %c0_1 = arith.constant 0 : index
    %c0_2 = arith.constant 0 : index
    %1 = vector.load %arg2[%c0_1, %c0_2] : memref<256x72xf32, #tpu.memory_space<vmem>>, vector<256x72xf32>
    %cst = arith.constant dense<0.000000e+00> : vector<16x72xf32>
    %2 = tpu.matmul %0, %1, %cst {dimension_numbers = #tpu.dot_dimension_numbers<[1], [0], [0], [1], [0, 0, 1, 1], [], []>} : vector<16x256xf32>, vector<256x72xf32>, vector<16x72xf32> -> vector<16x72xf32>
    %c0_3 = arith.constant 0 : index
    %c0_4 = arith.constant 0 : index
    %3 = vector.load %arg3[%c0_3, %c0_4] : memref<256x72xf32, #tpu.memory_space<vmem>>, vector<256x72xf32>
    %cst_5 = arith.constant dense<0.000000e+00> : vector<16x72xf32>
    %4 = tpu.matmul %0, %3, %cst_5 {dimension_numbers = #tpu.dot_dimension_numbers<[1], [0], [0], [1], [0, 0, 1, 1], [], []>} : vector<16x256xf32>, vector<256x72xf32>, vector<16x72xf32> -> vector<16x72xf32>
    %c0_6 = arith.constant 0 : index
    %c0_7 = arith.constant 0 : index
    %c0_8 = arith.constant 0 : index
    %5 = vector.load %arg4[%c0_6, %c0_7, %c0_8] : memref<16x16x72xf32, #tpu.memory_space<vmem>>, vector<1x16x72xf32>
    %6 = vector.shape_cast %5 : vector<1x16x72xf32> to vector<16x72xf32>
    %c0_9 = arith.constant 0 : index
    %c0_10 = arith.constant 0 : index
    %c0_11 = arith.constant 0 : index
    %7 = vector.load %arg5[%c0_9, %c0_10, %c0_11] : memref<16x16x72xf32, #tpu.memory_space<vmem>>, vector<1x16x72xf32>
    %8 = vector.shape_cast %7 : vector<1x16x72xf32> to vector<16x72xf32>
    %9 = vector.extract_strided_slice %2 {offsets = [0, 0], sizes = [1, 72], strides = [1, 1]} : vector<16x72xf32> to vector<1x72xf32>
    %10 = vector.extract_strided_slice %4 {offsets = [0, 0], sizes = [1, 72], strides = [1, 1]} : vector<16x72xf32> to vector<1x72xf32>
    %11 = vector.broadcast %9 : vector<1x72xf32> to vector<16x72xf32>
    %12 = arith.mulf %6, %11 : vector<16x72xf32>
    %13 = vector.broadcast %10 : vector<1x72xf32> to vector<16x72xf32>
    %14 = arith.mulf %8, %13 : vector<16x72xf32>
    %15 = arith.subf %12, %14 : vector<16x72xf32>
    %16 = vector.broadcast %10 : vector<1x72xf32> to vector<16x72xf32>
    %17 = arith.mulf %6, %16 : vector<16x72xf32>
    %18 = vector.broadcast %9 : vector<1x72xf32> to vector<16x72xf32>
    %19 = arith.mulf %8, %18 : vector<16x72xf32>
    %20 = arith.addf %17, %19 : vector<16x72xf32>
    %c1 = arith.constant 1 : index
    %c0_12 = arith.constant 0 : index
    %c0_13 = arith.constant 0 : index
    %21 = vector.load %arg4[%c1, %c0_12, %c0_13] : memref<16x16x72xf32, #tpu.memory_space<vmem>>, vector<1x16x72xf32>
    %22 = vector.shape_cast %21 : vector<1x16x72xf32> to vector<16x72xf32>
    %c1_14 = arith.constant 1 : index
    %c0_15 = arith.constant 0 : index
    %c0_16 = arith.constant 0 : index
    %23 = vector.load %arg5[%c1_14, %c0_15, %c0_16] : memref<16x16x72xf32, #tpu.memory_space<vmem>>, vector<1x16x72xf32>
    %24 = vector.shape_cast %23 : vector<1x16x72xf32> to vector<16x72xf32>
    %25 = vector.extract_strided_slice %2 {offsets = [1, 0], sizes = [1, 72], strides = [1, 1]} : vector<16x72xf32> to vector<1x72xf32>
    %26 = vector.extract_strided_slice %4 {offsets = [1, 0], sizes = [1, 72], strides = [1, 1]} : vector<16x72xf32> to vector<1x72xf32>
    %27 = vector.broadcast %25 : vector<1x72xf32> to vector<16x72xf32>
    %28 = arith.mulf %22, %27 : vector<16x72xf32>
    %29 = vector.broadcast %26 : vector<1x72xf32> to vector<16x72xf32>
    %30 = arith.mulf %24, %29 : vector<16x72xf32>
    %31 = arith.subf %28, %30 : vector<16x72xf32>
    %32 = vector.broadcast %26 : vector<1x72xf32> to vector<16x72xf32>
    %33 = arith.mulf %22, %32 : vector<16x72xf32>
    %34 = vector.broadcast %25 : vector<1x72xf32> to vector<16x72xf32>
    %35 = arith.mulf %24, %34 : vector<16x72xf32>
    %36 = arith.addf %33, %35 : vector<16x72xf32>
    %37 = arith.addf %15, %31 : vector<16x72xf32>
    %38 = arith.addf %20, %36 : vector<16x72xf32>
    %c2 = arith.constant 2 : index
    %c0_17 = arith.constant 0 : index
    %c0_18 = arith.constant 0 : index
    %39 = vector.load %arg4[%c2, %c0_17, %c0_18] : memref<16x16x72xf32, #tpu.memory_space<vmem>>, vector<1x16x72xf32>
    %40 = vector.shape_cast %39 : vector<1x16x72xf32> to vector<16x72xf32>
    %c2_19 = arith.constant 2 : index
    %c0_20 = arith.constant 0 : index
    %c0_21 = arith.constant 0 : index
    %41 = vector.load %arg5[%c2_19, %c0_20, %c0_21] : memref<16x16x72xf32, #tpu.memory_space<vmem>>, vector<1x16x72xf32>
    %42 = vector.shape_cast %41 : vector<1x16x72xf32> to vector<16x72xf32>
    %43 = vector.extract_strided_slice %2 {offsets = [2, 0], sizes = [1, 72], strides = [1, 1]} : vector<16x72xf32> to vector<1x72xf32>
    %44 = vector.extract_strided_slice %4 {offsets = [2, 0], sizes = [1, 72], strides = [1, 1]} : vector<16x72xf32> to vector<1x72xf32>
    %45 = vector.broadcast %43 : vector<1x72xf32> to vector<16x72xf32>
    %46 = arith.mulf %40, %45 : vector<16x72xf32>
    %47 = vector.broadcast %44 : vector<1x72xf32> to vector<16x72xf32>
    %48 = arith.mulf %42, %47 : vector<16x72xf32>
    %49 = arith.subf %46, %48 : vector<16x72xf32>
    %50 = vector.broadcast %44 : vector<1x72xf32> to vector<16x72xf32>
    %51 = arith.mulf %40, %50 : vector<16x72xf32>
    %52 = vector.broadcast %43 : vector<1x72xf32> to vector<16x72xf32>
    %53 = arith.mulf %42, %52 : vector<16x72xf32>
    %54 = arith.addf %51, %53 : vector<16x72xf32>
    %55 = arith.addf %37, %49 : vector<16x72xf32>
    %56 = arith.addf %38, %54 : vector<16x72xf32>
    %c3 = arith.constant 3 : index
    %c0_22 = arith.constant 0 : index
    %c0_23 = arith.constant 0 : index
    %57 = vector.load %arg4[%c3, %c0_22, %c0_23] : memref<16x16x72xf32, #tpu.memory_space<vmem>>, vector<1x16x72xf32>
    %58 = vector.shape_cast %57 : vector<1x16x72xf32> to vector<16x72xf32>
    %c3_24 = arith.constant 3 : index
    %c0_25 = arith.constant 0 : index
    %c0_26 = arith.constant 0 : index
    %59 = vector.load %arg5[%c3_24, %c0_25, %c0_26] : memref<16x16x72xf32, #tpu.memory_space<vmem>>, vector<1x16x72xf32>
    %60 = vector.shape_cast %59 : vector<1x16x72xf32> to vector<16x72xf32>
    %61 = vector.extract_strided_slice %2 {offsets = [3, 0], sizes = [1, 72], strides = [1, 1]} : vector<16x72xf32> to vector<1x72xf32>
    %62 = vector.extract_strided_slice %4 {offsets = [3, 0], sizes = [1, 72], strides = [1, 1]} : vector<16x72xf32> to vector<1x72xf32>
    %63 = vector.broadcast %61 : vector<1x72xf32> to vector<16x72xf32>
    %64 = arith.mulf %58, %63 : vector<16x72xf32>
    %65 = vector.broadcast %62 : vector<1x72xf32> to vector<16x72xf32>
    %66 = arith.mulf %60, %65 : vector<16x72xf32>
    %67 = arith.subf %64, %66 : vector<16x72xf32>
    %68 = vector.broadcast %62 : vector<1x72xf32> to vector<16x72xf32>
    %69 = arith.mulf %58, %68 : vector<16x72xf32>
    %70 = vector.broadcast %61 : vector<1x72xf32> to vector<16x72xf32>
    %71 = arith.mulf %60, %70 : vector<16x72xf32>
    %72 = arith.addf %69, %71 : vector<16x72xf32>
    %73 = arith.addf %55, %67 : vector<16x72xf32>
    %74 = arith.addf %56, %72 : vector<16x72xf32>
    %c4 = arith.constant 4 : index
    %c0_27 = arith.constant 0 : index
    %c0_28 = arith.constant 0 : index
    %75 = vector.load %arg4[%c4, %c0_27, %c0_28] : memref<16x16x72xf32, #tpu.memory_space<vmem>>, vector<1x16x72xf32>
    %76 = vector.shape_cast %75 : vector<1x16x72xf32> to vector<16x72xf32>
    %c4_29 = arith.constant 4 : index
    %c0_30 = arith.constant 0 : index
    %c0_31 = arith.constant 0 : index
    %77 = vector.load %arg5[%c4_29, %c0_30, %c0_31] : memref<16x16x72xf32, #tpu.memory_space<vmem>>, vector<1x16x72xf32>
    %78 = vector.shape_cast %77 : vector<1x16x72xf32> to vector<16x72xf32>
    %79 = vector.extract_strided_slice %2 {offsets = [4, 0], sizes = [1, 72], strides = [1, 1]} : vector<16x72xf32> to vector<1x72xf32>
    %80 = vector.extract_strided_slice %4 {offsets = [4, 0], sizes = [1, 72], strides = [1, 1]} : vector<16x72xf32> to vector<1x72xf32>
    %81 = vector.broadcast %79 : vector<1x72xf32> to vector<16x72xf32>
    %82 = arith.mulf %76, %81 : vector<16x72xf32>
    %83 = vector.broadcast %80 : vector<1x72xf32> to vector<16x72xf32>
    %84 = arith.mulf %78, %83 : vector<16x72xf32>
    %85 = arith.subf %82, %84 : vector<16x72xf32>
    %86 = vector.broadcast %80 : vector<1x72xf32> to vector<16x72xf32>
    %87 = arith.mulf %76, %86 : vector<16x72xf32>
    %88 = vector.broadcast %79 : vector<1x72xf32> to vector<16x72xf32>
    %89 = arith.mulf %78, %88 : vector<16x72xf32>
    %90 = arith.addf %87, %89 : vector<16x72xf32>
    %91 = arith.addf %73, %85 : vector<16x72xf32>
    %92 = arith.addf %74, %90 : vector<16x72xf32>
    %c5 = arith.constant 5 : index
    %c0_32 = arith.constant 0 : index
    %c0_33 = arith.constant 0 : index
    %93 = vector.load %arg4[%c5, %c0_32, %c0_33] : memref<16x16x72xf32, #tpu.memory_space<vmem>>, vector<1x16x72xf32>
    %94 = vector.shape_cast %93 : vector<1x16x72xf32> to vector<16x72xf32>
    %c5_34 = arith.constant 5 : index
    %c0_35 = arith.constant 0 : index
    %c0_36 = arith.constant 0 : index
    %95 = vector.load %arg5[%c5_34, %c0_35, %c0_36] : memref<16x16x72xf32, #tpu.memory_space<vmem>>, vector<1x16x72xf32>
    %96 = vector.shape_cast %95 : vector<1x16x72xf32> to vector<16x72xf32>
    %97 = vector.extract_strided_slice %2 {offsets = [5, 0], sizes = [1, 72], strides = [1, 1]} : vector<16x72xf32> to vector<1x72xf32>
    %98 = vector.extract_strided_slice %4 {offsets = [5, 0], sizes = [1, 72], strides = [1, 1]} : vector<16x72xf32> to vector<1x72xf32>
    %99 = vector.broadcast %97 : vector<1x72xf32> to vector<16x72xf32>
    %100 = arith.mulf %94, %99 : vector<16x72xf32>
    %101 = vector.broadcast %98 : vector<1x72xf32> to vector<16x72xf32>
    %102 = arith.mulf %96, %101 : vector<16x72xf32>
    %103 = arith.subf %100, %102 : vector<16x72xf32>
    %104 = vector.broadcast %98 : vector<1x72xf32> to vector<16x72xf32>
    %105 = arith.mulf %94, %104 : vector<16x72xf32>
    %106 = vector.broadcast %97 : vector<1x72xf32> to vector<16x72xf32>
    %107 = arith.mulf %96, %106 : vector<16x72xf32>
    %108 = arith.addf %105, %107 : vector<16x72xf32>
    %109 = arith.addf %91, %103 : vector<16x72xf32>
    %110 = arith.addf %92, %108 : vector<16x72xf32>
    %c6 = arith.constant 6 : index
    %c0_37 = arith.constant 0 : index
    %c0_38 = arith.constant 0 : index
    %111 = vector.load %arg4[%c6, %c0_37, %c0_38] : memref<16x16x72xf32, #tpu.memory_space<vmem>>, vector<1x16x72xf32>
    %112 = vector.shape_cast %111 : vector<1x16x72xf32> to vector<16x72xf32>
    %c6_39 = arith.constant 6 : index
    %c0_40 = arith.constant 0 : index
    %c0_41 = arith.constant 0 : index
    %113 = vector.load %arg5[%c6_39, %c0_40, %c0_41] : memref<16x16x72xf32, #tpu.memory_space<vmem>>, vector<1x16x72xf32>
    %114 = vector.shape_cast %113 : vector<1x16x72xf32> to vector<16x72xf32>
    %115 = vector.extract_strided_slice %2 {offsets = [6, 0], sizes = [1, 72], strides = [1, 1]} : vector<16x72xf32> to vector<1x72xf32>
    %116 = vector.extract_strided_slice %4 {offsets = [6, 0], sizes = [1, 72], strides = [1, 1]} : vector<16x72xf32> to vector<1x72xf32>
    %117 = vector.broadcast %115 : vector<1x72xf32> to vector<16x72xf32>
    %118 = arith.mulf %112, %117 : vector<16x72xf32>
    %119 = vector.broadcast %116 : vector<1x72xf32> to vector<16x72xf32>
    %120 = arith.mulf %114, %119 : vector<16x72xf32>
    %121 = arith.subf %118, %120 : vector<16x72xf32>
    %122 = vector.broadcast %116 : vector<1x72xf32> to vector<16x72xf32>
    %123 = arith.mulf %112, %122 : vector<16x72xf32>
    %124 = vector.broadcast %115 : vector<1x72xf32> to vector<16x72xf32>
    %125 = arith.mulf %114, %124 : vector<16x72xf32>
    %126 = arith.addf %123, %125 : vector<16x72xf32>
    %127 = arith.addf %109, %121 : vector<16x72xf32>
    %128 = arith.addf %110, %126 : vector<16x72xf32>
    %c7 = arith.constant 7 : index
    %c0_42 = arith.constant 0 : index
    %c0_43 = arith.constant 0 : index
    %129 = vector.load %arg4[%c7, %c0_42, %c0_43] : memref<16x16x72xf32, #tpu.memory_space<vmem>>, vector<1x16x72xf32>
    %130 = vector.shape_cast %129 : vector<1x16x72xf32> to vector<16x72xf32>
    %c7_44 = arith.constant 7 : index
    %c0_45 = arith.constant 0 : index
    %c0_46 = arith.constant 0 : index
    %131 = vector.load %arg5[%c7_44, %c0_45, %c0_46] : memref<16x16x72xf32, #tpu.memory_space<vmem>>, vector<1x16x72xf32>
    %132 = vector.shape_cast %131 : vector<1x16x72xf32> to vector<16x72xf32>
    %133 = vector.extract_strided_slice %2 {offsets = [7, 0], sizes = [1, 72], strides = [1, 1]} : vector<16x72xf32> to vector<1x72xf32>
    %134 = vector.extract_strided_slice %4 {offsets = [7, 0], sizes = [1, 72], strides = [1, 1]} : vector<16x72xf32> to vector<1x72xf32>
    %135 = vector.broadcast %133 : vector<1x72xf32> to vector<16x72xf32>
    %136 = arith.mulf %130, %135 : vector<16x72xf32>
    %137 = vector.broadcast %134 : vector<1x72xf32> to vector<16x72xf32>
    %138 = arith.mulf %132, %137 : vector<16x72xf32>
    %139 = arith.subf %136, %138 : vector<16x72xf32>
    %140 = vector.broadcast %134 : vector<1x72xf32> to vector<16x72xf32>
    %141 = arith.mulf %130, %140 : vector<16x72xf32>
    %142 = vector.broadcast %133 : vector<1x72xf32> to vector<16x72xf32>
    %143 = arith.mulf %132, %142 : vector<16x72xf32>
    %144 = arith.addf %141, %143 : vector<16x72xf32>
    %145 = arith.addf %127, %139 : vector<16x72xf32>
    %146 = arith.addf %128, %144 : vector<16x72xf32>
    %c8 = arith.constant 8 : index
    %c0_47 = arith.constant 0 : index
    %c0_48 = arith.constant 0 : index
    %147 = vector.load %arg4[%c8, %c0_47, %c0_48] : memref<16x16x72xf32, #tpu.memory_space<vmem>>, vector<1x16x72xf32>
    %148 = vector.shape_cast %147 : vector<1x16x72xf32> to vector<16x72xf32>
    %c8_49 = arith.constant 8 : index
    %c0_50 = arith.constant 0 : index
    %c0_51 = arith.constant 0 : index
    %149 = vector.load %arg5[%c8_49, %c0_50, %c0_51] : memref<16x16x72xf32, #tpu.memory_space<vmem>>, vector<1x16x72xf32>
    %150 = vector.shape_cast %149 : vector<1x16x72xf32> to vector<16x72xf32>
    %151 = vector.extract_strided_slice %2 {offsets = [8, 0], sizes = [1, 72], strides = [1, 1]} : vector<16x72xf32> to vector<1x72xf32>
    %152 = vector.extract_strided_slice %4 {offsets = [8, 0], sizes = [1, 72], strides = [1, 1]} : vector<16x72xf32> to vector<1x72xf32>
    %153 = vector.broadcast %151 : vector<1x72xf32> to vector<16x72xf32>
    %154 = arith.mulf %148, %153 : vector<16x72xf32>
    %155 = vector.broadcast %152 : vector<1x72xf32> to vector<16x72xf32>
    %156 = arith.mulf %150, %155 : vector<16x72xf32>
    %157 = arith.subf %154, %156 : vector<16x72xf32>
    %158 = vector.broadcast %152 : vector<1x72xf32> to vector<16x72xf32>
    %159 = arith.mulf %148, %158 : vector<16x72xf32>
    %160 = vector.broadcast %151 : vector<1x72xf32> to vector<16x72xf32>
    %161 = arith.mulf %150, %160 : vector<16x72xf32>
    %162 = arith.addf %159, %161 : vector<16x72xf32>
    %163 = arith.addf %145, %157 : vector<16x72xf32>
    %164 = arith.addf %146, %162 : vector<16x72xf32>
    %c9 = arith.constant 9 : index
    %c0_52 = arith.constant 0 : index
    %c0_53 = arith.constant 0 : index
    %165 = vector.load %arg4[%c9, %c0_52, %c0_53] : memref<16x16x72xf32, #tpu.memory_space<vmem>>, vector<1x16x72xf32>
    %166 = vector.shape_cast %165 : vector<1x16x72xf32> to vector<16x72xf32>
    %c9_54 = arith.constant 9 : index
    %c0_55 = arith.constant 0 : index
    %c0_56 = arith.constant 0 : index
    %167 = vector.load %arg5[%c9_54, %c0_55, %c0_56] : memref<16x16x72xf32, #tpu.memory_space<vmem>>, vector<1x16x72xf32>
    %168 = vector.shape_cast %167 : vector<1x16x72xf32> to vector<16x72xf32>
    %169 = vector.extract_strided_slice %2 {offsets = [9, 0], sizes = [1, 72], strides = [1, 1]} : vector<16x72xf32> to vector<1x72xf32>
    %170 = vector.extract_strided_slice %4 {offsets = [9, 0], sizes = [1, 72], strides = [1, 1]} : vector<16x72xf32> to vector<1x72xf32>
    %171 = vector.broadcast %169 : vector<1x72xf32> to vector<16x72xf32>
    %172 = arith.mulf %166, %171 : vector<16x72xf32>
    %173 = vector.broadcast %170 : vector<1x72xf32> to vector<16x72xf32>
    %174 = arith.mulf %168, %173 : vector<16x72xf32>
    %175 = arith.subf %172, %174 : vector<16x72xf32>
    %176 = vector.broadcast %170 : vector<1x72xf32> to vector<16x72xf32>
    %177 = arith.mulf %166, %176 : vector<16x72xf32>
    %178 = vector.broadcast %169 : vector<1x72xf32> to vector<16x72xf32>
    %179 = arith.mulf %168, %178 : vector<16x72xf32>
    %180 = arith.addf %177, %179 : vector<16x72xf32>
    %181 = arith.addf %163, %175 : vector<16x72xf32>
    %182 = arith.addf %164, %180 : vector<16x72xf32>
    %c10 = arith.constant 10 : index
    %c0_57 = arith.constant 0 : index
    %c0_58 = arith.constant 0 : index
    %183 = vector.load %arg4[%c10, %c0_57, %c0_58] : memref<16x16x72xf32, #tpu.memory_space<vmem>>, vector<1x16x72xf32>
    %184 = vector.shape_cast %183 : vector<1x16x72xf32> to vector<16x72xf32>
    %c10_59 = arith.constant 10 : index
    %c0_60 = arith.constant 0 : index
    %c0_61 = arith.constant 0 : index
    %185 = vector.load %arg5[%c10_59, %c0_60, %c0_61] : memref<16x16x72xf32, #tpu.memory_space<vmem>>, vector<1x16x72xf32>
    %186 = vector.shape_cast %185 : vector<1x16x72xf32> to vector<16x72xf32>
    %187 = vector.extract_strided_slice %2 {offsets = [10, 0], sizes = [1, 72], strides = [1, 1]} : vector<16x72xf32> to vector<1x72xf32>
    %188 = vector.extract_strided_slice %4 {offsets = [10, 0], sizes = [1, 72], strides = [1, 1]} : vector<16x72xf32> to vector<1x72xf32>
    %189 = vector.broadcast %187 : vector<1x72xf32> to vector<16x72xf32>
    %190 = arith.mulf %184, %189 : vector<16x72xf32>
    %191 = vector.broadcast %188 : vector<1x72xf32> to vector<16x72xf32>
    %192 = arith.mulf %186, %191 : vector<16x72xf32>
    %193 = arith.subf %190, %192 : vector<16x72xf32>
    %194 = vector.broadcast %188 : vector<1x72xf32> to vector<16x72xf32>
    %195 = arith.mulf %184, %194 : vector<16x72xf32>
    %196 = vector.broadcast %187 : vector<1x72xf32> to vector<16x72xf32>
    %197 = arith.mulf %186, %196 : vector<16x72xf32>
    %198 = arith.addf %195, %197 : vector<16x72xf32>
    %199 = arith.addf %181, %193 : vector<16x72xf32>
    %200 = arith.addf %182, %198 : vector<16x72xf32>
    %c11 = arith.constant 11 : index
    %c0_62 = arith.constant 0 : index
    %c0_63 = arith.constant 0 : index
    %201 = vector.load %arg4[%c11, %c0_62, %c0_63] : memref<16x16x72xf32, #tpu.memory_space<vmem>>, vector<1x16x72xf32>
    %202 = vector.shape_cast %201 : vector<1x16x72xf32> to vector<16x72xf32>
    %c11_64 = arith.constant 11 : index
    %c0_65 = arith.constant 0 : index
    %c0_66 = arith.constant 0 : index
    %203 = vector.load %arg5[%c11_64, %c0_65, %c0_66] : memref<16x16x72xf32, #tpu.memory_space<vmem>>, vector<1x16x72xf32>
    %204 = vector.shape_cast %203 : vector<1x16x72xf32> to vector<16x72xf32>
    %205 = vector.extract_strided_slice %2 {offsets = [11, 0], sizes = [1, 72], strides = [1, 1]} : vector<16x72xf32> to vector<1x72xf32>
    %206 = vector.extract_strided_slice %4 {offsets = [11, 0], sizes = [1, 72], strides = [1, 1]} : vector<16x72xf32> to vector<1x72xf32>
    %207 = vector.broadcast %205 : vector<1x72xf32> to vector<16x72xf32>
    %208 = arith.mulf %202, %207 : vector<16x72xf32>
    %209 = vector.broadcast %206 : vector<1x72xf32> to vector<16x72xf32>
    %210 = arith.mulf %204, %209 : vector<16x72xf32>
    %211 = arith.subf %208, %210 : vector<16x72xf32>
    %212 = vector.broadcast %206 : vector<1x72xf32> to vector<16x72xf32>
    %213 = arith.mulf %202, %212 : vector<16x72xf32>
    %214 = vector.broadcast %205 : vector<1x72xf32> to vector<16x72xf32>
    %215 = arith.mulf %204, %214 : vector<16x72xf32>
    %216 = arith.addf %213, %215 : vector<16x72xf32>
    %217 = arith.addf %199, %211 : vector<16x72xf32>
    %218 = arith.addf %200, %216 : vector<16x72xf32>
    %c12 = arith.constant 12 : index
    %c0_67 = arith.constant 0 : index
    %c0_68 = arith.constant 0 : index
    %219 = vector.load %arg4[%c12, %c0_67, %c0_68] : memref<16x16x72xf32, #tpu.memory_space<vmem>>, vector<1x16x72xf32>
    %220 = vector.shape_cast %219 : vector<1x16x72xf32> to vector<16x72xf32>
    %c12_69 = arith.constant 12 : index
    %c0_70 = arith.constant 0 : index
    %c0_71 = arith.constant 0 : index
    %221 = vector.load %arg5[%c12_69, %c0_70, %c0_71] : memref<16x16x72xf32, #tpu.memory_space<vmem>>, vector<1x16x72xf32>
    %222 = vector.shape_cast %221 : vector<1x16x72xf32> to vector<16x72xf32>
    %223 = vector.extract_strided_slice %2 {offsets = [12, 0], sizes = [1, 72], strides = [1, 1]} : vector<16x72xf32> to vector<1x72xf32>
    %224 = vector.extract_strided_slice %4 {offsets = [12, 0], sizes = [1, 72], strides = [1, 1]} : vector<16x72xf32> to vector<1x72xf32>
    %225 = vector.broadcast %223 : vector<1x72xf32> to vector<16x72xf32>
    %226 = arith.mulf %220, %225 : vector<16x72xf32>
    %227 = vector.broadcast %224 : vector<1x72xf32> to vector<16x72xf32>
    %228 = arith.mulf %222, %227 : vector<16x72xf32>
    %229 = arith.subf %226, %228 : vector<16x72xf32>
    %230 = vector.broadcast %224 : vector<1x72xf32> to vector<16x72xf32>
    %231 = arith.mulf %220, %230 : vector<16x72xf32>
    %232 = vector.broadcast %223 : vector<1x72xf32> to vector<16x72xf32>
    %233 = arith.mulf %222, %232 : vector<16x72xf32>
    %234 = arith.addf %231, %233 : vector<16x72xf32>
    %235 = arith.addf %217, %229 : vector<16x72xf32>
    %236 = arith.addf %218, %234 : vector<16x72xf32>
    %c13 = arith.constant 13 : index
    %c0_72 = arith.constant 0 : index
    %c0_73 = arith.constant 0 : index
    %237 = vector.load %arg4[%c13, %c0_72, %c0_73] : memref<16x16x72xf32, #tpu.memory_space<vmem>>, vector<1x16x72xf32>
    %238 = vector.shape_cast %237 : vector<1x16x72xf32> to vector<16x72xf32>
    %c13_74 = arith.constant 13 : index
    %c0_75 = arith.constant 0 : index
    %c0_76 = arith.constant 0 : index
    %239 = vector.load %arg5[%c13_74, %c0_75, %c0_76] : memref<16x16x72xf32, #tpu.memory_space<vmem>>, vector<1x16x72xf32>
    %240 = vector.shape_cast %239 : vector<1x16x72xf32> to vector<16x72xf32>
    %241 = vector.extract_strided_slice %2 {offsets = [13, 0], sizes = [1, 72], strides = [1, 1]} : vector<16x72xf32> to vector<1x72xf32>
    %242 = vector.extract_strided_slice %4 {offsets = [13, 0], sizes = [1, 72], strides = [1, 1]} : vector<16x72xf32> to vector<1x72xf32>
    %243 = vector.broadcast %241 : vector<1x72xf32> to vector<16x72xf32>
    %244 = arith.mulf %238, %243 : vector<16x72xf32>
    %245 = vector.broadcast %242 : vector<1x72xf32> to vector<16x72xf32>
    %246 = arith.mulf %240, %245 : vector<16x72xf32>
    %247 = arith.subf %244, %246 : vector<16x72xf32>
    %248 = vector.broadcast %242 : vector<1x72xf32> to vector<16x72xf32>
    %249 = arith.mulf %238, %248 : vector<16x72xf32>
    %250 = vector.broadcast %241 : vector<1x72xf32> to vector<16x72xf32>
    %251 = arith.mulf %240, %250 : vector<16x72xf32>
    %252 = arith.addf %249, %251 : vector<16x72xf32>
    %253 = arith.addf %235, %247 : vector<16x72xf32>
    %254 = arith.addf %236, %252 : vector<16x72xf32>
    %c14 = arith.constant 14 : index
    %c0_77 = arith.constant 0 : index
    %c0_78 = arith.constant 0 : index
    %255 = vector.load %arg4[%c14, %c0_77, %c0_78] : memref<16x16x72xf32, #tpu.memory_space<vmem>>, vector<1x16x72xf32>
    %256 = vector.shape_cast %255 : vector<1x16x72xf32> to vector<16x72xf32>
    %c14_79 = arith.constant 14 : index
    %c0_80 = arith.constant 0 : index
    %c0_81 = arith.constant 0 : index
    %257 = vector.load %arg5[%c14_79, %c0_80, %c0_81] : memref<16x16x72xf32, #tpu.memory_space<vmem>>, vector<1x16x72xf32>
    %258 = vector.shape_cast %257 : vector<1x16x72xf32> to vector<16x72xf32>
    %259 = vector.extract_strided_slice %2 {offsets = [14, 0], sizes = [1, 72], strides = [1, 1]} : vector<16x72xf32> to vector<1x72xf32>
    %260 = vector.extract_strided_slice %4 {offsets = [14, 0], sizes = [1, 72], strides = [1, 1]} : vector<16x72xf32> to vector<1x72xf32>
    %261 = vector.broadcast %259 : vector<1x72xf32> to vector<16x72xf32>
    %262 = arith.mulf %256, %261 : vector<16x72xf32>
    %263 = vector.broadcast %260 : vector<1x72xf32> to vector<16x72xf32>
    %264 = arith.mulf %258, %263 : vector<16x72xf32>
    %265 = arith.subf %262, %264 : vector<16x72xf32>
    %266 = vector.broadcast %260 : vector<1x72xf32> to vector<16x72xf32>
    %267 = arith.mulf %256, %266 : vector<16x72xf32>
    %268 = vector.broadcast %259 : vector<1x72xf32> to vector<16x72xf32>
    %269 = arith.mulf %258, %268 : vector<16x72xf32>
    %270 = arith.addf %267, %269 : vector<16x72xf32>
    %271 = arith.addf %253, %265 : vector<16x72xf32>
    %272 = arith.addf %254, %270 : vector<16x72xf32>
    %c15 = arith.constant 15 : index
    %c0_82 = arith.constant 0 : index
    %c0_83 = arith.constant 0 : index
    %273 = vector.load %arg4[%c15, %c0_82, %c0_83] : memref<16x16x72xf32, #tpu.memory_space<vmem>>, vector<1x16x72xf32>
    %274 = vector.shape_cast %273 : vector<1x16x72xf32> to vector<16x72xf32>
    %c15_84 = arith.constant 15 : index
    %c0_85 = arith.constant 0 : index
    %c0_86 = arith.constant 0 : index
    %275 = vector.load %arg5[%c15_84, %c0_85, %c0_86] : memref<16x16x72xf32, #tpu.memory_space<vmem>>, vector<1x16x72xf32>
    %276 = vector.shape_cast %275 : vector<1x16x72xf32> to vector<16x72xf32>
    %277 = vector.extract_strided_slice %2 {offsets = [15, 0], sizes = [1, 72], strides = [1, 1]} : vector<16x72xf32> to vector<1x72xf32>
    %278 = vector.extract_strided_slice %4 {offsets = [15, 0], sizes = [1, 72], strides = [1, 1]} : vector<16x72xf32> to vector<1x72xf32>
    %279 = vector.broadcast %277 : vector<1x72xf32> to vector<16x72xf32>
    %280 = arith.mulf %274, %279 : vector<16x72xf32>
    %281 = vector.broadcast %278 : vector<1x72xf32> to vector<16x72xf32>
    %282 = arith.mulf %276, %281 : vector<16x72xf32>
    %283 = arith.subf %280, %282 : vector<16x72xf32>
    %284 = vector.broadcast %278 : vector<1x72xf32> to vector<16x72xf32>
    %285 = arith.mulf %274, %284 : vector<16x72xf32>
    %286 = vector.broadcast %277 : vector<1x72xf32> to vector<16x72xf32>
    %287 = arith.mulf %276, %286 : vector<16x72xf32>
    %288 = arith.addf %285, %287 : vector<16x72xf32>
    %289 = arith.addf %271, %283 : vector<16x72xf32>
    %290 = arith.addf %272, %288 : vector<16x72xf32>
    %c0_87 = arith.constant 0 : index
    %c0_88 = arith.constant 0 : index
    %291 = vector.load %arg6[%c0_87, %c0_88] : memref<72x256xf32, #tpu.memory_space<vmem>>, vector<72x256xf32>
    %cst_89 = arith.constant dense<0.000000e+00> : vector<16x256xf32>
    %292 = tpu.matmul %289, %291, %cst_89 {dimension_numbers = #tpu.dot_dimension_numbers<[1], [0], [0], [1], [0, 0, 1, 1], [], []>} : vector<16x72xf32>, vector<72x256xf32>, vector<16x256xf32> -> vector<16x256xf32>
    %c0_90 = arith.constant 0 : index
    %c0_91 = arith.constant 0 : index
    %293 = vector.load %arg7[%c0_90, %c0_91] : memref<72x256xf32, #tpu.memory_space<vmem>>, vector<72x256xf32>
    %cst_92 = arith.constant dense<0.000000e+00> : vector<16x256xf32>
    %294 = tpu.matmul %290, %293, %cst_92 {dimension_numbers = #tpu.dot_dimension_numbers<[1], [0], [0], [1], [0, 0, 1, 1], [], []>} : vector<16x72xf32>, vector<72x256xf32>, vector<16x256xf32> -> vector<16x256xf32>
    %295 = arith.addf %292, %294 : vector<16x256xf32>
    %c0_93 = arith.constant 0 : index
    %c0_94 = arith.constant 0 : index
    %296 = vector.load %arg8[%c0_93, %c0_94] : memref<16x16xf32, #tpu.memory_space<vmem>>, vector<16x16xf32>
    %cst_95 = arith.constant dense<0.000000e+00> : vector<16x256xf32>
    %297 = tpu.matmul %296, %0, %cst_95 {dimension_numbers = #tpu.dot_dimension_numbers<[1], [0], [0], [1], [0, 0, 1, 1], [], []>} : vector<16x16xf32>, vector<16x256xf32>, vector<16x256xf32> -> vector<16x256xf32>
    %c0_96 = arith.constant 0 : index
    %c0_97 = arith.constant 0 : index
    %298 = vector.load %arg9[%c0_96, %c0_97] : memref<16x1xf32, #tpu.memory_space<vmem>>, vector<16x1xf32>
    %299 = vector.broadcast %298 : vector<16x1xf32> to vector<16x256xf32>
    %300 = arith.addf %297, %299 : vector<16x256xf32>
    %301 = arith.addf %300, %295 : vector<16x256xf32>
    %cst_98 = arith.constant 0.000000e+00 : f32
    %302 = vector.broadcast %cst_98 : f32 to vector<16x256xf32>
    %303 = arith.maximumf %301, %302 : vector<16x256xf32>
    %c0_99 = arith.constant 0 : index
    %c0_100 = arith.constant 0 : index
    %304 = vector.load %arg10[%c0_99, %c0_100] : memref<16x256xf32, #tpu.memory_space<vmem>>, vector<16x256xf32>
    tpu.vector_store %arg10[%c0_99, %c0_100], %303 {strides = array<i32>} : memref<16x256xf32, #tpu.memory_space<vmem>>, vector<16x256xf32>,
    return
  }
  func.func @transform_0(%arg0: i32) -> (i32, i32) {
    %c0_i32 = arith.constant 0 : i32
    %c0_i32_0 = arith.constant 0 : i32
    return %c0_i32, %arg0 : i32, i32
  }
  func.func @transform_1(%arg0: i32) -> (i32, i32) {
    %c0_i32 = arith.constant 0 : i32
    %c0_i32_0 = arith.constant 0 : i32
    %c0_i32_1 = arith.constant 0 : i32
    return %c0_i32, %c0_i32_0 : i32, i32
  }
  func.func @transform_2(%arg0: i32) -> (i32, i32) {
    %c0_i32 = arith.constant 0 : i32
    %c0_i32_0 = arith.constant 0 : i32
    %c0_i32_1 = arith.constant 0 : i32
    return %c0_i32, %c0_i32_0 : i32, i32
  }
  func.func @transform_3(%arg0: i32) -> (i32, i32, i32) {
    %c0_i32 = arith.constant 0 : i32
    %c0_i32_0 = arith.constant 0 : i32
    %c0_i32_1 = arith.constant 0 : i32
    %c0_i32_2 = arith.constant 0 : i32
    return %c0_i32, %c0_i32_0, %c0_i32_1 : i32, i32, i32
  }
  func.func @transform_4(%arg0: i32) -> (i32, i32, i32) {
    %c0_i32 = arith.constant 0 : i32
    %c0_i32_0 = arith.constant 0 : i32
    %c0_i32_1 = arith.constant 0 : i32
    %c0_i32_2 = arith.constant 0 : i32
    return %c0_i32, %c0_i32_0, %c0_i32_1 : i32, i32, i32
  }
  func.func @transform_5(%arg0: i32) -> (i32, i32) {
    %c0_i32 = arith.constant 0 : i32
    %c0_i32_0 = arith.constant 0 : i32
    %c0_i32_1 = arith.constant 0 : i32
    return %c0_i32, %c0_i32_0 : i32, i32
  }
  func.func @transform_6(%arg0: i32) -> (i32, i32) {
    %c0_i32 = arith.constant 0 : i32
    %c0_i32_0 = arith.constant 0 : i32
    %c0_i32_1 = arith.constant 0 : i32
    return %c0_i32, %c0_i32_0 : i32, i32
  }
  func.func @transform_7(%arg0: i32) -> (i32, i32) {
    %c0_i32 = arith.constant 0 : i32
    %c0_i32_0 = arith.constant 0 : i32
    %c0_i32_1 = arith.constant 0 : i32
    return %c0_i32, %c0_i32_0 : i32, i32
  }
  func.func @transform_8(%arg0: i32) -> (i32, i32) {
    %c0_i32 = arith.constant 0 : i32
    %c0_i32_0 = arith.constant 0 : i32
    %c0_i32_1 = arith.constant 0 : i32
    return %c0_i32, %c0_i32_0 : i32, i32
  }
  func.func @transform_9(%arg0: i32) -> (i32, i32) {
    %c0_i32 = arith.constant 0 : i32
    %c0_i32_0 = arith.constant 0 : i32
    return %c0_i32, %arg0 : i32, i32
  }
}

module attributes {stable_mosaic.version = 11 : i64} {
  func.func @_fourier_layer_kernel(%arg0: i32, %arg1: memref<16x256xf32, #tpu.memory_space<vmem>>, %arg2: memref<256x72xf32, #tpu.memory_space<vmem>>, %arg3: memref<256x72xf32, #tpu.memory_space<vmem>>, %arg4: memref<16x16x72xf32, #tpu.memory_space<vmem>>, %arg5: memref<16x16x72xf32, #tpu.memory_space<vmem>>, %arg6: memref<72x256xf32, #tpu.memory_space<vmem>>, %arg7: memref<72x256xf32, #tpu.memory_space<vmem>>, %arg8: memref<16x16xf32, #tpu.memory_space<vmem>>, %arg9: memref<16x1xf32, #tpu.memory_space<vmem>>, %arg10: memref<16x256xf32, #tpu.memory_space<vmem>>) attributes {dimension_semantics = [#tpu.dimension_semantics<parallel>], iteration_bounds = array<i64: 2>, scalar_prefetch = 0 : i64, scratch_operands = 0 : i64, tpu.core_type = #tpu.core_type<tc>, window_params = [{transform_indices = @transform_0, window_bounds = array<i64: 16, 256>}, {pipeline_mode = #tpu.pipeline_mode<synchronous>, transform_indices = @transform_1, window_bounds = array<i64: 256, 72>}, {pipeline_mode = #tpu.pipeline_mode<synchronous>, transform_indices = @transform_2, window_bounds = array<i64: 256, 72>}, {pipeline_mode = #tpu.pipeline_mode<synchronous>, transform_indices = @transform_3, window_bounds = array<i64: 16, 16, 72>}, {pipeline_mode = #tpu.pipeline_mode<synchronous>, transform_indices = @transform_4, window_bounds = array<i64: 16, 16, 72>}, {pipeline_mode = #tpu.pipeline_mode<synchronous>, transform_indices = @transform_5, window_bounds = array<i64: 72, 256>}, {pipeline_mode = #tpu.pipeline_mode<synchronous>, transform_indices = @transform_6, window_bounds = array<i64: 72, 256>}, {pipeline_mode = #tpu.pipeline_mode<synchronous>, transform_indices = @transform_7, window_bounds = array<i64: 16, 16>}, {pipeline_mode = #tpu.pipeline_mode<synchronous>, transform_indices = @transform_8, window_bounds = array<i64: 16, 1>}, {transform_indices = @transform_9, window_bounds = array<i64: 16, 256>}]} {
    %c0 = arith.constant 0 : index
    %c0_0 = arith.constant 0 : index
    %0 = vector.load %arg1[%c0, %c0_0] : memref<16x256xf32, #tpu.memory_space<vmem>>, vector<16x256xf32>
    %c0_1 = arith.constant 0 : index
    %c0_2 = arith.constant 0 : index
    %1 = vector.load %arg2[%c0_1, %c0_2] : memref<256x72xf32, #tpu.memory_space<vmem>>, vector<256x72xf32>
    %cst = arith.constant dense<0.000000e+00> : vector<16x72xf32>
    %2 = tpu.matmul %0, %1, %cst {dimension_numbers = #tpu.dot_dimension_numbers<[1], [0], [0], [1], [0, 0, 1, 1], [], []>} : vector<16x256xf32>, vector<256x72xf32>, vector<16x72xf32> -> vector<16x72xf32>
    %c0_3 = arith.constant 0 : index
    %c0_4 = arith.constant 0 : index
    %3 = vector.load %arg3[%c0_3, %c0_4] : memref<256x72xf32, #tpu.memory_space<vmem>>, vector<256x72xf32>
    %cst_5 = arith.constant dense<0.000000e+00> : vector<16x72xf32>
    %4 = tpu.matmul %0, %3, %cst_5 {dimension_numbers = #tpu.dot_dimension_numbers<[1], [0], [0], [1], [0, 0, 1, 1], [], []>} : vector<16x256xf32>, vector<256x72xf32>, vector<16x72xf32> -> vector<16x72xf32>
    %c0_6 = arith.constant 0 : index
    %c0_7 = arith.constant 0 : index
    %c0_8 = arith.constant 0 : index
    %5 = vector.load %arg4[%c0_6, %c0_7, %c0_8] : memref<16x16x72xf32, #tpu.memory_space<vmem>>, vector<1x16x72xf32>
    %6 = vector.shape_cast %5 : vector<1x16x72xf32> to vector<16x72xf32>
    %c0_9 = arith.constant 0 : index
    %c0_10 = arith.constant 0 : index
    %c0_11 = arith.constant 0 : index
    %7 = vector.load %arg5[%c0_9, %c0_10, %c0_11] : memref<16x16x72xf32, #tpu.memory_space<vmem>>, vector<1x16x72xf32>
    %8 = vector.shape_cast %7 : vector<1x16x72xf32> to vector<16x72xf32>
    %9 = vector.extract_strided_slice %2 {offsets = [0, 0], sizes = [1, 72], strides = [1, 1]} : vector<16x72xf32> to vector<1x72xf32>
    %10 = vector.extract_strided_slice %4 {offsets = [0, 0], sizes = [1, 72], strides = [1, 1]} : vector<16x72xf32> to vector<1x72xf32>
    %11 = vector.broadcast %9 : vector<1x72xf32> to vector<16x72xf32>
    %12 = arith.mulf %6, %11 : vector<16x72xf32>
    %13 = vector.broadcast %10 : vector<1x72xf32> to vector<16x72xf32>
    %14 = arith.mulf %8, %13 : vector<16x72xf32>
    %15 = arith.subf %12, %14 : vector<16x72xf32>
    %16 = vector.broadcast %10 : vector<1x72xf32> to vector<16x72xf32>
    %17 = arith.mulf %6, %16 : vector<16x72xf32>
    %18 = vector.broadcast %9 : vector<1x72xf32> to vector<16x72xf32>
    %19 = arith.mulf %8, %18 : vector<16x72xf32>
    %20 = arith.addf %17, %19 : vector<16x72xf32>
    %c1 = arith.constant 1 : index
    %c0_12 = arith.constant 0 : index
    %c0_13 = arith.constant 0 : index
    %21 = vector.load %arg4[%c1, %c0_12, %c0_13] : memref<16x16x72xf32, #tpu.memory_space<vmem>>, vector<1x16x72xf32>
    %22 = vector.shape_cast %21 : vector<1x16x72xf32> to vector<16x72xf32>
    %c1_14 = arith.constant 1 : index
    %c0_15 = arith.constant 0 : index
    %c0_16 = arith.constant 0 : index
    %23 = vector.load %arg5[%c1_14, %c0_15, %c0_16] : memref<16x16x72xf32, #tpu.memory_space<vmem>>, vector<1x16x72xf32>
    %24 = vector.shape_cast %23 : vector<1x16x72xf32> to vector<16x72xf32>
    %25 = vector.extract_strided_slice %2 {offsets = [1, 0], sizes = [1, 72], strides = [1, 1]} : vector<16x72xf32> to vector<1x72xf32>
    %26 = vector.extract_strided_slice %4 {offsets = [1, 0], sizes = [1, 72], strides = [1, 1]} : vector<16x72xf32> to vector<1x72xf32>
    %27 = vector.broadcast %25 : vector<1x72xf32> to vector<16x72xf32>
    %28 = arith.mulf %22, %27 : vector<16x72xf32>
    %29 = vector.broadcast %26 : vector<1x72xf32> to vector<16x72xf32>
    %30 = arith.mulf %24, %29 : vector<16x72xf32>
    %31 = arith.subf %28, %30 : vector<16x72xf32>
    %32 = vector.broadcast %26 : vector<1x72xf32> to vector<16x72xf32>
    %33 = arith.mulf %22, %32 : vector<16x72xf32>
    %34 = vector.broadcast %25 : vector<1x72xf32> to vector<16x72xf32>
    %35 = arith.mulf %24, %34 : vector<16x72xf32>
    %36 = arith.addf %33, %35 : vector<16x72xf32>
    %37 = arith.addf %15, %31 : vector<16x72xf32>
    %38 = arith.addf %20, %36 : vector<16x72xf32>
    %c2 = arith.constant 2 : index
    %c0_17 = arith.constant 0 : index
    %c0_18 = arith.constant 0 : index
    %39 = vector.load %arg4[%c2, %c0_17, %c0_18] : memref<16x16x72xf32, #tpu.memory_space<vmem>>, vector<1x16x72xf32>
    %40 = vector.shape_cast %39 : vector<1x16x72xf32> to vector<16x72xf32>
    %c2_19 = arith.constant 2 : index
    %c0_20 = arith.constant 0 : index
    %c0_21 = arith.constant 0 : index
    %41 = vector.load %arg5[%c2_19, %c0_20, %c0_21] : memref<16x16x72xf32, #tpu.memory_space<vmem>>, vector<1x16x72xf32>
    %42 = vector.shape_cast %41 : vector<1x16x72xf32> to vector<16x72xf32>
    %43 = vector.extract_strided_slice %2 {offsets = [2, 0], sizes = [1, 72], strides = [1, 1]} : vector<16x72xf32> to vector<1x72xf32>
    %44 = vector.extract_strided_slice %4 {offsets = [2, 0], sizes = [1, 72], strides = [1, 1]} : vector<16x72xf32> to vector<1x72xf32>
    %45 = vector.broadcast %43 : vector<1x72xf32> to vector<16x72xf32>
    %46 = arith.mulf %40, %45 : vector<16x72xf32>
    %47 = vector.broadcast %44 : vector<1x72xf32> to vector<16x72xf32>
    %48 = arith.mulf %42, %47 : vector<16x72xf32>
    %49 = arith.subf %46, %48 : vector<16x72xf32>
    %50 = vector.broadcast %44 : vector<1x72xf32> to vector<16x72xf32>
    %51 = arith.mulf %40, %50 : vector<16x72xf32>
    %52 = vector.broadcast %43 : vector<1x72xf32> to vector<16x72xf32>
    %53 = arith.mulf %42, %52 : vector<16x72xf32>
    %54 = arith.addf %51, %53 : vector<16x72xf32>
    %55 = arith.addf %37, %49 : vector<16x72xf32>
    %56 = arith.addf %38, %54 : vector<16x72xf32>
    %c3 = arith.constant 3 : index
    %c0_22 = arith.constant 0 : index
    %c0_23 = arith.constant 0 : index
    %57 = vector.load %arg4[%c3, %c0_22, %c0_23] : memref<16x16x72xf32, #tpu.memory_space<vmem>>, vector<1x16x72xf32>
    %58 = vector.shape_cast %57 : vector<1x16x72xf32> to vector<16x72xf32>
    %c3_24 = arith.constant 3 : index
    %c0_25 = arith.constant 0 : index
    %c0_26 = arith.constant 0 : index
    %59 = vector.load %arg5[%c3_24, %c0_25, %c0_26] : memref<16x16x72xf32, #tpu.memory_space<vmem>>, vector<1x16x72xf32>
    %60 = vector.shape_cast %59 : vector<1x16x72xf32> to vector<16x72xf32>
    %61 = vector.extract_strided_slice %2 {offsets = [3, 0], sizes = [1, 72], strides = [1, 1]} : vector<16x72xf32> to vector<1x72xf32>
    %62 = vector.extract_strided_slice %4 {offsets = [3, 0], sizes = [1, 72], strides = [1, 1]} : vector<16x72xf32> to vector<1x72xf32>
    %63 = vector.broadcast %61 : vector<1x72xf32> to vector<16x72xf32>
    %64 = arith.mulf %58, %63 : vector<16x72xf32>
    %65 = vector.broadcast %62 : vector<1x72xf32> to vector<16x72xf32>
    %66 = arith.mulf %60, %65 : vector<16x72xf32>
    %67 = arith.subf %64, %66 : vector<16x72xf32>
    %68 = vector.broadcast %62 : vector<1x72xf32> to vector<16x72xf32>
    %69 = arith.mulf %58, %68 : vector<16x72xf32>
    %70 = vector.broadcast %61 : vector<1x72xf32> to vector<16x72xf32>
    %71 = arith.mulf %60, %70 : vector<16x72xf32>
    %72 = arith.addf %69, %71 : vector<16x72xf32>
    %73 = arith.addf %55, %67 : vector<16x72xf32>
    %74 = arith.addf %56, %72 : vector<16x72xf32>
    %c4 = arith.constant 4 : index
    %c0_27 = arith.constant 0 : index
    %c0_28 = arith.constant 0 : index
    %75 = vector.load %arg4[%c4, %c0_27, %c0_28] : memref<16x16x72xf32, #tpu.memory_space<vmem>>, vector<1x16x72xf32>
    %76 = vector.shape_cast %75 : vector<1x16x72xf32> to vector<16x72xf32>
    %c4_29 = arith.constant 4 : index
    %c0_30 = arith.constant 0 : index
    %c0_31 = arith.constant 0 : index
    %77 = vector.load %arg5[%c4_29, %c0_30, %c0_31] : memref<16x16x72xf32, #tpu.memory_space<vmem>>, vector<1x16x72xf32>
    %78 = vector.shape_cast %77 : vector<1x16x72xf32> to vector<16x72xf32>
    %79 = vector.extract_strided_slice %2 {offsets = [4, 0], sizes = [1, 72], strides = [1, 1]} : vector<16x72xf32> to vector<1x72xf32>
    %80 = vector.extract_strided_slice %4 {offsets = [4, 0], sizes = [1, 72], strides = [1, 1]} : vector<16x72xf32> to vector<1x72xf32>
    %81 = vector.broadcast %79 : vector<1x72xf32> to vector<16x72xf32>
    %82 = arith.mulf %76, %81 : vector<16x72xf32>
    %83 = vector.broadcast %80 : vector<1x72xf32> to vector<16x72xf32>
    %84 = arith.mulf %78, %83 : vector<16x72xf32>
    %85 = arith.subf %82, %84 : vector<16x72xf32>
    %86 = vector.broadcast %80 : vector<1x72xf32> to vector<16x72xf32>
    %87 = arith.mulf %76, %86 : vector<16x72xf32>
    %88 = vector.broadcast %79 : vector<1x72xf32> to vector<16x72xf32>
    %89 = arith.mulf %78, %88 : vector<16x72xf32>
    %90 = arith.addf %87, %89 : vector<16x72xf32>
    %91 = arith.addf %73, %85 : vector<16x72xf32>
    %92 = arith.addf %74, %90 : vector<16x72xf32>
    %c5 = arith.constant 5 : index
    %c0_32 = arith.constant 0 : index
    %c0_33 = arith.constant 0 : index
    %93 = vector.load %arg4[%c5, %c0_32, %c0_33] : memref<16x16x72xf32, #tpu.memory_space<vmem>>, vector<1x16x72xf32>
    %94 = vector.shape_cast %93 : vector<1x16x72xf32> to vector<16x72xf32>
    %c5_34 = arith.constant 5 : index
    %c0_35 = arith.constant 0 : index
    %c0_36 = arith.constant 0 : index
    %95 = vector.load %arg5[%c5_34, %c0_35, %c0_36] : memref<16x16x72xf32, #tpu.memory_space<vmem>>, vector<1x16x72xf32>
    %96 = vector.shape_cast %95 : vector<1x16x72xf32> to vector<16x72xf32>
    %97 = vector.extract_strided_slice %2 {offsets = [5, 0], sizes = [1, 72], strides = [1, 1]} : vector<16x72xf32> to vector<1x72xf32>
    %98 = vector.extract_strided_slice %4 {offsets = [5, 0], sizes = [1, 72], strides = [1, 1]} : vector<16x72xf32> to vector<1x72xf32>
    %99 = vector.broadcast %97 : vector<1x72xf32> to vector<16x72xf32>
    %100 = arith.mulf %94, %99 : vector<16x72xf32>
    %101 = vector.broadcast %98 : vector<1x72xf32> to vector<16x72xf32>
    %102 = arith.mulf %96, %101 : vector<16x72xf32>
    %103 = arith.subf %100, %102 : vector<16x72xf32>
    %104 = vector.broadcast %98 : vector<1x72xf32> to vector<16x72xf32>
    %105 = arith.mulf %94, %104 : vector<16x72xf32>
    %106 = vector.broadcast %97 : vector<1x72xf32> to vector<16x72xf32>
    %107 = arith.mulf %96, %106 : vector<16x72xf32>
    %108 = arith.addf %105, %107 : vector<16x72xf32>
    %109 = arith.addf %91, %103 : vector<16x72xf32>
    %110 = arith.addf %92, %108 : vector<16x72xf32>
    %c6 = arith.constant 6 : index
    %c0_37 = arith.constant 0 : index
    %c0_38 = arith.constant 0 : index
    %111 = vector.load %arg4[%c6, %c0_37, %c0_38] : memref<16x16x72xf32, #tpu.memory_space<vmem>>, vector<1x16x72xf32>
    %112 = vector.shape_cast %111 : vector<1x16x72xf32> to vector<16x72xf32>
    %c6_39 = arith.constant 6 : index
    %c0_40 = arith.constant 0 : index
    %c0_41 = arith.constant 0 : index
    %113 = vector.load %arg5[%c6_39, %c0_40, %c0_41] : memref<16x16x72xf32, #tpu.memory_space<vmem>>, vector<1x16x72xf32>
    %114 = vector.shape_cast %113 : vector<1x16x72xf32> to vector<16x72xf32>
    %115 = vector.extract_strided_slice %2 {offsets = [6, 0], sizes = [1, 72], strides = [1, 1]} : vector<16x72xf32> to vector<1x72xf32>
    %116 = vector.extract_strided_slice %4 {offsets = [6, 0], sizes = [1, 72], strides = [1, 1]} : vector<16x72xf32> to vector<1x72xf32>
    %117 = vector.broadcast %115 : vector<1x72xf32> to vector<16x72xf32>
    %118 = arith.mulf %112, %117 : vector<16x72xf32>
    %119 = vector.broadcast %116 : vector<1x72xf32> to vector<16x72xf32>
    %120 = arith.mulf %114, %119 : vector<16x72xf32>
    %121 = arith.subf %118, %120 : vector<16x72xf32>
    %122 = vector.broadcast %116 : vector<1x72xf32> to vector<16x72xf32>
    %123 = arith.mulf %112, %122 : vector<16x72xf32>
    %124 = vector.broadcast %115 : vector<1x72xf32> to vector<16x72xf32>
    %125 = arith.mulf %114, %124 : vector<16x72xf32>
    %126 = arith.addf %123, %125 : vector<16x72xf32>
    %127 = arith.addf %109, %121 : vector<16x72xf32>
    %128 = arith.addf %110, %126 : vector<16x72xf32>
    %c7 = arith.constant 7 : index
    %c0_42 = arith.constant 0 : index
    %c0_43 = arith.constant 0 : index
    %129 = vector.load %arg4[%c7, %c0_42, %c0_43] : memref<16x16x72xf32, #tpu.memory_space<vmem>>, vector<1x16x72xf32>
    %130 = vector.shape_cast %129 : vector<1x16x72xf32> to vector<16x72xf32>
    %c7_44 = arith.constant 7 : index
    %c0_45 = arith.constant 0 : index
    %c0_46 = arith.constant 0 : index
    %131 = vector.load %arg5[%c7_44, %c0_45, %c0_46] : memref<16x16x72xf32, #tpu.memory_space<vmem>>, vector<1x16x72xf32>
    %132 = vector.shape_cast %131 : vector<1x16x72xf32> to vector<16x72xf32>
    %133 = vector.extract_strided_slice %2 {offsets = [7, 0], sizes = [1, 72], strides = [1, 1]} : vector<16x72xf32> to vector<1x72xf32>
    %134 = vector.extract_strided_slice %4 {offsets = [7, 0], sizes = [1, 72], strides = [1, 1]} : vector<16x72xf32> to vector<1x72xf32>
    %135 = vector.broadcast %133 : vector<1x72xf32> to vector<16x72xf32>
    %136 = arith.mulf %130, %135 : vector<16x72xf32>
    %137 = vector.broadcast %134 : vector<1x72xf32> to vector<16x72xf32>
    %138 = arith.mulf %132, %137 : vector<16x72xf32>
    %139 = arith.subf %136, %138 : vector<16x72xf32>
    %140 = vector.broadcast %134 : vector<1x72xf32> to vector<16x72xf32>
    %141 = arith.mulf %130, %140 : vector<16x72xf32>
    %142 = vector.broadcast %133 : vector<1x72xf32> to vector<16x72xf32>
    %143 = arith.mulf %132, %142 : vector<16x72xf32>
    %144 = arith.addf %141, %143 : vector<16x72xf32>
    %145 = arith.addf %127, %139 : vector<16x72xf32>
    %146 = arith.addf %128, %144 : vector<16x72xf32>
    %c8 = arith.constant 8 : index
    %c0_47 = arith.constant 0 : index
    %c0_48 = arith.constant 0 : index
    %147 = vector.load %arg4[%c8, %c0_47, %c0_48] : memref<16x16x72xf32, #tpu.memory_space<vmem>>, vector<1x16x72xf32>
    %148 = vector.shape_cast %147 : vector<1x16x72xf32> to vector<16x72xf32>
    %c8_49 = arith.constant 8 : index
    %c0_50 = arith.constant 0 : index
    %c0_51 = arith.constant 0 : index
    %149 = vector.load %arg5[%c8_49, %c0_50, %c0_51] : memref<16x16x72xf32, #tpu.memory_space<vmem>>, vector<1x16x72xf32>
    %150 = vector.shape_cast %149 : vector<1x16x72xf32> to vector<16x72xf32>
    %151 = vector.extract_strided_slice %2 {offsets = [8, 0], sizes = [1, 72], strides = [1, 1]} : vector<16x72xf32> to vector<1x72xf32>
    %152 = vector.extract_strided_slice %4 {offsets = [8, 0], sizes = [1, 72], strides = [1, 1]} : vector<16x72xf32> to vector<1x72xf32>
    %153 = vector.broadcast %151 : vector<1x72xf32> to vector<16x72xf32>
    %154 = arith.mulf %148, %153 : vector<16x72xf32>
    %155 = vector.broadcast %152 : vector<1x72xf32> to vector<16x72xf32>
    %156 = arith.mulf %150, %155 : vector<16x72xf32>
    %157 = arith.subf %154, %156 : vector<16x72xf32>
    %158 = vector.broadcast %152 : vector<1x72xf32> to vector<16x72xf32>
    %159 = arith.mulf %148, %158 : vector<16x72xf32>
    %160 = vector.broadcast %151 : vector<1x72xf32> to vector<16x72xf32>
    %161 = arith.mulf %150, %160 : vector<16x72xf32>
    %162 = arith.addf %159, %161 : vector<16x72xf32>
    %163 = arith.addf %145, %157 : vector<16x72xf32>
    %164 = arith.addf %146, %162 : vector<16x72xf32>
    %c9 = arith.constant 9 : index
    %c0_52 = arith.constant 0 : index
    %c0_53 = arith.constant 0 : index
    %165 = vector.load %arg4[%c9, %c0_52, %c0_53] : memref<16x16x72xf32, #tpu.memory_space<vmem>>, vector<1x16x72xf32>
    %166 = vector.shape_cast %165 : vector<1x16x72xf32> to vector<16x72xf32>
    %c9_54 = arith.constant 9 : index
    %c0_55 = arith.constant 0 : index
    %c0_56 = arith.constant 0 : index
    %167 = vector.load %arg5[%c9_54, %c0_55, %c0_56] : memref<16x16x72xf32, #tpu.memory_space<vmem>>, vector<1x16x72xf32>
    %168 = vector.shape_cast %167 : vector<1x16x72xf32> to vector<16x72xf32>
    %169 = vector.extract_strided_slice %2 {offsets = [9, 0], sizes = [1, 72], strides = [1, 1]} : vector<16x72xf32> to vector<1x72xf32>
    %170 = vector.extract_strided_slice %4 {offsets = [9, 0], sizes = [1, 72], strides = [1, 1]} : vector<16x72xf32> to vector<1x72xf32>
    %171 = vector.broadcast %169 : vector<1x72xf32> to vector<16x72xf32>
    %172 = arith.mulf %166, %171 : vector<16x72xf32>
    %173 = vector.broadcast %170 : vector<1x72xf32> to vector<16x72xf32>
    %174 = arith.mulf %168, %173 : vector<16x72xf32>
    %175 = arith.subf %172, %174 : vector<16x72xf32>
    %176 = vector.broadcast %170 : vector<1x72xf32> to vector<16x72xf32>
    %177 = arith.mulf %166, %176 : vector<16x72xf32>
    %178 = vector.broadcast %169 : vector<1x72xf32> to vector<16x72xf32>
    %179 = arith.mulf %168, %178 : vector<16x72xf32>
    %180 = arith.addf %177, %179 : vector<16x72xf32>
    %181 = arith.addf %163, %175 : vector<16x72xf32>
    %182 = arith.addf %164, %180 : vector<16x72xf32>
    %c10 = arith.constant 10 : index
    %c0_57 = arith.constant 0 : index
    %c0_58 = arith.constant 0 : index
    %183 = vector.load %arg4[%c10, %c0_57, %c0_58] : memref<16x16x72xf32, #tpu.memory_space<vmem>>, vector<1x16x72xf32>
    %184 = vector.shape_cast %183 : vector<1x16x72xf32> to vector<16x72xf32>
    %c10_59 = arith.constant 10 : index
    %c0_60 = arith.constant 0 : index
    %c0_61 = arith.constant 0 : index
    %185 = vector.load %arg5[%c10_59, %c0_60, %c0_61] : memref<16x16x72xf32, #tpu.memory_space<vmem>>, vector<1x16x72xf32>
    %186 = vector.shape_cast %185 : vector<1x16x72xf32> to vector<16x72xf32>
    %187 = vector.extract_strided_slice %2 {offsets = [10, 0], sizes = [1, 72], strides = [1, 1]} : vector<16x72xf32> to vector<1x72xf32>
    %188 = vector.extract_strided_slice %4 {offsets = [10, 0], sizes = [1, 72], strides = [1, 1]} : vector<16x72xf32> to vector<1x72xf32>
    %189 = vector.broadcast %187 : vector<1x72xf32> to vector<16x72xf32>
    %190 = arith.mulf %184, %189 : vector<16x72xf32>
    %191 = vector.broadcast %188 : vector<1x72xf32> to vector<16x72xf32>
    %192 = arith.mulf %186, %191 : vector<16x72xf32>
    %193 = arith.subf %190, %192 : vector<16x72xf32>
    %194 = vector.broadcast %188 : vector<1x72xf32> to vector<16x72xf32>
    %195 = arith.mulf %184, %194 : vector<16x72xf32>
    %196 = vector.broadcast %187 : vector<1x72xf32> to vector<16x72xf32>
    %197 = arith.mulf %186, %196 : vector<16x72xf32>
    %198 = arith.addf %195, %197 : vector<16x72xf32>
    %199 = arith.addf %181, %193 : vector<16x72xf32>
    %200 = arith.addf %182, %198 : vector<16x72xf32>
    %c11 = arith.constant 11 : index
    %c0_62 = arith.constant 0 : index
    %c0_63 = arith.constant 0 : index
    %201 = vector.load %arg4[%c11, %c0_62, %c0_63] : memref<16x16x72xf32, #tpu.memory_space<vmem>>, vector<1x16x72xf32>
    %202 = vector.shape_cast %201 : vector<1x16x72xf32> to vector<16x72xf32>
    %c11_64 = arith.constant 11 : index
    %c0_65 = arith.constant 0 : index
    %c0_66 = arith.constant 0 : index
    %203 = vector.load %arg5[%c11_64, %c0_65, %c0_66] : memref<16x16x72xf32, #tpu.memory_space<vmem>>, vector<1x16x72xf32>
    %204 = vector.shape_cast %203 : vector<1x16x72xf32> to vector<16x72xf32>
    %205 = vector.extract_strided_slice %2 {offsets = [11, 0], sizes = [1, 72], strides = [1, 1]} : vector<16x72xf32> to vector<1x72xf32>
    %206 = vector.extract_strided_slice %4 {offsets = [11, 0], sizes = [1, 72], strides = [1, 1]} : vector<16x72xf32> to vector<1x72xf32>
    %207 = vector.broadcast %205 : vector<1x72xf32> to vector<16x72xf32>
    %208 = arith.mulf %202, %207 : vector<16x72xf32>
    %209 = vector.broadcast %206 : vector<1x72xf32> to vector<16x72xf32>
    %210 = arith.mulf %204, %209 : vector<16x72xf32>
    %211 = arith.subf %208, %210 : vector<16x72xf32>
    %212 = vector.broadcast %206 : vector<1x72xf32> to vector<16x72xf32>
    %213 = arith.mulf %202, %212 : vector<16x72xf32>
    %214 = vector.broadcast %205 : vector<1x72xf32> to vector<16x72xf32>
    %215 = arith.mulf %204, %214 : vector<16x72xf32>
    %216 = arith.addf %213, %215 : vector<16x72xf32>
    %217 = arith.addf %199, %211 : vector<16x72xf32>
    %218 = arith.addf %200, %216 : vector<16x72xf32>
    %c12 = arith.constant 12 : index
    %c0_67 = arith.constant 0 : index
    %c0_68 = arith.constant 0 : index
    %219 = vector.load %arg4[%c12, %c0_67, %c0_68] : memref<16x16x72xf32, #tpu.memory_space<vmem>>, vector<1x16x72xf32>
    %220 = vector.shape_cast %219 : vector<1x16x72xf32> to vector<16x72xf32>
    %c12_69 = arith.constant 12 : index
    %c0_70 = arith.constant 0 : index
    %c0_71 = arith.constant 0 : index
    %221 = vector.load %arg5[%c12_69, %c0_70, %c0_71] : memref<16x16x72xf32, #tpu.memory_space<vmem>>, vector<1x16x72xf32>
    %222 = vector.shape_cast %221 : vector<1x16x72xf32> to vector<16x72xf32>
    %223 = vector.extract_strided_slice %2 {offsets = [12, 0], sizes = [1, 72], strides = [1, 1]} : vector<16x72xf32> to vector<1x72xf32>
    %224 = vector.extract_strided_slice %4 {offsets = [12, 0], sizes = [1, 72], strides = [1, 1]} : vector<16x72xf32> to vector<1x72xf32>
    %225 = vector.broadcast %223 : vector<1x72xf32> to vector<16x72xf32>
    %226 = arith.mulf %220, %225 : vector<16x72xf32>
    %227 = vector.broadcast %224 : vector<1x72xf32> to vector<16x72xf32>
    %228 = arith.mulf %222, %227 : vector<16x72xf32>
    %229 = arith.subf %226, %228 : vector<16x72xf32>
    %230 = vector.broadcast %224 : vector<1x72xf32> to vector<16x72xf32>
    %231 = arith.mulf %220, %230 : vector<16x72xf32>
    %232 = vector.broadcast %223 : vector<1x72xf32> to vector<16x72xf32>
    %233 = arith.mulf %222, %232 : vector<16x72xf32>
    %234 = arith.addf %231, %233 : vector<16x72xf32>
    %235 = arith.addf %217, %229 : vector<16x72xf32>
    %236 = arith.addf %218, %234 : vector<16x72xf32>
    %c13 = arith.constant 13 : index
    %c0_72 = arith.constant 0 : index
    %c0_73 = arith.constant 0 : index
    %237 = vector.load %arg4[%c13, %c0_72, %c0_73] : memref<16x16x72xf32, #tpu.memory_space<vmem>>, vector<1x16x72xf32>
    %238 = vector.shape_cast %237 : vector<1x16x72xf32> to vector<16x72xf32>
    %c13_74 = arith.constant 13 : index
    %c0_75 = arith.constant 0 : index
    %c0_76 = arith.constant 0 : index
    %239 = vector.load %arg5[%c13_74, %c0_75, %c0_76] : memref<16x16x72xf32, #tpu.memory_space<vmem>>, vector<1x16x72xf32>
    %240 = vector.shape_cast %239 : vector<1x16x72xf32> to vector<16x72xf32>
    %241 = vector.extract_strided_slice %2 {offsets = [13, 0], sizes = [1, 72], strides = [1, 1]} : vector<16x72xf32> to vector<1x72xf32>
    %242 = vector.extract_strided_slice %4 {offsets = [13, 0], sizes = [1, 72], strides = [1, 1]} : vector<16x72xf32> to vector<1x72xf32>
    %243 = vector.broadcast %241 : vector<1x72xf32> to vector<16x72xf32>
    %244 = arith.mulf %238, %243 : vector<16x72xf32>
    %245 = vector.broadcast %242 : vector<1x72xf32> to vector<16x72xf32>
    %246 = arith.mulf %240, %245 : vector<16x72xf32>
    %247 = arith.subf %244, %246 : vector<16x72xf32>
    %248 = vector.broadcast %242 : vector<1x72xf32> to vector<16x72xf32>
    %249 = arith.mulf %238, %248 : vector<16x72xf32>
    %250 = vector.broadcast %241 : vector<1x72xf32> to vector<16x72xf32>
    %251 = arith.mulf %240, %250 : vector<16x72xf32>
    %252 = arith.addf %249, %251 : vector<16x72xf32>
    %253 = arith.addf %235, %247 : vector<16x72xf32>
    %254 = arith.addf %236, %252 : vector<16x72xf32>
    %c14 = arith.constant 14 : index
    %c0_77 = arith.constant 0 : index
    %c0_78 = arith.constant 0 : index
    %255 = vector.load %arg4[%c14, %c0_77, %c0_78] : memref<16x16x72xf32, #tpu.memory_space<vmem>>, vector<1x16x72xf32>
    %256 = vector.shape_cast %255 : vector<1x16x72xf32> to vector<16x72xf32>
    %c14_79 = arith.constant 14 : index
    %c0_80 = arith.constant 0 : index
    %c0_81 = arith.constant 0 : index
    %257 = vector.load %arg5[%c14_79, %c0_80, %c0_81] : memref<16x16x72xf32, #tpu.memory_space<vmem>>, vector<1x16x72xf32>
    %258 = vector.shape_cast %257 : vector<1x16x72xf32> to vector<16x72xf32>
    %259 = vector.extract_strided_slice %2 {offsets = [14, 0], sizes = [1, 72], strides = [1, 1]} : vector<16x72xf32> to vector<1x72xf32>
    %260 = vector.extract_strided_slice %4 {offsets = [14, 0], sizes = [1, 72], strides = [1, 1]} : vector<16x72xf32> to vector<1x72xf32>
    %261 = vector.broadcast %259 : vector<1x72xf32> to vector<16x72xf32>
    %262 = arith.mulf %256, %261 : vector<16x72xf32>
    %263 = vector.broadcast %260 : vector<1x72xf32> to vector<16x72xf32>
    %264 = arith.mulf %258, %263 : vector<16x72xf32>
    %265 = arith.subf %262, %264 : vector<16x72xf32>
    %266 = vector.broadcast %260 : vector<1x72xf32> to vector<16x72xf32>
    %267 = arith.mulf %256, %266 : vector<16x72xf32>
    %268 = vector.broadcast %259 : vector<1x72xf32> to vector<16x72xf32>
    %269 = arith.mulf %258, %268 : vector<16x72xf32>
    %270 = arith.addf %267, %269 : vector<16x72xf32>
    %271 = arith.addf %253, %265 : vector<16x72xf32>
    %272 = arith.addf %254, %270 : vector<16x72xf32>
    %c15 = arith.constant 15 : index
    %c0_82 = arith.constant 0 : index
    %c0_83 = arith.constant 0 : index
    %273 = vector.load %arg4[%c15, %c0_82, %c0_83] : memref<16x16x72xf32, #tpu.memory_space<vmem>>, vector<1x16x72xf32>
    %274 = vector.shape_cast %273 : vector<1x16x72xf32> to vector<16x72xf32>
    %c15_84 = arith.constant 15 : index
    %c0_85 = arith.constant 0 : index
    %c0_86 = arith.constant 0 : index
    %275 = vector.load %arg5[%c15_84, %c0_85, %c0_86] : memref<16x16x72xf32, #tpu.memory_space<vmem>>, vector<1x16x72xf32>
    %276 = vector.shape_cast %275 : vector<1x16x72xf32> to vector<16x72xf32>
    %277 = vector.extract_strided_slice %2 {offsets = [15, 0], sizes = [1, 72], strides = [1, 1]} : vector<16x72xf32> to vector<1x72xf32>
    %278 = vector.extract_strided_slice %4 {offsets = [15, 0], sizes = [1, 72], strides = [1, 1]} : vector<16x72xf32> to vector<1x72xf32>
    %279 = vector.broadcast %277 : vector<1x72xf32> to vector<16x72xf32>
    %280 = arith.mulf %274, %279 : vector<16x72xf32>
    %281 = vector.broadcast %278 : vector<1x72xf32> to vector<16x72xf32>
    %282 = arith.mulf %276, %281 : vector<16x72xf32>
    %283 = arith.subf %280, %282 : vector<16x72xf32>
    %284 = vector.broadcast %278 : vector<1x72xf32> to vector<16x72xf32>
    %285 = arith.mulf %274, %284 : vector<16x72xf32>
    %286 = vector.broadcast %277 : vector<1x72xf32> to vector<16x72xf32>
    %287 = arith.mulf %276, %286 : vector<16x72xf32>
    %288 = arith.addf %285, %287 : vector<16x72xf32>
    %289 = arith.addf %271, %283 : vector<16x72xf32>
    %290 = arith.addf %272, %288 : vector<16x72xf32>
    %c0_87 = arith.constant 0 : index
    %c0_88 = arith.constant 0 : index
    %291 = vector.load %arg6[%c0_87, %c0_88] : memref<72x256xf32, #tpu.memory_space<vmem>>, vector<72x256xf32>
    %cst_89 = arith.constant dense<0.000000e+00> : vector<16x256xf32>
    %292 = tpu.matmul %289, %291, %cst_89 {dimension_numbers = #tpu.dot_dimension_numbers<[1], [0], [0], [1], [0, 0, 1, 1], [], []>} : vector<16x72xf32>, vector<72x256xf32>, vector<16x256xf32> -> vector<16x256xf32>
    %c0_90 = arith.constant 0 : index
    %c0_91 = arith.constant 0 : index
    %293 = vector.load %arg7[%c0_90, %c0_91] : memref<72x256xf32, #tpu.memory_space<vmem>>, vector<72x256xf32>
    %cst_92 = arith.constant dense<0.000000e+00> : vector<16x256xf32>
    %294 = tpu.matmul %290, %293, %cst_92 {dimension_numbers = #tpu.dot_dimension_numbers<[1], [0], [0], [1], [0, 0, 1, 1], [], []>} : vector<16x72xf32>, vector<72x256xf32>, vector<16x256xf32> -> vector<16x256xf32>
    %295 = arith.addf %292, %294 : vector<16x256xf32>
    %c0_93 = arith.constant 0 : index
    %c0_94 = arith.constant 0 : index
    %296 = vector.load %arg8[%c0_93, %c0_94] : memref<16x16xf32, #tpu.memory_space<vmem>>, vector<16x16xf32>
    %cst_95 = arith.constant dense<0.000000e+00> : vector<16x256xf32>
    %297 = tpu.matmul %296, %0, %cst_95 {dimension_numbers = #tpu.dot_dimension_numbers<[1], [0], [0], [1], [0, 0, 1, 1], [], []>} : vector<16x16xf32>, vector<16x256xf32>, vector<16x256xf32> -> vector<16x256xf32>
    %c0_96 = arith.constant 0 : index
    %c0_97 = arith.constant 0 : index
    %298 = vector.load %arg9[%c0_96, %c0_97] : memref<16x1xf32, #tpu.memory_space<vmem>>, vector<16x1xf32>
    %299 = vector.broadcast %298 : vector<16x1xf32> to vector<16x256xf32>
    %300 = arith.addf %297, %299 : vector<16x256xf32>
    %301 = arith.addf %300, %295 : vector<16x256xf32>
    %cst_98 = arith.constant 0.000000e+00 : f32
    %302 = vector.broadcast %cst_98 : f32 to vector<16x256xf32>
    %303 = arith.maximumf %301, %302 : vector<16x256xf32>
    %c0_99 = arith.constant 0 : index
    %c0_100 = arith.constant 0 : index
    %304 = vector.load %arg10[%c0_99, %c0_100] : memref<16x256xf32, #tpu.memory_space<vmem>>, vector<16x256xf32>
    tpu.vector_store %arg10[%c0_99, %c0_100], %303 {strides = array<i32>} : memref<16x256xf32, #tpu.memory_space<vmem>>, vector<16x256xf32>,
    return
  }
  func.func @transform_0(%arg0: i32) -> (i32, i32) {
    %c0_i32 = arith.constant 0 : i32
    %c0_i32_0 = arith.constant 0 : i32
    return %c0_i32, %arg0 : i32, i32
  }
  func.func @transform_1(%arg0: i32) -> (i32, i32) {
    %c0_i32 = arith.constant 0 : i32
    %c0_i32_0 = arith.constant 0 : i32
    %c0_i32_1 = arith.constant 0 : i32
    return %c0_i32, %c0_i32_0 : i32, i32
  }
  func.func @transform_2(%arg0: i32) -> (i32, i32) {
    %c0_i32 = arith.constant 0 : i32
    %c0_i32_0 = arith.constant 0 : i32
    %c0_i32_1 = arith.constant 0 : i32
    return %c0_i32, %c0_i32_0 : i32, i32
  }
  func.func @transform_3(%arg0: i32) -> (i32, i32, i32) {
    %c0_i32 = arith.constant 0 : i32
    %c0_i32_0 = arith.constant 0 : i32
    %c0_i32_1 = arith.constant 0 : i32
    %c0_i32_2 = arith.constant 0 : i32
    return %c0_i32, %c0_i32_0, %c0_i32_1 : i32, i32, i32
  }
  func.func @transform_4(%arg0: i32) -> (i32, i32, i32) {
    %c0_i32 = arith.constant 0 : i32
    %c0_i32_0 = arith.constant 0 : i32
    %c0_i32_1 = arith.constant 0 : i32
    %c0_i32_2 = arith.constant 0 : i32
    return %c0_i32, %c0_i32_0, %c0_i32_1 : i32, i32, i32
  }
  func.func @transform_5(%arg0: i32) -> (i32, i32) {
    %c0_i32 = arith.constant 0 : i32
    %c0_i32_0 = arith.constant 0 : i32
    %c0_i32_1 = arith.constant 0 : i32
    return %c0_i32, %c0_i32_0 : i32, i32
  }
  func.func @transform_6(%arg0: i32) -> (i32, i32) {
    %c0_i32 = arith.constant 0 : i32
    %c0_i32_0 = arith.constant 0 : i32
    %c0_i32_1 = arith.constant 0 : i32
    return %c0_i32, %c0_i32_0 : i32, i32
  }
  func.func @transform_7(%arg0: i32) -> (i32, i32) {
    %c0_i32 = arith.constant 0 : i32
    %c0_i32_0 = arith.constant 0 : i32
    %c0_i32_1 = arith.constant 0 : i32
    return %c0_i32, %c0_i32_0 : i32, i32
  }
  func.func @transform_8(%arg0: i32) -> (i32, i32) {
    %c0_i32 = arith.constant 0 : i32
    %c0_i32_0 = arith.constant 0 : i32
    %c0_i32_1 = arith.constant 0 : i32
    return %c0_i32, %c0_i32_0 : i32, i32
  }
  func.func @transform_9(%arg0: i32) -> (i32, i32) {
    %c0_i32 = arith.constant 0 : i32
    %c0_i32_0 = arith.constant 0 : i32
    return %c0_i32, %arg0 : i32, i32
  }
}

module attributes {stable_mosaic.version = 11 : i64} {
  func.func @_fc0_kernel(%arg0: i32, %arg1: memref<3x256xf32, #tpu.memory_space<vmem>>, %arg2: memref<2x256xf32, #tpu.memory_space<vmem>>, %arg3: memref<16x3xf32, #tpu.memory_space<vmem>>, %arg4: memref<16x2xf32, #tpu.memory_space<vmem>>, %arg5: memref<16x1xf32, #tpu.memory_space<vmem>>, %arg6: memref<16x256xf32, #tpu.memory_space<vmem>>) attributes {dimension_semantics = [#tpu.dimension_semantics<parallel>], iteration_bounds = array<i64: 2>, scalar_prefetch = 0 : i64, scratch_operands = 0 : i64, tpu.core_type = #tpu.core_type<tc>, window_params = [{transform_indices = @transform_0, window_bounds = array<i64: 3, 256>}, {transform_indices = @transform_1, window_bounds = array<i64: 2, 256>}, {pipeline_mode = #tpu.pipeline_mode<synchronous>, transform_indices = @transform_2, window_bounds = array<i64: 16, 3>}, {pipeline_mode = #tpu.pipeline_mode<synchronous>, transform_indices = @transform_3, window_bounds = array<i64: 16, 2>}, {pipeline_mode = #tpu.pipeline_mode<synchronous>, transform_indices = @transform_4, window_bounds = array<i64: 16, 1>}, {transform_indices = @transform_5, window_bounds = array<i64: 16, 256>}]} {
    %c0 = arith.constant 0 : index
    %c0_0 = arith.constant 0 : index
    %0 = vector.load %arg3[%c0, %c0_0] : memref<16x3xf32, #tpu.memory_space<vmem>>, vector<16x3xf32>
    %c0_1 = arith.constant 0 : index
    %c0_2 = arith.constant 0 : index
    %1 = vector.load %arg1[%c0_1, %c0_2] : memref<3x256xf32, #tpu.memory_space<vmem>>, vector<3x256xf32>
    %cst = arith.constant dense<0.000000e+00> : vector<16x256xf32>
    %2 = tpu.matmul %0, %1, %cst {dimension_numbers = #tpu.dot_dimension_numbers<[1], [0], [0], [1], [0, 0, 1, 1], [], []>} : vector<16x3xf32>, vector<3x256xf32>, vector<16x256xf32> -> vector<16x256xf32>
    %c0_3 = arith.constant 0 : index
    %c0_4 = arith.constant 0 : index
    %3 = vector.load %arg4[%c0_3, %c0_4] : memref<16x2xf32, #tpu.memory_space<vmem>>, vector<16x2xf32>
    %c0_5 = arith.constant 0 : index
    %c0_6 = arith.constant 0 : index
    %4 = vector.load %arg2[%c0_5, %c0_6] : memref<2x256xf32, #tpu.memory_space<vmem>>, vector<2x256xf32>
    %cst_7 = arith.constant dense<0.000000e+00> : vector<16x256xf32>
    %5 = tpu.matmul %3, %4, %cst_7 {dimension_numbers = #tpu.dot_dimension_numbers<[1], [0], [0], [1], [0, 0, 1, 1], [], []>} : vector<16x2xf32>, vector<2x256xf32>, vector<16x256xf32> -> vector<16x256xf32>
    %6 = arith.addf %2, %5 : vector<16x256xf32>
    %c0_8 = arith.constant 0 : index
    %c0_9 = arith.constant 0 : index
    %7 = vector.load %arg5[%c0_8, %c0_9] : memref<16x1xf32, #tpu.memory_space<vmem>>, vector<16x1xf32>
    %8 = vector.broadcast %7 : vector<16x1xf32> to vector<16x256xf32>
    %9 = arith.addf %6, %8 : vector<16x256xf32>
    %c0_10 = arith.constant 0 : index
    %c0_11 = arith.constant 0 : index
    %10 = vector.load %arg6[%c0_10, %c0_11] : memref<16x256xf32, #tpu.memory_space<vmem>>, vector<16x256xf32>
    tpu.vector_store %arg6[%c0_10, %c0_11], %9 {strides = array<i32>} : memref<16x256xf32, #tpu.memory_space<vmem>>, vector<16x256xf32>,
    return
  }
  func.func @transform_0(%arg0: i32) -> (i32, i32) {
    %c0_i32 = arith.constant 0 : i32
    %c0_i32_0 = arith.constant 0 : i32
    return %c0_i32, %arg0 : i32, i32
  }
  func.func @transform_1(%arg0: i32) -> (i32, i32) {
    %c0_i32 = arith.constant 0 : i32
    %c0_i32_0 = arith.constant 0 : i32
    return %c0_i32, %arg0 : i32, i32
  }
  func.func @transform_2(%arg0: i32) -> (i32, i32) {
    %c0_i32 = arith.constant 0 : i32
    %c0_i32_0 = arith.constant 0 : i32
    %c0_i32_1 = arith.constant 0 : i32
    return %c0_i32, %c0_i32_0 : i32, i32
  }
  func.func @transform_3(%arg0: i32) -> (i32, i32) {
    %c0_i32 = arith.constant 0 : i32
    %c0_i32_0 = arith.constant 0 : i32
    %c0_i32_1 = arith.constant 0 : i32
    return %c0_i32, %c0_i32_0 : i32, i32
  }
  func.func @transform_4(%arg0: i32) -> (i32, i32) {
    %c0_i32 = arith.constant 0 : i32
    %c0_i32_0 = arith.constant 0 : i32
    %c0_i32_1 = arith.constant 0 : i32
    return %c0_i32, %c0_i32_0 : i32, i32
  }
  func.func @transform_5(%arg0: i32) -> (i32, i32) {
    %c0_i32 = arith.constant 0 : i32
    %c0_i32_0 = arith.constant 0 : i32
    return %c0_i32, %arg0 : i32, i32
  }
}

module attributes {stable_mosaic.version = 11 : i64} {
  func.func @_fourier_layer_kernel(%arg0: i32, %arg1: memref<16x256xf32, #tpu.memory_space<vmem>>, %arg2: memref<256x72xf32, #tpu.memory_space<vmem>>, %arg3: memref<256x72xf32, #tpu.memory_space<vmem>>, %arg4: memref<16x16x72xf32, #tpu.memory_space<vmem>>, %arg5: memref<16x16x72xf32, #tpu.memory_space<vmem>>, %arg6: memref<72x256xf32, #tpu.memory_space<vmem>>, %arg7: memref<72x256xf32, #tpu.memory_space<vmem>>, %arg8: memref<16x16xf32, #tpu.memory_space<vmem>>, %arg9: memref<16x1xf32, #tpu.memory_space<vmem>>, %arg10: memref<16x256xf32, #tpu.memory_space<vmem>>) attributes {dimension_semantics = [#tpu.dimension_semantics<parallel>], iteration_bounds = array<i64: 2>, scalar_prefetch = 0 : i64, scratch_operands = 0 : i64, tpu.core_type = #tpu.core_type<tc>, window_params = [{transform_indices = @transform_0, window_bounds = array<i64: 16, 256>}, {pipeline_mode = #tpu.pipeline_mode<synchronous>, transform_indices = @transform_1, window_bounds = array<i64: 256, 72>}, {pipeline_mode = #tpu.pipeline_mode<synchronous>, transform_indices = @transform_2, window_bounds = array<i64: 256, 72>}, {pipeline_mode = #tpu.pipeline_mode<synchronous>, transform_indices = @transform_3, window_bounds = array<i64: 16, 16, 72>}, {pipeline_mode = #tpu.pipeline_mode<synchronous>, transform_indices = @transform_4, window_bounds = array<i64: 16, 16, 72>}, {pipeline_mode = #tpu.pipeline_mode<synchronous>, transform_indices = @transform_5, window_bounds = array<i64: 72, 256>}, {pipeline_mode = #tpu.pipeline_mode<synchronous>, transform_indices = @transform_6, window_bounds = array<i64: 72, 256>}, {pipeline_mode = #tpu.pipeline_mode<synchronous>, transform_indices = @transform_7, window_bounds = array<i64: 16, 16>}, {pipeline_mode = #tpu.pipeline_mode<synchronous>, transform_indices = @transform_8, window_bounds = array<i64: 16, 1>}, {transform_indices = @transform_9, window_bounds = array<i64: 16, 256>}]} {
    %c0 = arith.constant 0 : index
    %c0_0 = arith.constant 0 : index
    %0 = vector.load %arg1[%c0, %c0_0] : memref<16x256xf32, #tpu.memory_space<vmem>>, vector<16x256xf32>
    %c0_1 = arith.constant 0 : index
    %c0_2 = arith.constant 0 : index
    %1 = vector.load %arg2[%c0_1, %c0_2] : memref<256x72xf32, #tpu.memory_space<vmem>>, vector<256x72xf32>
    %cst = arith.constant dense<0.000000e+00> : vector<16x72xf32>
    %2 = tpu.matmul %0, %1, %cst {dimension_numbers = #tpu.dot_dimension_numbers<[1], [0], [0], [1], [0, 0, 1, 1], [], []>} : vector<16x256xf32>, vector<256x72xf32>, vector<16x72xf32> -> vector<16x72xf32>
    %c0_3 = arith.constant 0 : index
    %c0_4 = arith.constant 0 : index
    %3 = vector.load %arg3[%c0_3, %c0_4] : memref<256x72xf32, #tpu.memory_space<vmem>>, vector<256x72xf32>
    %cst_5 = arith.constant dense<0.000000e+00> : vector<16x72xf32>
    %4 = tpu.matmul %0, %3, %cst_5 {dimension_numbers = #tpu.dot_dimension_numbers<[1], [0], [0], [1], [0, 0, 1, 1], [], []>} : vector<16x256xf32>, vector<256x72xf32>, vector<16x72xf32> -> vector<16x72xf32>
    %c0_6 = arith.constant 0 : index
    %c0_7 = arith.constant 0 : index
    %c0_8 = arith.constant 0 : index
    %5 = vector.load %arg4[%c0_6, %c0_7, %c0_8] : memref<16x16x72xf32, #tpu.memory_space<vmem>>, vector<1x16x72xf32>
    %6 = vector.shape_cast %5 : vector<1x16x72xf32> to vector<16x72xf32>
    %c0_9 = arith.constant 0 : index
    %c0_10 = arith.constant 0 : index
    %c0_11 = arith.constant 0 : index
    %7 = vector.load %arg5[%c0_9, %c0_10, %c0_11] : memref<16x16x72xf32, #tpu.memory_space<vmem>>, vector<1x16x72xf32>
    %8 = vector.shape_cast %7 : vector<1x16x72xf32> to vector<16x72xf32>
    %9 = vector.extract_strided_slice %2 {offsets = [0, 0], sizes = [1, 72], strides = [1, 1]} : vector<16x72xf32> to vector<1x72xf32>
    %10 = vector.extract_strided_slice %4 {offsets = [0, 0], sizes = [1, 72], strides = [1, 1]} : vector<16x72xf32> to vector<1x72xf32>
    %11 = vector.broadcast %9 : vector<1x72xf32> to vector<16x72xf32>
    %12 = arith.mulf %6, %11 : vector<16x72xf32>
    %13 = vector.broadcast %10 : vector<1x72xf32> to vector<16x72xf32>
    %14 = arith.mulf %8, %13 : vector<16x72xf32>
    %15 = arith.subf %12, %14 : vector<16x72xf32>
    %16 = vector.broadcast %10 : vector<1x72xf32> to vector<16x72xf32>
    %17 = arith.mulf %6, %16 : vector<16x72xf32>
    %18 = vector.broadcast %9 : vector<1x72xf32> to vector<16x72xf32>
    %19 = arith.mulf %8, %18 : vector<16x72xf32>
    %20 = arith.addf %17, %19 : vector<16x72xf32>
    %c1 = arith.constant 1 : index
    %c0_12 = arith.constant 0 : index
    %c0_13 = arith.constant 0 : index
    %21 = vector.load %arg4[%c1, %c0_12, %c0_13] : memref<16x16x72xf32, #tpu.memory_space<vmem>>, vector<1x16x72xf32>
    %22 = vector.shape_cast %21 : vector<1x16x72xf32> to vector<16x72xf32>
    %c1_14 = arith.constant 1 : index
    %c0_15 = arith.constant 0 : index
    %c0_16 = arith.constant 0 : index
    %23 = vector.load %arg5[%c1_14, %c0_15, %c0_16] : memref<16x16x72xf32, #tpu.memory_space<vmem>>, vector<1x16x72xf32>
    %24 = vector.shape_cast %23 : vector<1x16x72xf32> to vector<16x72xf32>
    %25 = vector.extract_strided_slice %2 {offsets = [1, 0], sizes = [1, 72], strides = [1, 1]} : vector<16x72xf32> to vector<1x72xf32>
    %26 = vector.extract_strided_slice %4 {offsets = [1, 0], sizes = [1, 72], strides = [1, 1]} : vector<16x72xf32> to vector<1x72xf32>
    %27 = vector.broadcast %25 : vector<1x72xf32> to vector<16x72xf32>
    %28 = arith.mulf %22, %27 : vector<16x72xf32>
    %29 = vector.broadcast %26 : vector<1x72xf32> to vector<16x72xf32>
    %30 = arith.mulf %24, %29 : vector<16x72xf32>
    %31 = arith.subf %28, %30 : vector<16x72xf32>
    %32 = vector.broadcast %26 : vector<1x72xf32> to vector<16x72xf32>
    %33 = arith.mulf %22, %32 : vector<16x72xf32>
    %34 = vector.broadcast %25 : vector<1x72xf32> to vector<16x72xf32>
    %35 = arith.mulf %24, %34 : vector<16x72xf32>
    %36 = arith.addf %33, %35 : vector<16x72xf32>
    %37 = arith.addf %15, %31 : vector<16x72xf32>
    %38 = arith.addf %20, %36 : vector<16x72xf32>
    %c2 = arith.constant 2 : index
    %c0_17 = arith.constant 0 : index
    %c0_18 = arith.constant 0 : index
    %39 = vector.load %arg4[%c2, %c0_17, %c0_18] : memref<16x16x72xf32, #tpu.memory_space<vmem>>, vector<1x16x72xf32>
    %40 = vector.shape_cast %39 : vector<1x16x72xf32> to vector<16x72xf32>
    %c2_19 = arith.constant 2 : index
    %c0_20 = arith.constant 0 : index
    %c0_21 = arith.constant 0 : index
    %41 = vector.load %arg5[%c2_19, %c0_20, %c0_21] : memref<16x16x72xf32, #tpu.memory_space<vmem>>, vector<1x16x72xf32>
    %42 = vector.shape_cast %41 : vector<1x16x72xf32> to vector<16x72xf32>
    %43 = vector.extract_strided_slice %2 {offsets = [2, 0], sizes = [1, 72], strides = [1, 1]} : vector<16x72xf32> to vector<1x72xf32>
    %44 = vector.extract_strided_slice %4 {offsets = [2, 0], sizes = [1, 72], strides = [1, 1]} : vector<16x72xf32> to vector<1x72xf32>
    %45 = vector.broadcast %43 : vector<1x72xf32> to vector<16x72xf32>
    %46 = arith.mulf %40, %45 : vector<16x72xf32>
    %47 = vector.broadcast %44 : vector<1x72xf32> to vector<16x72xf32>
    %48 = arith.mulf %42, %47 : vector<16x72xf32>
    %49 = arith.subf %46, %48 : vector<16x72xf32>
    %50 = vector.broadcast %44 : vector<1x72xf32> to vector<16x72xf32>
    %51 = arith.mulf %40, %50 : vector<16x72xf32>
    %52 = vector.broadcast %43 : vector<1x72xf32> to vector<16x72xf32>
    %53 = arith.mulf %42, %52 : vector<16x72xf32>
    %54 = arith.addf %51, %53 : vector<16x72xf32>
    %55 = arith.addf %37, %49 : vector<16x72xf32>
    %56 = arith.addf %38, %54 : vector<16x72xf32>
    %c3 = arith.constant 3 : index
    %c0_22 = arith.constant 0 : index
    %c0_23 = arith.constant 0 : index
    %57 = vector.load %arg4[%c3, %c0_22, %c0_23] : memref<16x16x72xf32, #tpu.memory_space<vmem>>, vector<1x16x72xf32>
    %58 = vector.shape_cast %57 : vector<1x16x72xf32> to vector<16x72xf32>
    %c3_24 = arith.constant 3 : index
    %c0_25 = arith.constant 0 : index
    %c0_26 = arith.constant 0 : index
    %59 = vector.load %arg5[%c3_24, %c0_25, %c0_26] : memref<16x16x72xf32, #tpu.memory_space<vmem>>, vector<1x16x72xf32>
    %60 = vector.shape_cast %59 : vector<1x16x72xf32> to vector<16x72xf32>
    %61 = vector.extract_strided_slice %2 {offsets = [3, 0], sizes = [1, 72], strides = [1, 1]} : vector<16x72xf32> to vector<1x72xf32>
    %62 = vector.extract_strided_slice %4 {offsets = [3, 0], sizes = [1, 72], strides = [1, 1]} : vector<16x72xf32> to vector<1x72xf32>
    %63 = vector.broadcast %61 : vector<1x72xf32> to vector<16x72xf32>
    %64 = arith.mulf %58, %63 : vector<16x72xf32>
    %65 = vector.broadcast %62 : vector<1x72xf32> to vector<16x72xf32>
    %66 = arith.mulf %60, %65 : vector<16x72xf32>
    %67 = arith.subf %64, %66 : vector<16x72xf32>
    %68 = vector.broadcast %62 : vector<1x72xf32> to vector<16x72xf32>
    %69 = arith.mulf %58, %68 : vector<16x72xf32>
    %70 = vector.broadcast %61 : vector<1x72xf32> to vector<16x72xf32>
    %71 = arith.mulf %60, %70 : vector<16x72xf32>
    %72 = arith.addf %69, %71 : vector<16x72xf32>
    %73 = arith.addf %55, %67 : vector<16x72xf32>
    %74 = arith.addf %56, %72 : vector<16x72xf32>
    %c4 = arith.constant 4 : index
    %c0_27 = arith.constant 0 : index
    %c0_28 = arith.constant 0 : index
    %75 = vector.load %arg4[%c4, %c0_27, %c0_28] : memref<16x16x72xf32, #tpu.memory_space<vmem>>, vector<1x16x72xf32>
    %76 = vector.shape_cast %75 : vector<1x16x72xf32> to vector<16x72xf32>
    %c4_29 = arith.constant 4 : index
    %c0_30 = arith.constant 0 : index
    %c0_31 = arith.constant 0 : index
    %77 = vector.load %arg5[%c4_29, %c0_30, %c0_31] : memref<16x16x72xf32, #tpu.memory_space<vmem>>, vector<1x16x72xf32>
    %78 = vector.shape_cast %77 : vector<1x16x72xf32> to vector<16x72xf32>
    %79 = vector.extract_strided_slice %2 {offsets = [4, 0], sizes = [1, 72], strides = [1, 1]} : vector<16x72xf32> to vector<1x72xf32>
    %80 = vector.extract_strided_slice %4 {offsets = [4, 0], sizes = [1, 72], strides = [1, 1]} : vector<16x72xf32> to vector<1x72xf32>
    %81 = vector.broadcast %79 : vector<1x72xf32> to vector<16x72xf32>
    %82 = arith.mulf %76, %81 : vector<16x72xf32>
    %83 = vector.broadcast %80 : vector<1x72xf32> to vector<16x72xf32>
    %84 = arith.mulf %78, %83 : vector<16x72xf32>
    %85 = arith.subf %82, %84 : vector<16x72xf32>
    %86 = vector.broadcast %80 : vector<1x72xf32> to vector<16x72xf32>
    %87 = arith.mulf %76, %86 : vector<16x72xf32>
    %88 = vector.broadcast %79 : vector<1x72xf32> to vector<16x72xf32>
    %89 = arith.mulf %78, %88 : vector<16x72xf32>
    %90 = arith.addf %87, %89 : vector<16x72xf32>
    %91 = arith.addf %73, %85 : vector<16x72xf32>
    %92 = arith.addf %74, %90 : vector<16x72xf32>
    %c5 = arith.constant 5 : index
    %c0_32 = arith.constant 0 : index
    %c0_33 = arith.constant 0 : index
    %93 = vector.load %arg4[%c5, %c0_32, %c0_33] : memref<16x16x72xf32, #tpu.memory_space<vmem>>, vector<1x16x72xf32>
    %94 = vector.shape_cast %93 : vector<1x16x72xf32> to vector<16x72xf32>
    %c5_34 = arith.constant 5 : index
    %c0_35 = arith.constant 0 : index
    %c0_36 = arith.constant 0 : index
    %95 = vector.load %arg5[%c5_34, %c0_35, %c0_36] : memref<16x16x72xf32, #tpu.memory_space<vmem>>, vector<1x16x72xf32>
    %96 = vector.shape_cast %95 : vector<1x16x72xf32> to vector<16x72xf32>
    %97 = vector.extract_strided_slice %2 {offsets = [5, 0], sizes = [1, 72], strides = [1, 1]} : vector<16x72xf32> to vector<1x72xf32>
    %98 = vector.extract_strided_slice %4 {offsets = [5, 0], sizes = [1, 72], strides = [1, 1]} : vector<16x72xf32> to vector<1x72xf32>
    %99 = vector.broadcast %97 : vector<1x72xf32> to vector<16x72xf32>
    %100 = arith.mulf %94, %99 : vector<16x72xf32>
    %101 = vector.broadcast %98 : vector<1x72xf32> to vector<16x72xf32>
    %102 = arith.mulf %96, %101 : vector<16x72xf32>
    %103 = arith.subf %100, %102 : vector<16x72xf32>
    %104 = vector.broadcast %98 : vector<1x72xf32> to vector<16x72xf32>
    %105 = arith.mulf %94, %104 : vector<16x72xf32>
    %106 = vector.broadcast %97 : vector<1x72xf32> to vector<16x72xf32>
    %107 = arith.mulf %96, %106 : vector<16x72xf32>
    %108 = arith.addf %105, %107 : vector<16x72xf32>
    %109 = arith.addf %91, %103 : vector<16x72xf32>
    %110 = arith.addf %92, %108 : vector<16x72xf32>
    %c6 = arith.constant 6 : index
    %c0_37 = arith.constant 0 : index
    %c0_38 = arith.constant 0 : index
    %111 = vector.load %arg4[%c6, %c0_37, %c0_38] : memref<16x16x72xf32, #tpu.memory_space<vmem>>, vector<1x16x72xf32>
    %112 = vector.shape_cast %111 : vector<1x16x72xf32> to vector<16x72xf32>
    %c6_39 = arith.constant 6 : index
    %c0_40 = arith.constant 0 : index
    %c0_41 = arith.constant 0 : index
    %113 = vector.load %arg5[%c6_39, %c0_40, %c0_41] : memref<16x16x72xf32, #tpu.memory_space<vmem>>, vector<1x16x72xf32>
    %114 = vector.shape_cast %113 : vector<1x16x72xf32> to vector<16x72xf32>
    %115 = vector.extract_strided_slice %2 {offsets = [6, 0], sizes = [1, 72], strides = [1, 1]} : vector<16x72xf32> to vector<1x72xf32>
    %116 = vector.extract_strided_slice %4 {offsets = [6, 0], sizes = [1, 72], strides = [1, 1]} : vector<16x72xf32> to vector<1x72xf32>
    %117 = vector.broadcast %115 : vector<1x72xf32> to vector<16x72xf32>
    %118 = arith.mulf %112, %117 : vector<16x72xf32>
    %119 = vector.broadcast %116 : vector<1x72xf32> to vector<16x72xf32>
    %120 = arith.mulf %114, %119 : vector<16x72xf32>
    %121 = arith.subf %118, %120 : vector<16x72xf32>
    %122 = vector.broadcast %116 : vector<1x72xf32> to vector<16x72xf32>
    %123 = arith.mulf %112, %122 : vector<16x72xf32>
    %124 = vector.broadcast %115 : vector<1x72xf32> to vector<16x72xf32>
    %125 = arith.mulf %114, %124 : vector<16x72xf32>
    %126 = arith.addf %123, %125 : vector<16x72xf32>
    %127 = arith.addf %109, %121 : vector<16x72xf32>
    %128 = arith.addf %110, %126 : vector<16x72xf32>
    %c7 = arith.constant 7 : index
    %c0_42 = arith.constant 0 : index
    %c0_43 = arith.constant 0 : index
    %129 = vector.load %arg4[%c7, %c0_42, %c0_43] : memref<16x16x72xf32, #tpu.memory_space<vmem>>, vector<1x16x72xf32>
    %130 = vector.shape_cast %129 : vector<1x16x72xf32> to vector<16x72xf32>
    %c7_44 = arith.constant 7 : index
    %c0_45 = arith.constant 0 : index
    %c0_46 = arith.constant 0 : index
    %131 = vector.load %arg5[%c7_44, %c0_45, %c0_46] : memref<16x16x72xf32, #tpu.memory_space<vmem>>, vector<1x16x72xf32>
    %132 = vector.shape_cast %131 : vector<1x16x72xf32> to vector<16x72xf32>
    %133 = vector.extract_strided_slice %2 {offsets = [7, 0], sizes = [1, 72], strides = [1, 1]} : vector<16x72xf32> to vector<1x72xf32>
    %134 = vector.extract_strided_slice %4 {offsets = [7, 0], sizes = [1, 72], strides = [1, 1]} : vector<16x72xf32> to vector<1x72xf32>
    %135 = vector.broadcast %133 : vector<1x72xf32> to vector<16x72xf32>
    %136 = arith.mulf %130, %135 : vector<16x72xf32>
    %137 = vector.broadcast %134 : vector<1x72xf32> to vector<16x72xf32>
    %138 = arith.mulf %132, %137 : vector<16x72xf32>
    %139 = arith.subf %136, %138 : vector<16x72xf32>
    %140 = vector.broadcast %134 : vector<1x72xf32> to vector<16x72xf32>
    %141 = arith.mulf %130, %140 : vector<16x72xf32>
    %142 = vector.broadcast %133 : vector<1x72xf32> to vector<16x72xf32>
    %143 = arith.mulf %132, %142 : vector<16x72xf32>
    %144 = arith.addf %141, %143 : vector<16x72xf32>
    %145 = arith.addf %127, %139 : vector<16x72xf32>
    %146 = arith.addf %128, %144 : vector<16x72xf32>
    %c8 = arith.constant 8 : index
    %c0_47 = arith.constant 0 : index
    %c0_48 = arith.constant 0 : index
    %147 = vector.load %arg4[%c8, %c0_47, %c0_48] : memref<16x16x72xf32, #tpu.memory_space<vmem>>, vector<1x16x72xf32>
    %148 = vector.shape_cast %147 : vector<1x16x72xf32> to vector<16x72xf32>
    %c8_49 = arith.constant 8 : index
    %c0_50 = arith.constant 0 : index
    %c0_51 = arith.constant 0 : index
    %149 = vector.load %arg5[%c8_49, %c0_50, %c0_51] : memref<16x16x72xf32, #tpu.memory_space<vmem>>, vector<1x16x72xf32>
    %150 = vector.shape_cast %149 : vector<1x16x72xf32> to vector<16x72xf32>
    %151 = vector.extract_strided_slice %2 {offsets = [8, 0], sizes = [1, 72], strides = [1, 1]} : vector<16x72xf32> to vector<1x72xf32>
    %152 = vector.extract_strided_slice %4 {offsets = [8, 0], sizes = [1, 72], strides = [1, 1]} : vector<16x72xf32> to vector<1x72xf32>
    %153 = vector.broadcast %151 : vector<1x72xf32> to vector<16x72xf32>
    %154 = arith.mulf %148, %153 : vector<16x72xf32>
    %155 = vector.broadcast %152 : vector<1x72xf32> to vector<16x72xf32>
    %156 = arith.mulf %150, %155 : vector<16x72xf32>
    %157 = arith.subf %154, %156 : vector<16x72xf32>
    %158 = vector.broadcast %152 : vector<1x72xf32> to vector<16x72xf32>
    %159 = arith.mulf %148, %158 : vector<16x72xf32>
    %160 = vector.broadcast %151 : vector<1x72xf32> to vector<16x72xf32>
    %161 = arith.mulf %150, %160 : vector<16x72xf32>
    %162 = arith.addf %159, %161 : vector<16x72xf32>
    %163 = arith.addf %145, %157 : vector<16x72xf32>
    %164 = arith.addf %146, %162 : vector<16x72xf32>
    %c9 = arith.constant 9 : index
    %c0_52 = arith.constant 0 : index
    %c0_53 = arith.constant 0 : index
    %165 = vector.load %arg4[%c9, %c0_52, %c0_53] : memref<16x16x72xf32, #tpu.memory_space<vmem>>, vector<1x16x72xf32>
    %166 = vector.shape_cast %165 : vector<1x16x72xf32> to vector<16x72xf32>
    %c9_54 = arith.constant 9 : index
    %c0_55 = arith.constant 0 : index
    %c0_56 = arith.constant 0 : index
    %167 = vector.load %arg5[%c9_54, %c0_55, %c0_56] : memref<16x16x72xf32, #tpu.memory_space<vmem>>, vector<1x16x72xf32>
    %168 = vector.shape_cast %167 : vector<1x16x72xf32> to vector<16x72xf32>
    %169 = vector.extract_strided_slice %2 {offsets = [9, 0], sizes = [1, 72], strides = [1, 1]} : vector<16x72xf32> to vector<1x72xf32>
    %170 = vector.extract_strided_slice %4 {offsets = [9, 0], sizes = [1, 72], strides = [1, 1]} : vector<16x72xf32> to vector<1x72xf32>
    %171 = vector.broadcast %169 : vector<1x72xf32> to vector<16x72xf32>
    %172 = arith.mulf %166, %171 : vector<16x72xf32>
    %173 = vector.broadcast %170 : vector<1x72xf32> to vector<16x72xf32>
    %174 = arith.mulf %168, %173 : vector<16x72xf32>
    %175 = arith.subf %172, %174 : vector<16x72xf32>
    %176 = vector.broadcast %170 : vector<1x72xf32> to vector<16x72xf32>
    %177 = arith.mulf %166, %176 : vector<16x72xf32>
    %178 = vector.broadcast %169 : vector<1x72xf32> to vector<16x72xf32>
    %179 = arith.mulf %168, %178 : vector<16x72xf32>
    %180 = arith.addf %177, %179 : vector<16x72xf32>
    %181 = arith.addf %163, %175 : vector<16x72xf32>
    %182 = arith.addf %164, %180 : vector<16x72xf32>
    %c10 = arith.constant 10 : index
    %c0_57 = arith.constant 0 : index
    %c0_58 = arith.constant 0 : index
    %183 = vector.load %arg4[%c10, %c0_57, %c0_58] : memref<16x16x72xf32, #tpu.memory_space<vmem>>, vector<1x16x72xf32>
    %184 = vector.shape_cast %183 : vector<1x16x72xf32> to vector<16x72xf32>
    %c10_59 = arith.constant 10 : index
    %c0_60 = arith.constant 0 : index
    %c0_61 = arith.constant 0 : index
    %185 = vector.load %arg5[%c10_59, %c0_60, %c0_61] : memref<16x16x72xf32, #tpu.memory_space<vmem>>, vector<1x16x72xf32>
    %186 = vector.shape_cast %185 : vector<1x16x72xf32> to vector<16x72xf32>
    %187 = vector.extract_strided_slice %2 {offsets = [10, 0], sizes = [1, 72], strides = [1, 1]} : vector<16x72xf32> to vector<1x72xf32>
    %188 = vector.extract_strided_slice %4 {offsets = [10, 0], sizes = [1, 72], strides = [1, 1]} : vector<16x72xf32> to vector<1x72xf32>
    %189 = vector.broadcast %187 : vector<1x72xf32> to vector<16x72xf32>
    %190 = arith.mulf %184, %189 : vector<16x72xf32>
    %191 = vector.broadcast %188 : vector<1x72xf32> to vector<16x72xf32>
    %192 = arith.mulf %186, %191 : vector<16x72xf32>
    %193 = arith.subf %190, %192 : vector<16x72xf32>
    %194 = vector.broadcast %188 : vector<1x72xf32> to vector<16x72xf32>
    %195 = arith.mulf %184, %194 : vector<16x72xf32>
    %196 = vector.broadcast %187 : vector<1x72xf32> to vector<16x72xf32>
    %197 = arith.mulf %186, %196 : vector<16x72xf32>
    %198 = arith.addf %195, %197 : vector<16x72xf32>
    %199 = arith.addf %181, %193 : vector<16x72xf32>
    %200 = arith.addf %182, %198 : vector<16x72xf32>
    %c11 = arith.constant 11 : index
    %c0_62 = arith.constant 0 : index
    %c0_63 = arith.constant 0 : index
    %201 = vector.load %arg4[%c11, %c0_62, %c0_63] : memref<16x16x72xf32, #tpu.memory_space<vmem>>, vector<1x16x72xf32>
    %202 = vector.shape_cast %201 : vector<1x16x72xf32> to vector<16x72xf32>
    %c11_64 = arith.constant 11 : index
    %c0_65 = arith.constant 0 : index
    %c0_66 = arith.constant 0 : index
    %203 = vector.load %arg5[%c11_64, %c0_65, %c0_66] : memref<16x16x72xf32, #tpu.memory_space<vmem>>, vector<1x16x72xf32>
    %204 = vector.shape_cast %203 : vector<1x16x72xf32> to vector<16x72xf32>
    %205 = vector.extract_strided_slice %2 {offsets = [11, 0], sizes = [1, 72], strides = [1, 1]} : vector<16x72xf32> to vector<1x72xf32>
    %206 = vector.extract_strided_slice %4 {offsets = [11, 0], sizes = [1, 72], strides = [1, 1]} : vector<16x72xf32> to vector<1x72xf32>
    %207 = vector.broadcast %205 : vector<1x72xf32> to vector<16x72xf32>
    %208 = arith.mulf %202, %207 : vector<16x72xf32>
    %209 = vector.broadcast %206 : vector<1x72xf32> to vector<16x72xf32>
    %210 = arith.mulf %204, %209 : vector<16x72xf32>
    %211 = arith.subf %208, %210 : vector<16x72xf32>
    %212 = vector.broadcast %206 : vector<1x72xf32> to vector<16x72xf32>
    %213 = arith.mulf %202, %212 : vector<16x72xf32>
    %214 = vector.broadcast %205 : vector<1x72xf32> to vector<16x72xf32>
    %215 = arith.mulf %204, %214 : vector<16x72xf32>
    %216 = arith.addf %213, %215 : vector<16x72xf32>
    %217 = arith.addf %199, %211 : vector<16x72xf32>
    %218 = arith.addf %200, %216 : vector<16x72xf32>
    %c12 = arith.constant 12 : index
    %c0_67 = arith.constant 0 : index
    %c0_68 = arith.constant 0 : index
    %219 = vector.load %arg4[%c12, %c0_67, %c0_68] : memref<16x16x72xf32, #tpu.memory_space<vmem>>, vector<1x16x72xf32>
    %220 = vector.shape_cast %219 : vector<1x16x72xf32> to vector<16x72xf32>
    %c12_69 = arith.constant 12 : index
    %c0_70 = arith.constant 0 : index
    %c0_71 = arith.constant 0 : index
    %221 = vector.load %arg5[%c12_69, %c0_70, %c0_71] : memref<16x16x72xf32, #tpu.memory_space<vmem>>, vector<1x16x72xf32>
    %222 = vector.shape_cast %221 : vector<1x16x72xf32> to vector<16x72xf32>
    %223 = vector.extract_strided_slice %2 {offsets = [12, 0], sizes = [1, 72], strides = [1, 1]} : vector<16x72xf32> to vector<1x72xf32>
    %224 = vector.extract_strided_slice %4 {offsets = [12, 0], sizes = [1, 72], strides = [1, 1]} : vector<16x72xf32> to vector<1x72xf32>
    %225 = vector.broadcast %223 : vector<1x72xf32> to vector<16x72xf32>
    %226 = arith.mulf %220, %225 : vector<16x72xf32>
    %227 = vector.broadcast %224 : vector<1x72xf32> to vector<16x72xf32>
    %228 = arith.mulf %222, %227 : vector<16x72xf32>
    %229 = arith.subf %226, %228 : vector<16x72xf32>
    %230 = vector.broadcast %224 : vector<1x72xf32> to vector<16x72xf32>
    %231 = arith.mulf %220, %230 : vector<16x72xf32>
    %232 = vector.broadcast %223 : vector<1x72xf32> to vector<16x72xf32>
    %233 = arith.mulf %222, %232 : vector<16x72xf32>
    %234 = arith.addf %231, %233 : vector<16x72xf32>
    %235 = arith.addf %217, %229 : vector<16x72xf32>
    %236 = arith.addf %218, %234 : vector<16x72xf32>
    %c13 = arith.constant 13 : index
    %c0_72 = arith.constant 0 : index
    %c0_73 = arith.constant 0 : index
    %237 = vector.load %arg4[%c13, %c0_72, %c0_73] : memref<16x16x72xf32, #tpu.memory_space<vmem>>, vector<1x16x72xf32>
    %238 = vector.shape_cast %237 : vector<1x16x72xf32> to vector<16x72xf32>
    %c13_74 = arith.constant 13 : index
    %c0_75 = arith.constant 0 : index
    %c0_76 = arith.constant 0 : index
    %239 = vector.load %arg5[%c13_74, %c0_75, %c0_76] : memref<16x16x72xf32, #tpu.memory_space<vmem>>, vector<1x16x72xf32>
    %240 = vector.shape_cast %239 : vector<1x16x72xf32> to vector<16x72xf32>
    %241 = vector.extract_strided_slice %2 {offsets = [13, 0], sizes = [1, 72], strides = [1, 1]} : vector<16x72xf32> to vector<1x72xf32>
    %242 = vector.extract_strided_slice %4 {offsets = [13, 0], sizes = [1, 72], strides = [1, 1]} : vector<16x72xf32> to vector<1x72xf32>
    %243 = vector.broadcast %241 : vector<1x72xf32> to vector<16x72xf32>
    %244 = arith.mulf %238, %243 : vector<16x72xf32>
    %245 = vector.broadcast %242 : vector<1x72xf32> to vector<16x72xf32>
    %246 = arith.mulf %240, %245 : vector<16x72xf32>
    %247 = arith.subf %244, %246 : vector<16x72xf32>
    %248 = vector.broadcast %242 : vector<1x72xf32> to vector<16x72xf32>
    %249 = arith.mulf %238, %248 : vector<16x72xf32>
    %250 = vector.broadcast %241 : vector<1x72xf32> to vector<16x72xf32>
    %251 = arith.mulf %240, %250 : vector<16x72xf32>
    %252 = arith.addf %249, %251 : vector<16x72xf32>
    %253 = arith.addf %235, %247 : vector<16x72xf32>
    %254 = arith.addf %236, %252 : vector<16x72xf32>
    %c14 = arith.constant 14 : index
    %c0_77 = arith.constant 0 : index
    %c0_78 = arith.constant 0 : index
    %255 = vector.load %arg4[%c14, %c0_77, %c0_78] : memref<16x16x72xf32, #tpu.memory_space<vmem>>, vector<1x16x72xf32>
    %256 = vector.shape_cast %255 : vector<1x16x72xf32> to vector<16x72xf32>
    %c14_79 = arith.constant 14 : index
    %c0_80 = arith.constant 0 : index
    %c0_81 = arith.constant 0 : index
    %257 = vector.load %arg5[%c14_79, %c0_80, %c0_81] : memref<16x16x72xf32, #tpu.memory_space<vmem>>, vector<1x16x72xf32>
    %258 = vector.shape_cast %257 : vector<1x16x72xf32> to vector<16x72xf32>
    %259 = vector.extract_strided_slice %2 {offsets = [14, 0], sizes = [1, 72], strides = [1, 1]} : vector<16x72xf32> to vector<1x72xf32>
    %260 = vector.extract_strided_slice %4 {offsets = [14, 0], sizes = [1, 72], strides = [1, 1]} : vector<16x72xf32> to vector<1x72xf32>
    %261 = vector.broadcast %259 : vector<1x72xf32> to vector<16x72xf32>
    %262 = arith.mulf %256, %261 : vector<16x72xf32>
    %263 = vector.broadcast %260 : vector<1x72xf32> to vector<16x72xf32>
    %264 = arith.mulf %258, %263 : vector<16x72xf32>
    %265 = arith.subf %262, %264 : vector<16x72xf32>
    %266 = vector.broadcast %260 : vector<1x72xf32> to vector<16x72xf32>
    %267 = arith.mulf %256, %266 : vector<16x72xf32>
    %268 = vector.broadcast %259 : vector<1x72xf32> to vector<16x72xf32>
    %269 = arith.mulf %258, %268 : vector<16x72xf32>
    %270 = arith.addf %267, %269 : vector<16x72xf32>
    %271 = arith.addf %253, %265 : vector<16x72xf32>
    %272 = arith.addf %254, %270 : vector<16x72xf32>
    %c15 = arith.constant 15 : index
    %c0_82 = arith.constant 0 : index
    %c0_83 = arith.constant 0 : index
    %273 = vector.load %arg4[%c15, %c0_82, %c0_83] : memref<16x16x72xf32, #tpu.memory_space<vmem>>, vector<1x16x72xf32>
    %274 = vector.shape_cast %273 : vector<1x16x72xf32> to vector<16x72xf32>
    %c15_84 = arith.constant 15 : index
    %c0_85 = arith.constant 0 : index
    %c0_86 = arith.constant 0 : index
    %275 = vector.load %arg5[%c15_84, %c0_85, %c0_86] : memref<16x16x72xf32, #tpu.memory_space<vmem>>, vector<1x16x72xf32>
    %276 = vector.shape_cast %275 : vector<1x16x72xf32> to vector<16x72xf32>
    %277 = vector.extract_strided_slice %2 {offsets = [15, 0], sizes = [1, 72], strides = [1, 1]} : vector<16x72xf32> to vector<1x72xf32>
    %278 = vector.extract_strided_slice %4 {offsets = [15, 0], sizes = [1, 72], strides = [1, 1]} : vector<16x72xf32> to vector<1x72xf32>
    %279 = vector.broadcast %277 : vector<1x72xf32> to vector<16x72xf32>
    %280 = arith.mulf %274, %279 : vector<16x72xf32>
    %281 = vector.broadcast %278 : vector<1x72xf32> to vector<16x72xf32>
    %282 = arith.mulf %276, %281 : vector<16x72xf32>
    %283 = arith.subf %280, %282 : vector<16x72xf32>
    %284 = vector.broadcast %278 : vector<1x72xf32> to vector<16x72xf32>
    %285 = arith.mulf %274, %284 : vector<16x72xf32>
    %286 = vector.broadcast %277 : vector<1x72xf32> to vector<16x72xf32>
    %287 = arith.mulf %276, %286 : vector<16x72xf32>
    %288 = arith.addf %285, %287 : vector<16x72xf32>
    %289 = arith.addf %271, %283 : vector<16x72xf32>
    %290 = arith.addf %272, %288 : vector<16x72xf32>
    %c0_87 = arith.constant 0 : index
    %c0_88 = arith.constant 0 : index
    %291 = vector.load %arg6[%c0_87, %c0_88] : memref<72x256xf32, #tpu.memory_space<vmem>>, vector<72x256xf32>
    %cst_89 = arith.constant dense<0.000000e+00> : vector<16x256xf32>
    %292 = tpu.matmul %289, %291, %cst_89 {dimension_numbers = #tpu.dot_dimension_numbers<[1], [0], [0], [1], [0, 0, 1, 1], [], []>} : vector<16x72xf32>, vector<72x256xf32>, vector<16x256xf32> -> vector<16x256xf32>
    %c0_90 = arith.constant 0 : index
    %c0_91 = arith.constant 0 : index
    %293 = vector.load %arg7[%c0_90, %c0_91] : memref<72x256xf32, #tpu.memory_space<vmem>>, vector<72x256xf32>
    %cst_92 = arith.constant dense<0.000000e+00> : vector<16x256xf32>
    %294 = tpu.matmul %290, %293, %cst_92 {dimension_numbers = #tpu.dot_dimension_numbers<[1], [0], [0], [1], [0, 0, 1, 1], [], []>} : vector<16x72xf32>, vector<72x256xf32>, vector<16x256xf32> -> vector<16x256xf32>
    %295 = arith.addf %292, %294 : vector<16x256xf32>
    %c0_93 = arith.constant 0 : index
    %c0_94 = arith.constant 0 : index
    %296 = vector.load %arg8[%c0_93, %c0_94] : memref<16x16xf32, #tpu.memory_space<vmem>>, vector<16x16xf32>
    %cst_95 = arith.constant dense<0.000000e+00> : vector<16x256xf32>
    %297 = tpu.matmul %296, %0, %cst_95 {dimension_numbers = #tpu.dot_dimension_numbers<[1], [0], [0], [1], [0, 0, 1, 1], [], []>} : vector<16x16xf32>, vector<16x256xf32>, vector<16x256xf32> -> vector<16x256xf32>
    %c0_96 = arith.constant 0 : index
    %c0_97 = arith.constant 0 : index
    %298 = vector.load %arg9[%c0_96, %c0_97] : memref<16x1xf32, #tpu.memory_space<vmem>>, vector<16x1xf32>
    %299 = vector.broadcast %298 : vector<16x1xf32> to vector<16x256xf32>
    %300 = arith.addf %297, %299 : vector<16x256xf32>
    %301 = arith.addf %300, %295 : vector<16x256xf32>
    %c0_98 = arith.constant 0 : index
    %c0_99 = arith.constant 0 : index
    %302 = vector.load %arg10[%c0_98, %c0_99] : memref<16x256xf32, #tpu.memory_space<vmem>>, vector<16x256xf32>
    tpu.vector_store %arg10[%c0_98, %c0_99], %301 {strides = array<i32>} : memref<16x256xf32, #tpu.memory_space<vmem>>, vector<16x256xf32>,
    return
  }
  func.func @transform_0(%arg0: i32) -> (i32, i32) {
    %c0_i32 = arith.constant 0 : i32
    %c0_i32_0 = arith.constant 0 : i32
    return %c0_i32, %arg0 : i32, i32
  }
  func.func @transform_1(%arg0: i32) -> (i32, i32) {
    %c0_i32 = arith.constant 0 : i32
    %c0_i32_0 = arith.constant 0 : i32
    %c0_i32_1 = arith.constant 0 : i32
    return %c0_i32, %c0_i32_0 : i32, i32
  }
  func.func @transform_2(%arg0: i32) -> (i32, i32) {
    %c0_i32 = arith.constant 0 : i32
    %c0_i32_0 = arith.constant 0 : i32
    %c0_i32_1 = arith.constant 0 : i32
    return %c0_i32, %c0_i32_0 : i32, i32
  }
  func.func @transform_3(%arg0: i32) -> (i32, i32, i32) {
    %c0_i32 = arith.constant 0 : i32
    %c0_i32_0 = arith.constant 0 : i32
    %c0_i32_1 = arith.constant 0 : i32
    %c0_i32_2 = arith.constant 0 : i32
    return %c0_i32, %c0_i32_0, %c0_i32_1 : i32, i32, i32
  }
  func.func @transform_4(%arg0: i32) -> (i32, i32, i32) {
    %c0_i32 = arith.constant 0 : i32
    %c0_i32_0 = arith.constant 0 : i32
    %c0_i32_1 = arith.constant 0 : i32
    %c0_i32_2 = arith.constant 0 : i32
    return %c0_i32, %c0_i32_0, %c0_i32_1 : i32, i32, i32
  }
  func.func @transform_5(%arg0: i32) -> (i32, i32) {
    %c0_i32 = arith.constant 0 : i32
    %c0_i32_0 = arith.constant 0 : i32
    %c0_i32_1 = arith.constant 0 : i32
    return %c0_i32, %c0_i32_0 : i32, i32
  }
  func.func @transform_6(%arg0: i32) -> (i32, i32) {
    %c0_i32 = arith.constant 0 : i32
    %c0_i32_0 = arith.constant 0 : i32
    %c0_i32_1 = arith.constant 0 : i32
    return %c0_i32, %c0_i32_0 : i32, i32
  }
  func.func @transform_7(%arg0: i32) -> (i32, i32) {
    %c0_i32 = arith.constant 0 : i32
    %c0_i32_0 = arith.constant 0 : i32
    %c0_i32_1 = arith.constant 0 : i32
    return %c0_i32, %c0_i32_0 : i32, i32
  }
  func.func @transform_8(%arg0: i32) -> (i32, i32) {
    %c0_i32 = arith.constant 0 : i32
    %c0_i32_0 = arith.constant 0 : i32
    %c0_i32_1 = arith.constant 0 : i32
    return %c0_i32, %c0_i32_0 : i32, i32
  }
  func.func @transform_9(%arg0: i32) -> (i32, i32) {
    %c0_i32 = arith.constant 0 : i32
    %c0_i32_0 = arith.constant 0 : i32
    return %c0_i32, %arg0 : i32, i32
  }
}

module attributes {stable_mosaic.version = 11 : i64} {
  func.func @_head_kernel(%arg0: i32, %arg1: memref<16x256xf32, #tpu.memory_space<vmem>>, %arg2: memref<64x16xf32, #tpu.memory_space<vmem>>, %arg3: memref<64x1xf32, #tpu.memory_space<vmem>>, %arg4: memref<1x64xf32, #tpu.memory_space<vmem>>, %arg5: memref<1x1xf32, #tpu.memory_space<vmem>>, %arg6: memref<1x256xf32, #tpu.memory_space<vmem>>) attributes {dimension_semantics = [#tpu.dimension_semantics<parallel>], iteration_bounds = array<i64: 2>, scalar_prefetch = 0 : i64, scratch_operands = 0 : i64, tpu.core_type = #tpu.core_type<tc>, window_params = [{transform_indices = @transform_0, window_bounds = array<i64: 16, 256>}, {pipeline_mode = #tpu.pipeline_mode<synchronous>, transform_indices = @transform_1, window_bounds = array<i64: 64, 16>}, {pipeline_mode = #tpu.pipeline_mode<synchronous>, transform_indices = @transform_2, window_bounds = array<i64: 64, 1>}, {pipeline_mode = #tpu.pipeline_mode<synchronous>, transform_indices = @transform_3, window_bounds = array<i64: 1, 64>}, {pipeline_mode = #tpu.pipeline_mode<synchronous>, transform_indices = @transform_4, window_bounds = array<i64: 1, 1>}, {transform_indices = @transform_5, window_bounds = array<i64: 1, 256>}]} {
    %c0 = arith.constant 0 : index
    %c0_0 = arith.constant 0 : index
    %0 = vector.load %arg2[%c0, %c0_0] : memref<64x16xf32, #tpu.memory_space<vmem>>, vector<64x16xf32>
    %c0_1 = arith.constant 0 : index
    %c0_2 = arith.constant 0 : index
    %1 = vector.load %arg1[%c0_1, %c0_2] : memref<16x256xf32, #tpu.memory_space<vmem>>, vector<16x256xf32>
    %cst = arith.constant dense<0.000000e+00> : vector<64x256xf32>
    %2 = tpu.matmul %0, %1, %cst {dimension_numbers = #tpu.dot_dimension_numbers<[1], [0], [0], [1], [0, 0, 1, 1], [], []>} : vector<64x16xf32>, vector<16x256xf32>, vector<64x256xf32> -> vector<64x256xf32>
    %c0_3 = arith.constant 0 : index
    %c0_4 = arith.constant 0 : index
    %3 = vector.load %arg3[%c0_3, %c0_4] : memref<64x1xf32, #tpu.memory_space<vmem>>, vector<64x1xf32>
    %4 = vector.broadcast %3 : vector<64x1xf32> to vector<64x256xf32>
    %5 = arith.addf %2, %4 : vector<64x256xf32>
    %cst_5 = arith.constant 0.000000e+00 : f32
    %6 = vector.broadcast %cst_5 : f32 to vector<64x256xf32>
    %7 = arith.maximumf %5, %6 : vector<64x256xf32>
    %c0_6 = arith.constant 0 : index
    %c0_7 = arith.constant 0 : index
    %8 = vector.load %arg4[%c0_6, %c0_7] : memref<1x64xf32, #tpu.memory_space<vmem>>, vector<1x64xf32>
    %cst_8 = arith.constant dense<0.000000e+00> : vector<1x256xf32>
    %9 = tpu.matmul %8, %7, %cst_8 {dimension_numbers = #tpu.dot_dimension_numbers<[1], [0], [0], [1], [0, 0, 1, 1], [], []>} : vector<1x64xf32>, vector<64x256xf32>, vector<1x256xf32> -> vector<1x256xf32>
    %c0_9 = arith.constant 0 : index
    %c0_10 = arith.constant 0 : index
    %10 = vector.load %arg5[%c0_9, %c0_10] : memref<1x1xf32, #tpu.memory_space<vmem>>, vector<1x1xf32>
    %11 = vector.broadcast %10 : vector<1x1xf32> to vector<1x256xf32>
    %12 = arith.addf %9, %11 : vector<1x256xf32>
    %c0_11 = arith.constant 0 : index
    %c0_12 = arith.constant 0 : index
    %13 = vector.load %arg6[%c0_11, %c0_12] : memref<1x256xf32, #tpu.memory_space<vmem>>, vector<1x256xf32>
    tpu.vector_store %arg6[%c0_11, %c0_12], %12 {strides = array<i32>} : memref<1x256xf32, #tpu.memory_space<vmem>>, vector<1x256xf32>,
    return
  }
  func.func @transform_0(%arg0: i32) -> (i32, i32) {
    %c0_i32 = arith.constant 0 : i32
    %c0_i32_0 = arith.constant 0 : i32
    return %c0_i32, %arg0 : i32, i32
  }
  func.func @transform_1(%arg0: i32) -> (i32, i32) {
    %c0_i32 = arith.constant 0 : i32
    %c0_i32_0 = arith.constant 0 : i32
    %c0_i32_1 = arith.constant 0 : i32
    return %c0_i32, %c0_i32_0 : i32, i32
  }
  func.func @transform_2(%arg0: i32) -> (i32, i32) {
    %c0_i32 = arith.constant 0 : i32
    %c0_i32_0 = arith.constant 0 : i32
    %c0_i32_1 = arith.constant 0 : i32
    return %c0_i32, %c0_i32_0 : i32, i32
  }
  func.func @transform_3(%arg0: i32) -> (i32, i32) {
    %c0_i32 = arith.constant 0 : i32
    %c0_i32_0 = arith.constant 0 : i32
    %c0_i32_1 = arith.constant 0 : i32
    return %c0_i32, %c0_i32_0 : i32, i32
  }
  func.func @transform_4(%arg0: i32) -> (i32, i32) {
    %c0_i32 = arith.constant 0 : i32
    %c0_i32_0 = arith.constant 0 : i32
    %c0_i32_1 = arith.constant 0 : i32
    return %c0_i32, %c0_i32_0 : i32, i32
  }
  func.func @transform_5(%arg0: i32) -> (i32, i32) {
    %c0_i32 = arith.constant 0 : i32
    %c0_i32_0 = arith.constant 0 : i32
    return %c0_i32, %arg0 : i32, i32
  }
}

</mosaic_0001>

<llo_original>
// kernel: fno2d_forward.6
$region0: #{fno2d_forward.6}
  #allocation0 [shape = 'u32[]', space=smem, size = 0x4, offset = 0x4, fixed_abs, tag = 'smem constant byte address 0x4 - core index']
  #allocation1 [shape = 'u32[144,128]{1,0:T(1,128)}', space=vmem, size = 0x12000, scoped, tag = 'internal scratch']
  %s0 = inlined_call_operand.vmem [shape: f32[3,512], index: 0, kind: input, shape index: {}]
  %s1 = inlined_call_operand.vmem [shape: f32[2,512], index: 1, kind: input, shape index: {}]
  %s2 = inlined_call_operand.vmem [shape: f32[16,3], index: 2, kind: input, shape index: {}]
  %s3 = inlined_call_operand.vmem [shape: f32[16,2], index: 3, kind: input, shape index: {}]
  %s4 = inlined_call_operand.vmem [shape: f32[16,1], index: 4, kind: input, shape index: {}]
  %s5 = inlined_call_operand.vmem [shape: f32[16,512], index: 5, kind: output, shape index: {}]
  %s6 = sld [smem:[#allocation0]]
  $region72: #{fno2d_forward.6} parent=0
    _
  %s8 = ssub.s32 1, %s6
  %s9 = scalar_select 0, %s8, %s6
  $region1: #{fno2d_forward.6} parent=0
    #allocation2 [shape = 'u8[32768]{0}', space=vmem, size = 0x8000, scoped, tag = 'output window, operand 0']
    loop: start=0, step=1, limit=4
    $region2: #{fno2d_forward.6} parent=1 // loop_pre_header
      _
    $region3: #{fno2d_forward.6} parent=1 // loop_header
      %s11 = sphi 0, %s15
      %p12 = scmp.ge.s32.totalorder %s11, 4
      %s21 = sphi 0, %s23
      %s24 = sphi 0, %s21
      %s25 = sphi 0, %s24
      %s41 = sphi 0, %s25
      %s47 = sphi 0, %s49
      %s50 = sphi 0, %s47
      %s51 = sphi 0, %s50
      %s67 = sphi 0, %s51
      %s71 = sphi 0, %s71
      %s73 = sphi 0, %s71
      %s74 = sphi 0, %s73
      %s88 = sphi 0, %s74
      %s92 = sphi 0, %s92
      %s94 = sphi 0, %s92
      %s95 = sphi 0, %s94
      %s109 = sphi 0, %s95
      %s113 = sphi 0, %s113
      %s115 = sphi 0, %s113
      %s116 = sphi 0, %s115
      %s130 = sphi 0, %s116
      %s136 = sphi 0, %s138
      %s139 = sphi 0, %s136
      %s140 = sphi 0, %s139
      %s156 = sphi 0, %s140
    $region4: #{fno2d_forward.6} parent=1 // loop_header_branch
      %14 = sbr.rel (%p12) target = $region8
    $region5: #{fno2d_forward.6} parent=1 // loop_body
      %s16 = ssub.s32 %s11, 1
      %s17 = ssub.s32 %s11, 2
      %s18 = sadd.s32 %s11, 1
      %s19 = ssub.s32 %s11, %s18
      %p20 = scmp.eq.s32.totalorder %s19, 0
      %s22 = sadd.s32 %s21, 1
      %s23 = scalar_select %p20, %s21, %s22
      %p26 = pneg %p20
      %p27 = scmp.eq.s32.totalorder %s11, 1
      %p28 = por %p26, %p27
      %p29 = scmp.ne.s32.totalorder %s21, %s24
      %p30 = scmp.eq.s32.totalorder %s11, 0
      %p31 = por %p29, %p30
      %p32 = scmp.ne.s32.totalorder %s21, %s24
      %p33 = scmp.eq.s32.totalorder %s16, 1
      %p34 = por %p32, %p33
      %p35 = scmp.ne.s32.totalorder %s24, %s25
      %p36 = scmp.eq.s32.totalorder %s16, 0
      %p37 = por %p35, %p36
      %p38 = scmp.ne.s32.totalorder %s24, %s25
      %p39 = scmp.eq.s32.totalorder %s17, 1
      %p40 = por %p38, %p39
      %p42 = scmp.ne.s32.totalorder %s25, %s41
      %p43 = scmp.eq.s32.totalorder %s17, 0
      %p44 = por %p42, %p43
      %s45 = ssub.s32 %s11, %s18
      %p46 = scmp.eq.s32.totalorder %s45, 0
      %s48 = sadd.s32 %s47, 1
      %s49 = scalar_select %p46, %s47, %s48
      %p52 = pneg %p46
      %p53 = scmp.eq.s32.totalorder %s11, 1
      %p54 = por %p52, %p53
      %p55 = scmp.ne.s32.totalorder %s47, %s50
      %p56 = scmp.eq.s32.totalorder %s11, 0
      %p57 = por %p55, %p56
      %p58 = scmp.ne.s32.totalorder %s47, %s50
      %p59 = scmp.eq.s32.totalorder %s16, 1
      %p60 = por %p58, %p59
      %p61 = scmp.ne.s32.totalorder %s50, %s51
      %p62 = scmp.eq.s32.totalorder %s16, 0
      %p63 = por %p61, %p62
      %p64 = scmp.ne.s32.totalorder %s50, %s51
      %p65 = scmp.eq.s32.totalorder %s17, 1
      %p66 = por %p64, %p65
      %p68 = scmp.ne.s32.totalorder %s51, %s67
      %p69 = scmp.eq.s32.totalorder %s17, 0
      %p70 = por %p68, %p69
      %s72 = sadd.s32 %s71, 1
      %p75 = scmp.eq.s32.totalorder %s11, 1
      %p76 = scmp.ne.s32.totalorder %s71, %s73
      %p77 = scmp.eq.s32.totalorder %s11, 0
      %p78 = por %p76, %p77
      %p79 = scmp.ne.s32.totalorder %s71, %s73
      %p80 = scmp.eq.s32.totalorder %s16, 1
      %p81 = por %p79, %p80
      %p82 = scmp.ne.s32.totalorder %s73, %s74
      %p83 = scmp.eq.s32.totalorder %s16, 0
      %p84 = por %p82, %p83
      %p85 = scmp.ne.s32.totalorder %s73, %s74
      %p86 = scmp.eq.s32.totalorder %s17, 1
      %p87 = por %p85, %p86
      %p89 = scmp.ne.s32.totalorder %s74, %s88
      %p90 = scmp.eq.s32.totalorder %s17, 0
      %p91 = por %p89, %p90
      %s93 = sadd.s32 %s92, 1
      %p96 = scmp.eq.s32.totalorder %s11, 1
      %p97 = scmp.ne.s32.totalorder %s92, %s94
      %p98 = scmp.eq.s32.totalorder %s11, 0
      %p99 = por %p97, %p98
      %p100 = scmp.ne.s32.totalorder %s92, %s94
      %p101 = scmp.eq.s32.totalorder %s16, 1
      %p102 = por %p100, %p101
      %p103 = scmp.ne.s32.totalorder %s94, %s95
      %p104 = scmp.eq.s32.totalorder %s16, 0
      %p105 = por %p103, %p104
      %p106 = scmp.ne.s32.totalorder %s94, %s95
      %p107 = scmp.eq.s32.totalorder %s17, 1
      %p108 = por %p106, %p107
      %p110 = scmp.ne.s32.totalorder %s95, %s109
      %p111 = scmp.eq.s32.totalorder %s17, 0
      %p112 = por %p110, %p111
      %s114 = sadd.s32 %s113, 1
      %p117 = scmp.eq.s32.totalorder %s11, 1
      %p118 = scmp.ne.s32.totalorder %s113, %s115
      %p119 = scmp.eq.s32.totalorder %s11, 0
      %p120 = por %p118, %p119
      %p121 = scmp.ne.s32.totalorder %s113, %s115
      %p122 = scmp.eq.s32.totalorder %s16, 1
      %p123 = por %p121, %p122
      %p124 = scmp.ne.s32.totalorder %s115, %s116
      %p125 = scmp.eq.s32.totalorder %s16, 0
      %p126 = por %p124, %p125
      %p127 = scmp.ne.s32.totalorder %s115, %s116
      %p128 = scmp.eq.s32.totalorder %s17, 1
      %p129 = por %p127, %p128
      %p131 = scmp.ne.s32.totalorder %s116, %s130
      %p132 = scmp.eq.s32.totalorder %s17, 0
      %p133 = por %p131, %p132
      %s134 = ssub.s32 %s11, %s18
      %p135 = scmp.eq.s32.totalorder %s134, 0
      %s137 = sadd.s32 %s136, 1
      %s138 = scalar_select %p135, %s136, %s137
      %p141 = pneg %p135
      %p142 = scmp.eq.s32.totalorder %s11, 1
      %p143 = por %p141, %p142
      %p144 = scmp.ne.s32.totalorder %s136, %s139
      %p145 = scmp.eq.s32.totalorder %s11, 0
      %p146 = por %p144, %p145
      %p147 = scmp.ne.s32.totalorder %s136, %s139
      %p148 = scmp.eq.s32.totalorder %s16, 1
      %p149 = por %p147, %p148
      %p150 = scmp.ne.s32.totalorder %s139, %s140
      %p151 = scmp.eq.s32.totalorder %s16, 0
      %p152 = por %p150, %p151
      %p153 = scmp.ne.s32.totalorder %s139, %s140
      %p154 = scmp.eq.s32.totalorder %s17, 1
      %p155 = por %p153, %p154
      %p157 = scmp.ne.s32.totalorder %s140, %s156
      %p158 = scmp.eq.s32.totalorder %s17, 0
      %p159 = por %p157, %p158
      %p160 = scmp.le.s32.totalorder 1, %s11
      %p161 = scmp.lt.s32.totalorder %s11, 3
      %p162 = pnand %p160, %p161
      %p163 = pneg %p162
      // Predicated region
      $region9: #{fno2d_forward.6} parent=5 // pred_check
        _
      $region10: #{fno2d_forward.6} parent=5 // pred_check_branch
        %165 = sbr.rel (%p162) target = $region12
      $region11: #{fno2d_forward.6} parent=5 // pred_region
        %s166 = ssub.s32 %s11, 1
        // Predicated region
        $region13: #{fno2d_forward.6} parent=11 // pred_check
          %p167 = pneg %p84
        $region14: #{fno2d_forward.6} parent=11 // pred_check_branch
          %169 = sbr.rel (%p167) target = $region16
        $region15: #{fno2d_forward.6} parent=11 // pred_region
          _
        $region16: #{fno2d_forward.6} parent=11 // pred_fallthru
          _
        // Predicated region
        $region17: #{fno2d_forward.6} parent=11 // pred_check
          %p170 = pneg %p105
        $region18: #{fno2d_forward.6} parent=11 // pred_check_branch
          %172 = sbr.rel (%p170) target = $region20
        $region19: #{fno2d_forward.6} parent=11 // pred_region
          _
        $region20: #{fno2d_forward.6} parent=11 // pred_fallthru
          _
        // Predicated region
        $region21: #{fno2d_forward.6} parent=11 // pred_check
          %p173 = pneg %p126
        $region22: #{fno2d_forward.6} parent=11 // pred_check_branch
          %175 = sbr.rel (%p173) target = $region24
        $region23: #{fno2d_forward.6} parent=11 // pred_region
          _
        $region24: #{fno2d_forward.6} parent=11 // pred_fallthru
          _
      $region12: #{fno2d_forward.6} parent=5 // pred_fallthru
        _
      %p176 = scmp.lt.s32.totalorder %s11, 2
      // Predicated region
      $region25: #{fno2d_forward.6} parent=5 // pred_check
        %p177 = pneg %p176
      $region26: #{fno2d_forward.6} parent=5 // pred_check_branch
        %179 = sbr.rel (%p177) target = $region28
      $region27: #{fno2d_forward.6} parent=5 // pred_region
        // Predicated region
        $region29: #{fno2d_forward.6} parent=27 // pred_check
          %p180 = pneg %p31
        $region30: #{fno2d_forward.6} parent=27 // pred_check_branch
          %182 = sbr.rel (%p180) target = $region32
        $region31: #{fno2d_forward.6} parent=27 // pred_region
          %s183 = smul.u32 2, %s11
          %p184 = scmp.lt.s32.totalorder %s183, 3
          %s185 = scalar_select %p184, %s183, 3
          %s186 = smul.addr %s185, 4
          %s187 = scalar_lea.vmem %s0, %s186
          %s188 = smul.u32 2, %s11
        $region32: #{fno2d_forward.6} parent=27 // pred_fallthru
          _
        // Predicated region
        $region33: #{fno2d_forward.6} parent=27 // pred_check
          %p189 = pneg %p57
        $region34: #{fno2d_forward.6} parent=27 // pred_check_branch
          %191 = sbr.rel (%p189) target = $region36
        $region35: #{fno2d_forward.6} parent=27 // pred_region
          %s192 = smul.u32 2, %s11
          %p193 = scmp.lt.s32.totalorder %s192, 3
          %s194 = scalar_select %p193, %s192, 3
          %s195 = smul.addr %s194, 2
          %s196 = scalar_lea.vmem %s1, %s195
          %s197 = smul.u32 2, %s11
        $region36: #{fno2d_forward.6} parent=27 // pred_fallthru
          _
      $region28: #{fno2d_forward.6} parent=5 // pred_fallthru
        _
      %p198 = scmp.le.s32.totalorder 1, %s11
      %p199 = scmp.lt.s32.totalorder %s11, 3
      %p200 = pnand %p198, %p199
      %p201 = pneg %p200
      // Predicated region
      $region37: #{fno2d_forward.6} parent=5 // pred_check
        _
      $region38: #{fno2d_forward.6} parent=5 // pred_check_branch
        %203 = sbr.rel (%p200) target = $region40
      $region39: #{fno2d_forward.6} parent=5 // pred_region
        %s204 = ssub.s32 %s11, 1
        %s205 = smul.u32 2, %s16
        %p206 = scmp.lt.s32.totalorder %s205, 3
        %s207 = scalar_select %p206, %s205, 3
        %s208 = smul.addr %s207, 4
        %s209 = scalar_lea.vmem %s0, %s208
        %p210 = pneg %p37
        %p211 = pneg %p34
        %s212 = smul.u32 2, %s16
        %p213 = scmp.lt.s32.totalorder %s212, 3
        %s214 = scalar_select %p213, %s212, 3
        %s215 = smul.addr %s214, 2
        %s216 = scalar_lea.vmem %s1, %s215
        %p217 = pneg %p63
        %p218 = pneg %p60
        %p219 = pneg %p84
        %p220 = pneg %p81
        %p221 = pneg %p105
        %p222 = pneg %p102
        %p223 = pneg %p126
        %p224 = pneg %p123
        %p225 = pneg %p152
        %p226 = pneg %p149
        %s227 = sand.u32 %s139, 1
        %s228 = sand.u32 %s139, 1
        %s229 = smul.addr %s228, 32
        %s230 = scalar_lea.vmem [#allocation2], %s229
        %s231 = smul.u32 2, %s16
        %p232 = scmp.lt.s32.totalorder %s231, 3
        %s233 = scalar_select %p232, %s231, 3
        %s234 = smul.addr %s233, 4
        %s235 = scalar_lea.vmem %s0, %s234
        %s236 = smul.u32 2, %s16
        %s237 = smul.u32 2, %s16
        %p238 = scmp.lt.s32.totalorder %s237, 3
        %s239 = scalar_select %p238, %s237, 3
        %s240 = smul.addr %s239, 2
        %s241 = scalar_lea.vmem %s1, %s240
        %s242 = smul.u32 2, %s16
        %s243 = smul.u32 2, %s16
        %v244 = vld [vmem:[%s2] sm:$0xff]
        %v245 = vld [vmem:[%s2 + $0x8] sm:$0xff]
        %v246 = vld [vmem:[%s235] sm:$0x77]
        %v247 = vld [vmem:[%s3] sm:$0xff]
        %v248 = vld [vmem:[%s3 + $0x8] sm:$0xff]
        %v249 = vld [vmem:[%s241] sm:$0xf]
        %v252 = vunpack.c.l.s4 1983009808
        %v253 = vunpack.c.0.s8 %v252
        %v254 = vlaneseq
        %v255 = vshrl.u32 %v254, 7
        %v256 = vsub.s32 %v253, %v255
        %v257 = vrot.slane %v249, %v256
        %v258 = vcombine.high %v257, %v257
        %vm259 = vcmask 15360
        %v261 = vsel %vm259, %v247, 0
        %v264 = vsel %vm259, %v248, 0
        %vm266 = vcmask 1041408
        %v267 = vsel %vm266, %v257, 0
        %v269 = vsel %vm266, %v258, 0
        %271 = vmatprep.subr.mxu0 %v269
        %272 = vmatpush1.msra.mxu0 %v267
        %273 = vmatprep.subr.mxu0 0.0
        %274 = vmatpush1.msra.mxu0 0.0
        %275 = vmatprep.subr.mxu0 0.0
        %276 = vmatpush1.msra.mxu0 0.0
        %277 = vmatprep.subr.mxu0 0.0
        %278 = vmatpush1.msra.mxu0 0.0
        %279 = vmatprep.subr.mxu0 0.0
        %280 = vmatpush1.msra.mxu0 0.0
        %281 = vmatprep.subr.mxu0 0.0
        %282 = vmatpush1.msra.mxu0 0.0
        %283 = vmatprep.subr.mxu0 0.0
        %284 = vmatpush1.msra.mxu0 0.0
        %285 = vmatprep.subr.mxu0 0.0
        %286 = vmatpush1.msra.mxu0 0.0
        %287 = vmatprep.subr.mxu0 0.0
        %288 = vmatpush1.msra.mxu0 0.0
        %289 = vmatprep.subr.mxu0 0.0
        %290 = vmatpush1.msra.mxu0 0.0
        %291 = vmatprep.subr.mxu0 0.0
        %292 = vmatpush1.msra.mxu0 0.0
        %293 = vmatprep.subr.mxu0 0.0
        %294 = vmatpush1.msra.mxu0 0.0
        %295 = vmatprep.subr.mxu0 0.0
        %296 = vmatpush1.msra.mxu0 0.0
        %297 = vmatprep.subr.mxu0 0.0
        %298 = vmatpush1.msra.mxu0 0.0
        %299 = vmatprep.subr.mxu0 0.0
        %300 = vmatpush1.msra.mxu0 0.0
        %301 = vmatprep.subr.mxu0 0.0
        %302 = vmatpush1.msra.mxu0 0.0
        %303 = vmatprep.subr.mxu0 0.0
        %304 = vmatpush1.msra.mxu0 0.0
        %305 = vmatprep.subr.mxu0 0.0
        %306 = vmatpush1.msra.mxu0 0.0
        %307 = vmatprep.subr.mxu0 0.0
        %308 = vmatpush1.msra.mxu0 0.0
        %309 = vmatprep.subr.mxu0 0.0
        %310 = vmatpush1.msra.mxu0 0.0
        %311 = vmatprep.subr.mxu0 0.0
        %312 = vmatpush1.msra.mxu0 0.0
        %313 = vmatprep.subr.mxu0 0.0
        %314 = vmatpush1.msra.mxu0 0.0
        %315 = vmatprep.subr.mxu0 0.0
        %316 = vmatpush1.msra.mxu0 0.0
        %317 = vmatprep.subr.mxu0 0.0
        %318 = vmatpush1.msra.mxu0 0.0
        %319 = vmatprep.subr.mxu0 0.0
        %320 = vmatpush1.msra.mxu0 0.0
        %321 = vmatprep.subr.mxu0 0.0
        %322 = vmatpush1.msra.mxu0 0.0
        %323 = vmatprep.subr.mxu0 0.0
        %324 = vmatpush1.msra.mxu0 0.0
        %325 = vmatprep.subr.mxu0 0.0
        %326 = vmatpush1.msra.mxu0 0.0
        %327 = vmatprep.subr.mxu0 0.0
        %328 = vmatpush1.msra.mxu0 0.0
        %329 = vmatprep.subr.mxu0 0.0
        %330 = vmatpush1.msra.mxu0 0.0
        %331 = vmatprep.subr.mxu0 0.0
        %332 = vmatpush1.msra.mxu0 0.0
        %333 = vmatprep.subr.mxu0 0.0
        %334 = vmatpush1.msra.mxu0 0.0
        %335 = vmatprep.mubr.f32.mxu0 0.0
        %336 = vmatmul.mubr.f32.gmra.mrb[0].mxu0 %v261
        %v337 = vpop.f32.mrb[0].mxu0
        %v338 = vadd.f32 0.0, %v337
        %v339 = vpop.f32.mrb[0].mxu0
        %v340 = vadd.f32 0.0, %v339
        %341 = vmatprep.mubr.f32.mxu0 0.0
        %342 = vmatmul.mubr.f32.gmra.mrb[0].mxu0 %v264
        %v343 = vpop.f32.mrb[0].mxu0
        %v344 = vadd.f32 0.0, %v343
        %v345 = vpop.f32.mrb[0].mxu0
        %v346 = vadd.f32 0.0, %v345
        %347 = vdwg.mxu0
        %v349 = vcombine.high %v246, %v246
        %vm350 = vcmask 23552
        %v352 = vsel %vm350, %v244, 0
        %v355 = vsel %vm350, %v245, 0
        %vm357 = vcmask 1042432
        %v358 = vsel %vm357, %v246, 0
        %v360 = vsel %vm357, %v349, 0
        %362 = vmatprep.subr.mxu0 %v360
        %363 = vmatpush1.msra.mxu0 %v358
        %364 = vmatprep.subr.mxu0 0.0
        %365 = vmatpush1.msra.mxu0 0.0
        %366 = vmatprep.subr.mxu0 0.0
        %367 = vmatpush1.msra.mxu0 0.0
        %368 = vmatprep.subr.mxu0 0.0
        %369 = vmatpush1.msra.mxu0 0.0
        %370 = vmatprep.subr.mxu0 0.0
        %371 = vmatpush1.msra.mxu0 0.0
        %372 = vmatprep.subr.mxu0 0.0
        %373 = vmatpush1.msra.mxu0 0.0
        %374 = vmatprep.subr.mxu0 0.0
        %375 = vmatpush1.msra.mxu0 0.0
        %376 = vmatprep.subr.mxu0 0.0
        %377 = vmatpush1.msra.mxu0 0.0
        %378 = vmatprep.subr.mxu0 0.0
        %379 = vmatpush1.msra.mxu0 0.0
        %380 = vmatprep.subr.mxu0 0.0
        %381 = vmatpush1.msra.mxu0 0.0
        %382 = vmatprep.subr.mxu0 0.0
        %383 = vmatpush1.msra.mxu0 0.0
        %384 = vmatprep.subr.mxu0 0.0
        %385 = vmatpush1.msra.mxu0 0.0
        %386 = vmatprep.subr.mxu0 0.0
        %387 = vmatpush1.msra.mxu0 0.0
        %388 = vmatprep.subr.mxu0 0.0
        %389 = vmatpush1.msra.mxu0 0.0
        %390 = vmatprep.subr.mxu0 0.0
        %391 = vmatpush1.msra.mxu0 0.0
        %392 = vmatprep.subr.mxu0 0.0
        %393 = vmatpush1.msra.mxu0 0.0
        %394 = vmatprep.subr.mxu0 0.0
        %395 = vmatpush1.msra.mxu0 0.0
        %396 = vmatprep.subr.mxu0 0.0
        %397 = vmatpush1.msra.mxu0 0.0
        %398 = vmatprep.subr.mxu0 0.0
        %399 = vmatpush1.msra.mxu0 0.0
        %400 = vmatprep.subr.mxu0 0.0
        %401 = vmatpush1.msra.mxu0 0.0
        %402 = vmatprep.subr.mxu0 0.0
        %403 = vmatpush1.msra.mxu0 0.0
        %404 = vmatprep.subr.mxu0 0.0
        %405 = vmatpush1.msra.mxu0 0.0
        %406 = vmatprep.subr.mxu0 0.0
        %407 = vmatpush1.msra.mxu0 0.0
        %408 = vmatprep.subr.mxu0 0.0
        %409 = vmatpush1.msra.mxu0 0.0
        %410 = vmatprep.subr.mxu0 0.0
        %411 = vmatpush1.msra.mxu0 0.0
        %412 = vmatprep.subr.mxu0 0.0
        %413 = vmatpush1.msra.mxu0 0.0
        %414 = vmatprep.subr.mxu0 0.0
        %415 = vmatpush1.msra.mxu0 0.0
        %416 = vmatprep.subr.mxu0 0.0
        %417 = vmatpush1.msra.mxu0 0.0
        %418 = vmatprep.subr.mxu0 0.0
        %419 = vmatpush1.msra.mxu0 0.0
        %420 = vmatprep.subr.mxu0 0.0
        %421 = vmatpush1.msra.mxu0 0.0
        %422 = vmatprep.subr.mxu0 0.0
        %423 = vmatpush1.msra.mxu0 0.0
        %424 = vmatprep.subr.mxu0 0.0
        %425 = vmatpush1.msra.mxu0 0.0
        %426 = vmatprep.mubr.f32.mxu0 0.0
        %427 = vmatmul.mubr.f32.gmra.mrb[0].mxu0 %v352
        %v428 = vpop.f32.mrb[0].mxu0
        %v429 = vadd.f32 %v338, %v428
        %v430 = vpop.f32.mrb[0].mxu0
        %v431 = vadd.f32 %v340, %v430
        %432 = vmatprep.mubr.f32.mxu0 0.0
        %433 = vmatmul.mubr.f32.gmra.mrb[0].mxu0 %v355
        %v434 = vpop.f32.mrb[0].mxu0
        %v435 = vadd.f32 %v344, %v434
        %v436 = vpop.f32.mrb[0].mxu0
        %v437 = vadd.f32 %v346, %v436
        %438 = vdwg.mxu0
        %v439 = vld [vmem:[%s4] sm:$0xff]
        %v440 = vld [vmem:[%s4 + $0x8] sm:$0xff]
        %442 = vset.pattern.permute.xlu0 0
        %443 = vperm.xlu0 %442, %v439
        %v444 = vpop.permute.xlu0 %443
        %447 = vset.pattern.permute.xlu0 0
        %448 = vperm.xlu0 %447, %v440
        %v449 = vpop.permute.xlu0 %448
        %v451 = vadd.f32 %v429, %v444
        %v452 = vadd.f32 %v431, %v444
        %v453 = vadd.f32 %v435, %v449
        %v454 = vadd.f32 %v437, %v449
        %455 = vst [vmem:[%s230] sm:$0xff] %v451
        %456 = vst [vmem:[%s230 + $0x8] sm:$0xff] %v452
        %457 = vst [vmem:[%s230 + $0x10] sm:$0xff] %v453
        %458 = vst [vmem:[%s230 + $0x18] sm:$0xff] %v454
        %s459 = sand.u32 %s139, 1
        %s460 = sand.u32 %s139, 1
        %s461 = smul.addr %s460, 32
        %s462 = scalar_lea.vmem [#allocation2], %s461
        // Predicated region
        $region41: #{fno2d_forward.6} parent=39 // pred_check
          %p463 = pneg %p149
        $region42: #{fno2d_forward.6} parent=39 // pred_check_branch
          %465 = sbr.rel (%p463) target = $region44
        $region43: #{fno2d_forward.6} parent=39 // pred_region
          %s466 = smul.u32 2, %s16
          %s467 = smul.addr %s466, 8
          %s468 = scalar_lea.vmem %s5, %s467
          // Predicated region
          $region45: #{fno2d_forward.6} parent=43 // pred_check
            _
          $region46: #{fno2d_forward.6} parent=43 // pred_check_branch
            %470 = sbr.rel (0) target = $region48
          $region47: #{fno2d_forward.6} parent=43 // pred_region
            // Predicated region
            $region49: #{fno2d_forward.6} parent=47 // pred_check
              _
            $region50: #{fno2d_forward.6} parent=47 // pred_check_branch
              %472 = sbr.rel (0) target = $region52
            $region51: #{fno2d_forward.6} parent=47 // pred_region
              loop: start=0, step=1, limit=1
              $region53: #{fno2d_forward.6} parent=51 // loop_pre_header
                _
              $region54: #{fno2d_forward.6} parent=51 // loop_header
                %s474 = sphi 0, %s478
                %p475 = scmp.ge.s32.totalorder %s474, 1
                %s479 = sphi %s462, %s462
                %s480 = sphi %s468, %s468
              $region55: #{fno2d_forward.6} parent=51 // loop_header_branch
                %477 = sbr.rel (%p475) target = $region59
              $region56: #{fno2d_forward.6} parent=51 // loop_body
                %v481 = vld [vmem:[%s479] sm:$0xff]
                %482 = vst [vmem:[%s480] sm:$0xff] %v481
                %v483 = vld [vmem:[%s479 + $0x8] sm:$0xff]
                %484 = vst [vmem:[%s480 + $0x8] sm:$0xff] %v483
                %v485 = vld [vmem:[%s479 + $0x10] sm:$0xff]
                %486 = vst [vmem:[%s480 + $0x20] sm:$0xff] %v485
                %v487 = vld [vmem:[%s479 + $0x18] sm:$0xff]
                %488 = vst [vmem:[%s480 + $0x28] sm:$0xff] %v487
              $region57: #{fno2d_forward.6} parent=51 // loop_footer
                %s478 = sadd.s32 1, %s474
              $region58: #{fno2d_forward.6} parent=51 // loop_footer_branch
                %473 = sbr.rel target = $region54
              $region59: #{fno2d_forward.6} parent=51 // loop_exit
                _
            $region52: #{fno2d_forward.6} parent=47 // pred_fallthru
              _
            // Predicated region
            $region60: #{fno2d_forward.6} parent=47 // pred_check
              _
            $region61: #{fno2d_forward.6} parent=47 // pred_check_branch
              %490 = sbr.rel target = $region63
            $region62: #{fno2d_forward.6} parent=47 // pred_region
              _
            $region63: #{fno2d_forward.6} parent=47 // pred_fallthru
              _
          $region48: #{fno2d_forward.6} parent=43 // pred_fallthru
            _
          %491 = vnop
        $region44: #{fno2d_forward.6} parent=39 // pred_fallthru
          _
      $region40: #{fno2d_forward.6} parent=5 // pred_fallthru
        _
      %p492 = scmp.le.s32.totalorder 2, %s11
      // Predicated region
      $region64: #{fno2d_forward.6} parent=5 // pred_check
        %p493 = pneg %p492
      $region65: #{fno2d_forward.6} parent=5 // pred_check_branch
        %495 = sbr.rel (%p493) target = $region67
      $region66: #{fno2d_forward.6} parent=5 // pred_region
        %s496 = ssub.s32 %s11, 2
        // Predicated region
        $region68: #{fno2d_forward.6} parent=66 // pred_check
          %p497 = pneg %p155
        $region69: #{fno2d_forward.6} parent=66 // pred_check_branch
          %499 = sbr.rel (%p497) target = $region71
        $region70: #{fno2d_forward.6} parent=66 // pred_region
          %s500 = sand.u32 %s140, 1
          %s501 = sand.u32 %s140, 1
          %s502 = smul.addr %s501, 32
          %s503 = scalar_lea.vmem [#allocation2], %s502
        $region71: #{fno2d_forward.6} parent=66 // pred_fallthru
          _
      $region67: #{fno2d_forward.6} parent=5 // pred_fallthru
        _
    $region6: #{fno2d_forward.6} parent=1 // loop_footer
      %s15 = sadd.s32 1, %s11
    $region7: #{fno2d_forward.6} parent=1 // loop_footer_branch
      %10 = sbr.rel target = $region3
    $region8: #{fno2d_forward.6} parent=1 // loop_exit
      _

// kernel: fno2d_forward.7
$region0: #{fno2d_forward.7}
  #allocation0 [shape = 'u32[]', space=smem, size = 0x4, offset = 0x4, fixed_abs, tag = 'smem constant byte address 0x4 - core index']
  #allocation1 [shape = 'u32[144,128]{1,0:T(1,128)}', space=vmem, size = 0x12000, scoped, tag = 'internal scratch']
  %s0 = inlined_call_operand.vmem [shape: f32[16,512], index: 0, kind: input, shape index: {}, may-alias: {0,9}]
  %s1 = inlined_call_operand.vmem [shape: f32[256,72], index: 1, kind: input, shape index: {}]
  %s2 = inlined_call_operand.vmem [shape: f32[256,72], index: 2, kind: input, shape index: {}]
  %s3 = inlined_call_operand.hbm [shape: f32[16,16,72], index: 3, kind: input, shape index: {}]
  %s4 = inlined_call_operand.hbm [shape: f32[16,16,72], index: 4, kind: input, shape index: {}]
  %s5 = inlined_call_operand.hbm [shape: f32[72,256], index: 5, kind: input, shape index: {}]
  %s6 = inlined_call_operand.hbm [shape: f32[72,256], index: 6, kind: input, shape index: {}]
  %s7 = inlined_call_operand.vmem [shape: f32[16,16], index: 7, kind: input, shape index: {}]
  %s8 = inlined_call_operand.vmem [shape: f32[16,1], index: 8, kind: input, shape index: {}]
  %s9 = inlined_call_operand.vmem [shape: f32[16,512], index: 9, kind: output, shape index: {}, may-alias: {0,9}]
  %s10 = sld [smem:[#allocation0]]
  $region127: #{fno2d_forward.7} parent=0
    _
  %s12 = ssub.s32 1, %s10
  %s13 = scalar_select 0, %s12, %s10
  $region1: #{fno2d_forward.7} parent=0
    #allocation2 [shape = 'u8[32768]{0}', space=vmem, size = 0x8000, scoped, tag = 'input window, operand 0']
    #allocation3 [shape = 'u8[131072]{0}', space=vmem, size = 0x20000, scoped, tag = 'input window, operand 3, single buffered']
    #allocation4 [shape = 's32[2]{0}', space=sflag, size = 0x8, scoped, tag = 'scoped memory for fno2d_forward.7']
    #allocation5 [shape = 'u8[131072]{0}', space=vmem, size = 0x20000, scoped, tag = 'input window, operand 4, single buffered']
    #allocation6 [shape = 's32[1]{0}', space=sflag, size = 0x4, scoped, tag = 'scoped memory for fno2d_forward.7']
    #allocation7 [shape = 'u8[73728]{0}', space=vmem, size = 0x12000, scoped, tag = 'input window, operand 5, single buffered']
    #allocation8 [shape = 'u8[73728]{0}', space=vmem, size = 0x12000, scoped, tag = 'input window, operand 6, single buffered']
    #allocation9 [shape = 's32[1]{0}', space=sflag, size = 0x4, scoped, tag = 'scoped memory for fno2d_forward.7']
    #allocation10 [shape = 'u8[32768]{0}', space=vmem, size = 0x8000, scoped, tag = 'output window, operand 0']
    %14 = vsyncpa [#allocation4], 0
    %15 = vsyncpa [#allocation6], 0
    %16 = vsyncpa [#allocation9], 0
    loop: start=0, step=1, limit=4
    $region2: #{fno2d_forward.7} parent=1 // loop_pre_header
      _
    $region3: #{fno2d_forward.7} parent=1 // loop_header
      %s18 = sphi 0, %s22
      %p19 = scmp.ge.s32.totalorder %s18, 4
      %s28 = sphi 0, %s30
      %s31 = sphi 0, %s28
      %s32 = sphi 0, %s31
      %s48 = sphi 0, %s32
      %s52 = sphi 0, %s52
      %s54 = sphi 0, %s52
      %s55 = sphi 0, %s54
      %s69 = sphi 0, %s55
      %s73 = sphi 0, %s73
      %s75 = sphi 0, %s73
      %s76 = sphi 0, %s75
      %s90 = sphi 0, %s76
      %s94 = sphi 0, %s94
      %s96 = sphi 0, %s94
      %s97 = sphi 0, %s96
      %s111 = sphi 0, %s97
      %s115 = sphi 0, %s115
      %s117 = sphi 0, %s115
      %s118 = sphi 0, %s117
      %s132 = sphi 0, %s118
      %s136 = sphi 0, %s136
      %s138 = sphi 0, %s136
      %s139 = sphi 0, %s138
      %s153 = sphi 0, %s139
      %s157 = sphi 0, %s157
      %s159 = sphi 0, %s157
      %s160 = sphi 0, %s159
      %s174 = sphi 0, %s160
      %s178 = sphi 0, %s178
      %s180 = sphi 0, %s178
      %s181 = sphi 0, %s180
      %s195 = sphi 0, %s181
      %s199 = sphi 0, %s199
      %s201 = sphi 0, %s199
      %s202 = sphi 0, %s201
      %s216 = sphi 0, %s202
      %s222 = sphi 0, %s224
      %s225 = sphi 0, %s222
      %s226 = sphi 0, %s225
      %s242 = sphi 0, %s226
    $region4: #{fno2d_forward.7} parent=1 // loop_header_branch
      %21 = sbr.rel (%p19) target = $region8
    $region5: #{fno2d_forward.7} parent=1 // loop_body
      %s23 = ssub.s32 %s18, 1
      %s24 = ssub.s32 %s18, 2
      %s25 = sadd.s32 %s18, 1
      %s26 = ssub.s32 %s18, %s25
      %p27 = scmp.eq.s32.totalorder %s26, 0
      %s29 = sadd.s32 %s28, 1
      %s30 = scalar_select %p27, %s28, %s29
      %p33 = pneg %p27
      %p34 = scmp.eq.s32.totalorder %s18, 1
      %p35 = por %p33, %p34
      %p36 = scmp.ne.s32.totalorder %s28, %s31
      %p37 = scmp.eq.s32.totalorder %s18, 0
      %p38 = por %p36, %p37
      %p39 = scmp.ne.s32.totalorder %s28, %s31
      %p40 = scmp.eq.s32.totalorder %s23, 1
      %p41 = por %p39, %p40
      %p42 = scmp.ne.s32.totalorder %s31, %s32
      %p43 = scmp.eq.s32.totalorder %s23, 0
      %p44 = por %p42, %p43
      %p45 = scmp.ne.s32.totalorder %s31, %s32
      %p46 = scmp.eq.s32.totalorder %s24, 1
      %p47 = por %p45, %p46
      %p49 = scmp.ne.s32.totalorder %s32, %s48
      %p50 = scmp.eq.s32.totalorder %s24, 0
      %p51 = por %p49, %p50
      %s53 = sadd.s32 %s52, 1
      %p56 = scmp.eq.s32.totalorder %s18, 1
      %p57 = scmp.ne.s32.totalorder %s52, %s54
      %p58 = scmp.eq.s32.totalorder %s18, 0
      %p59 = por %p57, %p58
      %p60 = scmp.ne.s32.totalorder %s52, %s54
      %p61 = scmp.eq.s32.totalorder %s23, 1
      %p62 = por %p60, %p61
      %p63 = scmp.ne.s32.totalorder %s54, %s55
      %p64 = scmp.eq.s32.totalorder %s23, 0
      %p65 = por %p63, %p64
      %p66 = scmp.ne.s32.totalorder %s54, %s55
      %p67 = scmp.eq.s32.totalorder %s24, 1
      %p68 = por %p66, %p67
      %p70 = scmp.ne.s32.totalorder %s55, %s69
      %p71 = scmp.eq.s32.totalorder %s24, 0
      %p72 = por %p70, %p71
      %s74 = sadd.s32 %s73, 1
      %p77 = scmp.eq.s32.totalorder %s18, 1
      %p78 = scmp.ne.s32.totalorder %s73, %s75
      %p79 = scmp.eq.s32.totalorder %s18, 0
      %p80 = por %p78, %p79
      %p81 = scmp.ne.s32.totalorder %s73, %s75
      %p82 = scmp.eq.s32.totalorder %s23, 1
      %p83 = por %p81, %p82
      %p84 = scmp.ne.s32.totalorder %s75, %s76
      %p85 = scmp.eq.s32.totalorder %s23, 0
      %p86 = por %p84, %p85
      %p87 = scmp.ne.s32.totalorder %s75, %s76
      %p88 = scmp.eq.s32.totalorder %s24, 1
      %p89 = por %p87, %p88
      %p91 = scmp.ne.s32.totalorder %s76, %s90
      %p92 = scmp.eq.s32.totalorder %s24, 0
      %p93 = por %p91, %p92
      %s95 = sadd.s32 %s94, 1
      %p98 = scmp.eq.s32.totalorder %s18, 1
      %p99 = scmp.ne.s32.totalorder %s94, %s96
      %p100 = scmp.eq.s32.totalorder %s18, 0
      %p101 = por %p99, %p100
      %p102 = scmp.ne.s32.totalorder %s94, %s96
      %p103 = scmp.eq.s32.totalorder %s23, 1
      %p104 = por %p102, %p103
      %p105 = scmp.ne.s32.totalorder %s96, %s97
      %p106 = scmp.eq.s32.totalorder %s23, 0
      %p107 = por %p105, %p106
      %p108 = scmp.ne.s32.totalorder %s96, %s97
      %p109 = scmp.eq.s32.totalorder %s24, 1
      %p110 = por %p108, %p109
      %p112 = scmp.ne.s32.totalorder %s97, %s111
      %p113 = scmp.eq.s32.totalorder %s24, 0
      %p114 = por %p112, %p113
      %s116 = sadd.s32 %s115, 1
      %p119 = scmp.eq.s32.totalorder %s18, 1
      %p120 = scmp.ne.s32.totalorder %s115, %s117
      %p121 = scmp.eq.s32.totalorder %s18, 0
      %p122 = por %p120, %p121
      %p123 = scmp.ne.s32.totalorder %s115, %s117
      %p124 = scmp.eq.s32.totalorder %s23, 1
      %p125 = por %p123, %p124
      %p126 = scmp.ne.s32.totalorder %s117, %s118
      %p127 = scmp.eq.s32.totalorder %s23, 0
      %p128 = por %p126, %p127
      %p129 = scmp.ne.s32.totalorder %s117, %s118
      %p130 = scmp.eq.s32.totalorder %s24, 1
      %p131 = por %p129, %p130
      %p133 = scmp.ne.s32.totalorder %s118, %s132
      %p134 = scmp.eq.s32.totalorder %s24, 0
      %p135 = por %p133, %p134
      %s137 = sadd.s32 %s136, 1
      %p140 = scmp.eq.s32.totalorder %s18, 1
      %p141 = scmp.ne.s32.totalorder %s136, %s138
      %p142 = scmp.eq.s32.totalorder %s18, 0
      %p143 = por %p141, %p142
      %p144 = scmp.ne.s32.totalorder %s136, %s138
      %p145 = scmp.eq.s32.totalorder %s23, 1
      %p146 = por %p144, %p145
      %p147 = scmp.ne.s32.totalorder %s138, %s139
      %p148 = scmp.eq.s32.totalorder %s23, 0
      %p149 = por %p147, %p148
      %p150 = scmp.ne.s32.totalorder %s138, %s139
      %p151 = scmp.eq.s32.totalorder %s24, 1
      %p152 = por %p150, %p151
      %p154 = scmp.ne.s32.totalorder %s139, %s153
      %p155 = scmp.eq.s32.totalorder %s24, 0
      %p156 = por %p154, %p155
      %s158 = sadd.s32 %s157, 1
      %p161 = scmp.eq.s32.totalorder %s18, 1
      %p162 = scmp.ne.s32.totalorder %s157, %s159
      %p163 = scmp.eq.s32.totalorder %s18, 0
      %p164 = por %p162, %p163
      %p165 = scmp.ne.s32.totalorder %s157, %s159
      %p166 = scmp.eq.s32.totalorder %s23, 1
      %p167 = por %p165, %p166
      %p168 = scmp.ne.s32.totalorder %s159, %s160
      %p169 = scmp.eq.s32.totalorder %s23, 0
      %p170 = por %p168, %p169
      %p171 = scmp.ne.s32.totalorder %s159, %s160
      %p172 = scmp.eq.s32.totalorder %s24, 1
      %p173 = por %p171, %p172
      %p175 = scmp.ne.s32.totalorder %s160, %s174
      %p176 = scmp.eq.s32.totalorder %s24, 0
      %p177 = por %p175, %p176
      %s179 = sadd.s32 %s178, 1
      %p182 = scmp.eq.s32.totalorder %s18, 1
      %p183 = scmp.ne.s32.totalorder %s178, %s180
      %p184 = scmp.eq.s32.totalorder %s18, 0
      %p185 = por %p183, %p184
      %p186 = scmp.ne.s32.totalorder %s178, %s180
      %p187 = scmp.eq.s32.totalorder %s23, 1
      %p188 = por %p186, %p187
      %p189 = scmp.ne.s32.totalorder %s180, %s181
      %p190 = scmp.eq.s32.totalorder %s23, 0
      %p191 = por %p189, %p190
      %p192 = scmp.ne.s32.totalorder %s180, %s181
      %p193 = scmp.eq.s32.totalorder %s24, 1
      %p194 = por %p192, %p193
      %p196 = scmp.ne.s32.totalorder %s181, %s195
      %p197 = scmp.eq.s32.totalorder %s24, 0
      %p198 = por %p196, %p197
      %s200 = sadd.s32 %s199, 1
      %p203 = scmp.eq.s32.totalorder %s18, 1
      %p204 = scmp.ne.s32.totalorder %s199, %s201
      %p205 = scmp.eq.s32.totalorder %s18, 0
      %p206 = por %p204, %p205
      %p207 = scmp.ne.s32.totalorder %s199, %s201
      %p208 = scmp.eq.s32.totalorder %s23, 1
      %p209 = por %p207, %p208
      %p210 = scmp.ne.s32.totalorder %s201, %s202
      %p211 = scmp.eq.s32.totalorder %s23, 0
      %p212 = por %p210, %p211
      %p213 = scmp.ne.s32.totalorder %s201, %s202
      %p214 = scmp.eq.s32.totalorder %s24, 1
      %p215 = por %p213, %p214
      %p217 = scmp.ne.s32.totalorder %s202, %s216
      %p218 = scmp.eq.s32.totalorder %s24, 0
      %p219 = por %p217, %p218
      %s220 = ssub.s32 %s18, %s25
      %p221 = scmp.eq.s32.totalorder %s220, 0
      %s223 = sadd.s32 %s222, 1
      %s224 = scalar_select %p221, %s222, %s223
      %p227 = pneg %p221
      %p228 = scmp.eq.s32.totalorder %s18, 1
      %p229 = por %p227, %p228
      %p230 = scmp.ne.s32.totalorder %s222, %s225
      %p231 = scmp.eq.s32.totalorder %s18, 0
      %p232 = por %p230, %p231
      %p233 = scmp.ne.s32.totalorder %s222, %s225
      %p234 = scmp.eq.s32.totalorder %s23, 1
      %p235 = por %p233, %p234
      %p236 = scmp.ne.s32.totalorder %s225, %s226
      %p237 = scmp.eq.s32.totalorder %s23, 0
      %p238 = por %p236, %p237
      %p239 = scmp.ne.s32.totalorder %s225, %s226
      %p240 = scmp.eq.s32.totalorder %s24, 1
      %p241 = por %p239, %p240
      %p243 = scmp.ne.s32.totalorder %s226, %s242
      %p244 = scmp.eq.s32.totalorder %s24, 0
      %p245 = por %p243, %p244
      %p246 = scmp.le.s32.totalorder 1, %s18
      %p247 = scmp.lt.s32.totalorder %s18, 3
      %p248 = pnand %p246, %p247
      %p249 = pneg %p248
      // Predicated region
      $region9: #{fno2d_forward.7} parent=5 // pred_check
        _
      $region10: #{fno2d_forward.7} parent=5 // pred_check_branch
        %251 = sbr.rel (%p248) target = $region12
      $region11: #{fno2d_forward.7} parent=5 // pred_region
        %s252 = ssub.s32 %s18, 1
        // Predicated region
        $region13: #{fno2d_forward.7} parent=11 // pred_check
          %p253 = pneg %p65
        $region14: #{fno2d_forward.7} parent=11 // pred_check_branch
          %255 = sbr.rel (%p253) target = $region16
        $region15: #{fno2d_forward.7} parent=11 // pred_region
          _
        $region16: #{fno2d_forward.7} parent=11 // pred_fallthru
          _
        // Predicated region
        $region17: #{fno2d_forward.7} parent=11 // pred_check
          %p256 = pneg %p86
        $region18: #{fno2d_forward.7} parent=11 // pred_check_branch
          %258 = sbr.rel (%p256) target = $region20
        $region19: #{fno2d_forward.7} parent=11 // pred_region
          _
        $region20: #{fno2d_forward.7} parent=11 // pred_fallthru
          _
        // Predicated region
        $region21: #{fno2d_forward.7} parent=11 // pred_check
          %p259 = pneg %p107
        $region22: #{fno2d_forward.7} parent=11 // pred_check_branch
          %261 = sbr.rel (%p259) target = $region24
        $region23: #{fno2d_forward.7} parent=11 // pred_region
          %s263 = ssub.s32 4096, 4096
          %264 = vsyncadd [#allocation4], %s263
          %s265 = sshll.u32 [#allocation3], 4
          %s266 = int_to_ptr.vmem [resolvable:$true] %s265
          %271 = dma.hbm_to_vmem [thread:$0]  %s3, 4096, %s266, [#allocation4], 128, 128, 8
        $region24: #{fno2d_forward.7} parent=11 // pred_fallthru
          _
        // Predicated region
        $region25: #{fno2d_forward.7} parent=11 // pred_check
          %p272 = pneg %p128
        $region26: #{fno2d_forward.7} parent=11 // pred_check_branch
          %274 = sbr.rel (%p272) target = $region28
        $region27: #{fno2d_forward.7} parent=11 // pred_region
          %s276 = ssub.s32 4096, 4096
          %277 = vsyncadd [#allocation6], %s276
          %s278 = sshll.u32 [#allocation5], 4
          %s279 = int_to_ptr.vmem [resolvable:$true] %s278
          %284 = dma.hbm_to_vmem [thread:$0]  %s4, 4096, %s279, [#allocation6], 128, 128, 8
        $region28: #{fno2d_forward.7} parent=11 // pred_fallthru
          _
        // Predicated region
        $region29: #{fno2d_forward.7} parent=11 // pred_check
          %p285 = pneg %p149
        $region30: #{fno2d_forward.7} parent=11 // pred_check_branch
          %287 = sbr.rel (%p285) target = $region32
        $region31: #{fno2d_forward.7} parent=11 // pred_region
          %s289 = ssub.s32 2304, 2304
          %290 = vsyncadd [#allocation6], %s289
          %s291 = sshll.u32 [#allocation7], 4
          %s292 = int_to_ptr.vmem [resolvable:$true] %s291
          %297 = dma.hbm_to_vmem [thread:$0]  %s5, 2304, %s292, [#allocation6], 256, 256, 16
        $region32: #{fno2d_forward.7} parent=11 // pred_fallthru
          _
        // Predicated region
        $region33: #{fno2d_forward.7} parent=11 // pred_check
          %p298 = pneg %p170
        $region34: #{fno2d_forward.7} parent=11 // pred_check_branch
          %300 = sbr.rel (%p298) target = $region36
        $region35: #{fno2d_forward.7} parent=11 // pred_region
          %s302 = ssub.s32 2304, 2304
          %303 = vsyncadd [#allocation9], %s302
          %s304 = sshll.u32 [#allocation8], 4
          %s305 = int_to_ptr.vmem [resolvable:$true] %s304
          %310 = dma.hbm_to_vmem [thread:$0]  %s6, 2304, %s305, [#allocation9], 256, 256, 16
        $region36: #{fno2d_forward.7} parent=11 // pred_fallthru
          _
        // Predicated region
        $region37: #{fno2d_forward.7} parent=11 // pred_check
          %p311 = pneg %p191
        $region38: #{fno2d_forward.7} parent=11 // pred_check_branch
          %313 = sbr.rel (%p311) target = $region40
        $region39: #{fno2d_forward.7} parent=11 // pred_region
          _
        $region40: #{fno2d_forward.7} parent=11 // pred_fallthru
          _
        // Predicated region
        $region41: #{fno2d_forward.7} parent=11 // pred_check
          %p314 = pneg %p212
        $region42: #{fno2d_forward.7} parent=11 // pred_check_branch
          %316 = sbr.rel (%p314) target = $region44
        $region43: #{fno2d_forward.7} parent=11 // pred_region
          _
        $region44: #{fno2d_forward.7} parent=11 // pred_fallthru
          _
      $region12: #{fno2d_forward.7} parent=5 // pred_fallthru
        _
      %p317 = scmp.lt.s32.totalorder %s18, 2
      // Predicated region
      $region45: #{fno2d_forward.7} parent=5 // pred_check
        %p318 = pneg %p317
      $region46: #{fno2d_forward.7} parent=5 // pred_check_branch
        %320 = sbr.rel (%p318) target = $region48
      $region47: #{fno2d_forward.7} parent=5 // pred_region
        // Predicated region
        $region49: #{fno2d_forward.7} parent=47 // pred_check
          %p321 = pneg %p38
        $region50: #{fno2d_forward.7} parent=47 // pred_check_branch
          %323 = sbr.rel (%p321) target = $region52
        $region51: #{fno2d_forward.7} parent=47 // pred_region
          %s324 = sand.u32 %s28, 1
          %s325 = sand.u32 %s28, 1
          %s326 = smul.addr %s325, 32
          %s327 = scalar_lea.vmem [#allocation2], %s326
          %s328 = smul.u32 2, %s18
          %s329 = smul.addr %s328, 8
          %s330 = scalar_lea.vmem %s0, %s329
          // Predicated region
          $region53: #{fno2d_forward.7} parent=51 // pred_check
            _
          $region54: #{fno2d_forward.7} parent=51 // pred_check_branch
            %332 = sbr.rel (0) target = $region56
          $region55: #{fno2d_forward.7} parent=51 // pred_region
            // Predicated region
            $region57: #{fno2d_forward.7} parent=55 // pred_check
              _
            $region58: #{fno2d_forward.7} parent=55 // pred_check_branch
              %334 = sbr.rel (0) target = $region60
            $region59: #{fno2d_forward.7} parent=55 // pred_region
              loop: start=0, step=1, limit=1
              $region61: #{fno2d_forward.7} parent=59 // loop_pre_header
                _
              $region62: #{fno2d_forward.7} parent=59 // loop_header
                %s336 = sphi 0, %s340
                %p337 = scmp.ge.s32.totalorder %s336, 1
                %s341 = sphi %s330, %s330
                %s342 = sphi %s327, %s327
              $region63: #{fno2d_forward.7} parent=59 // loop_header_branch
                %339 = sbr.rel (%p337) target = $region67
              $region64: #{fno2d_forward.7} parent=59 // loop_body
                %v343 = vld [vmem:[%s341] sm:$0xff]
                %344 = vst [vmem:[%s342] sm:$0xff] %v343
                %v345 = vld [vmem:[%s341 + $0x8] sm:$0xff]
                %346 = vst [vmem:[%s342 + $0x8] sm:$0xff] %v345
                %v347 = vld [vmem:[%s341 + $0x20] sm:$0xff]
                %348 = vst [vmem:[%s342 + $0x10] sm:$0xff] %v347
                %v349 = vld [vmem:[%s341 + $0x28] sm:$0xff]
                %350 = vst [vmem:[%s342 + $0x18] sm:$0xff] %v349
              $region65: #{fno2d_forward.7} parent=59 // loop_footer
                %s340 = sadd.s32 1, %s336
              $region66: #{fno2d_forward.7} parent=59 // loop_footer_branch
                %335 = sbr.rel target = $region62
              $region67: #{fno2d_forward.7} parent=59 // loop_exit
                _
            $region60: #{fno2d_forward.7} parent=55 // pred_fallthru
              _
            // Predicated region
            $region68: #{fno2d_forward.7} parent=55 // pred_check
              _
            $region69: #{fno2d_forward.7} parent=55 // pred_check_branch
              %352 = sbr.rel target = $region71
            $region70: #{fno2d_forward.7} parent=55 // pred_region
              _
            $region71: #{fno2d_forward.7} parent=55 // pred_fallthru
              _
          $region56: #{fno2d_forward.7} parent=51 // pred_fallthru
            _
          %353 = vnop
        $region52: #{fno2d_forward.7} parent=47 // pred_fallthru
          _
      $region48: #{fno2d_forward.7} parent=5 // pred_fallthru
        _
      %p354 = scmp.le.s32.totalorder 1, %s18
      %p355 = scmp.lt.s32.totalorder %s18, 3
      %p356 = pnand %p354, %p355
      %p357 = pneg %p356
      // Predicated region
      $region72: #{fno2d_forward.7} parent=5 // pred_check
        _
      $region73: #{fno2d_forward.7} parent=5 // pred_check_branch
        %359 = sbr.rel (%p356) target = $region75
      $region74: #{fno2d_forward.7} parent=5 // pred_region
        %s360 = ssub.s32 %s18, 1
        %s361 = sand.u32 %s31, 1
        %s362 = sand.u32 %s31, 1
        %s363 = smul.addr %s362, 32
        %s364 = scalar_lea.vmem [#allocation2], %s363
        // Predicated region
        $region76: #{fno2d_forward.7} parent=74 // pred_check
          %p365 = pneg %p44
        $region77: #{fno2d_forward.7} parent=74 // pred_check_branch
          %367 = sbr.rel (%p365) target = $region79
        $region78: #{fno2d_forward.7} parent=74 // pred_region
          _
        $region79: #{fno2d_forward.7} parent=74 // pred_fallthru
          _
        // Predicated region
        $region80: #{fno2d_forward.7} parent=74 // pred_check
          %p368 = pneg %p107
        $region81: #{fno2d_forward.7} parent=74 // pred_check_branch
          %370 = sbr.rel (%p368) target = $region83
        $region82: #{fno2d_forward.7} parent=74 // pred_region
          %371 = dma.done [#allocation4], 4096
        $region83: #{fno2d_forward.7} parent=74 // pred_fallthru
          _
        // Predicated region
        $region84: #{fno2d_forward.7} parent=74 // pred_check
          %p372 = pneg %p128
        $region85: #{fno2d_forward.7} parent=74 // pred_check_branch
          %374 = sbr.rel (%p372) target = $region87
        $region86: #{fno2d_forward.7} parent=74 // pred_region
          %375 = dma.done [#allocation6], 4096
        $region87: #{fno2d_forward.7} parent=74 // pred_fallthru
          _
        // Predicated region
        $region88: #{fno2d_forward.7} parent=74 // pred_check
          %p376 = pneg %p149
        $region89: #{fno2d_forward.7} parent=74 // pred_check_branch
          %378 = sbr.rel (%p376) target = $region91
        $region90: #{fno2d_forward.7} parent=74 // pred_region
          %379 = dma.done [#allocation6], 2304
        $region91: #{fno2d_forward.7} parent=74 // pred_fallthru
          _
        // Predicated region
        $region92: #{fno2d_forward.7} parent=74 // pred_check
          %p380 = pneg %p170
        $region93: #{fno2d_forward.7} parent=74 // pred_check_branch
          %382 = sbr.rel (%p380) target = $region95
        $region94: #{fno2d_forward.7} parent=74 // pred_region
          %383 = dma.done [#allocation9], 2304
        $region95: #{fno2d_forward.7} parent=74 // pred_fallthru
          _
        %s384 = sand.u32 %s31, 1
        %s385 = sand.u32 %s31, 1
        %s386 = smul.addr %s385, 32
        %s387 = scalar_lea.vmem [#allocation2], %s386
        %p388 = pneg %p44
        %p389 = pneg %p41
        %p390 = pneg %p65
        %p391 = pneg %p62
        %p392 = pneg %p86
        %p393 = pneg %p83
        %p394 = pneg %p107
        %p395 = pneg %p104
        %p396 = pneg %p128
        %p397 = pneg %p125
        %p398 = pneg %p149
        %p399 = pneg %p146
        %p400 = pneg %p170
        %p401 = pneg %p167
        %p402 = pneg %p191
        %p403 = pneg %p188
        %p404 = pneg %p212
        %p405 = pneg %p209
        %p406 = pneg %p238
        %p407 = pneg %p235
        %s408 = sand.u32 %s225, 1
        %s409 = sand.u32 %s225, 1
        %s410 = smul.addr %s409, 32
        %s411 = scalar_lea.vmem [#allocation10], %s410
        %s412 = smul.u32 2, %s23
        %s413 = smul.u32 2, %s23
        %v414 = vld [vmem:[%s364] sm:$0xff]
        %v415 = vld [vmem:[%s364 + $0x8] sm:$0xff]
        %v416 = vld [vmem:[%s364 + $0x10] sm:$0xff]
        %v417 = vld [vmem:[%s364 + $0x18] sm:$0xff]
        %v418 = vld [vmem:[%s1] sm:$0xff]
        %v419 = vld [vmem:[%s1 + $0x8] sm:$0xff]
        %v420 = vld [vmem:[%s1 + $0x10] sm:$0xff]
        %v421 = vld [vmem:[%s1 + $0x18] sm:$0xff]
        %v422 = vld [vmem:[%s1 + $0x20] sm:$0xff]
        %v423 = vld [vmem:[%s1 + $0x28] sm:$0xff]
        %v424 = vld [vmem:[%s1 + $0x30] sm:$0xff]
        %v425 = vld [vmem:[%s1 + $0x38] sm:$0xff]
        %v426 = vld [vmem:[%s1 + $0x40] sm:$0xff]
        %v427 = vld [vmem:[%s1 + $0x48] sm:$0xff]
        %v428 = vld [vmem:[%s1 + $0x50] sm:$0xff]
        %v429 = vld [vmem:[%s1 + $0x58] sm:$0xff]
        %v430 = vld [vmem:[%s1 + $0x60] sm:$0xff]
        %v431 = vld [vmem:[%s1 + $0x68] sm:$0xff]
        %v432 = vld [vmem:[%s1 + $0x70] sm:$0xff]
        %v433 = vld [vmem:[%s1 + $0x78] sm:$0xff]
        %v434 = vld [vmem:[%s1 + $0x80] sm:$0xff]
        %v435 = vld [vmem:[%s1 + $0x88] sm:$0xff]
        %v436 = vld [vmem:[%s1 + $0x90] sm:$0xff]
        %v437 = vld [vmem:[%s1 + $0x98] sm:$0xff]
        %v438 = vld [vmem:[%s1 + $0xa0] sm:$0xff]
        %v439 = vld [vmem:[%s1 + $0xa8] sm:$0xff]
        %v440 = vld [vmem:[%s1 + $0xb0] sm:$0xff]
        %v441 = vld [vmem:[%s1 + $0xb8] sm:$0xff]
        %v442 = vld [vmem:[%s1 + $0xc0] sm:$0xff]
        %v443 = vld [vmem:[%s1 + $0xc8] sm:$0xff]
        %v444 = vld [vmem:[%s1 + $0xd0] sm:$0xff]
        %v445 = vld [vmem:[%s1 + $0xd8] sm:$0xff]
        %v446 = vld [vmem:[%s1 + $0xe0] sm:$0xff]
        %v447 = vld [vmem:[%s1 + $0xe8] sm:$0xff]
        %v448 = vld [vmem:[%s1 + $0xf0] sm:$0xff]
        %v449 = vld [vmem:[%s1 + $0xf8] sm:$0xff]
        %450 = vmatprep.subr.mxu0 0.0
        %451 = vmatpush1.msra.mxu0 %v418
        %452 = vmatprep.subr.mxu0 0.0
        %453 = vmatpush1.msra.mxu0 %v419
        %454 = vmatprep.subr.mxu0 0.0
        %455 = vmatpush1.msra.mxu0 %v420
        %456 = vmatprep.subr.mxu0 0.0
        %457 = vmatpush1.msra.mxu0 %v421
        %458 = vmatprep.subr.mxu0 0.0
        %459 = vmatpush1.msra.mxu0 %v422
        %460 = vmatprep.subr.mxu0 0.0
        %461 = vmatpush1.msra.mxu0 %v423
        %462 = vmatprep.subr.mxu0 0.0
        %463 = vmatpush1.msra.mxu0 %v424
        %464 = vmatprep.subr.mxu0 0.0
        %465 = vmatpush1.msra.mxu0 %v425
        %466 = vmatprep.subr.mxu0 0.0
        %467 = vmatpush1.msra.mxu0 %v426
        %468 = vmatprep.subr.mxu0 0.0
        %469 = vmatpush1.msra.mxu0 %v427
        %470 = vmatprep.subr.mxu0 0.0
        %471 = vmatpush1.msra.mxu0 %v428
        %472 = vmatprep.subr.mxu0 0.0
        %473 = vmatpush1.msra.mxu0 %v429
        %474 = vmatprep.subr.mxu0 0.0
        %475 = vmatpush1.msra.mxu0 %v430
        %476 = vmatprep.subr.mxu0 0.0
        %477 = vmatpush1.msra.mxu0 %v431
        %478 = vmatprep.subr.mxu0 0.0
        %479 = vmatpush1.msra.mxu0 %v432
        %480 = vmatprep.subr.mxu0 0.0
        %481 = vmatpush1.msra.mxu0 %v433
        %482 = vmatprep.subr.mxu0 0.0
        %483 = vmatpush1.msra.mxu0 %v434
        %484 = vmatprep.subr.mxu0 0.0
        %485 = vmatpush1.msra.mxu0 %v435
        %486 = vmatprep.subr.mxu0 0.0
        %487 = vmatpush1.msra.mxu0 %v436
        %488 = vmatprep.subr.mxu0 0.0
        %489 = vmatpush1.msra.mxu0 %v437
        %490 = vmatprep.subr.mxu0 0.0
        %491 = vmatpush1.msra.mxu0 %v438
        %492 = vmatprep.subr.mxu0 0.0
        %493 = vmatpush1.msra.mxu0 %v439
        %494 = vmatprep.subr.mxu0 0.0
        %495 = vmatpush1.msra.mxu0 %v440
        %496 = vmatprep.subr.mxu0 0.0
        %497 = vmatpush1.msra.mxu0 %v441
        %498 = vmatprep.subr.mxu0 0.0
        %499 = vmatpush1.msra.mxu0 %v442
        %500 = vmatprep.subr.mxu0 0.0
        %501 = vmatpush1.msra.mxu0 %v443
        %502 = vmatprep.subr.mxu0 0.0
        %503 = vmatpush1.msra.mxu0 %v444
        %504 = vmatprep.subr.mxu0 0.0
        %505 = vmatpush1.msra.mxu0 %v445
        %506 = vmatprep.subr.mxu0 0.0
        %507 = vmatpush1.msra.mxu0 %v446
        %508 = vmatprep.subr.mxu0 0.0
        %509 = vmatpush1.msra.mxu0 %v447
        %510 = vmatprep.subr.mxu0 0.0
        %511 = vmatpush1.msra.mxu0 %v448
        %512 = vmatprep.subr.mxu0 0.0
        %513 = vmatpush1.msra.mxu0 %v449
        %514 = vmatprep.mubr.f32.mxu0 %v415
        %515 = vmatmul.mubr.f32.gmra.mrb[0].mxu0 %v414
        %v516 = vpop.f32.mrb[0].mxu0
        %v517 = vadd.f32 0.0, %v516
        %v518 = vpop.f32.mrb[0].mxu0
        %519 = vmatprep.mubr.f32.mxu0 %v417
        %520 = vmatmul.mubr.f32.gmra.mrb[0].mxu0 %v416
        %v521 = vpop.f32.mrb[0].mxu0
        %v522 = vadd.f32 0.0, %v521
        %v523 = vpop.f32.mrb[0].mxu0
        %524 = vdwg.mxu0
        %v525 = vld [vmem:[%s2] sm:$0xff]
        %v526 = vld [vmem:[%s2 + $0x8] sm:$0xff]
        %v527 = vld [vmem:[%s2 + $0x10] sm:$0xff]
        %v528 = vld [vmem:[%s2 + $0x18] sm:$0xff]
        %v529 = vld [vmem:[%s2 + $0x20] sm:$0xff]
        %v530 = vld [vmem:[%s2 + $0x28] sm:$0xff]
        %v531 = vld [vmem:[%s2 + $0x30] sm:$0xff]
        %v532 = vld [vmem:[%s2 + $0x38] sm:$0xff]
        %v533 = vld [vmem:[%s2 + $0x40] sm:$0xff]
        %v534 = vld [vmem:[%s2 + $0x48] sm:$0xff]
        %v535 = vld [vmem:[%s2 + $0x50] sm:$0xff]
        %v536 = vld [vmem:[%s2 + $0x58] sm:$0xff]
        %v537 = vld [vmem:[%s2 + $0x60] sm:$0xff]
        %v538 = vld [vmem:[%s2 + $0x68] sm:$0xff]
        %v539 = vld [vmem:[%s2 + $0x70] sm:$0xff]
        %v540 = vld [vmem:[%s2 + $0x78] sm:$0xff]
        %v541 = vld [vmem:[%s2 + $0x80] sm:$0xff]
        %v542 = vld [vmem:[%s2 + $0x88] sm:$0xff]
        %v543 = vld [vmem:[%s2 + $0x90] sm:$0xff]
        %v544 = vld [vmem:[%s2 + $0x98] sm:$0xff]
        %v545 = vld [vmem:[%s2 + $0xa0] sm:$0xff]
        %v546 = vld [vmem:[%s2 + $0xa8] sm:$0xff]
        %v547 = vld [vmem:[%s2 + $0xb0] sm:$0xff]
        %v548 = vld [vmem:[%s2 + $0xb8] sm:$0xff]
        %v549 = vld [vmem:[%s2 + $0xc0] sm:$0xff]
        %v550 = vld [vmem:[%s2 + $0xc8] sm:$0xff]
        %v551 = vld [vmem:[%s2 + $0xd0] sm:$0xff]
        %v552 = vld [vmem:[%s2 + $0xd8] sm:$0xff]
        %v553 = vld [vmem:[%s2 + $0xe0] sm:$0xff]
        %v554 = vld [vmem:[%s2 + $0xe8] sm:$0xff]
        %v555 = vld [vmem:[%s2 + $0xf0] sm:$0xff]
        %v556 = vld [vmem:[%s2 + $0xf8] sm:$0xff]
        %557 = vmatprep.subr.mxu0 0.0
        %558 = vmatpush1.msra.mxu0 %v525
        %559 = vmatprep.subr.mxu0 0.0
        %560 = vmatpush1.msra.mxu0 %v526
        %561 = vmatprep.subr.mxu0 0.0
        %562 = vmatpush1.msra.mxu0 %v527
        %563 = vmatprep.subr.mxu0 0.0
        %564 = vmatpush1.msra.mxu0 %v528
        %565 = vmatprep.subr.mxu0 0.0
        %566 = vmatpush1.msra.mxu0 %v529
        %567 = vmatprep.subr.mxu0 0.0
        %568 = vmatpush1.msra.mxu0 %v530
        %569 = vmatprep.subr.mxu0 0.0
        %570 = vmatpush1.msra.mxu0 %v531
        %571 = vmatprep.subr.mxu0 0.0
        %572 = vmatpush1.msra.mxu0 %v532
        %573 = vmatprep.subr.mxu0 0.0
        %574 = vmatpush1.msra.mxu0 %v533
        %575 = vmatprep.subr.mxu0 0.0
        %576 = vmatpush1.msra.mxu0 %v534
        %577 = vmatprep.subr.mxu0 0.0
        %578 = vmatpush1.msra.mxu0 %v535
        %579 = vmatprep.subr.mxu0 0.0
        %580 = vmatpush1.msra.mxu0 %v536
        %581 = vmatprep.subr.mxu0 0.0
        %582 = vmatpush1.msra.mxu0 %v537
        %583 = vmatprep.subr.mxu0 0.0
        %584 = vmatpush1.msra.mxu0 %v538
        %585 = vmatprep.subr.mxu0 0.0
        %586 = vmatpush1.msra.mxu0 %v539
        %587 = vmatprep.subr.mxu0 0.0
        %588 = vmatpush1.msra.mxu0 %v540
        %589 = vmatprep.subr.mxu0 0.0
        %590 = vmatpush1.msra.mxu0 %v541
        %591 = vmatprep.subr.mxu0 0.0
        %592 = vmatpush1.msra.mxu0 %v542
        %593 = vmatprep.subr.mxu0 0.0
        %594 = vmatpush1.msra.mxu0 %v543
        %595 = vmatprep.subr.mxu0 0.0
        %596 = vmatpush1.msra.mxu0 %v544
        %597 = vmatprep.subr.mxu0 0.0
        %598 = vmatpush1.msra.mxu0 %v545
        %599 = vmatprep.subr.mxu0 0.0
        %600 = vmatpush1.msra.mxu0 %v546
        %601 = vmatprep.subr.mxu0 0.0
        %602 = vmatpush1.msra.mxu0 %v547
        %603 = vmatprep.subr.mxu0 0.0
        %604 = vmatpush1.msra.mxu0 %v548
        %605 = vmatprep.subr.mxu0 0.0
        %606 = vmatpush1.msra.mxu0 %v549
        %607 = vmatprep.subr.mxu0 0.0
        %608 = vmatpush1.msra.mxu0 %v550
        %609 = vmatprep.subr.mxu0 0.0
        %610 = vmatpush1.msra.mxu0 %v551
        %611 = vmatprep.subr.mxu0 0.0
        %612 = vmatpush1.msra.mxu0 %v552
        %613 = vmatprep.subr.mxu0 0.0
        %614 = vmatpush1.msra.mxu0 %v553
        %615 = vmatprep.subr.mxu0 0.0
        %616 = vmatpush1.msra.mxu0 %v554
        %617 = vmatprep.subr.mxu0 0.0
        %618 = vmatpush1.msra.mxu0 %v555
        %619 = vmatprep.subr.mxu0 0.0
        %620 = vmatpush1.msra.mxu0 %v556
        %621 = vmatprep.mubr.f32.mxu0 %v415
        %622 = vmatmul.mubr.f32.gmra.mrb[0].mxu0 %v414
        %v623 = vpop.f32.mrb[0].mxu0
        %v624 = vadd.f32 0.0, %v623
        %v625 = vpop.f32.mrb[0].mxu0
        %626 = vmatprep.mubr.f32.mxu0 %v417
        %627 = vmatmul.mubr.f32.gmra.mrb[0].mxu0 %v416
        %v628 = vpop.f32.mrb[0].mxu0
        %v629 = vadd.f32 0.0, %v628
        %v630 = vpop.f32.mrb[0].mxu0
        %631 = vdwg.mxu0
        %v632 = vld [vmem:[#allocation3] sm:$0xff]
        %v633 = vld [vmem:[#allocation3 + $0x8] sm:$0xff]
        %v634 = vld [vmem:[#allocation5] sm:$0xff]
        %v635 = vld [vmem:[#allocation5 + $0x8] sm:$0xff]
        %v636 = vlaneseq
        %v637 = vshrl.u32 %v636, 7
        %v638 = vsub.s32 0, %v637
        %v639 = vrot.slane %v517, %v638
        %v640 = vmul.f32 %v632, %v639
        %v641 = vmul.f32 %v633, %v639
        %v642 = vlaneseq
        %v643 = vshrl.u32 %v642, 7
        %v644 = vsub.s32 0, %v643
        %v645 = vrot.slane %v624, %v644
        %v646 = vmul.f32 %v634, %v645
        %v647 = vmul.f32 %v635, %v645
        %v648 = vsub.f32 %v640, %v646
        %v649 = vsub.f32 %v641, %v647
        %v650 = vmul.f32 %v632, %v645
        %v651 = vmul.f32 %v633, %v645
        %v652 = vmul.f32 %v634, %v639
        %v653 = vmul.f32 %v635, %v639
        %v654 = vadd.f32 %v650, %v652
        %v655 = vadd.f32 %v651, %v653
        %s656 = scalar_lea.vmem [#allocation3], 16
        %v657 = vld [vmem:[%s656] sm:$0xff]
        %v658 = vld [vmem:[%s656 + $0x8] sm:$0xff]
        %s659 = scalar_lea.vmem [#allocation5], 16
        %v660 = vld [vmem:[%s659] sm:$0xff]
        %v661 = vld [vmem:[%s659 + $0x8] sm:$0xff]
        %v662 = vlaneseq
        %v663 = vshrl.u32 %v662, 7
        %v664 = vsub.s32 1, %v663
        %v665 = vrot.slane %v517, %v664
        %v666 = vmul.f32 %v657, %v665
        %v667 = vmul.f32 %v658, %v665
        %v668 = vlaneseq
        %v669 = vshrl.u32 %v668, 7
        %v670 = vsub.s32 1, %v669
        %v671 = vrot.slane %v624, %v670
        %v672 = vmul.f32 %v660, %v671
        %v673 = vmul.f32 %v661, %v671
        %v674 = vsub.f32 %v666, %v672
        %v675 = vsub.f32 %v667, %v673
        %v676 = vmul.f32 %v657, %v671
        %v677 = vmul.f32 %v658, %v671
        %v678 = vmul.f32 %v660, %v665
        %v679 = vmul.f32 %v661, %v665
        %v680 = vadd.f32 %v676, %v678
        %v681 = vadd.f32 %v677, %v679
        %v682 = vadd.f32 %v648, %v674
        %v683 = vadd.f32 %v649, %v675
        %v684 = vadd.f32 %v654, %v680
        %v685 = vadd.f32 %v655, %v681
        %s686 = scalar_lea.vmem [#allocation3], 32
        %v687 = vld [vmem:[%s686] sm:$0xff]
        %v688 = vld [vmem:[%s686 + $0x8] sm:$0xff]
        %s689 = scalar_lea.vmem [#allocation5], 32
        %v690 = vld [vmem:[%s689] sm:$0xff]
        %v691 = vld [vmem:[%s689 + $0x8] sm:$0xff]
        %v692 = vlaneseq
        %v693 = vshrl.u32 %v692, 7
        %v694 = vsub.s32 2, %v693
        %v695 = vrot.slane %v517, %v694
        %v696 = vmul.f32 %v687, %v695
        %v697 = vmul.f32 %v688, %v695
        %v698 = vlaneseq
        %v699 = vshrl.u32 %v698, 7
        %v700 = vsub.s32 2, %v699
        %v701 = vrot.slane %v624, %v700
        %v702 = vmul.f32 %v690, %v701
        %v703 = vmul.f32 %v691, %v701
        %v704 = vsub.f32 %v696, %v702
        %v705 = vsub.f32 %v697, %v703
        %v706 = vmul.f32 %v687, %v701
        %v707 = vmul.f32 %v688, %v701
        %v708 = vmul.f32 %v690, %v695
        %v709 = vmul.f32 %v691, %v695
        %v710 = vadd.f32 %v706, %v708
        %v711 = vadd.f32 %v707, %v709
        %v712 = vadd.f32 %v682, %v704
        %v713 = vadd.f32 %v683, %v705
        %v714 = vadd.f32 %v684, %v710
        %v715 = vadd.f32 %v685, %v711
        %s716 = scalar_lea.vmem [#allocation3], 48
        %v717 = vld [vmem:[%s716] sm:$0xff]
        %v718 = vld [vmem:[%s716 + $0x8] sm:$0xff]
        %s719 = scalar_lea.vmem [#allocation5], 48
        %v720 = vld [vmem:[%s719] sm:$0xff]
        %v721 = vld [vmem:[%s719 + $0x8] sm:$0xff]
        %v722 = vlaneseq
        %v723 = vshrl.u32 %v722, 7
        %v724 = vsub.s32 3, %v723
        %v725 = vrot.slane %v517, %v724
        %v726 = vmul.f32 %v717, %v725
        %v727 = vmul.f32 %v718, %v725
        %v728 = vlaneseq
        %v729 = vshrl.u32 %v728, 7
        %v730 = vsub.s32 3, %v729
        %v731 = vrot.slane %v624, %v730
        %v732 = vmul.f32 %v720, %v731
        %v733 = vmul.f32 %v721, %v731
        %v734 = vsub.f32 %v726, %v732
        %v735 = vsub.f32 %v727, %v733
        %v736 = vmul.f32 %v717, %v731
        %v737 = vmul.f32 %v718, %v731
        %v738 = vmul.f32 %v720, %v725
        %v739 = vmul.f32 %v721, %v725
        %v740 = vadd.f32 %v736, %v738
        %v741 = vadd.f32 %v737, %v739
        %v742 = vadd.f32 %v712, %v734
        %v743 = vadd.f32 %v713, %v735
        %v744 = vadd.f32 %v714, %v740
        %v745 = vadd.f32 %v715, %v741
        %s746 = scalar_lea.vmem [#allocation3], 64
        %v747 = vld [vmem:[%s746] sm:$0xff]
        %v748 = vld [vmem:[%s746 + $0x8] sm:$0xff]
        %s749 = scalar_lea.vmem [#allocation5], 64
        %v750 = vld [vmem:[%s749] sm:$0xff]
        %v751 = vld [vmem:[%s749 + $0x8] sm:$0xff]
        %v752 = vlaneseq
        %v753 = vshrl.u32 %v752, 7
        %v754 = vsub.s32 4, %v753
        %v755 = vrot.slane %v517, %v754
        %v756 = vmul.f32 %v747, %v755
        %v757 = vmul.f32 %v748, %v755
        %v758 = vlaneseq
        %v759 = vshrl.u32 %v758, 7
        %v760 = vsub.s32 4, %v759
        %v761 = vrot.slane %v624, %v760
        %v762 = vmul.f32 %v750, %v761
        %v763 = vmul.f32 %v751, %v761
        %v764 = vsub.f32 %v756, %v762
        %v765 = vsub.f32 %v757, %v763
        %v766 = vmul.f32 %v747, %v761
        %v767 = vmul.f32 %v748, %v761
        %v768 = vmul.f32 %v750, %v755
        %v769 = vmul.f32 %v751, %v755
        %v770 = vadd.f32 %v766, %v768
        %v771 = vadd.f32 %v767, %v769
        %v772 = vadd.f32 %v742, %v764
        %v773 = vadd.f32 %v743, %v765
        %v774 = vadd.f32 %v744, %v770
        %v775 = vadd.f32 %v745, %v771
        %s776 = scalar_lea.vmem [#allocation3], 80
        %v777 = vld [vmem:[%s776] sm:$0xff]
        %v778 = vld [vmem:[%s776 + $0x8] sm:$0xff]
        %s779 = scalar_lea.vmem [#allocation5], 80
        %v780 = vld [vmem:[%s779] sm:$0xff]
        %v781 = vld [vmem:[%s779 + $0x8] sm:$0xff]
        %v782 = vlaneseq
        %v783 = vshrl.u32 %v782, 7
        %v784 = vsub.s32 5, %v783
        %v785 = vrot.slane %v517, %v784
        %v786 = vmul.f32 %v777, %v785
        %v787 = vmul.f32 %v778, %v785
        %v788 = vlaneseq
        %v789 = vshrl.u32 %v788, 7
        %v790 = vsub.s32 5, %v789
        %v791 = vrot.slane %v624, %v790
        %v792 = vmul.f32 %v780, %v791
        %v793 = vmul.f32 %v781, %v791
        %v794 = vsub.f32 %v786, %v792
        %v795 = vsub.f32 %v787, %v793
        %v796 = vmul.f32 %v777, %v791
        %v797 = vmul.f32 %v778, %v791
        %v798 = vmul.f32 %v780, %v785
        %v799 = vmul.f32 %v781, %v785
        %v800 = vadd.f32 %v796, %v798
        %v801 = vadd.f32 %v797, %v799
        %v802 = vadd.f32 %v772, %v794
        %v803 = vadd.f32 %v773, %v795
        %v804 = vadd.f32 %v774, %v800
        %v805 = vadd.f32 %v775, %v801
        %s806 = scalar_lea.vmem [#allocation3], 96
        %v807 = vld [vmem:[%s806] sm:$0xff]
        %v808 = vld [vmem:[%s806 + $0x8] sm:$0xff]
        %s809 = scalar_lea.vmem [#allocation5], 96
        %v810 = vld [vmem:[%s809] sm:$0xff]
        %v811 = vld [vmem:[%s809 + $0x8] sm:$0xff]
        %v812 = vlaneseq
        %v813 = vshrl.u32 %v812, 7
        %v814 = vsub.s32 6, %v813
        %v815 = vrot.slane %v517, %v814
        %v816 = vmul.f32 %v807, %v815
        %v817 = vmul.f32 %v808, %v815
        %v818 = vlaneseq
        %v819 = vshrl.u32 %v818, 7
        %v820 = vsub.s32 6, %v819
        %v821 = vrot.slane %v624, %v820
        %v822 = vmul.f32 %v810, %v821
        %v823 = vmul.f32 %v811, %v821
        %v824 = vsub.f32 %v816, %v822
        %v825 = vsub.f32 %v817, %v823
        %v826 = vmul.f32 %v807, %v821
        %v827 = vmul.f32 %v808, %v821
        %v828 = vmul.f32 %v810, %v815
        %v829 = vmul.f32 %v811, %v815
        %v830 = vadd.f32 %v826, %v828
        %v831 = vadd.f32 %v827, %v829
        %v832 = vadd.f32 %v802, %v824
        %v833 = vadd.f32 %v803, %v825
        %v834 = vadd.f32 %v804, %v830
        %v835 = vadd.f32 %v805, %v831
        %s836 = scalar_lea.vmem [#allocation3], 112
        %v837 = vld [vmem:[%s836] sm:$0xff]
        %v838 = vld [vmem:[%s836 + $0x8] sm:$0xff]
        %s839 = scalar_lea.vmem [#allocation5], 112
        %v840 = vld [vmem:[%s839] sm:$0xff]
        %v841 = vld [vmem:[%s839 + $0x8] sm:$0xff]
        %v842 = vlaneseq
        %v843 = vshrl.u32 %v842, 7
        %v844 = vsub.s32 7, %v843
        %v845 = vrot.slane %v517, %v844
        %v846 = vmul.f32 %v837, %v845
        %v847 = vmul.f32 %v838, %v845
        %v848 = vlaneseq
        %v849 = vshrl.u32 %v848, 7
        %v850 = vsub.s32 7, %v849
        %v851 = vrot.slane %v624, %v850
        %v852 = vmul.f32 %v840, %v851
        %v853 = vmul.f32 %v841, %v851
        %v854 = vsub.f32 %v846, %v852
        %v855 = vsub.f32 %v847, %v853
        %v856 = vmul.f32 %v837, %v851
        %v857 = vmul.f32 %v838, %v851
        %v858 = vmul.f32 %v840, %v845
        %v859 = vmul.f32 %v841, %v845
        %v860 = vadd.f32 %v856, %v858
        %v861 = vadd.f32 %v857, %v859
        %v862 = vadd.f32 %v832, %v854
        %v863 = vadd.f32 %v833, %v855
        %v864 = vadd.f32 %v834, %v860
        %v865 = vadd.f32 %v835, %v861
        %s866 = scalar_lea.vmem [#allocation3], 128
        %v867 = vld [vmem:[%s866] sm:$0xff]
        %v868 = vld [vmem:[%s866 + $0x8] sm:$0xff]
        %s869 = scalar_lea.vmem [#allocation5], 128
        %v870 = vld [vmem:[%s869] sm:$0xff]
        %v871 = vld [vmem:[%s869 + $0x8] sm:$0xff]
        %v872 = vlaneseq
        %v873 = vshrl.u32 %v872, 7
        %v874 = vsub.s32 0, %v873
        %v875 = vrot.slane %v522, %v874
        %v876 = vmul.f32 %v867, %v875
        %v877 = vmul.f32 %v868, %v875
        %v878 = vlaneseq
        %v879 = vshrl.u32 %v878, 7
        %v880 = vsub.s32 0, %v879
        %v881 = vrot.slane %v629, %v880
        %v882 = vmul.f32 %v870, %v881
        %v883 = vmul.f32 %v871, %v881
        %v884 = vsub.f32 %v876, %v882
        %v885 = vsub.f32 %v877, %v883
        %v886 = vmul.f32 %v867, %v881
        %v887 = vmul.f32 %v868, %v881
        %v888 = vmul.f32 %v870, %v875
        %v889 = vmul.f32 %v871, %v875
        %v890 = vadd.f32 %v886, %v888
        %v891 = vadd.f32 %v887, %v889
        %v892 = vadd.f32 %v862, %v884
        %v893 = vadd.f32 %v863, %v885
        %v894 = vadd.f32 %v864, %v890
        %v895 = vadd.f32 %v865, %v891
        %s896 = scalar_lea.vmem [#allocation3], 144
        %v897 = vld [vmem:[%s896] sm:$0xff]
        %v898 = vld [vmem:[%s896 + $0x8] sm:$0xff]
        %s899 = scalar_lea.vmem [#allocation5], 144
        %v900 = vld [vmem:[%s899] sm:$0xff]
        %v901 = vld [vmem:[%s899 + $0x8] sm:$0xff]
        %v902 = vlaneseq
        %v903 = vshrl.u32 %v902, 7
        %v904 = vsub.s32 1, %v903
        %v905 = vrot.slane %v522, %v904
        %v906 = vmul.f32 %v897, %v905
        %v907 = vmul.f32 %v898, %v905
        %v908 = vlaneseq
        %v909 = vshrl.u32 %v908, 7
        %v910 = vsub.s32 1, %v909
        %v911 = vrot.slane %v629, %v910
        %v912 = vmul.f32 %v900, %v911
        %v913 = vmul.f32 %v901, %v911
        %v914 = vsub.f32 %v906, %v912
        %v915 = vsub.f32 %v907, %v913
        %v916 = vmul.f32 %v897, %v911
        %v917 = vmul.f32 %v898, %v911
        %v918 = vmul.f32 %v900, %v905
        %v919 = vmul.f32 %v901, %v905
        %v920 = vadd.f32 %v916, %v918
        %v921 = vadd.f32 %v917, %v919
        %v922 = vadd.f32 %v892, %v914
        %v923 = vadd.f32 %v893, %v915
        %v924 = vadd.f32 %v894, %v920
        %v925 = vadd.f32 %v895, %v921
        %s926 = scalar_lea.vmem [#allocation3], 160
        %v927 = vld [vmem:[%s926] sm:$0xff]
        %v928 = vld [vmem:[%s926 + $0x8] sm:$0xff]
        %s929 = scalar_lea.vmem [#allocation5], 160
        %v930 = vld [vmem:[%s929] sm:$0xff]
        %v931 = vld [vmem:[%s929 + $0x8] sm:$0xff]
        %v932 = vlaneseq
        %v933 = vshrl.u32 %v932, 7
        %v934 = vsub.s32 2, %v933
        %v935 = vrot.slane %v522, %v934
        %v936 = vmul.f32 %v927, %v935
        %v937 = vmul.f32 %v928, %v935
        %v938 = vlaneseq
        %v939 = vshrl.u32 %v938, 7
        %v940 = vsub.s32 2, %v939
        %v941 = vrot.slane %v629, %v940
        %v942 = vmul.f32 %v930, %v941
        %v943 = vmul.f32 %v931, %v941
        %v944 = vsub.f32 %v936, %v942
        %v945 = vsub.f32 %v937, %v943
        %v946 = vmul.f32 %v927, %v941
        %v947 = vmul.f32 %v928, %v941
        %v948 = vmul.f32 %v930, %v935
        %v949 = vmul.f32 %v931, %v935
        %v950 = vadd.f32 %v946, %v948
        %v951 = vadd.f32 %v947, %v949
        %v952 = vadd.f32 %v922, %v944
        %v953 = vadd.f32 %v923, %v945
        %v954 = vadd.f32 %v924, %v950
        %v955 = vadd.f32 %v925, %v951
        %s956 = scalar_lea.vmem [#allocation3], 176
        %v957 = vld [vmem:[%s956] sm:$0xff]
        %v958 = vld [vmem:[%s956 + $0x8] sm:$0xff]
        %s959 = scalar_lea.vmem [#allocation5], 176
        %v960 = vld [vmem:[%s959] sm:$0xff]
        %v961 = vld [vmem:[%s959 + $0x8] sm:$0xff]
        %v962 = vlaneseq
        %v963 = vshrl.u32 %v962, 7
        %v964 = vsub.s32 3, %v963
        %v965 = vrot.slane %v522, %v964
        %v966 = vmul.f32 %v957, %v965
        %v967 = vmul.f32 %v958, %v965
        %v968 = vlaneseq
        %v969 = vshrl.u32 %v968, 7
        %v970 = vsub.s32 3, %v969
        %v971 = vrot.slane %v629, %v970
        %v972 = vmul.f32 %v960, %v971
        %v973 = vmul.f32 %v961, %v971
        %v974 = vsub.f32 %v966, %v972
        %v975 = vsub.f32 %v967, %v973
        %v976 = vmul.f32 %v957, %v971
        %v977 = vmul.f32 %v958, %v971
        %v978 = vmul.f32 %v960, %v965
        %v979 = vmul.f32 %v961, %v965
        %v980 = vadd.f32 %v976, %v978
        %v981 = vadd.f32 %v977, %v979
        %v982 = vadd.f32 %v952, %v974
        %v983 = vadd.f32 %v953, %v975
        %v984 = vadd.f32 %v954, %v980
        %v985 = vadd.f32 %v955, %v981
        %s986 = scalar_lea.vmem [#allocation3], 192
        %v987 = vld [vmem:[%s986] sm:$0xff]
        %v988 = vld [vmem:[%s986 + $0x8] sm:$0xff]
        %s989 = scalar_lea.vmem [#allocation5], 192
        %v990 = vld [vmem:[%s989] sm:$0xff]
        %v991 = vld [vmem:[%s989 + $0x8] sm:$0xff]
        %v992 = vlaneseq
        %v993 = vshrl.u32 %v992, 7
        %v994 = vsub.s32 4, %v993
        %v995 = vrot.slane %v522, %v994
        %v996 = vmul.f32 %v987, %v995
        %v997 = vmul.f32 %v988, %v995
        %v998 = vlaneseq
        %v999 = vshrl.u32 %v998, 7
        %v1000 = vsub.s32 4, %v999
        %v1001 = vrot.slane %v629, %v1000
        %v1002 = vmul.f32 %v990, %v1001
        %v1003 = vmul.f32 %v991, %v1001
        %v1004 = vsub.f32 %v996, %v1002
        %v1005 = vsub.f32 %v997, %v1003
        %v1006 = vmul.f32 %v987, %v1001
        %v1007 = vmul.f32 %v988, %v1001
        %v1008 = vmul.f32 %v990, %v995
        %v1009 = vmul.f32 %v991, %v995
        %v1010 = vadd.f32 %v1006, %v1008
        %v1011 = vadd.f32 %v1007, %v1009
        %v1012 = vadd.f32 %v982, %v1004
        %v1013 = vadd.f32 %v983, %v1005
        %v1014 = vadd.f32 %v984, %v1010
        %v1015 = vadd.f32 %v985, %v1011
        %s1016 = scalar_lea.vmem [#allocation3], 208
        %v1017 = vld [vmem:[%s1016] sm:$0xff]
        %v1018 = vld [vmem:[%s1016 + $0x8] sm:$0xff]
        %s1019 = scalar_lea.vmem [#allocation5], 208
        %v1020 = vld [vmem:[%s1019] sm:$0xff]
        %v1021 = vld [vmem:[%s1019 + $0x8] sm:$0xff]
        %v1022 = vlaneseq
        %v1023 = vshrl.u32 %v1022, 7
        %v1024 = vsub.s32 5, %v1023
        %v1025 = vrot.slane %v522, %v1024
        %v1026 = vmul.f32 %v1017, %v1025
        %v1027 = vmul.f32 %v1018, %v1025
        %v1028 = vlaneseq
        %v1029 = vshrl.u32 %v1028, 7
        %v1030 = vsub.s32 5, %v1029
        %v1031 = vrot.slane %v629, %v1030
        %v1032 = vmul.f32 %v1020, %v1031
        %v1033 = vmul.f32 %v1021, %v1031
        %v1034 = vsub.f32 %v1026, %v1032
        %v1035 = vsub.f32 %v1027, %v1033
        %v1036 = vmul.f32 %v1017, %v1031
        %v1037 = vmul.f32 %v1018, %v1031
        %v1038 = vmul.f32 %v1020, %v1025
        %v1039 = vmul.f32 %v1021, %v1025
        %v1040 = vadd.f32 %v1036, %v1038
        %v1041 = vadd.f32 %v1037, %v1039
        %v1042 = vadd.f32 %v1012, %v1034
        %v1043 = vadd.f32 %v1013, %v1035
        %v1044 = vadd.f32 %v1014, %v1040
        %v1045 = vadd.f32 %v1015, %v1041
        %s1046 = scalar_lea.vmem [#allocation3], 224
        %v1047 = vld [vmem:[%s1046] sm:$0xff]
        %v1048 = vld [vmem:[%s1046 + $0x8] sm:$0xff]
        %s1049 = scalar_lea.vmem [#allocation5], 224
        %v1050 = vld [vmem:[%s1049] sm:$0xff]
        %v1051 = vld [vmem:[%s1049 + $0x8] sm:$0xff]
        %v1052 = vlaneseq
        %v1053 = vshrl.u32 %v1052, 7
        %v1054 = vsub.s32 6, %v1053
        %v1055 = vrot.slane %v522, %v1054
        %v1056 = vmul.f32 %v1047, %v1055
        %v1057 = vmul.f32 %v1048, %v1055
        %v1058 = vlaneseq
        %v1059 = vshrl.u32 %v1058, 7
        %v1060 = vsub.s32 6, %v1059
        %v1061 = vrot.slane %v629, %v1060
        %v1062 = vmul.f32 %v1050, %v1061
        %v1063 = vmul.f32 %v1051, %v1061
        %v1064 = vsub.f32 %v1056, %v1062
        %v1065 = vsub.f32 %v1057, %v1063
        %v1066 = vmul.f32 %v1047, %v1061
        %v1067 = vmul.f32 %v1048, %v1061
        %v1068 = vmul.f32 %v1050, %v1055
        %v1069 = vmul.f32 %v1051, %v1055
        %v1070 = vadd.f32 %v1066, %v1068
        %v1071 = vadd.f32 %v1067, %v1069
        %v1072 = vadd.f32 %v1042, %v1064
        %v1073 = vadd.f32 %v1043, %v1065
        %v1074 = vadd.f32 %v1044, %v1070
        %v1075 = vadd.f32 %v1045, %v1071
        %s1076 = scalar_lea.vmem [#allocation3], 240
        %v1077 = vld [vmem:[%s1076] sm:$0xff]
        %v1078 = vld [vmem:[%s1076 + $0x8] sm:$0xff]
        %s1079 = scalar_lea.vmem [#allocation5], 240
        %v1080 = vld [vmem:[%s1079] sm:$0xff]
        %v1081 = vld [vmem:[%s1079 + $0x8] sm:$0xff]
        %v1082 = vlaneseq
        %v1083 = vshrl.u32 %v1082, 7
        %v1084 = vsub.s32 7, %v1083
        %v1085 = vrot.slane %v522, %v1084
        %v1086 = vmul.f32 %v1077, %v1085
        %v1087 = vmul.f32 %v1078, %v1085
        %v1088 = vlaneseq
        %v1089 = vshrl.u32 %v1088, 7
        %v1090 = vsub.s32 7, %v1089
        %v1091 = vrot.slane %v629, %v1090
        %v1092 = vmul.f32 %v1080, %v1091
        %v1093 = vmul.f32 %v1081, %v1091
        %v1094 = vsub.f32 %v1086, %v1092
        %v1095 = vsub.f32 %v1087, %v1093
        %v1096 = vmul.f32 %v1077, %v1091
        %v1097 = vmul.f32 %v1078, %v1091
        %v1098 = vmul.f32 %v1080, %v1085
        %v1099 = vmul.f32 %v1081, %v1085
        %v1100 = vadd.f32 %v1096, %v1098
        %v1101 = vadd.f32 %v1097, %v1099
        %v1102 = vadd.f32 %v1072, %v1094
        %v1103 = vadd.f32 %v1073, %v1095
        %v1104 = vadd.f32 %v1074, %v1100
        %v1105 = vadd.f32 %v1075, %v1101
        %v1106 = vld [vmem:[#allocation7] sm:$0xff]
        %v1107 = vld [vmem:[#allocation7 + $0x8] sm:$0xff]
        %v1108 = vld [vmem:[#allocation7 + $0x10] sm:$0xff]
        %v1109 = vld [vmem:[#allocation7 + $0x18] sm:$0xff]
        %v1110 = vld [vmem:[#allocation7 + $0x20] sm:$0xff]
        %v1111 = vld [vmem:[#allocation7 + $0x28] sm:$0xff]
        %v1112 = vld [vmem:[#allocation7 + $0x30] sm:$0xff]
        %v1113 = vld [vmem:[#allocation7 + $0x38] sm:$0xff]
        %v1114 = vld [vmem:[#allocation7 + $0x40] sm:$0xff]
        %v1115 = vld [vmem:[#allocation7 + $0x48] sm:$0xff]
        %v1116 = vld [vmem:[#allocation7 + $0x50] sm:$0xff]
        %v1117 = vld [vmem:[#allocation7 + $0x58] sm:$0xff]
        %v1118 = vld [vmem:[#allocation7 + $0x60] sm:$0xff]
        %v1119 = vld [vmem:[#allocation7 + $0x68] sm:$0xff]
        %v1120 = vld [vmem:[#allocation7 + $0x70] sm:$0xff]
        %v1121 = vld [vmem:[#allocation7 + $0x78] sm:$0xff]
        %v1122 = vld [vmem:[#allocation7 + $0x80] sm:$0xff]
        %v1123 = vld [vmem:[#allocation7 + $0x88] sm:$0xff]
        %v1124 = vld [vmem:[#allocation8] sm:$0xff]
        %v1125 = vld [vmem:[#allocation8 + $0x8] sm:$0xff]
        %v1126 = vld [vmem:[#allocation8 + $0x10] sm:$0xff]
        %v1127 = vld [vmem:[#allocation8 + $0x18] sm:$0xff]
        %v1128 = vld [vmem:[#allocation8 + $0x20] sm:$0xff]
        %v1129 = vld [vmem:[#allocation8 + $0x28] sm:$0xff]
        %v1130 = vld [vmem:[#allocation8 + $0x30] sm:$0xff]
        %v1131 = vld [vmem:[#allocation8 + $0x38] sm:$0xff]
        %v1132 = vld [vmem:[#allocation8 + $0x40] sm:$0xff]
        %v1133 = vld [vmem:[#allocation8 + $0x48] sm:$0xff]
        %v1134 = vld [vmem:[#allocation8 + $0x50] sm:$0xff]
        %v1135 = vld [vmem:[#allocation8 + $0x58] sm:$0xff]
        %v1136 = vld [vmem:[#allocation8 + $0x60] sm:$0xff]
        %v1137 = vld [vmem:[#allocation8 + $0x68] sm:$0xff]
        %v1138 = vld [vmem:[#allocation8 + $0x70] sm:$0xff]
        %v1139 = vld [vmem:[#allocation8 + $0x78] sm:$0xff]
        %v1140 = vld [vmem:[#allocation8 + $0x80] sm:$0xff]
        %v1141 = vld [vmem:[#allocation8 + $0x88] sm:$0xff]
        %vm1142 = vcmask 588800
        %v1144 = vsel %vm1142, %v1104, 0
        %v1147 = vsel %vm1142, %v1105, 0
        %1149 = vmatprep.subr.mxu0 %v1125
        %1150 = vmatpush1.msra.mxu0 %v1124
        %1151 = vmatprep.subr.mxu0 %v1127
        %1152 = vmatpush1.msra.mxu0 %v1126
        %1153 = vmatprep.subr.mxu0 %v1129
        %1154 = vmatpush1.msra.mxu0 %v1128
        %1155 = vmatprep.subr.mxu0 %v1131
        %1156 = vmatpush1.msra.mxu0 %v1130
        %1157 = vmatprep.subr.mxu0 %v1133
        %1158 = vmatpush1.msra.mxu0 %v1132
        %1159 = vmatprep.subr.mxu0 %v1135
        %1160 = vmatpush1.msra.mxu0 %v1134
        %1161 = vmatprep.subr.mxu0 %v1137
        %1162 = vmatpush1.msra.mxu0 %v1136
        %1163 = vmatprep.subr.mxu0 %v1139
        %1164 = vmatpush1.msra.mxu0 %v1138
        %1165 = vmatprep.subr.mxu0 %v1141
        %1166 = vmatpush1.msra.mxu0 %v1140
        %1167 = vmatprep.subr.mxu0 0.0
        %1168 = vmatpush1.msra.mxu0 0.0
        %1169 = vmatprep.subr.mxu0 0.0
        %1170 = vmatpush1.msra.mxu0 0.0
        %1171 = vmatprep.subr.mxu0 0.0
        %1172 = vmatpush1.msra.mxu0 0.0
        %1173 = vmatprep.subr.mxu0 0.0
        %1174 = vmatpush1.msra.mxu0 0.0
        %1175 = vmatprep.subr.mxu0 0.0
        %1176 = vmatpush1.msra.mxu0 0.0
        %1177 = vmatprep.subr.mxu0 0.0
        %1178 = vmatpush1.msra.mxu0 0.0
        %1179 = vmatprep.subr.mxu0 0.0
        %1180 = vmatpush1.msra.mxu0 0.0
        %1181 = vmatprep.subr.mxu0 0.0
        %1182 = vmatpush1.msra.mxu0 0.0
        %1183 = vmatprep.subr.mxu0 0.0
        %1184 = vmatpush1.msra.mxu0 0.0
        %1185 = vmatprep.subr.mxu0 0.0
        %1186 = vmatpush1.msra.mxu0 0.0
        %1187 = vmatprep.subr.mxu0 0.0
        %1188 = vmatpush1.msra.mxu0 0.0
        %1189 = vmatprep.subr.mxu0 0.0
        %1190 = vmatpush1.msra.mxu0 0.0
        %1191 = vmatprep.subr.mxu0 0.0
        %1192 = vmatpush1.msra.mxu0 0.0
        %1193 = vmatprep.subr.mxu0 0.0
        %1194 = vmatpush1.msra.mxu0 0.0
        %1195 = vmatprep.subr.mxu0 0.0
        %1196 = vmatpush1.msra.mxu0 0.0
        %1197 = vmatprep.subr.mxu0 0.0
        %1198 = vmatpush1.msra.mxu0 0.0
        %1199 = vmatprep.subr.mxu0 0.0
        %1200 = vmatpush1.msra.mxu0 0.0
        %1201 = vmatprep.subr.mxu0 0.0
        %1202 = vmatpush1.msra.mxu0 0.0
        %1203 = vmatprep.subr.mxu0 0.0
        %1204 = vmatpush1.msra.mxu0 0.0
        %1205 = vmatprep.subr.mxu0 0.0
        %1206 = vmatpush1.msra.mxu0 0.0
        %1207 = vmatprep.subr.mxu0 0.0
        %1208 = vmatpush1.msra.mxu0 0.0
        %1209 = vmatprep.subr.mxu0 0.0
        %1210 = vmatpush1.msra.mxu0 0.0
        %1211 = vmatprep.subr.mxu0 0.0
        %1212 = vmatpush1.msra.mxu0 0.0
        %1213 = vmatprep.mubr.f32.mxu0 0.0
        %1214 = vmatmul.mubr.f32.gmra.mrb[0].mxu0 %v1144
        %v1215 = vpop.f32.mrb[0].mxu0
        %v1216 = vadd.f32 0.0, %v1215
        %v1217 = vpop.f32.mrb[0].mxu0
        %v1218 = vadd.f32 0.0, %v1217
        %1219 = vmatprep.mubr.f32.mxu0 0.0
        %1220 = vmatmul.mubr.f32.gmra.mrb[0].mxu0 %v1147
        %v1221 = vpop.f32.mrb[0].mxu0
        %v1222 = vadd.f32 0.0, %v1221
        %v1223 = vpop.f32.mrb[0].mxu0
        %v1224 = vadd.f32 0.0, %v1223
        %1225 = vdwg.mxu0
        %v1227 = vsel %vm1142, %v1102, 0
        %v1230 = vsel %vm1142, %v1103, 0
        %1232 = vmatprep.subr.mxu0 %v1107
        %1233 = vmatpush1.msra.mxu0 %v1106
        %1234 = vmatprep.subr.mxu0 %v1109
        %1235 = vmatpush1.msra.mxu0 %v1108
        %1236 = vmatprep.subr.mxu0 %v1111
        %1237 = vmatpush1.msra.mxu0 %v1110
        %1238 = vmatprep.subr.mxu0 %v1113
        %1239 = vmatpush1.msra.mxu0 %v1112
        %1240 = vmatprep.subr.mxu0 %v1115
        %1241 = vmatpush1.msra.mxu0 %v1114
        %1242 = vmatprep.subr.mxu0 %v1117
        %1243 = vmatpush1.msra.mxu0 %v1116
        %1244 = vmatprep.subr.mxu0 %v1119
        %1245 = vmatpush1.msra.mxu0 %v1118
        %1246 = vmatprep.subr.mxu0 %v1121
        %1247 = vmatpush1.msra.mxu0 %v1120
        %1248 = vmatprep.subr.mxu0 %v1123
        %1249 = vmatpush1.msra.mxu0 %v1122
        %1250 = vmatprep.subr.mxu0 0.0
        %1251 = vmatpush1.msra.mxu0 0.0
        %1252 = vmatprep.subr.mxu0 0.0
        %1253 = vmatpush1.msra.mxu0 0.0
        %1254 = vmatprep.subr.mxu0 0.0
        %1255 = vmatpush1.msra.mxu0 0.0
        %1256 = vmatprep.subr.mxu0 0.0
        %1257 = vmatpush1.msra.mxu0 0.0
        %1258 = vmatprep.subr.mxu0 0.0
        %1259 = vmatpush1.msra.mxu0 0.0
        %1260 = vmatprep.subr.mxu0 0.0
        %1261 = vmatpush1.msra.mxu0 0.0
        %1262 = vmatprep.subr.mxu0 0.0
        %1263 = vmatpush1.msra.mxu0 0.0
        %1264 = vmatprep.subr.mxu0 0.0
        %1265 = vmatpush1.msra.mxu0 0.0
        %1266 = vmatprep.subr.mxu0 0.0
        %1267 = vmatpush1.msra.mxu0 0.0
        %1268 = vmatprep.subr.mxu0 0.0
        %1269 = vmatpush1.msra.mxu0 0.0
        %1270 = vmatprep.subr.mxu0 0.0
        %1271 = vmatpush1.msra.mxu0 0.0
        %1272 = vmatprep.subr.mxu0 0.0
        %1273 = vmatpush1.msra.mxu0 0.0
        %1274 = vmatprep.subr.mxu0 0.0
        %1275 = vmatpush1.msra.mxu0 0.0
        %1276 = vmatprep.subr.mxu0 0.0
        %1277 = vmatpush1.msra.mxu0 0.0
        %1278 = vmatprep.subr.mxu0 0.0
        %1279 = vmatpush1.msra.mxu0 0.0
        %1280 = vmatprep.subr.mxu0 0.0
        %1281 = vmatpush1.msra.mxu0 0.0
        %1282 = vmatprep.subr.mxu0 0.0
        %1283 = vmatpush1.msra.mxu0 0.0
        %1284 = vmatprep.subr.mxu0 0.0
        %1285 = vmatpush1.msra.mxu0 0.0
        %1286 = vmatprep.subr.mxu0 0.0
        %1287 = vmatpush1.msra.mxu0 0.0
        %1288 = vmatprep.subr.mxu0 0.0
        %1289 = vmatpush1.msra.mxu0 0.0
        %1290 = vmatprep.subr.mxu0 0.0
        %1291 = vmatpush1.msra.mxu0 0.0
        %1292 = vmatprep.subr.mxu0 0.0
        %1293 = vmatpush1.msra.mxu0 0.0
        %1294 = vmatprep.subr.mxu0 0.0
        %1295 = vmatpush1.msra.mxu0 0.0
        %1296 = vmatprep.mubr.f32.mxu0 0.0
        %1297 = vmatmul.mubr.f32.gmra.mrb[0].mxu0 %v1227
        %v1298 = vpop.f32.mrb[0].mxu0
        %v1299 = vadd.f32 %v1216, %v1298
        %v1300 = vpop.f32.mrb[0].mxu0
        %v1301 = vadd.f32 %v1218, %v1300
        %1302 = vmatprep.mubr.f32.mxu0 0.0
        %1303 = vmatmul.mubr.f32.gmra.mrb[0].mxu0 %v1230
        %v1304 = vpop.f32.mrb[0].mxu0
        %v1305 = vadd.f32 %v1222, %v1304
        %v1306 = vpop.f32.mrb[0].mxu0
        %v1307 = vadd.f32 %v1224, %v1306
        %1308 = vdwg.mxu0
        %v1309 = vld [vmem:[%s7] sm:$0xff]
        %v1310 = vld [vmem:[%s7 + $0x8] sm:$0xff]
        %v1311 = vld [vmem:[%s8] sm:$0xff]
        %v1312 = vld [vmem:[%s8 + $0x8] sm:$0xff]
        %1314 = vset.pattern.permute.xlu0 0
        %1315 = vperm.xlu0 %1314, %v1311
        %v1316 = vpop.permute.xlu0 %1315
        %1319 = vset.pattern.permute.xlu0 0
        %1320 = vperm.xlu0 %1319, %v1312
        %v1321 = vpop.permute.xlu0 %1320
        %vm1323 = vcmask 130048
        %v1325 = vsel %vm1323, %v1309, 0
        %v1328 = vsel %vm1323, %v1310, 0
        %1330 = vmatprep.subr.mxu0 %v415
        %1331 = vmatpush1.msra.mxu0 %v414
        %1332 = vmatprep.subr.mxu0 %v417
        %1333 = vmatpush1.msra.mxu0 %v416
        %1334 = vmatprep.subr.mxu0 0.0
        %1335 = vmatpush1.msra.mxu0 0.0
        %1336 = vmatprep.subr.mxu0 0.0
        %1337 = vmatpush1.msra.mxu0 0.0
        %1338 = vmatprep.subr.mxu0 0.0
        %1339 = vmatpush1.msra.mxu0 0.0
        %1340 = vmatprep.subr.mxu0 0.0
        %1341 = vmatpush1.msra.mxu0 0.0
        %1342 = vmatprep.subr.mxu0 0.0
        %1343 = vmatpush1.msra.mxu0 0.0
        %1344 = vmatprep.subr.mxu0 0.0
        %1345 = vmatpush1.msra.mxu0 0.0
        %1346 = vmatprep.subr.mxu0 0.0
        %1347 = vmatpush1.msra.mxu0 0.0
        %1348 = vmatprep.subr.mxu0 0.0
        %1349 = vmatpush1.msra.mxu0 0.0
        %1350 = vmatprep.subr.mxu0 0.0
        %1351 = vmatpush1.msra.mxu0 0.0
        %1352 = vmatprep.subr.mxu0 0.0
        %1353 = vmatpush1.msra.mxu0 0.0
        %1354 = vmatprep.subr.mxu0 0.0
        %1355 = vmatpush1.msra.mxu0 0.0
        %1356 = vmatprep.subr.mxu0 0.0
        %1357 = vmatpush1.msra.mxu0 0.0
        %1358 = vmatprep.subr.mxu0 0.0
        %1359 = vmatpush1.msra.mxu0 0.0
        %1360 = vmatprep.subr.mxu0 0.0
        %1361 = vmatpush1.msra.mxu0 0.0
        %1362 = vmatprep.subr.mxu0 0.0
        %1363 = vmatpush1.msra.mxu0 0.0
        %1364 = vmatprep.subr.mxu0 0.0
        %1365 = vmatpush1.msra.mxu0 0.0
        %1366 = vmatprep.subr.mxu0 0.0
        %1367 = vmatpush1.msra.mxu0 0.0
        %1368 = vmatprep.subr.mxu0 0.0
        %1369 = vmatpush1.msra.mxu0 0.0
        %1370 = vmatprep.subr.mxu0 0.0
        %1371 = vmatpush1.msra.mxu0 0.0
        %1372 = vmatprep.subr.mxu0 0.0
        %1373 = vmatpush1.msra.mxu0 0.0
        %1374 = vmatprep.subr.mxu0 0.0
        %1375 = vmatpush1.msra.mxu0 0.0
        %1376 = vmatprep.subr.mxu0 0.0
        %1377 = vmatpush1.msra.mxu0 0.0
        %1378 = vmatprep.subr.mxu0 0.0
        %1379 = vmatpush1.msra.mxu0 0.0
        %1380 = vmatprep.subr.mxu0 0.0
        %1381 = vmatpush1.msra.mxu0 0.0
        %1382 = vmatprep.subr.mxu0 0.0
        %1383 = vmatpush1.msra.mxu0 0.0
        %1384 = vmatprep.subr.mxu0 0.0
        %1385 = vmatpush1.msra.mxu0 0.0
        %1386 = vmatprep.subr.mxu0 0.0
        %1387 = vmatpush1.msra.mxu0 0.0
        %1388 = vmatprep.subr.mxu0 0.0
        %1389 = vmatpush1.msra.mxu0 0.0
        %1390 = vmatprep.subr.mxu0 0.0
        %1391 = vmatpush1.msra.mxu0 0.0
        %1392 = vmatprep.subr.mxu0 0.0
        %1393 = vmatpush1.msra.mxu0 0.0
        %1394 = vmatprep.mubr.f32.mxu0 0.0
        %1395 = vmatmul.mubr.f32.gmra.mrb[0].mxu0 %v1325
        %v1396 = vpop.f32.mrb[0].mxu0
        %v1397 = vadd.f32 %v1316, %v1396
        %v1398 = vpop.f32.mrb[0].mxu0
        %v1399 = vadd.f32 %v1316, %v1398
        %1400 = vmatprep.mubr.f32.mxu0 0.0
        %1401 = vmatmul.mubr.f32.gmra.mrb[0].mxu0 %v1328
        %v1402 = vpop.f32.mrb[0].mxu0
        %v1403 = vadd.f32 %v1321, %v1402
        %v1404 = vpop.f32.mrb[0].mxu0
        %v1405 = vadd.f32 %v1321, %v1404
        %1406 = vdwg.mxu0
        %v1407 = vadd.f32 %v1397, %v1299
        %v1408 = vadd.f32 %v1399, %v1301
        %v1409 = vadd.f32 %v1403, %v1305
        %v1410 = vadd.f32 %v1405, %v1307
        %v1411 = vmax.f32 %v1407, 0.0
        %v1412 = vmax.f32 %v1408, 0.0
        %v1413 = vmax.f32 %v1409, 0.0
        %v1414 = vmax.f32 %v1410, 0.0
        %1415 = vst [vmem:[%s411] sm:$0xff] %v1411
        %1416 = vst [vmem:[%s411 + $0x8] sm:$0xff] %v1412
        %1417 = vst [vmem:[%s411 + $0x10] sm:$0xff] %v1413
        %1418 = vst [vmem:[%s411 + $0x18] sm:$0xff] %v1414
        %s1419 = sand.u32 %s225, 1
        %s1420 = sand.u32 %s225, 1
        %s1421 = smul.addr %s1420, 32
        %s1422 = scalar_lea.vmem [#allocation10], %s1421
        // Predicated region
        $region96: #{fno2d_forward.7} parent=74 // pred_check
          %p1423 = pneg %p235
        $region97: #{fno2d_forward.7} parent=74 // pred_check_branch
          %1425 = sbr.rel (%p1423) target = $region99
        $region98: #{fno2d_forward.7} parent=74 // pred_region
          %s1426 = smul.u32 2, %s23
          %s1427 = smul.addr %s1426, 8
          %s1428 = scalar_lea.vmem %s9, %s1427
          // Predicated region
          $region100: #{fno2d_forward.7} parent=98 // pred_check
            _
          $region101: #{fno2d_forward.7} parent=98 // pred_check_branch
            %1430 = sbr.rel (0) target = $region103
          $region102: #{fno2d_forward.7} parent=98 // pred_region
            // Predicated region
            $region104: #{fno2d_forward.7} parent=102 // pred_check
              _
            $region105: #{fno2d_forward.7} parent=102 // pred_check_branch
              %1432 = sbr.rel (0) target = $region107
            $region106: #{fno2d_forward.7} parent=102 // pred_region
              loop: start=0, step=1, limit=1
              $region108: #{fno2d_forward.7} parent=106 // loop_pre_header
                _
              $region109: #{fno2d_forward.7} parent=106 // loop_header
                %s1434 = sphi 0, %s1438
                %p1435 = scmp.ge.s32.totalorder %s1434, 1
                %s1439 = sphi %s1422, %s1422
                %s1440 = sphi %s1428, %s1428
              $region110: #{fno2d_forward.7} parent=106 // loop_header_branch
                %1437 = sbr.rel (%p1435) target = $region114
              $region111: #{fno2d_forward.7} parent=106 // loop_body
                %v1441 = vld [vmem:[%s1439] sm:$0xff]
                %1442 = vst [vmem:[%s1440] sm:$0xff] %v1441
                %v1443 = vld [vmem:[%s1439 + $0x8] sm:$0xff]
                %1444 = vst [vmem:[%s1440 + $0x8] sm:$0xff] %v1443
                %v1445 = vld [vmem:[%s1439 + $0x10] sm:$0xff]
                %1446 = vst [vmem:[%s1440 + $0x20] sm:$0xff] %v1445
                %v1447 = vld [vmem:[%s1439 + $0x18] sm:$0xff]
                %1448 = vst [vmem:[%s1440 + $0x28] sm:$0xff] %v1447
              $region112: #{fno2d_forward.7} parent=106 // loop_footer
                %s1438 = sadd.s32 1, %s1434
              $region113: #{fno2d_forward.7} parent=106 // loop_footer_branch
                %1433 = sbr.rel target = $region109
              $region114: #{fno2d_forward.7} parent=106 // loop_exit
                _
            $region107: #{fno2d_forward.7} parent=102 // pred_fallthru
              _
            // Predicated region
            $region115: #{fno2d_forward.7} parent=102 // pred_check
              _
            $region116: #{fno2d_forward.7} parent=102 // pred_check_branch
              %1450 = sbr.rel target = $region118
            $region117: #{fno2d_forward.7} parent=102 // pred_region
              _
            $region118: #{fno2d_forward.7} parent=102 // pred_fallthru
              _
          $region103: #{fno2d_forward.7} parent=98 // pred_fallthru
            _
          %1451 = vnop
        $region99: #{fno2d_forward.7} parent=74 // pred_fallthru
          _
      $region75: #{fno2d_forward.7} parent=5 // pred_fallthru
        _
      %p1452 = scmp.le.s32.totalorder 2, %s18
      // Predicated region
      $region119: #{fno2d_forward.7} parent=5 // pred_check
        %p1453 = pneg %p1452
      $region120: #{fno2d_forward.7} parent=5 // pred_check_branch
        %1455 = sbr.rel (%p1453) target = $region122
      $region121: #{fno2d_forward.7} parent=5 // pred_region
        %s1456 = ssub.s32 %s18, 2
        // Predicated region
        $region123: #{fno2d_forward.7} parent=121 // pred_check
          %p1457 = pneg %p241
        $region124: #{fno2d_forward.7} parent=121 // pred_check_branch
          %1459 = sbr.rel (%p1457) target = $region126
        $region125: #{fno2d_forward.7} parent=121 // pred_region
          %s1460 = sand.u32 %s226, 1
          %s1461 = sand.u32 %s226, 1
          %s1462 = smul.addr %s1461, 32
          %s1463 = scalar_lea.vmem [#allocation10], %s1462
        $region126: #{fno2d_forward.7} parent=121 // pred_fallthru
          _
      $region122: #{fno2d_forward.7} parent=5 // pred_fallthru
        _
    $region6: #{fno2d_forward.7} parent=1 // loop_footer
      %s22 = sadd.s32 1, %s18
    $region7: #{fno2d_forward.7} parent=1 // loop_footer_branch
      %17 = sbr.rel target = $region3
    $region8: #{fno2d_forward.7} parent=1 // loop_exit
      _
    %1464 = vsyncpa [#allocation4], 1
    %s1465 = scalar_lea.sflag [#allocation4], 1
    %1466 = vsyncpa %s1465, 1
    %1467 = vsyncpa [#allocation6], 1
    %1468 = vsyncpa [#allocation9], 1

// kernel: fno2d_forward.8
$region0: #{fno2d_forward.8}
  #allocation0 [shape = 'u32[]', space=smem, size = 0x4, offset = 0x4, fixed_abs, tag = 'smem constant byte address 0x4 - core index']
  #allocation1 [shape = 'u32[144,128]{1,0:T(1,128)}', space=vmem, size = 0x12000, scoped, tag = 'internal scratch']
  %s0 = inlined_call_operand.vmem [shape: f32[16,512], index: 0, kind: input, shape index: {}, may-alias: {0,9}]
  %s1 = inlined_call_operand.vmem [shape: f32[256,72], index: 1, kind: input, shape index: {}]
  %s2 = inlined_call_operand.vmem [shape: f32[256,72], index: 2, kind: input, shape index: {}]
  %s3 = inlined_call_operand.vmem [shape: f32[16,16,72], index: 3, kind: input, shape index: {}]
  %s4 = inlined_call_operand.vmem [shape: f32[16,16,72], index: 4, kind: input, shape index: {}]
  %s5 = inlined_call_operand.vmem [shape: f32[72,256], index: 5, kind: input, shape index: {}]
  %s6 = inlined_call_operand.vmem [shape: f32[72,256], index: 6, kind: input, shape index: {}]
  %s7 = inlined_call_operand.vmem [shape: f32[16,16], index: 7, kind: input, shape index: {}]
  %s8 = inlined_call_operand.vmem [shape: f32[16,1], index: 8, kind: input, shape index: {}]
  %s9 = inlined_call_operand.vmem [shape: f32[16,512], index: 9, kind: output, shape index: {}, may-alias: {0,9}]
  %s10 = sld [smem:[#allocation0]]
  $region111: #{fno2d_forward.8} parent=0
    _
  %s12 = ssub.s32 1, %s10
  %s13 = scalar_select 0, %s12, %s10
  $region1: #{fno2d_forward.8} parent=0
    #allocation2 [shape = 'u8[32768]{0}', space=vmem, size = 0x8000, scoped, tag = 'input window, operand 0']
    #allocation3 [shape = 'u8[32768]{0}', space=vmem, size = 0x8000, scoped, tag = 'output window, operand 0']
    loop: start=0, step=1, limit=4
    $region2: #{fno2d_forward.8} parent=1 // loop_pre_header
      _
    $region3: #{fno2d_forward.8} parent=1 // loop_header
      %s15 = sphi 0, %s19
      %p16 = scmp.ge.s32.totalorder %s15, 4
      %s25 = sphi 0, %s27
      %s28 = sphi 0, %s25
      %s29 = sphi 0, %s28
      %s45 = sphi 0, %s29
      %s49 = sphi 0, %s49
      %s51 = sphi 0, %s49
      %s52 = sphi 0, %s51
      %s66 = sphi 0, %s52
      %s70 = sphi 0, %s70
      %s72 = sphi 0, %s70
      %s73 = sphi 0, %s72
      %s87 = sphi 0, %s73
      %s91 = sphi 0, %s91
      %s93 = sphi 0, %s91
      %s94 = sphi 0, %s93
      %s108 = sphi 0, %s94
      %s112 = sphi 0, %s112
      %s114 = sphi 0, %s112
      %s115 = sphi 0, %s114
      %s129 = sphi 0, %s115
      %s133 = sphi 0, %s133
      %s135 = sphi 0, %s133
      %s136 = sphi 0, %s135
      %s150 = sphi 0, %s136
      %s154 = sphi 0, %s154
      %s156 = sphi 0, %s154
      %s157 = sphi 0, %s156
      %s171 = sphi 0, %s157
      %s175 = sphi 0, %s175
      %s177 = sphi 0, %s175
      %s178 = sphi 0, %s177
      %s192 = sphi 0, %s178
      %s196 = sphi 0, %s196
      %s198 = sphi 0, %s196
      %s199 = sphi 0, %s198
      %s213 = sphi 0, %s199
      %s219 = sphi 0, %s221
      %s222 = sphi 0, %s219
      %s223 = sphi 0, %s222
      %s239 = sphi 0, %s223
    $region4: #{fno2d_forward.8} parent=1 // loop_header_branch
      %18 = sbr.rel (%p16) target = $region8
    $region5: #{fno2d_forward.8} parent=1 // loop_body
      %s20 = ssub.s32 %s15, 1
      %s21 = ssub.s32 %s15, 2
      %s22 = sadd.s32 %s15, 1
      %s23 = ssub.s32 %s15, %s22
      %p24 = scmp.eq.s32.totalorder %s23, 0
      %s26 = sadd.s32 %s25, 1
      %s27 = scalar_select %p24, %s25, %s26
      %p30 = pneg %p24
      %p31 = scmp.eq.s32.totalorder %s15, 1
      %p32 = por %p30, %p31
      %p33 = scmp.ne.s32.totalorder %s25, %s28
      %p34 = scmp.eq.s32.totalorder %s15, 0
      %p35 = por %p33, %p34
      %p36 = scmp.ne.s32.totalorder %s25, %s28
      %p37 = scmp.eq.s32.totalorder %s20, 1
      %p38 = por %p36, %p37
      %p39 = scmp.ne.s32.totalorder %s28, %s29
      %p40 = scmp.eq.s32.totalorder %s20, 0
      %p41 = por %p39, %p40
      %p42 = scmp.ne.s32.totalorder %s28, %s29
      %p43 = scmp.eq.s32.totalorder %s21, 1
      %p44 = por %p42, %p43
      %p46 = scmp.ne.s32.totalorder %s29, %s45
      %p47 = scmp.eq.s32.totalorder %s21, 0
      %p48 = por %p46, %p47
      %s50 = sadd.s32 %s49, 1
      %p53 = scmp.eq.s32.totalorder %s15, 1
      %p54 = scmp.ne.s32.totalorder %s49, %s51
      %p55 = scmp.eq.s32.totalorder %s15, 0
      %p56 = por %p54, %p55
      %p57 = scmp.ne.s32.totalorder %s49, %s51
      %p58 = scmp.eq.s32.totalorder %s20, 1
      %p59 = por %p57, %p58
      %p60 = scmp.ne.s32.totalorder %s51, %s52
      %p61 = scmp.eq.s32.totalorder %s20, 0
      %p62 = por %p60, %p61
      %p63 = scmp.ne.s32.totalorder %s51, %s52
      %p64 = scmp.eq.s32.totalorder %s21, 1
      %p65 = por %p63, %p64
      %p67 = scmp.ne.s32.totalorder %s52, %s66
      %p68 = scmp.eq.s32.totalorder %s21, 0
      %p69 = por %p67, %p68
      %s71 = sadd.s32 %s70, 1
      %p74 = scmp.eq.s32.totalorder %s15, 1
      %p75 = scmp.ne.s32.totalorder %s70, %s72
      %p76 = scmp.eq.s32.totalorder %s15, 0
      %p77 = por %p75, %p76
      %p78 = scmp.ne.s32.totalorder %s70, %s72
      %p79 = scmp.eq.s32.totalorder %s20, 1
      %p80 = por %p78, %p79
      %p81 = scmp.ne.s32.totalorder %s72, %s73
      %p82 = scmp.eq.s32.totalorder %s20, 0
      %p83 = por %p81, %p82
      %p84 = scmp.ne.s32.totalorder %s72, %s73
      %p85 = scmp.eq.s32.totalorder %s21, 1
      %p86 = por %p84, %p85
      %p88 = scmp.ne.s32.totalorder %s73, %s87
      %p89 = scmp.eq.s32.totalorder %s21, 0
      %p90 = por %p88, %p89
      %s92 = sadd.s32 %s91, 1
      %p95 = scmp.eq.s32.totalorder %s15, 1
      %p96 = scmp.ne.s32.totalorder %s91, %s93
      %p97 = scmp.eq.s32.totalorder %s15, 0
      %p98 = por %p96, %p97
      %p99 = scmp.ne.s32.totalorder %s91, %s93
      %p100 = scmp.eq.s32.totalorder %s20, 1
      %p101 = por %p99, %p100
      %p102 = scmp.ne.s32.totalorder %s93, %s94
      %p103 = scmp.eq.s32.totalorder %s20, 0
      %p104 = por %p102, %p103
      %p105 = scmp.ne.s32.totalorder %s93, %s94
      %p106 = scmp.eq.s32.totalorder %s21, 1
      %p107 = por %p105, %p106
      %p109 = scmp.ne.s32.totalorder %s94, %s108
      %p110 = scmp.eq.s32.totalorder %s21, 0
      %p111 = por %p109, %p110
      %s113 = sadd.s32 %s112, 1
      %p116 = scmp.eq.s32.totalorder %s15, 1
      %p117 = scmp.ne.s32.totalorder %s112, %s114
      %p118 = scmp.eq.s32.totalorder %s15, 0
      %p119 = por %p117, %p118
      %p120 = scmp.ne.s32.totalorder %s112, %s114
      %p121 = scmp.eq.s32.totalorder %s20, 1
      %p122 = por %p120, %p121
      %p123 = scmp.ne.s32.totalorder %s114, %s115
      %p124 = scmp.eq.s32.totalorder %s20, 0
      %p125 = por %p123, %p124
      %p126 = scmp.ne.s32.totalorder %s114, %s115
      %p127 = scmp.eq.s32.totalorder %s21, 1
      %p128 = por %p126, %p127
      %p130 = scmp.ne.s32.totalorder %s115, %s129
      %p131 = scmp.eq.s32.totalorder %s21, 0
      %p132 = por %p130, %p131
      %s134 = sadd.s32 %s133, 1
      %p137 = scmp.eq.s32.totalorder %s15, 1
      %p138 = scmp.ne.s32.totalorder %s133, %s135
      %p139 = scmp.eq.s32.totalorder %s15, 0
      %p140 = por %p138, %p139
      %p141 = scmp.ne.s32.totalorder %s133, %s135
      %p142 = scmp.eq.s32.totalorder %s20, 1
      %p143 = por %p141, %p142
      %p144 = scmp.ne.s32.totalorder %s135, %s136
      %p145 = scmp.eq.s32.totalorder %s20, 0
      %p146 = por %p144, %p145
      %p147 = scmp.ne.s32.totalorder %s135, %s136
      %p148 = scmp.eq.s32.totalorder %s21, 1
      %p149 = por %p147, %p148
      %p151 = scmp.ne.s32.totalorder %s136, %s150
      %p152 = scmp.eq.s32.totalorder %s21, 0
      %p153 = por %p151, %p152
      %s155 = sadd.s32 %s154, 1
      %p158 = scmp.eq.s32.totalorder %s15, 1
      %p159 = scmp.ne.s32.totalorder %s154, %s156
      %p160 = scmp.eq.s32.totalorder %s15, 0
      %p161 = por %p159, %p160
      %p162 = scmp.ne.s32.totalorder %s154, %s156
      %p163 = scmp.eq.s32.totalorder %s20, 1
      %p164 = por %p162, %p163
      %p165 = scmp.ne.s32.totalorder %s156, %s157
      %p166 = scmp.eq.s32.totalorder %s20, 0
      %p167 = por %p165, %p166
      %p168 = scmp.ne.s32.totalorder %s156, %s157
      %p169 = scmp.eq.s32.totalorder %s21, 1
      %p170 = por %p168, %p169
      %p172 = scmp.ne.s32.totalorder %s157, %s171
      %p173 = scmp.eq.s32.totalorder %s21, 0
      %p174 = por %p172, %p173
      %s176 = sadd.s32 %s175, 1
      %p179 = scmp.eq.s32.totalorder %s15, 1
      %p180 = scmp.ne.s32.totalorder %s175, %s177
      %p181 = scmp.eq.s32.totalorder %s15, 0
      %p182 = por %p180, %p181
      %p183 = scmp.ne.s32.totalorder %s175, %s177
      %p184 = scmp.eq.s32.totalorder %s20, 1
      %p185 = por %p183, %p184
      %p186 = scmp.ne.s32.totalorder %s177, %s178
      %p187 = scmp.eq.s32.totalorder %s20, 0
      %p188 = por %p186, %p187
      %p189 = scmp.ne.s32.totalorder %s177, %s178
      %p190 = scmp.eq.s32.totalorder %s21, 1
      %p191 = por %p189, %p190
      %p193 = scmp.ne.s32.totalorder %s178, %s192
      %p194 = scmp.eq.s32.totalorder %s21, 0
      %p195 = por %p193, %p194
      %s197 = sadd.s32 %s196, 1
      %p200 = scmp.eq.s32.totalorder %s15, 1
      %p201 = scmp.ne.s32.totalorder %s196, %s198
      %p202 = scmp.eq.s32.totalorder %s15, 0
      %p203 = por %p201, %p202
      %p204 = scmp.ne.s32.totalorder %s196, %s198
      %p205 = scmp.eq.s32.totalorder %s20, 1
      %p206 = por %p204, %p205
      %p207 = scmp.ne.s32.totalorder %s198, %s199
      %p208 = scmp.eq.s32.totalorder %s20, 0
      %p209 = por %p207, %p208
      %p210 = scmp.ne.s32.totalorder %s198, %s199
      %p211 = scmp.eq.s32.totalorder %s21, 1
      %p212 = por %p210, %p211
      %p214 = scmp.ne.s32.totalorder %s199, %s213
      %p215 = scmp.eq.s32.totalorder %s21, 0
      %p216 = por %p214, %p215
      %s217 = ssub.s32 %s15, %s22
      %p218 = scmp.eq.s32.totalorder %s217, 0
      %s220 = sadd.s32 %s219, 1
      %s221 = scalar_select %p218, %s219, %s220
      %p224 = pneg %p218
      %p225 = scmp.eq.s32.totalorder %s15, 1
      %p226 = por %p224, %p225
      %p227 = scmp.ne.s32.totalorder %s219, %s222
      %p228 = scmp.eq.s32.totalorder %s15, 0
      %p229 = por %p227, %p228
      %p230 = scmp.ne.s32.totalorder %s219, %s222
      %p231 = scmp.eq.s32.totalorder %s20, 1
      %p232 = por %p230, %p231
      %p233 = scmp.ne.s32.totalorder %s222, %s223
      %p234 = scmp.eq.s32.totalorder %s20, 0
      %p235 = por %p233, %p234
      %p236 = scmp.ne.s32.totalorder %s222, %s223
      %p237 = scmp.eq.s32.totalorder %s21, 1
      %p238 = por %p236, %p237
      %p240 = scmp.ne.s32.totalorder %s223, %s239
      %p241 = scmp.eq.s32.totalorder %s21, 0
      %p242 = por %p240, %p241
      %p243 = scmp.le.s32.totalorder 1, %s15
      %p244 = scmp.lt.s32.totalorder %s15, 3
      %p245 = pnand %p243, %p244
      %p246 = pneg %p245
      // Predicated region
      $region9: #{fno2d_forward.8} parent=5 // pred_check
        _
      $region10: #{fno2d_forward.8} parent=5 // pred_check_branch
        %248 = sbr.rel (%p245) target = $region12
      $region11: #{fno2d_forward.8} parent=5 // pred_region
        %s249 = ssub.s32 %s15, 1
        // Predicated region
        $region13: #{fno2d_forward.8} parent=11 // pred_check
          %p250 = pneg %p62
        $region14: #{fno2d_forward.8} parent=11 // pred_check_branch
          %252 = sbr.rel (%p250) target = $region16
        $region15: #{fno2d_forward.8} parent=11 // pred_region
          _
        $region16: #{fno2d_forward.8} parent=11 // pred_fallthru
          _
        // Predicated region
        $region17: #{fno2d_forward.8} parent=11 // pred_check
          %p253 = pneg %p83
        $region18: #{fno2d_forward.8} parent=11 // pred_check_branch
          %255 = sbr.rel (%p253) target = $region20
        $region19: #{fno2d_forward.8} parent=11 // pred_region
          _
        $region20: #{fno2d_forward.8} parent=11 // pred_fallthru
          _
        // Predicated region
        $region21: #{fno2d_forward.8} parent=11 // pred_check
          %p256 = pneg %p104
        $region22: #{fno2d_forward.8} parent=11 // pred_check_branch
          %258 = sbr.rel (%p256) target = $region24
        $region23: #{fno2d_forward.8} parent=11 // pred_region
          _
        $region24: #{fno2d_forward.8} parent=11 // pred_fallthru
          _
        // Predicated region
        $region25: #{fno2d_forward.8} parent=11 // pred_check
          %p259 = pneg %p125
        $region26: #{fno2d_forward.8} parent=11 // pred_check_branch
          %261 = sbr.rel (%p259) target = $region28
        $region27: #{fno2d_forward.8} parent=11 // pred_region
          _
        $region28: #{fno2d_forward.8} parent=11 // pred_fallthru
          _
        // Predicated region
        $region29: #{fno2d_forward.8} parent=11 // pred_check
          %p262 = pneg %p146
        $region30: #{fno2d_forward.8} parent=11 // pred_check_branch
          %264 = sbr.rel (%p262) target = $region32
        $region31: #{fno2d_forward.8} parent=11 // pred_region
          _
        $region32: #{fno2d_forward.8} parent=11 // pred_fallthru
          _
        // Predicated region
        $region33: #{fno2d_forward.8} parent=11 // pred_check
          %p265 = pneg %p167
        $region34: #{fno2d_forward.8} parent=11 // pred_check_branch
          %267 = sbr.rel (%p265) target = $region36
        $region35: #{fno2d_forward.8} parent=11 // pred_region
          _
        $region36: #{fno2d_forward.8} parent=11 // pred_fallthru
          _
        // Predicated region
        $region37: #{fno2d_forward.8} parent=11 // pred_check
          %p268 = pneg %p188
        $region38: #{fno2d_forward.8} parent=11 // pred_check_branch
          %270 = sbr.rel (%p268) target = $region40
        $region39: #{fno2d_forward.8} parent=11 // pred_region
          _
        $region40: #{fno2d_forward.8} parent=11 // pred_fallthru
          _
        // Predicated region
        $region41: #{fno2d_forward.8} parent=11 // pred_check
          %p271 = pneg %p209
        $region42: #{fno2d_forward.8} parent=11 // pred_check_branch
          %273 = sbr.rel (%p271) target = $region44
        $region43: #{fno2d_forward.8} parent=11 // pred_region
          _
        $region44: #{fno2d_forward.8} parent=11 // pred_fallthru
          _
      $region12: #{fno2d_forward.8} parent=5 // pred_fallthru
        _
      %p274 = scmp.lt.s32.totalorder %s15, 2
      // Predicated region
      $region45: #{fno2d_forward.8} parent=5 // pred_check
        %p275 = pneg %p274
      $region46: #{fno2d_forward.8} parent=5 // pred_check_branch
        %277 = sbr.rel (%p275) target = $region48
      $region47: #{fno2d_forward.8} parent=5 // pred_region
        // Predicated region
        $region49: #{fno2d_forward.8} parent=47 // pred_check
          %p278 = pneg %p35
        $region50: #{fno2d_forward.8} parent=47 // pred_check_branch
          %280 = sbr.rel (%p278) target = $region52
        $region51: #{fno2d_forward.8} parent=47 // pred_region
          %s281 = sand.u32 %s25, 1
          %s282 = sand.u32 %s25, 1
          %s283 = smul.addr %s282, 32
          %s284 = scalar_lea.vmem [#allocation2], %s283
          %s285 = smul.u32 2, %s15
          %s286 = smul.addr %s285, 8
          %s287 = scalar_lea.vmem %s0, %s286
          // Predicated region
          $region53: #{fno2d_forward.8} parent=51 // pred_check
            _
          $region54: #{fno2d_forward.8} parent=51 // pred_check_branch
            %289 = sbr.rel (0) target = $region56
          $region55: #{fno2d_forward.8} parent=51 // pred_region
            // Predicated region
            $region57: #{fno2d_forward.8} parent=55 // pred_check
              _
            $region58: #{fno2d_forward.8} parent=55 // pred_check_branch
              %291 = sbr.rel (0) target = $region60
            $region59: #{fno2d_forward.8} parent=55 // pred_region
              loop: start=0, step=1, limit=1
              $region61: #{fno2d_forward.8} parent=59 // loop_pre_header
                _
              $region62: #{fno2d_forward.8} parent=59 // loop_header
                %s293 = sphi 0, %s297
                %p294 = scmp.ge.s32.totalorder %s293, 1
                %s298 = sphi %s287, %s287
                %s299 = sphi %s284, %s284
              $region63: #{fno2d_forward.8} parent=59 // loop_header_branch
                %296 = sbr.rel (%p294) target = $region67
              $region64: #{fno2d_forward.8} parent=59 // loop_body
                %v300 = vld [vmem:[%s298] sm:$0xff]
                %301 = vst [vmem:[%s299] sm:$0xff] %v300
                %v302 = vld [vmem:[%s298 + $0x8] sm:$0xff]
                %303 = vst [vmem:[%s299 + $0x8] sm:$0xff] %v302
                %v304 = vld [vmem:[%s298 + $0x20] sm:$0xff]
                %305 = vst [vmem:[%s299 + $0x10] sm:$0xff] %v304
                %v306 = vld [vmem:[%s298 + $0x28] sm:$0xff]
                %307 = vst [vmem:[%s299 + $0x18] sm:$0xff] %v306
              $region65: #{fno2d_forward.8} parent=59 // loop_footer
                %s297 = sadd.s32 1, %s293
              $region66: #{fno2d_forward.8} parent=59 // loop_footer_branch
                %292 = sbr.rel target = $region62
              $region67: #{fno2d_forward.8} parent=59 // loop_exit
                _
            $region60: #{fno2d_forward.8} parent=55 // pred_fallthru
              _
            // Predicated region
            $region68: #{fno2d_forward.8} parent=55 // pred_check
              _
            $region69: #{fno2d_forward.8} parent=55 // pred_check_branch
              %309 = sbr.rel target = $region71
            $region70: #{fno2d_forward.8} parent=55 // pred_region
              _
            $region71: #{fno2d_forward.8} parent=55 // pred_fallthru
              _
          $region56: #{fno2d_forward.8} parent=51 // pred_fallthru
            _
          %310 = vnop
        $region52: #{fno2d_forward.8} parent=47 // pred_fallthru
          _
      $region48: #{fno2d_forward.8} parent=5 // pred_fallthru
        _
      %p311 = scmp.le.s32.totalorder 1, %s15
      %p312 = scmp.lt.s32.totalorder %s15, 3
      %p313 = pnand %p311, %p312
      %p314 = pneg %p313
      // Predicated region
      $region72: #{fno2d_forward.8} parent=5 // pred_check
        _
      $region73: #{fno2d_forward.8} parent=5 // pred_check_branch
        %316 = sbr.rel (%p313) target = $region75
      $region74: #{fno2d_forward.8} parent=5 // pred_region
        %s317 = ssub.s32 %s15, 1
        %s318 = sand.u32 %s28, 1
        %s319 = sand.u32 %s28, 1
        %s320 = smul.addr %s319, 32
        %s321 = scalar_lea.vmem [#allocation2], %s320
        // Predicated region
        $region76: #{fno2d_forward.8} parent=74 // pred_check
          %p322 = pneg %p41
        $region77: #{fno2d_forward.8} parent=74 // pred_check_branch
          %324 = sbr.rel (%p322) target = $region79
        $region78: #{fno2d_forward.8} parent=74 // pred_region
          _
        $region79: #{fno2d_forward.8} parent=74 // pred_fallthru
          _
        %s325 = sand.u32 %s28, 1
        %s326 = sand.u32 %s28, 1
        %s327 = smul.addr %s326, 32
        %s328 = scalar_lea.vmem [#allocation2], %s327
        %p329 = pneg %p41
        %p330 = pneg %p38
        %p331 = pneg %p62
        %p332 = pneg %p59
        %p333 = pneg %p83
        %p334 = pneg %p80
        %p335 = pneg %p104
        %p336 = pneg %p101
        %p337 = pneg %p125
        %p338 = pneg %p122
        %p339 = pneg %p146
        %p340 = pneg %p143
        %p341 = pneg %p167
        %p342 = pneg %p164
        %p343 = pneg %p188
        %p344 = pneg %p185
        %p345 = pneg %p209
        %p346 = pneg %p206
        %p347 = pneg %p235
        %p348 = pneg %p232
        %s349 = sand.u32 %s222, 1
        %s350 = sand.u32 %s222, 1
        %s351 = smul.addr %s350, 32
        %s352 = scalar_lea.vmem [#allocation3], %s351
        %s353 = smul.u32 2, %s20
        %s354 = smul.u32 2, %s20
        %v355 = vld [vmem:[%s321] sm:$0xff]
        %v356 = vld [vmem:[%s321 + $0x8] sm:$0xff]
        %v357 = vld [vmem:[%s321 + $0x10] sm:$0xff]
        %v358 = vld [vmem:[%s321 + $0x18] sm:$0xff]
        %v359 = vld [vmem:[%s1] sm:$0xff]
        %v360 = vld [vmem:[%s1 + $0x8] sm:$0xff]
        %v361 = vld [vmem:[%s1 + $0x10] sm:$0xff]
        %v362 = vld [vmem:[%s1 + $0x18] sm:$0xff]
        %v363 = vld [vmem:[%s1 + $0x20] sm:$0xff]
        %v364 = vld [vmem:[%s1 + $0x28] sm:$0xff]
        %v365 = vld [vmem:[%s1 + $0x30] sm:$0xff]
        %v366 = vld [vmem:[%s1 + $0x38] sm:$0xff]
        %v367 = vld [vmem:[%s1 + $0x40] sm:$0xff]
        %v368 = vld [vmem:[%s1 + $0x48] sm:$0xff]
        %v369 = vld [vmem:[%s1 + $0x50] sm:$0xff]
        %v370 = vld [vmem:[%s1 + $0x58] sm:$0xff]
        %v371 = vld [vmem:[%s1 + $0x60] sm:$0xff]
        %v372 = vld [vmem:[%s1 + $0x68] sm:$0xff]
        %v373 = vld [vmem:[%s1 + $0x70] sm:$0xff]
        %v374 = vld [vmem:[%s1 + $0x78] sm:$0xff]
        %v375 = vld [vmem:[%s1 + $0x80] sm:$0xff]
        %v376 = vld [vmem:[%s1 + $0x88] sm:$0xff]
        %v377 = vld [vmem:[%s1 + $0x90] sm:$0xff]
        %v378 = vld [vmem:[%s1 + $0x98] sm:$0xff]
        %v379 = vld [vmem:[%s1 + $0xa0] sm:$0xff]
        %v380 = vld [vmem:[%s1 + $0xa8] sm:$0xff]
        %v381 = vld [vmem:[%s1 + $0xb0] sm:$0xff]
        %v382 = vld [vmem:[%s1 + $0xb8] sm:$0xff]
        %v383 = vld [vmem:[%s1 + $0xc0] sm:$0xff]
        %v384 = vld [vmem:[%s1 + $0xc8] sm:$0xff]
        %v385 = vld [vmem:[%s1 + $0xd0] sm:$0xff]
        %v386 = vld [vmem:[%s1 + $0xd8] sm:$0xff]
        %v387 = vld [vmem:[%s1 + $0xe0] sm:$0xff]
        %v388 = vld [vmem:[%s1 + $0xe8] sm:$0xff]
        %v389 = vld [vmem:[%s1 + $0xf0] sm:$0xff]
        %v390 = vld [vmem:[%s1 + $0xf8] sm:$0xff]
        %391 = vmatprep.subr.mxu0 0.0
        %392 = vmatpush1.msra.mxu0 %v359
        %393 = vmatprep.subr.mxu0 0.0
        %394 = vmatpush1.msra.mxu0 %v360
        %395 = vmatprep.subr.mxu0 0.0
        %396 = vmatpush1.msra.mxu0 %v361
        %397 = vmatprep.subr.mxu0 0.0
        %398 = vmatpush1.msra.mxu0 %v362
        %399 = vmatprep.subr.mxu0 0.0
        %400 = vmatpush1.msra.mxu0 %v363
        %401 = vmatprep.subr.mxu0 0.0
        %402 = vmatpush1.msra.mxu0 %v364
        %403 = vmatprep.subr.mxu0 0.0
        %404 = vmatpush1.msra.mxu0 %v365
        %405 = vmatprep.subr.mxu0 0.0
        %406 = vmatpush1.msra.mxu0 %v366
        %407 = vmatprep.subr.mxu0 0.0
        %408 = vmatpush1.msra.mxu0 %v367
        %409 = vmatprep.subr.mxu0 0.0
        %410 = vmatpush1.msra.mxu0 %v368
        %411 = vmatprep.subr.mxu0 0.0
        %412 = vmatpush1.msra.mxu0 %v369
        %413 = vmatprep.subr.mxu0 0.0
        %414 = vmatpush1.msra.mxu0 %v370
        %415 = vmatprep.subr.mxu0 0.0
        %416 = vmatpush1.msra.mxu0 %v371
        %417 = vmatprep.subr.mxu0 0.0
        %418 = vmatpush1.msra.mxu0 %v372
        %419 = vmatprep.subr.mxu0 0.0
        %420 = vmatpush1.msra.mxu0 %v373
        %421 = vmatprep.subr.mxu0 0.0
        %422 = vmatpush1.msra.mxu0 %v374
        %423 = vmatprep.subr.mxu0 0.0
        %424 = vmatpush1.msra.mxu0 %v375
        %425 = vmatprep.subr.mxu0 0.0
        %426 = vmatpush1.msra.mxu0 %v376
        %427 = vmatprep.subr.mxu0 0.0
        %428 = vmatpush1.msra.mxu0 %v377
        %429 = vmatprep.subr.mxu0 0.0
        %430 = vmatpush1.msra.mxu0 %v378
        %431 = vmatprep.subr.mxu0 0.0
        %432 = vmatpush1.msra.mxu0 %v379
        %433 = vmatprep.subr.mxu0 0.0
        %434 = vmatpush1.msra.mxu0 %v380
        %435 = vmatprep.subr.mxu0 0.0
        %436 = vmatpush1.msra.mxu0 %v381
        %437 = vmatprep.subr.mxu0 0.0
        %438 = vmatpush1.msra.mxu0 %v382
        %439 = vmatprep.subr.mxu0 0.0
        %440 = vmatpush1.msra.mxu0 %v383
        %441 = vmatprep.subr.mxu0 0.0
        %442 = vmatpush1.msra.mxu0 %v384
        %443 = vmatprep.subr.mxu0 0.0
        %444 = vmatpush1.msra.mxu0 %v385
        %445 = vmatprep.subr.mxu0 0.0
        %446 = vmatpush1.msra.mxu0 %v386
        %447 = vmatprep.subr.mxu0 0.0
        %448 = vmatpush1.msra.mxu0 %v387
        %449 = vmatprep.subr.mxu0 0.0
        %450 = vmatpush1.msra.mxu0 %v388
        %451 = vmatprep.subr.mxu0 0.0
        %452 = vmatpush1.msra.mxu0 %v389
        %453 = vmatprep.subr.mxu0 0.0
        %454 = vmatpush1.msra.mxu0 %v390
        %455 = vmatprep.mubr.f32.mxu0 %v356
        %456 = vmatmul.mubr.f32.gmra.mrb[0].mxu0 %v355
        %v457 = vpop.f32.mrb[0].mxu0
        %v458 = vadd.f32 0.0, %v457
        %v459 = vpop.f32.mrb[0].mxu0
        %460 = vmatprep.mubr.f32.mxu0 %v358
        %461 = vmatmul.mubr.f32.gmra.mrb[0].mxu0 %v357
        %v462 = vpop.f32.mrb[0].mxu0
        %v463 = vadd.f32 0.0, %v462
        %v464 = vpop.f32.mrb[0].mxu0
        %465 = vdwg.mxu0
        %v466 = vld [vmem:[%s2] sm:$0xff]
        %v467 = vld [vmem:[%s2 + $0x8] sm:$0xff]
        %v468 = vld [vmem:[%s2 + $0x10] sm:$0xff]
        %v469 = vld [vmem:[%s2 + $0x18] sm:$0xff]
        %v470 = vld [vmem:[%s2 + $0x20] sm:$0xff]
        %v471 = vld [vmem:[%s2 + $0x28] sm:$0xff]
        %v472 = vld [vmem:[%s2 + $0x30] sm:$0xff]
        %v473 = vld [vmem:[%s2 + $0x38] sm:$0xff]
        %v474 = vld [vmem:[%s2 + $0x40] sm:$0xff]
        %v475 = vld [vmem:[%s2 + $0x48] sm:$0xff]
        %v476 = vld [vmem:[%s2 + $0x50] sm:$0xff]
        %v477 = vld [vmem:[%s2 + $0x58] sm:$0xff]
        %v478 = vld [vmem:[%s2 + $0x60] sm:$0xff]
        %v479 = vld [vmem:[%s2 + $0x68] sm:$0xff]
        %v480 = vld [vmem:[%s2 + $0x70] sm:$0xff]
        %v481 = vld [vmem:[%s2 + $0x78] sm:$0xff]
        %v482 = vld [vmem:[%s2 + $0x80] sm:$0xff]
        %v483 = vld [vmem:[%s2 + $0x88] sm:$0xff]
        %v484 = vld [vmem:[%s2 + $0x90] sm:$0xff]
        %v485 = vld [vmem:[%s2 + $0x98] sm:$0xff]
        %v486 = vld [vmem:[%s2 + $0xa0] sm:$0xff]
        %v487 = vld [vmem:[%s2 + $0xa8] sm:$0xff]
        %v488 = vld [vmem:[%s2 + $0xb0] sm:$0xff]
        %v489 = vld [vmem:[%s2 + $0xb8] sm:$0xff]
        %v490 = vld [vmem:[%s2 + $0xc0] sm:$0xff]
        %v491 = vld [vmem:[%s2 + $0xc8] sm:$0xff]
        %v492 = vld [vmem:[%s2 + $0xd0] sm:$0xff]
        %v493 = vld [vmem:[%s2 + $0xd8] sm:$0xff]
        %v494 = vld [vmem:[%s2 + $0xe0] sm:$0xff]
        %v495 = vld [vmem:[%s2 + $0xe8] sm:$0xff]
        %v496 = vld [vmem:[%s2 + $0xf0] sm:$0xff]
        %v497 = vld [vmem:[%s2 + $0xf8] sm:$0xff]
        %498 = vmatprep.subr.mxu0 0.0
        %499 = vmatpush1.msra.mxu0 %v466
        %500 = vmatprep.subr.mxu0 0.0
        %501 = vmatpush1.msra.mxu0 %v467
        %502 = vmatprep.subr.mxu0 0.0
        %503 = vmatpush1.msra.mxu0 %v468
        %504 = vmatprep.subr.mxu0 0.0
        %505 = vmatpush1.msra.mxu0 %v469
        %506 = vmatprep.subr.mxu0 0.0
        %507 = vmatpush1.msra.mxu0 %v470
        %508 = vmatprep.subr.mxu0 0.0
        %509 = vmatpush1.msra.mxu0 %v471
        %510 = vmatprep.subr.mxu0 0.0
        %511 = vmatpush1.msra.mxu0 %v472
        %512 = vmatprep.subr.mxu0 0.0
        %513 = vmatpush1.msra.mxu0 %v473
        %514 = vmatprep.subr.mxu0 0.0
        %515 = vmatpush1.msra.mxu0 %v474
        %516 = vmatprep.subr.mxu0 0.0
        %517 = vmatpush1.msra.mxu0 %v475
        %518 = vmatprep.subr.mxu0 0.0
        %519 = vmatpush1.msra.mxu0 %v476
        %520 = vmatprep.subr.mxu0 0.0
        %521 = vmatpush1.msra.mxu0 %v477
        %522 = vmatprep.subr.mxu0 0.0
        %523 = vmatpush1.msra.mxu0 %v478
        %524 = vmatprep.subr.mxu0 0.0
        %525 = vmatpush1.msra.mxu0 %v479
        %526 = vmatprep.subr.mxu0 0.0
        %527 = vmatpush1.msra.mxu0 %v480
        %528 = vmatprep.subr.mxu0 0.0
        %529 = vmatpush1.msra.mxu0 %v481
        %530 = vmatprep.subr.mxu0 0.0
        %531 = vmatpush1.msra.mxu0 %v482
        %532 = vmatprep.subr.mxu0 0.0
        %533 = vmatpush1.msra.mxu0 %v483
        %534 = vmatprep.subr.mxu0 0.0
        %535 = vmatpush1.msra.mxu0 %v484
        %536 = vmatprep.subr.mxu0 0.0
        %537 = vmatpush1.msra.mxu0 %v485
        %538 = vmatprep.subr.mxu0 0.0
        %539 = vmatpush1.msra.mxu0 %v486
        %540 = vmatprep.subr.mxu0 0.0
        %541 = vmatpush1.msra.mxu0 %v487
        %542 = vmatprep.subr.mxu0 0.0
        %543 = vmatpush1.msra.mxu0 %v488
        %544 = vmatprep.subr.mxu0 0.0
        %545 = vmatpush1.msra.mxu0 %v489
        %546 = vmatprep.subr.mxu0 0.0
        %547 = vmatpush1.msra.mxu0 %v490
        %548 = vmatprep.subr.mxu0 0.0
        %549 = vmatpush1.msra.mxu0 %v491
        %550 = vmatprep.subr.mxu0 0.0
        %551 = vmatpush1.msra.mxu0 %v492
        %552 = vmatprep.subr.mxu0 0.0
        %553 = vmatpush1.msra.mxu0 %v493
        %554 = vmatprep.subr.mxu0 0.0
        %555 = vmatpush1.msra.mxu0 %v494
        %556 = vmatprep.subr.mxu0 0.0
        %557 = vmatpush1.msra.mxu0 %v495
        %558 = vmatprep.subr.mxu0 0.0
        %559 = vmatpush1.msra.mxu0 %v496
        %560 = vmatprep.subr.mxu0 0.0
        %561 = vmatpush1.msra.mxu0 %v497
        %562 = vmatprep.mubr.f32.mxu0 %v356
        %563 = vmatmul.mubr.f32.gmra.mrb[0].mxu0 %v355
        %v564 = vpop.f32.mrb[0].mxu0
        %v565 = vadd.f32 0.0, %v564
        %v566 = vpop.f32.mrb[0].mxu0
        %567 = vmatprep.mubr.f32.mxu0 %v358
        %568 = vmatmul.mubr.f32.gmra.mrb[0].mxu0 %v357
        %v569 = vpop.f32.mrb[0].mxu0
        %v570 = vadd.f32 0.0, %v569
        %v571 = vpop.f32.mrb[0].mxu0
        %572 = vdwg.mxu0
        %v573 = vld [vmem:[%s3] sm:$0xff]
        %v574 = vld [vmem:[%s3 + $0x8] sm:$0xff]
        %v575 = vld [vmem:[%s4] sm:$0xff]
        %v576 = vld [vmem:[%s4 + $0x8] sm:$0xff]
        %v577 = vlaneseq
        %v578 = vshrl.u32 %v577, 7
        %v579 = vsub.s32 0, %v578
        %v580 = vrot.slane %v458, %v579
        %v581 = vmul.f32 %v573, %v580
        %v582 = vmul.f32 %v574, %v580
        %v583 = vlaneseq
        %v584 = vshrl.u32 %v583, 7
        %v585 = vsub.s32 0, %v584
        %v586 = vrot.slane %v565, %v585
        %v587 = vmul.f32 %v575, %v586
        %v588 = vmul.f32 %v576, %v586
        %v589 = vsub.f32 %v581, %v587
        %v590 = vsub.f32 %v582, %v588
        %v591 = vmul.f32 %v573, %v586
        %v592 = vmul.f32 %v574, %v586
        %v593 = vmul.f32 %v575, %v580
        %v594 = vmul.f32 %v576, %v580
        %v595 = vadd.f32 %v591, %v593
        %v596 = vadd.f32 %v592, %v594
        %s597 = scalar_lea.vmem %s3, 16
        %v598 = vld [vmem:[%s597] sm:$0xff]
        %v599 = vld [vmem:[%s597 + $0x8] sm:$0xff]
        %s600 = scalar_lea.vmem %s4, 16
        %v601 = vld [vmem:[%s600] sm:$0xff]
        %v602 = vld [vmem:[%s600 + $0x8] sm:$0xff]
        %v603 = vlaneseq
        %v604 = vshrl.u32 %v603, 7
        %v605 = vsub.s32 1, %v604
        %v606 = vrot.slane %v458, %v605
        %v607 = vmul.f32 %v598, %v606
        %v608 = vmul.f32 %v599, %v606
        %v609 = vlaneseq
        %v610 = vshrl.u32 %v609, 7
        %v611 = vsub.s32 1, %v610
        %v612 = vrot.slane %v565, %v611
        %v613 = vmul.f32 %v601, %v612
        %v614 = vmul.f32 %v602, %v612
        %v615 = vsub.f32 %v607, %v613
        %v616 = vsub.f32 %v608, %v614
        %v617 = vmul.f32 %v598, %v612
        %v618 = vmul.f32 %v599, %v612
        %v619 = vmul.f32 %v601, %v606
        %v620 = vmul.f32 %v602, %v606
        %v621 = vadd.f32 %v617, %v619
        %v622 = vadd.f32 %v618, %v620
        %v623 = vadd.f32 %v589, %v615
        %v624 = vadd.f32 %v590, %v616
        %v625 = vadd.f32 %v595, %v621
        %v626 = vadd.f32 %v596, %v622
        %s627 = scalar_lea.vmem %s3, 32
        %v628 = vld [vmem:[%s627] sm:$0xff]
        %v629 = vld [vmem:[%s627 + $0x8] sm:$0xff]
        %s630 = scalar_lea.vmem %s4, 32
        %v631 = vld [vmem:[%s630] sm:$0xff]
        %v632 = vld [vmem:[%s630 + $0x8] sm:$0xff]
        %v633 = vlaneseq
        %v634 = vshrl.u32 %v633, 7
        %v635 = vsub.s32 2, %v634
        %v636 = vrot.slane %v458, %v635
        %v637 = vmul.f32 %v628, %v636
        %v638 = vmul.f32 %v629, %v636
        %v639 = vlaneseq
        %v640 = vshrl.u32 %v639, 7
        %v641 = vsub.s32 2, %v640
        %v642 = vrot.slane %v565, %v641
        %v643 = vmul.f32 %v631, %v642
        %v644 = vmul.f32 %v632, %v642
        %v645 = vsub.f32 %v637, %v643
        %v646 = vsub.f32 %v638, %v644
        %v647 = vmul.f32 %v628, %v642
        %v648 = vmul.f32 %v629, %v642
        %v649 = vmul.f32 %v631, %v636
        %v650 = vmul.f32 %v632, %v636
        %v651 = vadd.f32 %v647, %v649
        %v652 = vadd.f32 %v648, %v650
        %v653 = vadd.f32 %v623, %v645
        %v654 = vadd.f32 %v624, %v646
        %v655 = vadd.f32 %v625, %v651
        %v656 = vadd.f32 %v626, %v652
        %s657 = scalar_lea.vmem %s3, 48
        %v658 = vld [vmem:[%s657] sm:$0xff]
        %v659 = vld [vmem:[%s657 + $0x8] sm:$0xff]
        %s660 = scalar_lea.vmem %s4, 48
        %v661 = vld [vmem:[%s660] sm:$0xff]
        %v662 = vld [vmem:[%s660 + $0x8] sm:$0xff]
        %v663 = vlaneseq
        %v664 = vshrl.u32 %v663, 7
        %v665 = vsub.s32 3, %v664
        %v666 = vrot.slane %v458, %v665
        %v667 = vmul.f32 %v658, %v666
        %v668 = vmul.f32 %v659, %v666
        %v669 = vlaneseq
        %v670 = vshrl.u32 %v669, 7
        %v671 = vsub.s32 3, %v670
        %v672 = vrot.slane %v565, %v671
        %v673 = vmul.f32 %v661, %v672
        %v674 = vmul.f32 %v662, %v672
        %v675 = vsub.f32 %v667, %v673
        %v676 = vsub.f32 %v668, %v674
        %v677 = vmul.f32 %v658, %v672
        %v678 = vmul.f32 %v659, %v672
        %v679 = vmul.f32 %v661, %v666
        %v680 = vmul.f32 %v662, %v666
        %v681 = vadd.f32 %v677, %v679
        %v682 = vadd.f32 %v678, %v680
        %v683 = vadd.f32 %v653, %v675
        %v684 = vadd.f32 %v654, %v676
        %v685 = vadd.f32 %v655, %v681
        %v686 = vadd.f32 %v656, %v682
        %s687 = scalar_lea.vmem %s3, 64
        %v688 = vld [vmem:[%s687] sm:$0xff]
        %v689 = vld [vmem:[%s687 + $0x8] sm:$0xff]
        %s690 = scalar_lea.vmem %s4, 64
        %v691 = vld [vmem:[%s690] sm:$0xff]
        %v692 = vld [vmem:[%s690 + $0x8] sm:$0xff]
        %v693 = vlaneseq
        %v694 = vshrl.u32 %v693, 7
        %v695 = vsub.s32 4, %v694
        %v696 = vrot.slane %v458, %v695
        %v697 = vmul.f32 %v688, %v696
        %v698 = vmul.f32 %v689, %v696
        %v699 = vlaneseq
        %v700 = vshrl.u32 %v699, 7
        %v701 = vsub.s32 4, %v700
        %v702 = vrot.slane %v565, %v701
        %v703 = vmul.f32 %v691, %v702
        %v704 = vmul.f32 %v692, %v702
        %v705 = vsub.f32 %v697, %v703
        %v706 = vsub.f32 %v698, %v704
        %v707 = vmul.f32 %v688, %v702
        %v708 = vmul.f32 %v689, %v702
        %v709 = vmul.f32 %v691, %v696
        %v710 = vmul.f32 %v692, %v696
        %v711 = vadd.f32 %v707, %v709
        %v712 = vadd.f32 %v708, %v710
        %v713 = vadd.f32 %v683, %v705
        %v714 = vadd.f32 %v684, %v706
        %v715 = vadd.f32 %v685, %v711
        %v716 = vadd.f32 %v686, %v712
        %s717 = scalar_lea.vmem %s3, 80
        %v718 = vld [vmem:[%s717] sm:$0xff]
        %v719 = vld [vmem:[%s717 + $0x8] sm:$0xff]
        %s720 = scalar_lea.vmem %s4, 80
        %v721 = vld [vmem:[%s720] sm:$0xff]
        %v722 = vld [vmem:[%s720 + $0x8] sm:$0xff]
        %v723 = vlaneseq
        %v724 = vshrl.u32 %v723, 7
        %v725 = vsub.s32 5, %v724
        %v726 = vrot.slane %v458, %v725
        %v727 = vmul.f32 %v718, %v726
        %v728 = vmul.f32 %v719, %v726
        %v729 = vlaneseq
        %v730 = vshrl.u32 %v729, 7
        %v731 = vsub.s32 5, %v730
        %v732 = vrot.slane %v565, %v731
        %v733 = vmul.f32 %v721, %v732
        %v734 = vmul.f32 %v722, %v732
        %v735 = vsub.f32 %v727, %v733
        %v736 = vsub.f32 %v728, %v734
        %v737 = vmul.f32 %v718, %v732
        %v738 = vmul.f32 %v719, %v732
        %v739 = vmul.f32 %v721, %v726
        %v740 = vmul.f32 %v722, %v726
        %v741 = vadd.f32 %v737, %v739
        %v742 = vadd.f32 %v738, %v740
        %v743 = vadd.f32 %v713, %v735
        %v744 = vadd.f32 %v714, %v736
        %v745 = vadd.f32 %v715, %v741
        %v746 = vadd.f32 %v716, %v742
        %s747 = scalar_lea.vmem %s3, 96
        %v748 = vld [vmem:[%s747] sm:$0xff]
        %v749 = vld [vmem:[%s747 + $0x8] sm:$0xff]
        %s750 = scalar_lea.vmem %s4, 96
        %v751 = vld [vmem:[%s750] sm:$0xff]
        %v752 = vld [vmem:[%s750 + $0x8] sm:$0xff]
        %v753 = vlaneseq
        %v754 = vshrl.u32 %v753, 7
        %v755 = vsub.s32 6, %v754
        %v756 = vrot.slane %v458, %v755
        %v757 = vmul.f32 %v748, %v756
        %v758 = vmul.f32 %v749, %v756
        %v759 = vlaneseq
        %v760 = vshrl.u32 %v759, 7
        %v761 = vsub.s32 6, %v760
        %v762 = vrot.slane %v565, %v761
        %v763 = vmul.f32 %v751, %v762
        %v764 = vmul.f32 %v752, %v762
        %v765 = vsub.f32 %v757, %v763
        %v766 = vsub.f32 %v758, %v764
        %v767 = vmul.f32 %v748, %v762
        %v768 = vmul.f32 %v749, %v762
        %v769 = vmul.f32 %v751, %v756
        %v770 = vmul.f32 %v752, %v756
        %v771 = vadd.f32 %v767, %v769
        %v772 = vadd.f32 %v768, %v770
        %v773 = vadd.f32 %v743, %v765
        %v774 = vadd.f32 %v744, %v766
        %v775 = vadd.f32 %v745, %v771
        %v776 = vadd.f32 %v746, %v772
        %s777 = scalar_lea.vmem %s3, 112
        %v778 = vld [vmem:[%s777] sm:$0xff]
        %v779 = vld [vmem:[%s777 + $0x8] sm:$0xff]
        %s780 = scalar_lea.vmem %s4, 112
        %v781 = vld [vmem:[%s780] sm:$0xff]
        %v782 = vld [vmem:[%s780 + $0x8] sm:$0xff]
        %v783 = vlaneseq
        %v784 = vshrl.u32 %v783, 7
        %v785 = vsub.s32 7, %v784
        %v786 = vrot.slane %v458, %v785
        %v787 = vmul.f32 %v778, %v786
        %v788 = vmul.f32 %v779, %v786
        %v789 = vlaneseq
        %v790 = vshrl.u32 %v789, 7
        %v791 = vsub.s32 7, %v790
        %v792 = vrot.slane %v565, %v791
        %v793 = vmul.f32 %v781, %v792
        %v794 = vmul.f32 %v782, %v792
        %v795 = vsub.f32 %v787, %v793
        %v796 = vsub.f32 %v788, %v794
        %v797 = vmul.f32 %v778, %v792
        %v798 = vmul.f32 %v779, %v792
        %v799 = vmul.f32 %v781, %v786
        %v800 = vmul.f32 %v782, %v786
        %v801 = vadd.f32 %v797, %v799
        %v802 = vadd.f32 %v798, %v800
        %v803 = vadd.f32 %v773, %v795
        %v804 = vadd.f32 %v774, %v796
        %v805 = vadd.f32 %v775, %v801
        %v806 = vadd.f32 %v776, %v802
        %s807 = scalar_lea.vmem %s3, 128
        %v808 = vld [vmem:[%s807] sm:$0xff]
        %v809 = vld [vmem:[%s807 + $0x8] sm:$0xff]
        %s810 = scalar_lea.vmem %s4, 128
        %v811 = vld [vmem:[%s810] sm:$0xff]
        %v812 = vld [vmem:[%s810 + $0x8] sm:$0xff]
        %v813 = vlaneseq
        %v814 = vshrl.u32 %v813, 7
        %v815 = vsub.s32 0, %v814
        %v816 = vrot.slane %v463, %v815
        %v817 = vmul.f32 %v808, %v816
        %v818 = vmul.f32 %v809, %v816
        %v819 = vlaneseq
        %v820 = vshrl.u32 %v819, 7
        %v821 = vsub.s32 0, %v820
        %v822 = vrot.slane %v570, %v821
        %v823 = vmul.f32 %v811, %v822
        %v824 = vmul.f32 %v812, %v822
        %v825 = vsub.f32 %v817, %v823
        %v826 = vsub.f32 %v818, %v824
        %v827 = vmul.f32 %v808, %v822
        %v828 = vmul.f32 %v809, %v822
        %v829 = vmul.f32 %v811, %v816
        %v830 = vmul.f32 %v812, %v816
        %v831 = vadd.f32 %v827, %v829
        %v832 = vadd.f32 %v828, %v830
        %v833 = vadd.f32 %v803, %v825
        %v834 = vadd.f32 %v804, %v826
        %v835 = vadd.f32 %v805, %v831
        %v836 = vadd.f32 %v806, %v832
        %s837 = scalar_lea.vmem %s3, 144
        %v838 = vld [vmem:[%s837] sm:$0xff]
        %v839 = vld [vmem:[%s837 + $0x8] sm:$0xff]
        %s840 = scalar_lea.vmem %s4, 144
        %v841 = vld [vmem:[%s840] sm:$0xff]
        %v842 = vld [vmem:[%s840 + $0x8] sm:$0xff]
        %v843 = vlaneseq
        %v844 = vshrl.u32 %v843, 7
        %v845 = vsub.s32 1, %v844
        %v846 = vrot.slane %v463, %v845
        %v847 = vmul.f32 %v838, %v846
        %v848 = vmul.f32 %v839, %v846
        %v849 = vlaneseq
        %v850 = vshrl.u32 %v849, 7
        %v851 = vsub.s32 1, %v850
        %v852 = vrot.slane %v570, %v851
        %v853 = vmul.f32 %v841, %v852
        %v854 = vmul.f32 %v842, %v852
        %v855 = vsub.f32 %v847, %v853
        %v856 = vsub.f32 %v848, %v854
        %v857 = vmul.f32 %v838, %v852
        %v858 = vmul.f32 %v839, %v852
        %v859 = vmul.f32 %v841, %v846
        %v860 = vmul.f32 %v842, %v846
        %v861 = vadd.f32 %v857, %v859
        %v862 = vadd.f32 %v858, %v860
        %v863 = vadd.f32 %v833, %v855
        %v864 = vadd.f32 %v834, %v856
        %v865 = vadd.f32 %v835, %v861
        %v866 = vadd.f32 %v836, %v862
        %s867 = scalar_lea.vmem %s3, 160
        %v868 = vld [vmem:[%s867] sm:$0xff]
        %v869 = vld [vmem:[%s867 + $0x8] sm:$0xff]
        %s870 = scalar_lea.vmem %s4, 160
        %v871 = vld [vmem:[%s870] sm:$0xff]
        %v872 = vld [vmem:[%s870 + $0x8] sm:$0xff]
        %v873 = vlaneseq
        %v874 = vshrl.u32 %v873, 7
        %v875 = vsub.s32 2, %v874
        %v876 = vrot.slane %v463, %v875
        %v877 = vmul.f32 %v868, %v876
        %v878 = vmul.f32 %v869, %v876
        %v879 = vlaneseq
        %v880 = vshrl.u32 %v879, 7
        %v881 = vsub.s32 2, %v880
        %v882 = vrot.slane %v570, %v881
        %v883 = vmul.f32 %v871, %v882
        %v884 = vmul.f32 %v872, %v882
        %v885 = vsub.f32 %v877, %v883
        %v886 = vsub.f32 %v878, %v884
        %v887 = vmul.f32 %v868, %v882
        %v888 = vmul.f32 %v869, %v882
        %v889 = vmul.f32 %v871, %v876
        %v890 = vmul.f32 %v872, %v876
        %v891 = vadd.f32 %v887, %v889
        %v892 = vadd.f32 %v888, %v890
        %v893 = vadd.f32 %v863, %v885
        %v894 = vadd.f32 %v864, %v886
        %v895 = vadd.f32 %v865, %v891
        %v896 = vadd.f32 %v866, %v892
        %s897 = scalar_lea.vmem %s3, 176
        %v898 = vld [vmem:[%s897] sm:$0xff]
        %v899 = vld [vmem:[%s897 + $0x8] sm:$0xff]
        %s900 = scalar_lea.vmem %s4, 176
        %v901 = vld [vmem:[%s900] sm:$0xff]
        %v902 = vld [vmem:[%s900 + $0x8] sm:$0xff]
        %v903 = vlaneseq
        %v904 = vshrl.u32 %v903, 7
        %v905 = vsub.s32 3, %v904
        %v906 = vrot.slane %v463, %v905
        %v907 = vmul.f32 %v898, %v906
        %v908 = vmul.f32 %v899, %v906
        %v909 = vlaneseq
        %v910 = vshrl.u32 %v909, 7
        %v911 = vsub.s32 3, %v910
        %v912 = vrot.slane %v570, %v911
        %v913 = vmul.f32 %v901, %v912
        %v914 = vmul.f32 %v902, %v912
        %v915 = vsub.f32 %v907, %v913
        %v916 = vsub.f32 %v908, %v914
        %v917 = vmul.f32 %v898, %v912
        %v918 = vmul.f32 %v899, %v912
        %v919 = vmul.f32 %v901, %v906
        %v920 = vmul.f32 %v902, %v906
        %v921 = vadd.f32 %v917, %v919
        %v922 = vadd.f32 %v918, %v920
        %v923 = vadd.f32 %v893, %v915
        %v924 = vadd.f32 %v894, %v916
        %v925 = vadd.f32 %v895, %v921
        %v926 = vadd.f32 %v896, %v922
        %s927 = scalar_lea.vmem %s3, 192
        %v928 = vld [vmem:[%s927] sm:$0xff]
        %v929 = vld [vmem:[%s927 + $0x8] sm:$0xff]
        %s930 = scalar_lea.vmem %s4, 192
        %v931 = vld [vmem:[%s930] sm:$0xff]
        %v932 = vld [vmem:[%s930 + $0x8] sm:$0xff]
        %v933 = vlaneseq
        %v934 = vshrl.u32 %v933, 7
        %v935 = vsub.s32 4, %v934
        %v936 = vrot.slane %v463, %v935
        %v937 = vmul.f32 %v928, %v936
        %v938 = vmul.f32 %v929, %v936
        %v939 = vlaneseq
        %v940 = vshrl.u32 %v939, 7
        %v941 = vsub.s32 4, %v940
        %v942 = vrot.slane %v570, %v941
        %v943 = vmul.f32 %v931, %v942
        %v944 = vmul.f32 %v932, %v942
        %v945 = vsub.f32 %v937, %v943
        %v946 = vsub.f32 %v938, %v944
        %v947 = vmul.f32 %v928, %v942
        %v948 = vmul.f32 %v929, %v942
        %v949 = vmul.f32 %v931, %v936
        %v950 = vmul.f32 %v932, %v936
        %v951 = vadd.f32 %v947, %v949
        %v952 = vadd.f32 %v948, %v950
        %v953 = vadd.f32 %v923, %v945
        %v954 = vadd.f32 %v924, %v946
        %v955 = vadd.f32 %v925, %v951
        %v956 = vadd.f32 %v926, %v952
        %s957 = scalar_lea.vmem %s3, 208
        %v958 = vld [vmem:[%s957] sm:$0xff]
        %v959 = vld [vmem:[%s957 + $0x8] sm:$0xff]
        %s960 = scalar_lea.vmem %s4, 208
        %v961 = vld [vmem:[%s960] sm:$0xff]
        %v962 = vld [vmem:[%s960 + $0x8] sm:$0xff]
        %v963 = vlaneseq
        %v964 = vshrl.u32 %v963, 7
        %v965 = vsub.s32 5, %v964
        %v966 = vrot.slane %v463, %v965
        %v967 = vmul.f32 %v958, %v966
        %v968 = vmul.f32 %v959, %v966
        %v969 = vlaneseq
        %v970 = vshrl.u32 %v969, 7
        %v971 = vsub.s32 5, %v970
        %v972 = vrot.slane %v570, %v971
        %v973 = vmul.f32 %v961, %v972
        %v974 = vmul.f32 %v962, %v972
        %v975 = vsub.f32 %v967, %v973
        %v976 = vsub.f32 %v968, %v974
        %v977 = vmul.f32 %v958, %v972
        %v978 = vmul.f32 %v959, %v972
        %v979 = vmul.f32 %v961, %v966
        %v980 = vmul.f32 %v962, %v966
        %v981 = vadd.f32 %v977, %v979
        %v982 = vadd.f32 %v978, %v980
        %v983 = vadd.f32 %v953, %v975
        %v984 = vadd.f32 %v954, %v976
        %v985 = vadd.f32 %v955, %v981
        %v986 = vadd.f32 %v956, %v982
        %s987 = scalar_lea.vmem %s3, 224
        %v988 = vld [vmem:[%s987] sm:$0xff]
        %v989 = vld [vmem:[%s987 + $0x8] sm:$0xff]
        %s990 = scalar_lea.vmem %s4, 224
        %v991 = vld [vmem:[%s990] sm:$0xff]
        %v992 = vld [vmem:[%s990 + $0x8] sm:$0xff]
        %v993 = vlaneseq
        %v994 = vshrl.u32 %v993, 7
        %v995 = vsub.s32 6, %v994
        %v996 = vrot.slane %v463, %v995
        %v997 = vmul.f32 %v988, %v996
        %v998 = vmul.f32 %v989, %v996
        %v999 = vlaneseq
        %v1000 = vshrl.u32 %v999, 7
        %v1001 = vsub.s32 6, %v1000
        %v1002 = vrot.slane %v570, %v1001
        %v1003 = vmul.f32 %v991, %v1002
        %v1004 = vmul.f32 %v992, %v1002
        %v1005 = vsub.f32 %v997, %v1003
        %v1006 = vsub.f32 %v998, %v1004
        %v1007 = vmul.f32 %v988, %v1002
        %v1008 = vmul.f32 %v989, %v1002
        %v1009 = vmul.f32 %v991, %v996
        %v1010 = vmul.f32 %v992, %v996
        %v1011 = vadd.f32 %v1007, %v1009
        %v1012 = vadd.f32 %v1008, %v1010
        %v1013 = vadd.f32 %v983, %v1005
        %v1014 = vadd.f32 %v984, %v1006
        %v1015 = vadd.f32 %v985, %v1011
        %v1016 = vadd.f32 %v986, %v1012
        %s1017 = scalar_lea.vmem %s3, 240
        %v1018 = vld [vmem:[%s1017] sm:$0xff]
        %v1019 = vld [vmem:[%s1017 + $0x8] sm:$0xff]
        %s1020 = scalar_lea.vmem %s4, 240
        %v1021 = vld [vmem:[%s1020] sm:$0xff]
        %v1022 = vld [vmem:[%s1020 + $0x8] sm:$0xff]
        %v1023 = vlaneseq
        %v1024 = vshrl.u32 %v1023, 7
        %v1025 = vsub.s32 7, %v1024
        %v1026 = vrot.slane %v463, %v1025
        %v1027 = vmul.f32 %v1018, %v1026
        %v1028 = vmul.f32 %v1019, %v1026
        %v1029 = vlaneseq
        %v1030 = vshrl.u32 %v1029, 7
        %v1031 = vsub.s32 7, %v1030
        %v1032 = vrot.slane %v570, %v1031
        %v1033 = vmul.f32 %v1021, %v1032
        %v1034 = vmul.f32 %v1022, %v1032
        %v1035 = vsub.f32 %v1027, %v1033
        %v1036 = vsub.f32 %v1028, %v1034
        %v1037 = vmul.f32 %v1018, %v1032
        %v1038 = vmul.f32 %v1019, %v1032
        %v1039 = vmul.f32 %v1021, %v1026
        %v1040 = vmul.f32 %v1022, %v1026
        %v1041 = vadd.f32 %v1037, %v1039
        %v1042 = vadd.f32 %v1038, %v1040
        %v1043 = vadd.f32 %v1013, %v1035
        %v1044 = vadd.f32 %v1014, %v1036
        %v1045 = vadd.f32 %v1015, %v1041
        %v1046 = vadd.f32 %v1016, %v1042
        %v1047 = vld [vmem:[%s5] sm:$0xff]
        %v1048 = vld [vmem:[%s5 + $0x8] sm:$0xff]
        %v1049 = vld [vmem:[%s5 + $0x10] sm:$0xff]
        %v1050 = vld [vmem:[%s5 + $0x18] sm:$0xff]
        %v1051 = vld [vmem:[%s5 + $0x20] sm:$0xff]
        %v1052 = vld [vmem:[%s5 + $0x28] sm:$0xff]
        %v1053 = vld [vmem:[%s5 + $0x30] sm:$0xff]
        %v1054 = vld [vmem:[%s5 + $0x38] sm:$0xff]
        %v1055 = vld [vmem:[%s5 + $0x40] sm:$0xff]
        %v1056 = vld [vmem:[%s5 + $0x48] sm:$0xff]
        %v1057 = vld [vmem:[%s5 + $0x50] sm:$0xff]
        %v1058 = vld [vmem:[%s5 + $0x58] sm:$0xff]
        %v1059 = vld [vmem:[%s5 + $0x60] sm:$0xff]
        %v1060 = vld [vmem:[%s5 + $0x68] sm:$0xff]
        %v1061 = vld [vmem:[%s5 + $0x70] sm:$0xff]
        %v1062 = vld [vmem:[%s5 + $0x78] sm:$0xff]
        %v1063 = vld [vmem:[%s5 + $0x80] sm:$0xff]
        %v1064 = vld [vmem:[%s5 + $0x88] sm:$0xff]
        %v1065 = vld [vmem:[%s6] sm:$0xff]
        %v1066 = vld [vmem:[%s6 + $0x8] sm:$0xff]
        %v1067 = vld [vmem:[%s6 + $0x10] sm:$0xff]
        %v1068 = vld [vmem:[%s6 + $0x18] sm:$0xff]
        %v1069 = vld [vmem:[%s6 + $0x20] sm:$0xff]
        %v1070 = vld [vmem:[%s6 + $0x28] sm:$0xff]
        %v1071 = vld [vmem:[%s6 + $0x30] sm:$0xff]
        %v1072 = vld [vmem:[%s6 + $0x38] sm:$0xff]
        %v1073 = vld [vmem:[%s6 + $0x40] sm:$0xff]
        %v1074 = vld [vmem:[%s6 + $0x48] sm:$0xff]
        %v1075 = vld [vmem:[%s6 + $0x50] sm:$0xff]
        %v1076 = vld [vmem:[%s6 + $0x58] sm:$0xff]
        %v1077 = vld [vmem:[%s6 + $0x60] sm:$0xff]
        %v1078 = vld [vmem:[%s6 + $0x68] sm:$0xff]
        %v1079 = vld [vmem:[%s6 + $0x70] sm:$0xff]
        %v1080 = vld [vmem:[%s6 + $0x78] sm:$0xff]
        %v1081 = vld [vmem:[%s6 + $0x80] sm:$0xff]
        %v1082 = vld [vmem:[%s6 + $0x88] sm:$0xff]
        %vm1083 = vcmask 588800
        %v1085 = vsel %vm1083, %v1045, 0
        %v1088 = vsel %vm1083, %v1046, 0
        %1090 = vmatprep.subr.mxu0 %v1066
        %1091 = vmatpush1.msra.mxu0 %v1065
        %1092 = vmatprep.subr.mxu0 %v1068
        %1093 = vmatpush1.msra.mxu0 %v1067
        %1094 = vmatprep.subr.mxu0 %v1070
        %1095 = vmatpush1.msra.mxu0 %v1069
        %1096 = vmatprep.subr.mxu0 %v1072
        %1097 = vmatpush1.msra.mxu0 %v1071
        %1098 = vmatprep.subr.mxu0 %v1074
        %1099 = vmatpush1.msra.mxu0 %v1073
        %1100 = vmatprep.subr.mxu0 %v1076
        %1101 = vmatpush1.msra.mxu0 %v1075
        %1102 = vmatprep.subr.mxu0 %v1078
        %1103 = vmatpush1.msra.mxu0 %v1077
        %1104 = vmatprep.subr.mxu0 %v1080
        %1105 = vmatpush1.msra.mxu0 %v1079
        %1106 = vmatprep.subr.mxu0 %v1082
        %1107 = vmatpush1.msra.mxu0 %v1081
        %1108 = vmatprep.subr.mxu0 0.0
        %1109 = vmatpush1.msra.mxu0 0.0
        %1110 = vmatprep.subr.mxu0 0.0
        %1111 = vmatpush1.msra.mxu0 0.0
        %1112 = vmatprep.subr.mxu0 0.0
        %1113 = vmatpush1.msra.mxu0 0.0
        %1114 = vmatprep.subr.mxu0 0.0
        %1115 = vmatpush1.msra.mxu0 0.0
        %1116 = vmatprep.subr.mxu0 0.0
        %1117 = vmatpush1.msra.mxu0 0.0
        %1118 = vmatprep.subr.mxu0 0.0
        %1119 = vmatpush1.msra.mxu0 0.0
        %1120 = vmatprep.subr.mxu0 0.0
        %1121 = vmatpush1.msra.mxu0 0.0
        %1122 = vmatprep.subr.mxu0 0.0
        %1123 = vmatpush1.msra.mxu0 0.0
        %1124 = vmatprep.subr.mxu0 0.0
        %1125 = vmatpush1.msra.mxu0 0.0
        %1126 = vmatprep.subr.mxu0 0.0
        %1127 = vmatpush1.msra.mxu0 0.0
        %1128 = vmatprep.subr.mxu0 0.0
        %1129 = vmatpush1.msra.mxu0 0.0
        %1130 = vmatprep.subr.mxu0 0.0
        %1131 = vmatpush1.msra.mxu0 0.0
        %1132 = vmatprep.subr.mxu0 0.0
        %1133 = vmatpush1.msra.mxu0 0.0
        %1134 = vmatprep.subr.mxu0 0.0
        %1135 = vmatpush1.msra.mxu0 0.0
        %1136 = vmatprep.subr.mxu0 0.0
        %1137 = vmatpush1.msra.mxu0 0.0
        %1138 = vmatprep.subr.mxu0 0.0
        %1139 = vmatpush1.msra.mxu0 0.0
        %1140 = vmatprep.subr.mxu0 0.0
        %1141 = vmatpush1.msra.mxu0 0.0
        %1142 = vmatprep.subr.mxu0 0.0
        %1143 = vmatpush1.msra.mxu0 0.0
        %1144 = vmatprep.subr.mxu0 0.0
        %1145 = vmatpush1.msra.mxu0 0.0
        %1146 = vmatprep.subr.mxu0 0.0
        %1147 = vmatpush1.msra.mxu0 0.0
        %1148 = vmatprep.subr.mxu0 0.0
        %1149 = vmatpush1.msra.mxu0 0.0
        %1150 = vmatprep.subr.mxu0 0.0
        %1151 = vmatpush1.msra.mxu0 0.0
        %1152 = vmatprep.subr.mxu0 0.0
        %1153 = vmatpush1.msra.mxu0 0.0
        %1154 = vmatprep.mubr.f32.mxu0 0.0
        %1155 = vmatmul.mubr.f32.gmra.mrb[0].mxu0 %v1085
        %v1156 = vpop.f32.mrb[0].mxu0
        %v1157 = vadd.f32 0.0, %v1156
        %v1158 = vpop.f32.mrb[0].mxu0
        %v1159 = vadd.f32 0.0, %v1158
        %1160 = vmatprep.mubr.f32.mxu0 0.0
        %1161 = vmatmul.mubr.f32.gmra.mrb[0].mxu0 %v1088
        %v1162 = vpop.f32.mrb[0].mxu0
        %v1163 = vadd.f32 0.0, %v1162
        %v1164 = vpop.f32.mrb[0].mxu0
        %v1165 = vadd.f32 0.0, %v1164
        %1166 = vdwg.mxu0
        %v1168 = vsel %vm1083, %v1043, 0
        %v1171 = vsel %vm1083, %v1044, 0
        %1173 = vmatprep.subr.mxu0 %v1048
        %1174 = vmatpush1.msra.mxu0 %v1047
        %1175 = vmatprep.subr.mxu0 %v1050
        %1176 = vmatpush1.msra.mxu0 %v1049
        %1177 = vmatprep.subr.mxu0 %v1052
        %1178 = vmatpush1.msra.mxu0 %v1051
        %1179 = vmatprep.subr.mxu0 %v1054
        %1180 = vmatpush1.msra.mxu0 %v1053
        %1181 = vmatprep.subr.mxu0 %v1056
        %1182 = vmatpush1.msra.mxu0 %v1055
        %1183 = vmatprep.subr.mxu0 %v1058
        %1184 = vmatpush1.msra.mxu0 %v1057
        %1185 = vmatprep.subr.mxu0 %v1060
        %1186 = vmatpush1.msra.mxu0 %v1059
        %1187 = vmatprep.subr.mxu0 %v1062
        %1188 = vmatpush1.msra.mxu0 %v1061
        %1189 = vmatprep.subr.mxu0 %v1064
        %1190 = vmatpush1.msra.mxu0 %v1063
        %1191 = vmatprep.subr.mxu0 0.0
        %1192 = vmatpush1.msra.mxu0 0.0
        %1193 = vmatprep.subr.mxu0 0.0
        %1194 = vmatpush1.msra.mxu0 0.0
        %1195 = vmatprep.subr.mxu0 0.0
        %1196 = vmatpush1.msra.mxu0 0.0
        %1197 = vmatprep.subr.mxu0 0.0
        %1198 = vmatpush1.msra.mxu0 0.0
        %1199 = vmatprep.subr.mxu0 0.0
        %1200 = vmatpush1.msra.mxu0 0.0
        %1201 = vmatprep.subr.mxu0 0.0
        %1202 = vmatpush1.msra.mxu0 0.0
        %1203 = vmatprep.subr.mxu0 0.0
        %1204 = vmatpush1.msra.mxu0 0.0
        %1205 = vmatprep.subr.mxu0 0.0
        %1206 = vmatpush1.msra.mxu0 0.0
        %1207 = vmatprep.subr.mxu0 0.0
        %1208 = vmatpush1.msra.mxu0 0.0
        %1209 = vmatprep.subr.mxu0 0.0
        %1210 = vmatpush1.msra.mxu0 0.0
        %1211 = vmatprep.subr.mxu0 0.0
        %1212 = vmatpush1.msra.mxu0 0.0
        %1213 = vmatprep.subr.mxu0 0.0
        %1214 = vmatpush1.msra.mxu0 0.0
        %1215 = vmatprep.subr.mxu0 0.0
        %1216 = vmatpush1.msra.mxu0 0.0
        %1217 = vmatprep.subr.mxu0 0.0
        %1218 = vmatpush1.msra.mxu0 0.0
        %1219 = vmatprep.subr.mxu0 0.0
        %1220 = vmatpush1.msra.mxu0 0.0
        %1221 = vmatprep.subr.mxu0 0.0
        %1222 = vmatpush1.msra.mxu0 0.0
        %1223 = vmatprep.subr.mxu0 0.0
        %1224 = vmatpush1.msra.mxu0 0.0
        %1225 = vmatprep.subr.mxu0 0.0
        %1226 = vmatpush1.msra.mxu0 0.0
        %1227 = vmatprep.subr.mxu0 0.0
        %1228 = vmatpush1.msra.mxu0 0.0
        %1229 = vmatprep.subr.mxu0 0.0
        %1230 = vmatpush1.msra.mxu0 0.0
        %1231 = vmatprep.subr.mxu0 0.0
        %1232 = vmatpush1.msra.mxu0 0.0
        %1233 = vmatprep.subr.mxu0 0.0
        %1234 = vmatpush1.msra.mxu0 0.0
        %1235 = vmatprep.subr.mxu0 0.0
        %1236 = vmatpush1.msra.mxu0 0.0
        %1237 = vmatprep.mubr.f32.mxu0 0.0
        %1238 = vmatmul.mubr.f32.gmra.mrb[0].mxu0 %v1168
        %v1239 = vpop.f32.mrb[0].mxu0
        %v1240 = vadd.f32 %v1157, %v1239
        %v1241 = vpop.f32.mrb[0].mxu0
        %v1242 = vadd.f32 %v1159, %v1241
        %1243 = vmatprep.mubr.f32.mxu0 0.0
        %1244 = vmatmul.mubr.f32.gmra.mrb[0].mxu0 %v1171
        %v1245 = vpop.f32.mrb[0].mxu0
        %v1246 = vadd.f32 %v1163, %v1245
        %v1247 = vpop.f32.mrb[0].mxu0
        %v1248 = vadd.f32 %v1165, %v1247
        %1249 = vdwg.mxu0
        %v1250 = vld [vmem:[%s7] sm:$0xff]
        %v1251 = vld [vmem:[%s7 + $0x8] sm:$0xff]
        %v1252 = vld [vmem:[%s8] sm:$0xff]
        %v1253 = vld [vmem:[%s8 + $0x8] sm:$0xff]
        %1255 = vset.pattern.permute.xlu0 0
        %1256 = vperm.xlu0 %1255, %v1252
        %v1257 = vpop.permute.xlu0 %1256
        %1260 = vset.pattern.permute.xlu0 0
        %1261 = vperm.xlu0 %1260, %v1253
        %v1262 = vpop.permute.xlu0 %1261
        %vm1264 = vcmask 130048
        %v1266 = vsel %vm1264, %v1250, 0
        %v1269 = vsel %vm1264, %v1251, 0
        %1271 = vmatprep.subr.mxu0 %v356
        %1272 = vmatpush1.msra.mxu0 %v355
        %1273 = vmatprep.subr.mxu0 %v358
        %1274 = vmatpush1.msra.mxu0 %v357
        %1275 = vmatprep.subr.mxu0 0.0
        %1276 = vmatpush1.msra.mxu0 0.0
        %1277 = vmatprep.subr.mxu0 0.0
        %1278 = vmatpush1.msra.mxu0 0.0
        %1279 = vmatprep.subr.mxu0 0.0
        %1280 = vmatpush1.msra.mxu0 0.0
        %1281 = vmatprep.subr.mxu0 0.0
        %1282 = vmatpush1.msra.mxu0 0.0
        %1283 = vmatprep.subr.mxu0 0.0
        %1284 = vmatpush1.msra.mxu0 0.0
        %1285 = vmatprep.subr.mxu0 0.0
        %1286 = vmatpush1.msra.mxu0 0.0
        %1287 = vmatprep.subr.mxu0 0.0
        %1288 = vmatpush1.msra.mxu0 0.0
        %1289 = vmatprep.subr.mxu0 0.0
        %1290 = vmatpush1.msra.mxu0 0.0
        %1291 = vmatprep.subr.mxu0 0.0
        %1292 = vmatpush1.msra.mxu0 0.0
        %1293 = vmatprep.subr.mxu0 0.0
        %1294 = vmatpush1.msra.mxu0 0.0
        %1295 = vmatprep.subr.mxu0 0.0
        %1296 = vmatpush1.msra.mxu0 0.0
        %1297 = vmatprep.subr.mxu0 0.0
        %1298 = vmatpush1.msra.mxu0 0.0
        %1299 = vmatprep.subr.mxu0 0.0
        %1300 = vmatpush1.msra.mxu0 0.0
        %1301 = vmatprep.subr.mxu0 0.0
        %1302 = vmatpush1.msra.mxu0 0.0
        %1303 = vmatprep.subr.mxu0 0.0
        %1304 = vmatpush1.msra.mxu0 0.0
        %1305 = vmatprep.subr.mxu0 0.0
        %1306 = vmatpush1.msra.mxu0 0.0
        %1307 = vmatprep.subr.mxu0 0.0
        %1308 = vmatpush1.msra.mxu0 0.0
        %1309 = vmatprep.subr.mxu0 0.0
        %1310 = vmatpush1.msra.mxu0 0.0
        %1311 = vmatprep.subr.mxu0 0.0
        %1312 = vmatpush1.msra.mxu0 0.0
        %1313 = vmatprep.subr.mxu0 0.0
        %1314 = vmatpush1.msra.mxu0 0.0
        %1315 = vmatprep.subr.mxu0 0.0
        %1316 = vmatpush1.msra.mxu0 0.0
        %1317 = vmatprep.subr.mxu0 0.0
        %1318 = vmatpush1.msra.mxu0 0.0
        %1319 = vmatprep.subr.mxu0 0.0
        %1320 = vmatpush1.msra.mxu0 0.0
        %1321 = vmatprep.subr.mxu0 0.0
        %1322 = vmatpush1.msra.mxu0 0.0
        %1323 = vmatprep.subr.mxu0 0.0
        %1324 = vmatpush1.msra.mxu0 0.0
        %1325 = vmatprep.subr.mxu0 0.0
        %1326 = vmatpush1.msra.mxu0 0.0
        %1327 = vmatprep.subr.mxu0 0.0
        %1328 = vmatpush1.msra.mxu0 0.0
        %1329 = vmatprep.subr.mxu0 0.0
        %1330 = vmatpush1.msra.mxu0 0.0
        %1331 = vmatprep.subr.mxu0 0.0
        %1332 = vmatpush1.msra.mxu0 0.0
        %1333 = vmatprep.subr.mxu0 0.0
        %1334 = vmatpush1.msra.mxu0 0.0
        %1335 = vmatprep.mubr.f32.mxu0 0.0
        %1336 = vmatmul.mubr.f32.gmra.mrb[0].mxu0 %v1266
        %v1337 = vpop.f32.mrb[0].mxu0
        %v1338 = vadd.f32 %v1257, %v1337
        %v1339 = vpop.f32.mrb[0].mxu0
        %v1340 = vadd.f32 %v1257, %v1339
        %1341 = vmatprep.mubr.f32.mxu0 0.0
        %1342 = vmatmul.mubr.f32.gmra.mrb[0].mxu0 %v1269
        %v1343 = vpop.f32.mrb[0].mxu0
        %v1344 = vadd.f32 %v1262, %v1343
        %v1345 = vpop.f32.mrb[0].mxu0
        %v1346 = vadd.f32 %v1262, %v1345
        %1347 = vdwg.mxu0
        %v1348 = vadd.f32 %v1338, %v1240
        %v1349 = vadd.f32 %v1340, %v1242
        %v1350 = vadd.f32 %v1344, %v1246
        %v1351 = vadd.f32 %v1346, %v1248
        %v1352 = vmax.f32 %v1348, 0.0
        %v1353 = vmax.f32 %v1349, 0.0
        %v1354 = vmax.f32 %v1350, 0.0
        %v1355 = vmax.f32 %v1351, 0.0
        %1356 = vst [vmem:[%s352] sm:$0xff] %v1352
        %1357 = vst [vmem:[%s352 + $0x8] sm:$0xff] %v1353
        %1358 = vst [vmem:[%s352 + $0x10] sm:$0xff] %v1354
        %1359 = vst [vmem:[%s352 + $0x18] sm:$0xff] %v1355
        %s1360 = sand.u32 %s222, 1
        %s1361 = sand.u32 %s222, 1
        %s1362 = smul.addr %s1361, 32
        %s1363 = scalar_lea.vmem [#allocation3], %s1362
        // Predicated region
        $region80: #{fno2d_forward.8} parent=74 // pred_check
          %p1364 = pneg %p232
        $region81: #{fno2d_forward.8} parent=74 // pred_check_branch
          %1366 = sbr.rel (%p1364) target = $region83
        $region82: #{fno2d_forward.8} parent=74 // pred_region
          %s1367 = smul.u32 2, %s20
          %s1368 = smul.addr %s1367, 8
          %s1369 = scalar_lea.vmem %s9, %s1368
          // Predicated region
          $region84: #{fno2d_forward.8} parent=82 // pred_check
            _
          $region85: #{fno2d_forward.8} parent=82 // pred_check_branch
            %1371 = sbr.rel (0) target = $region87
          $region86: #{fno2d_forward.8} parent=82 // pred_region
            // Predicated region
            $region88: #{fno2d_forward.8} parent=86 // pred_check
              _
            $region89: #{fno2d_forward.8} parent=86 // pred_check_branch
              %1373 = sbr.rel (0) target = $region91
            $region90: #{fno2d_forward.8} parent=86 // pred_region
              loop: start=0, step=1, limit=1
              $region92: #{fno2d_forward.8} parent=90 // loop_pre_header
                _
              $region93: #{fno2d_forward.8} parent=90 // loop_header
                %s1375 = sphi 0, %s1379
                %p1376 = scmp.ge.s32.totalorder %s1375, 1
                %s1380 = sphi %s1363, %s1363
                %s1381 = sphi %s1369, %s1369
              $region94: #{fno2d_forward.8} parent=90 // loop_header_branch
                %1378 = sbr.rel (%p1376) target = $region98
              $region95: #{fno2d_forward.8} parent=90 // loop_body
                %v1382 = vld [vmem:[%s1380] sm:$0xff]
                %1383 = vst [vmem:[%s1381] sm:$0xff] %v1382
                %v1384 = vld [vmem:[%s1380 + $0x8] sm:$0xff]
                %1385 = vst [vmem:[%s1381 + $0x8] sm:$0xff] %v1384
                %v1386 = vld [vmem:[%s1380 + $0x10] sm:$0xff]
                %1387 = vst [vmem:[%s1381 + $0x20] sm:$0xff] %v1386
                %v1388 = vld [vmem:[%s1380 + $0x18] sm:$0xff]
                %1389 = vst [vmem:[%s1381 + $0x28] sm:$0xff] %v1388
              $region96: #{fno2d_forward.8} parent=90 // loop_footer
                %s1379 = sadd.s32 1, %s1375
              $region97: #{fno2d_forward.8} parent=90 // loop_footer_branch
                %1374 = sbr.rel target = $region93
              $region98: #{fno2d_forward.8} parent=90 // loop_exit
                _
            $region91: #{fno2d_forward.8} parent=86 // pred_fallthru
              _
            // Predicated region
            $region99: #{fno2d_forward.8} parent=86 // pred_check
              _
            $region100: #{fno2d_forward.8} parent=86 // pred_check_branch
              %1391 = sbr.rel target = $region102
            $region101: #{fno2d_forward.8} parent=86 // pred_region
              _
            $region102: #{fno2d_forward.8} parent=86 // pred_fallthru
              _
          $region87: #{fno2d_forward.8} parent=82 // pred_fallthru
            _
          %1392 = vnop
        $region83: #{fno2d_forward.8} parent=74 // pred_fallthru
          _
      $region75: #{fno2d_forward.8} parent=5 // pred_fallthru
        _
      %p1393 = scmp.le.s32.totalorder 2, %s15
      // Predicated region
      $region103: #{fno2d_forward.8} parent=5 // pred_check
        %p1394 = pneg %p1393
      $region104: #{fno2d_forward.8} parent=5 // pred_check_branch
        %1396 = sbr.rel (%p1394) target = $region106
      $region105: #{fno2d_forward.8} parent=5 // pred_region
        %s1397 = ssub.s32 %s15, 2
        // Predicated region
        $region107: #{fno2d_forward.8} parent=105 // pred_check
          %p1398 = pneg %p238
        $region108: #{fno2d_forward.8} parent=105 // pred_check_branch
          %1400 = sbr.rel (%p1398) target = $region110
        $region109: #{fno2d_forward.8} parent=105 // pred_region
          %s1401 = sand.u32 %s223, 1
          %s1402 = sand.u32 %s223, 1
          %s1403 = smul.addr %s1402, 32
          %s1404 = scalar_lea.vmem [#allocation3], %s1403
        $region110: #{fno2d_forward.8} parent=105 // pred_fallthru
          _
      $region106: #{fno2d_forward.8} parent=5 // pred_fallthru
        _
    $region6: #{fno2d_forward.8} parent=1 // loop_footer
      %s19 = sadd.s32 1, %s15
    $region7: #{fno2d_forward.8} parent=1 // loop_footer_branch
      %14 = sbr.rel target = $region3
    $region8: #{fno2d_forward.8} parent=1 // loop_exit
      _

// kernel: fno2d_forward.10
$region0: #{fno2d_forward.10}
  #allocation0 [shape = 'u32[]', space=smem, size = 0x4, offset = 0x4, fixed_abs, tag = 'smem constant byte address 0x4 - core index']
  #allocation1 [shape = 'u32[144,128]{1,0:T(1,128)}', space=vmem, size = 0x12000, scoped, tag = 'internal scratch']
  %s0 = inlined_call_operand.vmem [shape: f32[16,512], index: 0, kind: input, shape index: {}, may-alias: {0,9}]
  %s1 = inlined_call_operand.vmem [shape: f32[256,72], index: 1, kind: input, shape index: {}]
  %s2 = inlined_call_operand.vmem [shape: f32[256,72], index: 2, kind: input, shape index: {}]
  %s3 = inlined_call_operand.vmem [shape: f32[16,16,72], index: 3, kind: input, shape index: {}]
  %s4 = inlined_call_operand.vmem [shape: f32[16,16,72], index: 4, kind: input, shape index: {}]
  %s5 = inlined_call_operand.vmem [shape: f32[72,256], index: 5, kind: input, shape index: {}]
  %s6 = inlined_call_operand.vmem [shape: f32[72,256], index: 6, kind: input, shape index: {}]
  %s7 = inlined_call_operand.vmem [shape: f32[16,16], index: 7, kind: input, shape index: {}]
  %s8 = inlined_call_operand.vmem [shape: f32[16,1], index: 8, kind: input, shape index: {}]
  %s9 = inlined_call_operand.vmem [shape: f32[16,512], index: 9, kind: output, shape index: {}, may-alias: {0,9}]
  %s10 = sld [smem:[#allocation0]]
  $region111: #{fno2d_forward.10} parent=0
    _
  %s12 = ssub.s32 1, %s10
  %s13 = scalar_select 0, %s12, %s10
  $region1: #{fno2d_forward.10} parent=0
    #allocation2 [shape = 'u8[32768]{0}', space=vmem, size = 0x8000, scoped, tag = 'input window, operand 0']
    #allocation3 [shape = 'u8[32768]{0}', space=vmem, size = 0x8000, scoped, tag = 'output window, operand 0']
    loop: start=0, step=1, limit=4
    $region2: #{fno2d_forward.10} parent=1 // loop_pre_header
      _
    $region3: #{fno2d_forward.10} parent=1 // loop_header
      %s15 = sphi 0, %s19
      %p16 = scmp.ge.s32.totalorder %s15, 4
      %s25 = sphi 0, %s27
      %s28 = sphi 0, %s25
      %s29 = sphi 0, %s28
      %s45 = sphi 0, %s29
      %s49 = sphi 0, %s49
      %s51 = sphi 0, %s49
      %s52 = sphi 0, %s51
      %s66 = sphi 0, %s52
      %s70 = sphi 0, %s70
      %s72 = sphi 0, %s70
      %s73 = sphi 0, %s72
      %s87 = sphi 0, %s73
      %s91 = sphi 0, %s91
      %s93 = sphi 0, %s91
      %s94 = sphi 0, %s93
      %s108 = sphi 0, %s94
      %s112 = sphi 0, %s112
      %s114 = sphi 0, %s112
      %s115 = sphi 0, %s114
      %s129 = sphi 0, %s115
      %s133 = sphi 0, %s133
      %s135 = sphi 0, %s133
      %s136 = sphi 0, %s135
      %s150 = sphi 0, %s136
      %s154 = sphi 0, %s154
      %s156 = sphi 0, %s154
      %s157 = sphi 0, %s156
      %s171 = sphi 0, %s157
      %s175 = sphi 0, %s175
      %s177 = sphi 0, %s175
      %s178 = sphi 0, %s177
      %s192 = sphi 0, %s178
      %s196 = sphi 0, %s196
      %s198 = sphi 0, %s196
      %s199 = sphi 0, %s198
      %s213 = sphi 0, %s199
      %s219 = sphi 0, %s221
      %s222 = sphi 0, %s219
      %s223 = sphi 0, %s222
      %s239 = sphi 0, %s223
    $region4: #{fno2d_forward.10} parent=1 // loop_header_branch
      %18 = sbr.rel (%p16) target = $region8
    $region5: #{fno2d_forward.10} parent=1 // loop_body
      %s20 = ssub.s32 %s15, 1
      %s21 = ssub.s32 %s15, 2
      %s22 = sadd.s32 %s15, 1
      %s23 = ssub.s32 %s15, %s22
      %p24 = scmp.eq.s32.totalorder %s23, 0
      %s26 = sadd.s32 %s25, 1
      %s27 = scalar_select %p24, %s25, %s26
      %p30 = pneg %p24
      %p31 = scmp.eq.s32.totalorder %s15, 1
      %p32 = por %p30, %p31
      %p33 = scmp.ne.s32.totalorder %s25, %s28
      %p34 = scmp.eq.s32.totalorder %s15, 0
      %p35 = por %p33, %p34
      %p36 = scmp.ne.s32.totalorder %s25, %s28
      %p37 = scmp.eq.s32.totalorder %s20, 1
      %p38 = por %p36, %p37
      %p39 = scmp.ne.s32.totalorder %s28, %s29
      %p40 = scmp.eq.s32.totalorder %s20, 0
      %p41 = por %p39, %p40
      %p42 = scmp.ne.s32.totalorder %s28, %s29
      %p43 = scmp.eq.s32.totalorder %s21, 1
      %p44 = por %p42, %p43
      %p46 = scmp.ne.s32.totalorder %s29, %s45
      %p47 = scmp.eq.s32.totalorder %s21, 0
      %p48 = por %p46, %p47
      %s50 = sadd.s32 %s49, 1
      %p53 = scmp.eq.s32.totalorder %s15, 1
      %p54 = scmp.ne.s32.totalorder %s49, %s51
      %p55 = scmp.eq.s32.totalorder %s15, 0
      %p56 = por %p54, %p55
      %p57 = scmp.ne.s32.totalorder %s49, %s51
      %p58 = scmp.eq.s32.totalorder %s20, 1
      %p59 = por %p57, %p58
      %p60 = scmp.ne.s32.totalorder %s51, %s52
      %p61 = scmp.eq.s32.totalorder %s20, 0
      %p62 = por %p60, %p61
      %p63 = scmp.ne.s32.totalorder %s51, %s52
      %p64 = scmp.eq.s32.totalorder %s21, 1
      %p65 = por %p63, %p64
      %p67 = scmp.ne.s32.totalorder %s52, %s66
      %p68 = scmp.eq.s32.totalorder %s21, 0
      %p69 = por %p67, %p68
      %s71 = sadd.s32 %s70, 1
      %p74 = scmp.eq.s32.totalorder %s15, 1
      %p75 = scmp.ne.s32.totalorder %s70, %s72
      %p76 = scmp.eq.s32.totalorder %s15, 0
      %p77 = por %p75, %p76
      %p78 = scmp.ne.s32.totalorder %s70, %s72
      %p79 = scmp.eq.s32.totalorder %s20, 1
      %p80 = por %p78, %p79
      %p81 = scmp.ne.s32.totalorder %s72, %s73
      %p82 = scmp.eq.s32.totalorder %s20, 0
      %p83 = por %p81, %p82
      %p84 = scmp.ne.s32.totalorder %s72, %s73
      %p85 = scmp.eq.s32.totalorder %s21, 1
      %p86 = por %p84, %p85
      %p88 = scmp.ne.s32.totalorder %s73, %s87
      %p89 = scmp.eq.s32.totalorder %s21, 0
      %p90 = por %p88, %p89
      %s92 = sadd.s32 %s91, 1
      %p95 = scmp.eq.s32.totalorder %s15, 1
      %p96 = scmp.ne.s32.totalorder %s91, %s93
      %p97 = scmp.eq.s32.totalorder %s15, 0
      %p98 = por %p96, %p97
      %p99 = scmp.ne.s32.totalorder %s91, %s93
      %p100 = scmp.eq.s32.totalorder %s20, 1
      %p101 = por %p99, %p100
      %p102 = scmp.ne.s32.totalorder %s93, %s94
      %p103 = scmp.eq.s32.totalorder %s20, 0
      %p104 = por %p102, %p103
      %p105 = scmp.ne.s32.totalorder %s93, %s94
      %p106 = scmp.eq.s32.totalorder %s21, 1
      %p107 = por %p105, %p106
      %p109 = scmp.ne.s32.totalorder %s94, %s108
      %p110 = scmp.eq.s32.totalorder %s21, 0
      %p111 = por %p109, %p110
      %s113 = sadd.s32 %s112, 1
      %p116 = scmp.eq.s32.totalorder %s15, 1
      %p117 = scmp.ne.s32.totalorder %s112, %s114
      %p118 = scmp.eq.s32.totalorder %s15, 0
      %p119 = por %p117, %p118
      %p120 = scmp.ne.s32.totalorder %s112, %s114
      %p121 = scmp.eq.s32.totalorder %s20, 1
      %p122 = por %p120, %p121
      %p123 = scmp.ne.s32.totalorder %s114, %s115
      %p124 = scmp.eq.s32.totalorder %s20, 0
      %p125 = por %p123, %p124
      %p126 = scmp.ne.s32.totalorder %s114, %s115
      %p127 = scmp.eq.s32.totalorder %s21, 1
      %p128 = por %p126, %p127
      %p130 = scmp.ne.s32.totalorder %s115, %s129
      %p131 = scmp.eq.s32.totalorder %s21, 0
      %p132 = por %p130, %p131
      %s134 = sadd.s32 %s133, 1
      %p137 = scmp.eq.s32.totalorder %s15, 1
      %p138 = scmp.ne.s32.totalorder %s133, %s135
      %p139 = scmp.eq.s32.totalorder %s15, 0
      %p140 = por %p138, %p139
      %p141 = scmp.ne.s32.totalorder %s133, %s135
      %p142 = scmp.eq.s32.totalorder %s20, 1
      %p143 = por %p141, %p142
      %p144 = scmp.ne.s32.totalorder %s135, %s136
      %p145 = scmp.eq.s32.totalorder %s20, 0
      %p146 = por %p144, %p145
      %p147 = scmp.ne.s32.totalorder %s135, %s136
      %p148 = scmp.eq.s32.totalorder %s21, 1
      %p149 = por %p147, %p148
      %p151 = scmp.ne.s32.totalorder %s136, %s150
      %p152 = scmp.eq.s32.totalorder %s21, 0
      %p153 = por %p151, %p152
      %s155 = sadd.s32 %s154, 1
      %p158 = scmp.eq.s32.totalorder %s15, 1
      %p159 = scmp.ne.s32.totalorder %s154, %s156
      %p160 = scmp.eq.s32.totalorder %s15, 0
      %p161 = por %p159, %p160
      %p162 = scmp.ne.s32.totalorder %s154, %s156
      %p163 = scmp.eq.s32.totalorder %s20, 1
      %p164 = por %p162, %p163
      %p165 = scmp.ne.s32.totalorder %s156, %s157
      %p166 = scmp.eq.s32.totalorder %s20, 0
      %p167 = por %p165, %p166
      %p168 = scmp.ne.s32.totalorder %s156, %s157
      %p169 = scmp.eq.s32.totalorder %s21, 1
      %p170 = por %p168, %p169
      %p172 = scmp.ne.s32.totalorder %s157, %s171
      %p173 = scmp.eq.s32.totalorder %s21, 0
      %p174 = por %p172, %p173
      %s176 = sadd.s32 %s175, 1
      %p179 = scmp.eq.s32.totalorder %s15, 1
      %p180 = scmp.ne.s32.totalorder %s175, %s177
      %p181 = scmp.eq.s32.totalorder %s15, 0
      %p182 = por %p180, %p181
      %p183 = scmp.ne.s32.totalorder %s175, %s177
      %p184 = scmp.eq.s32.totalorder %s20, 1
      %p185 = por %p183, %p184
      %p186 = scmp.ne.s32.totalorder %s177, %s178
      %p187 = scmp.eq.s32.totalorder %s20, 0
      %p188 = por %p186, %p187
      %p189 = scmp.ne.s32.totalorder %s177, %s178
      %p190 = scmp.eq.s32.totalorder %s21, 1
      %p191 = por %p189, %p190
      %p193 = scmp.ne.s32.totalorder %s178, %s192
      %p194 = scmp.eq.s32.totalorder %s21, 0
      %p195 = por %p193, %p194
      %s197 = sadd.s32 %s196, 1
      %p200 = scmp.eq.s32.totalorder %s15, 1
      %p201 = scmp.ne.s32.totalorder %s196, %s198
      %p202 = scmp.eq.s32.totalorder %s15, 0
      %p203 = por %p201, %p202
      %p204 = scmp.ne.s32.totalorder %s196, %s198
      %p205 = scmp.eq.s32.totalorder %s20, 1
      %p206 = por %p204, %p205
      %p207 = scmp.ne.s32.totalorder %s198, %s199
      %p208 = scmp.eq.s32.totalorder %s20, 0
      %p209 = por %p207, %p208
      %p210 = scmp.ne.s32.totalorder %s198, %s199
      %p211 = scmp.eq.s32.totalorder %s21, 1
      %p212 = por %p210, %p211
      %p214 = scmp.ne.s32.totalorder %s199, %s213
      %p215 = scmp.eq.s32.totalorder %s21, 0
      %p216 = por %p214, %p215
      %s217 = ssub.s32 %s15, %s22
      %p218 = scmp.eq.s32.totalorder %s217, 0
      %s220 = sadd.s32 %s219, 1
      %s221 = scalar_select %p218, %s219, %s220
      %p224 = pneg %p218
      %p225 = scmp.eq.s32.totalorder %s15, 1
      %p226 = por %p224, %p225
      %p227 = scmp.ne.s32.totalorder %s219, %s222
      %p228 = scmp.eq.s32.totalorder %s15, 0
      %p229 = por %p227, %p228
      %p230 = scmp.ne.s32.totalorder %s219, %s222
      %p231 = scmp.eq.s32.totalorder %s20, 1
      %p232 = por %p230, %p231
      %p233 = scmp.ne.s32.totalorder %s222, %s223
      %p234 = scmp.eq.s32.totalorder %s20, 0
      %p235 = por %p233, %p234
      %p236 = scmp.ne.s32.totalorder %s222, %s223
      %p237 = scmp.eq.s32.totalorder %s21, 1
      %p238 = por %p236, %p237
      %p240 = scmp.ne.s32.totalorder %s223, %s239
      %p241 = scmp.eq.s32.totalorder %s21, 0
      %p242 = por %p240, %p241
      %p243 = scmp.le.s32.totalorder 1, %s15
      %p244 = scmp.lt.s32.totalorder %s15, 3
      %p245 = pnand %p243, %p244
      %p246 = pneg %p245
      // Predicated region
      $region9: #{fno2d_forward.10} parent=5 // pred_check
        _
      $region10: #{fno2d_forward.10} parent=5 // pred_check_branch
        %248 = sbr.rel (%p245) target = $region12
      $region11: #{fno2d_forward.10} parent=5 // pred_region
        %s249 = ssub.s32 %s15, 1
        // Predicated region
        $region13: #{fno2d_forward.10} parent=11 // pred_check
          %p250 = pneg %p62
        $region14: #{fno2d_forward.10} parent=11 // pred_check_branch
          %252 = sbr.rel (%p250) target = $region16
        $region15: #{fno2d_forward.10} parent=11 // pred_region
          _
        $region16: #{fno2d_forward.10} parent=11 // pred_fallthru
          _
        // Predicated region
        $region17: #{fno2d_forward.10} parent=11 // pred_check
          %p253 = pneg %p83
        $region18: #{fno2d_forward.10} parent=11 // pred_check_branch
          %255 = sbr.rel (%p253) target = $region20
        $region19: #{fno2d_forward.10} parent=11 // pred_region
          _
        $region20: #{fno2d_forward.10} parent=11 // pred_fallthru
          _
        // Predicated region
        $region21: #{fno2d_forward.10} parent=11 // pred_check
          %p256 = pneg %p104
        $region22: #{fno2d_forward.10} parent=11 // pred_check_branch
          %258 = sbr.rel (%p256) target = $region24
        $region23: #{fno2d_forward.10} parent=11 // pred_region
          _
        $region24: #{fno2d_forward.10} parent=11 // pred_fallthru
          _
        // Predicated region
        $region25: #{fno2d_forward.10} parent=11 // pred_check
          %p259 = pneg %p125
        $region26: #{fno2d_forward.10} parent=11 // pred_check_branch
          %261 = sbr.rel (%p259) target = $region28
        $region27: #{fno2d_forward.10} parent=11 // pred_region
          _
        $region28: #{fno2d_forward.10} parent=11 // pred_fallthru
          _
        // Predicated region
        $region29: #{fno2d_forward.10} parent=11 // pred_check
          %p262 = pneg %p146
        $region30: #{fno2d_forward.10} parent=11 // pred_check_branch
          %264 = sbr.rel (%p262) target = $region32
        $region31: #{fno2d_forward.10} parent=11 // pred_region
          _
        $region32: #{fno2d_forward.10} parent=11 // pred_fallthru
          _
        // Predicated region
        $region33: #{fno2d_forward.10} parent=11 // pred_check
          %p265 = pneg %p167
        $region34: #{fno2d_forward.10} parent=11 // pred_check_branch
          %267 = sbr.rel (%p265) target = $region36
        $region35: #{fno2d_forward.10} parent=11 // pred_region
          _
        $region36: #{fno2d_forward.10} parent=11 // pred_fallthru
          _
        // Predicated region
        $region37: #{fno2d_forward.10} parent=11 // pred_check
          %p268 = pneg %p188
        $region38: #{fno2d_forward.10} parent=11 // pred_check_branch
          %270 = sbr.rel (%p268) target = $region40
        $region39: #{fno2d_forward.10} parent=11 // pred_region
          _
        $region40: #{fno2d_forward.10} parent=11 // pred_fallthru
          _
        // Predicated region
        $region41: #{fno2d_forward.10} parent=11 // pred_check
          %p271 = pneg %p209
        $region42: #{fno2d_forward.10} parent=11 // pred_check_branch
          %273 = sbr.rel (%p271) target = $region44
        $region43: #{fno2d_forward.10} parent=11 // pred_region
          _
        $region44: #{fno2d_forward.10} parent=11 // pred_fallthru
          _
      $region12: #{fno2d_forward.10} parent=5 // pred_fallthru
        _
      %p274 = scmp.lt.s32.totalorder %s15, 2
      // Predicated region
      $region45: #{fno2d_forward.10} parent=5 // pred_check
        %p275 = pneg %p274
      $region46: #{fno2d_forward.10} parent=5 // pred_check_branch
        %277 = sbr.rel (%p275) target = $region48
      $region47: #{fno2d_forward.10} parent=5 // pred_region
        // Predicated region
        $region49: #{fno2d_forward.10} parent=47 // pred_check
          %p278 = pneg %p35
        $region50: #{fno2d_forward.10} parent=47 // pred_check_branch
          %280 = sbr.rel (%p278) target = $region52
        $region51: #{fno2d_forward.10} parent=47 // pred_region
          %s281 = sand.u32 %s25, 1
          %s282 = sand.u32 %s25, 1
          %s283 = smul.addr %s282, 32
          %s284 = scalar_lea.vmem [#allocation2], %s283
          %s285 = smul.u32 2, %s15
          %s286 = smul.addr %s285, 8
          %s287 = scalar_lea.vmem %s0, %s286
          // Predicated region
          $region53: #{fno2d_forward.10} parent=51 // pred_check
            _
          $region54: #{fno2d_forward.10} parent=51 // pred_check_branch
            %289 = sbr.rel (0) target = $region56
          $region55: #{fno2d_forward.10} parent=51 // pred_region
            // Predicated region
            $region57: #{fno2d_forward.10} parent=55 // pred_check
              _
            $region58: #{fno2d_forward.10} parent=55 // pred_check_branch
              %291 = sbr.rel (0) target = $region60
            $region59: #{fno2d_forward.10} parent=55 // pred_region
              loop: start=0, step=1, limit=1
              $region61: #{fno2d_forward.10} parent=59 // loop_pre_header
                _
              $region62: #{fno2d_forward.10} parent=59 // loop_header
                %s293 = sphi 0, %s297
                %p294 = scmp.ge.s32.totalorder %s293, 1
                %s298 = sphi %s287, %s287
                %s299 = sphi %s284, %s284
              $region63: #{fno2d_forward.10} parent=59 // loop_header_branch
                %296 = sbr.rel (%p294) target = $region67
              $region64: #{fno2d_forward.10} parent=59 // loop_body
                %v300 = vld [vmem:[%s298] sm:$0xff]
                %301 = vst [vmem:[%s299] sm:$0xff] %v300
                %v302 = vld [vmem:[%s298 + $0x8] sm:$0xff]
                %303 = vst [vmem:[%s299 + $0x8] sm:$0xff] %v302
                %v304 = vld [vmem:[%s298 + $0x20] sm:$0xff]
                %305 = vst [vmem:[%s299 + $0x10] sm:$0xff] %v304
                %v306 = vld [vmem:[%s298 + $0x28] sm:$0xff]
                %307 = vst [vmem:[%s299 + $0x18] sm:$0xff] %v306
              $region65: #{fno2d_forward.10} parent=59 // loop_footer
                %s297 = sadd.s32 1, %s293
              $region66: #{fno2d_forward.10} parent=59 // loop_footer_branch
                %292 = sbr.rel target = $region62
              $region67: #{fno2d_forward.10} parent=59 // loop_exit
                _
            $region60: #{fno2d_forward.10} parent=55 // pred_fallthru
              _
            // Predicated region
            $region68: #{fno2d_forward.10} parent=55 // pred_check
              _
            $region69: #{fno2d_forward.10} parent=55 // pred_check_branch
              %309 = sbr.rel target = $region71
            $region70: #{fno2d_forward.10} parent=55 // pred_region
              _
            $region71: #{fno2d_forward.10} parent=55 // pred_fallthru
              _
          $region56: #{fno2d_forward.10} parent=51 // pred_fallthru
            _
          %310 = vnop
        $region52: #{fno2d_forward.10} parent=47 // pred_fallthru
          _
      $region48: #{fno2d_forward.10} parent=5 // pred_fallthru
        _
      %p311 = scmp.le.s32.totalorder 1, %s15
      %p312 = scmp.lt.s32.totalorder %s15, 3
      %p313 = pnand %p311, %p312
      %p314 = pneg %p313
      // Predicated region
      $region72: #{fno2d_forward.10} parent=5 // pred_check
        _
      $region73: #{fno2d_forward.10} parent=5 // pred_check_branch
        %316 = sbr.rel (%p313) target = $region75
      $region74: #{fno2d_forward.10} parent=5 // pred_region
        %s317 = ssub.s32 %s15, 1
        %s318 = sand.u32 %s28, 1
        %s319 = sand.u32 %s28, 1
        %s320 = smul.addr %s319, 32
        %s321 = scalar_lea.vmem [#allocation2], %s320
        // Predicated region
        $region76: #{fno2d_forward.10} parent=74 // pred_check
          %p322 = pneg %p41
        $region77: #{fno2d_forward.10} parent=74 // pred_check_branch
          %324 = sbr.rel (%p322) target = $region79
        $region78: #{fno2d_forward.10} parent=74 // pred_region
          _
        $region79: #{fno2d_forward.10} parent=74 // pred_fallthru
          _
        %s325 = sand.u32 %s28, 1
        %s326 = sand.u32 %s28, 1
        %s327 = smul.addr %s326, 32
        %s328 = scalar_lea.vmem [#allocation2], %s327
        %p329 = pneg %p41
        %p330 = pneg %p38
        %p331 = pneg %p62
        %p332 = pneg %p59
        %p333 = pneg %p83
        %p334 = pneg %p80
        %p335 = pneg %p104
        %p336 = pneg %p101
        %p337 = pneg %p125
        %p338 = pneg %p122
        %p339 = pneg %p146
        %p340 = pneg %p143
        %p341 = pneg %p167
        %p342 = pneg %p164
        %p343 = pneg %p188
        %p344 = pneg %p185
        %p345 = pneg %p209
        %p346 = pneg %p206
        %p347 = pneg %p235
        %p348 = pneg %p232
        %s349 = sand.u32 %s222, 1
        %s350 = sand.u32 %s222, 1
        %s351 = smul.addr %s350, 32
        %s352 = scalar_lea.vmem [#allocation3], %s351
        %s353 = smul.u32 2, %s20
        %s354 = smul.u32 2, %s20
        %v355 = vld [vmem:[%s321] sm:$0xff]
        %v356 = vld [vmem:[%s321 + $0x8] sm:$0xff]
        %v357 = vld [vmem:[%s321 + $0x10] sm:$0xff]
        %v358 = vld [vmem:[%s321 + $0x18] sm:$0xff]
        %v359 = vld [vmem:[%s1] sm:$0xff]
        %v360 = vld [vmem:[%s1 + $0x8] sm:$0xff]
        %v361 = vld [vmem:[%s1 + $0x10] sm:$0xff]
        %v362 = vld [vmem:[%s1 + $0x18] sm:$0xff]
        %v363 = vld [vmem:[%s1 + $0x20] sm:$0xff]
        %v364 = vld [vmem:[%s1 + $0x28] sm:$0xff]
        %v365 = vld [vmem:[%s1 + $0x30] sm:$0xff]
        %v366 = vld [vmem:[%s1 + $0x38] sm:$0xff]
        %v367 = vld [vmem:[%s1 + $0x40] sm:$0xff]
        %v368 = vld [vmem:[%s1 + $0x48] sm:$0xff]
        %v369 = vld [vmem:[%s1 + $0x50] sm:$0xff]
        %v370 = vld [vmem:[%s1 + $0x58] sm:$0xff]
        %v371 = vld [vmem:[%s1 + $0x60] sm:$0xff]
        %v372 = vld [vmem:[%s1 + $0x68] sm:$0xff]
        %v373 = vld [vmem:[%s1 + $0x70] sm:$0xff]
        %v374 = vld [vmem:[%s1 + $0x78] sm:$0xff]
        %v375 = vld [vmem:[%s1 + $0x80] sm:$0xff]
        %v376 = vld [vmem:[%s1 + $0x88] sm:$0xff]
        %v377 = vld [vmem:[%s1 + $0x90] sm:$0xff]
        %v378 = vld [vmem:[%s1 + $0x98] sm:$0xff]
        %v379 = vld [vmem:[%s1 + $0xa0] sm:$0xff]
        %v380 = vld [vmem:[%s1 + $0xa8] sm:$0xff]
        %v381 = vld [vmem:[%s1 + $0xb0] sm:$0xff]
        %v382 = vld [vmem:[%s1 + $0xb8] sm:$0xff]
        %v383 = vld [vmem:[%s1 + $0xc0] sm:$0xff]
        %v384 = vld [vmem:[%s1 + $0xc8] sm:$0xff]
        %v385 = vld [vmem:[%s1 + $0xd0] sm:$0xff]
        %v386 = vld [vmem:[%s1 + $0xd8] sm:$0xff]
        %v387 = vld [vmem:[%s1 + $0xe0] sm:$0xff]
        %v388 = vld [vmem:[%s1 + $0xe8] sm:$0xff]
        %v389 = vld [vmem:[%s1 + $0xf0] sm:$0xff]
        %v390 = vld [vmem:[%s1 + $0xf8] sm:$0xff]
        %391 = vmatprep.subr.mxu0 0.0
        %392 = vmatpush1.msra.mxu0 %v359
        %393 = vmatprep.subr.mxu0 0.0
        %394 = vmatpush1.msra.mxu0 %v360
        %395 = vmatprep.subr.mxu0 0.0
        %396 = vmatpush1.msra.mxu0 %v361
        %397 = vmatprep.subr.mxu0 0.0
        %398 = vmatpush1.msra.mxu0 %v362
        %399 = vmatprep.subr.mxu0 0.0
        %400 = vmatpush1.msra.mxu0 %v363
        %401 = vmatprep.subr.mxu0 0.0
        %402 = vmatpush1.msra.mxu0 %v364
        %403 = vmatprep.subr.mxu0 0.0
        %404 = vmatpush1.msra.mxu0 %v365
        %405 = vmatprep.subr.mxu0 0.0
        %406 = vmatpush1.msra.mxu0 %v366
        %407 = vmatprep.subr.mxu0 0.0
        %408 = vmatpush1.msra.mxu0 %v367
        %409 = vmatprep.subr.mxu0 0.0
        %410 = vmatpush1.msra.mxu0 %v368
        %411 = vmatprep.subr.mxu0 0.0
        %412 = vmatpush1.msra.mxu0 %v369
        %413 = vmatprep.subr.mxu0 0.0
        %414 = vmatpush1.msra.mxu0 %v370
        %415 = vmatprep.subr.mxu0 0.0
        %416 = vmatpush1.msra.mxu0 %v371
        %417 = vmatprep.subr.mxu0 0.0
        %418 = vmatpush1.msra.mxu0 %v372
        %419 = vmatprep.subr.mxu0 0.0
        %420 = vmatpush1.msra.mxu0 %v373
        %421 = vmatprep.subr.mxu0 0.0
        %422 = vmatpush1.msra.mxu0 %v374
        %423 = vmatprep.subr.mxu0 0.0
        %424 = vmatpush1.msra.mxu0 %v375
        %425 = vmatprep.subr.mxu0 0.0
        %426 = vmatpush1.msra.mxu0 %v376
        %427 = vmatprep.subr.mxu0 0.0
        %428 = vmatpush1.msra.mxu0 %v377
        %429 = vmatprep.subr.mxu0 0.0
        %430 = vmatpush1.msra.mxu0 %v378
        %431 = vmatprep.subr.mxu0 0.0
        %432 = vmatpush1.msra.mxu0 %v379
        %433 = vmatprep.subr.mxu0 0.0
        %434 = vmatpush1.msra.mxu0 %v380
        %435 = vmatprep.subr.mxu0 0.0
        %436 = vmatpush1.msra.mxu0 %v381
        %437 = vmatprep.subr.mxu0 0.0
        %438 = vmatpush1.msra.mxu0 %v382
        %439 = vmatprep.subr.mxu0 0.0
        %440 = vmatpush1.msra.mxu0 %v383
        %441 = vmatprep.subr.mxu0 0.0
        %442 = vmatpush1.msra.mxu0 %v384
        %443 = vmatprep.subr.mxu0 0.0
        %444 = vmatpush1.msra.mxu0 %v385
        %445 = vmatprep.subr.mxu0 0.0
        %446 = vmatpush1.msra.mxu0 %v386
        %447 = vmatprep.subr.mxu0 0.0
        %448 = vmatpush1.msra.mxu0 %v387
        %449 = vmatprep.subr.mxu0 0.0
        %450 = vmatpush1.msra.mxu0 %v388
        %451 = vmatprep.subr.mxu0 0.0
        %452 = vmatpush1.msra.mxu0 %v389
        %453 = vmatprep.subr.mxu0 0.0
        %454 = vmatpush1.msra.mxu0 %v390
        %455 = vmatprep.mubr.f32.mxu0 %v356
        %456 = vmatmul.mubr.f32.gmra.mrb[0].mxu0 %v355
        %v457 = vpop.f32.mrb[0].mxu0
        %v458 = vadd.f32 0.0, %v457
        %v459 = vpop.f32.mrb[0].mxu0
        %460 = vmatprep.mubr.f32.mxu0 %v358
        %461 = vmatmul.mubr.f32.gmra.mrb[0].mxu0 %v357
        %v462 = vpop.f32.mrb[0].mxu0
        %v463 = vadd.f32 0.0, %v462
        %v464 = vpop.f32.mrb[0].mxu0
        %465 = vdwg.mxu0
        %v466 = vld [vmem:[%s2] sm:$0xff]
        %v467 = vld [vmem:[%s2 + $0x8] sm:$0xff]
        %v468 = vld [vmem:[%s2 + $0x10] sm:$0xff]
        %v469 = vld [vmem:[%s2 + $0x18] sm:$0xff]
        %v470 = vld [vmem:[%s2 + $0x20] sm:$0xff]
        %v471 = vld [vmem:[%s2 + $0x28] sm:$0xff]
        %v472 = vld [vmem:[%s2 + $0x30] sm:$0xff]
        %v473 = vld [vmem:[%s2 + $0x38] sm:$0xff]
        %v474 = vld [vmem:[%s2 + $0x40] sm:$0xff]
        %v475 = vld [vmem:[%s2 + $0x48] sm:$0xff]
        %v476 = vld [vmem:[%s2 + $0x50] sm:$0xff]
        %v477 = vld [vmem:[%s2 + $0x58] sm:$0xff]
        %v478 = vld [vmem:[%s2 + $0x60] sm:$0xff]
        %v479 = vld [vmem:[%s2 + $0x68] sm:$0xff]
        %v480 = vld [vmem:[%s2 + $0x70] sm:$0xff]
        %v481 = vld [vmem:[%s2 + $0x78] sm:$0xff]
        %v482 = vld [vmem:[%s2 + $0x80] sm:$0xff]
        %v483 = vld [vmem:[%s2 + $0x88] sm:$0xff]
        %v484 = vld [vmem:[%s2 + $0x90] sm:$0xff]
        %v485 = vld [vmem:[%s2 + $0x98] sm:$0xff]
        %v486 = vld [vmem:[%s2 + $0xa0] sm:$0xff]
        %v487 = vld [vmem:[%s2 + $0xa8] sm:$0xff]
        %v488 = vld [vmem:[%s2 + $0xb0] sm:$0xff]
        %v489 = vld [vmem:[%s2 + $0xb8] sm:$0xff]
        %v490 = vld [vmem:[%s2 + $0xc0] sm:$0xff]
        %v491 = vld [vmem:[%s2 + $0xc8] sm:$0xff]
        %v492 = vld [vmem:[%s2 + $0xd0] sm:$0xff]
        %v493 = vld [vmem:[%s2 + $0xd8] sm:$0xff]
        %v494 = vld [vmem:[%s2 + $0xe0] sm:$0xff]
        %v495 = vld [vmem:[%s2 + $0xe8] sm:$0xff]
        %v496 = vld [vmem:[%s2 + $0xf0] sm:$0xff]
        %v497 = vld [vmem:[%s2 + $0xf8] sm:$0xff]
        %498 = vmatprep.subr.mxu0 0.0
        %499 = vmatpush1.msra.mxu0 %v466
        %500 = vmatprep.subr.mxu0 0.0
        %501 = vmatpush1.msra.mxu0 %v467
        %502 = vmatprep.subr.mxu0 0.0
        %503 = vmatpush1.msra.mxu0 %v468
        %504 = vmatprep.subr.mxu0 0.0
        %505 = vmatpush1.msra.mxu0 %v469
        %506 = vmatprep.subr.mxu0 0.0
        %507 = vmatpush1.msra.mxu0 %v470
        %508 = vmatprep.subr.mxu0 0.0
        %509 = vmatpush1.msra.mxu0 %v471
        %510 = vmatprep.subr.mxu0 0.0
        %511 = vmatpush1.msra.mxu0 %v472
        %512 = vmatprep.subr.mxu0 0.0
        %513 = vmatpush1.msra.mxu0 %v473
        %514 = vmatprep.subr.mxu0 0.0
        %515 = vmatpush1.msra.mxu0 %v474
        %516 = vmatprep.subr.mxu0 0.0
        %517 = vmatpush1.msra.mxu0 %v475
        %518 = vmatprep.subr.mxu0 0.0
        %519 = vmatpush1.msra.mxu0 %v476
        %520 = vmatprep.subr.mxu0 0.0
        %521 = vmatpush1.msra.mxu0 %v477
        %522 = vmatprep.subr.mxu0 0.0
        %523 = vmatpush1.msra.mxu0 %v478
        %524 = vmatprep.subr.mxu0 0.0
        %525 = vmatpush1.msra.mxu0 %v479
        %526 = vmatprep.subr.mxu0 0.0
        %527 = vmatpush1.msra.mxu0 %v480
        %528 = vmatprep.subr.mxu0 0.0
        %529 = vmatpush1.msra.mxu0 %v481
        %530 = vmatprep.subr.mxu0 0.0
        %531 = vmatpush1.msra.mxu0 %v482
        %532 = vmatprep.subr.mxu0 0.0
        %533 = vmatpush1.msra.mxu0 %v483
        %534 = vmatprep.subr.mxu0 0.0
        %535 = vmatpush1.msra.mxu0 %v484
        %536 = vmatprep.subr.mxu0 0.0
        %537 = vmatpush1.msra.mxu0 %v485
        %538 = vmatprep.subr.mxu0 0.0
        %539 = vmatpush1.msra.mxu0 %v486
        %540 = vmatprep.subr.mxu0 0.0
        %541 = vmatpush1.msra.mxu0 %v487
        %542 = vmatprep.subr.mxu0 0.0
        %543 = vmatpush1.msra.mxu0 %v488
        %544 = vmatprep.subr.mxu0 0.0
        %545 = vmatpush1.msra.mxu0 %v489
        %546 = vmatprep.subr.mxu0 0.0
        %547 = vmatpush1.msra.mxu0 %v490
        %548 = vmatprep.subr.mxu0 0.0
        %549 = vmatpush1.msra.mxu0 %v491
        %550 = vmatprep.subr.mxu0 0.0
        %551 = vmatpush1.msra.mxu0 %v492
        %552 = vmatprep.subr.mxu0 0.0
        %553 = vmatpush1.msra.mxu0 %v493
        %554 = vmatprep.subr.mxu0 0.0
        %555 = vmatpush1.msra.mxu0 %v494
        %556 = vmatprep.subr.mxu0 0.0
        %557 = vmatpush1.msra.mxu0 %v495
        %558 = vmatprep.subr.mxu0 0.0
        %559 = vmatpush1.msra.mxu0 %v496
        %560 = vmatprep.subr.mxu0 0.0
        %561 = vmatpush1.msra.mxu0 %v497
        %562 = vmatprep.mubr.f32.mxu0 %v356
        %563 = vmatmul.mubr.f32.gmra.mrb[0].mxu0 %v355
        %v564 = vpop.f32.mrb[0].mxu0
        %v565 = vadd.f32 0.0, %v564
        %v566 = vpop.f32.mrb[0].mxu0
        %567 = vmatprep.mubr.f32.mxu0 %v358
        %568 = vmatmul.mubr.f32.gmra.mrb[0].mxu0 %v357
        %v569 = vpop.f32.mrb[0].mxu0
        %v570 = vadd.f32 0.0, %v569
        %v571 = vpop.f32.mrb[0].mxu0
        %572 = vdwg.mxu0
        %v573 = vld [vmem:[%s3] sm:$0xff]
        %v574 = vld [vmem:[%s3 + $0x8] sm:$0xff]
        %v575 = vld [vmem:[%s4] sm:$0xff]
        %v576 = vld [vmem:[%s4 + $0x8] sm:$0xff]
        %v577 = vlaneseq
        %v578 = vshrl.u32 %v577, 7
        %v579 = vsub.s32 0, %v578
        %v580 = vrot.slane %v458, %v579
        %v581 = vmul.f32 %v573, %v580
        %v582 = vmul.f32 %v574, %v580
        %v583 = vlaneseq
        %v584 = vshrl.u32 %v583, 7
        %v585 = vsub.s32 0, %v584
        %v586 = vrot.slane %v565, %v585
        %v587 = vmul.f32 %v575, %v586
        %v588 = vmul.f32 %v576, %v586
        %v589 = vsub.f32 %v581, %v587
        %v590 = vsub.f32 %v582, %v588
        %v591 = vmul.f32 %v573, %v586
        %v592 = vmul.f32 %v574, %v586
        %v593 = vmul.f32 %v575, %v580
        %v594 = vmul.f32 %v576, %v580
        %v595 = vadd.f32 %v591, %v593
        %v596 = vadd.f32 %v592, %v594
        %s597 = scalar_lea.vmem %s3, 16
        %v598 = vld [vmem:[%s597] sm:$0xff]
        %v599 = vld [vmem:[%s597 + $0x8] sm:$0xff]
        %s600 = scalar_lea.vmem %s4, 16
        %v601 = vld [vmem:[%s600] sm:$0xff]
        %v602 = vld [vmem:[%s600 + $0x8] sm:$0xff]
        %v603 = vlaneseq
        %v604 = vshrl.u32 %v603, 7
        %v605 = vsub.s32 1, %v604
        %v606 = vrot.slane %v458, %v605
        %v607 = vmul.f32 %v598, %v606
        %v608 = vmul.f32 %v599, %v606
        %v609 = vlaneseq
        %v610 = vshrl.u32 %v609, 7
        %v611 = vsub.s32 1, %v610
        %v612 = vrot.slane %v565, %v611
        %v613 = vmul.f32 %v601, %v612
        %v614 = vmul.f32 %v602, %v612
        %v615 = vsub.f32 %v607, %v613
        %v616 = vsub.f32 %v608, %v614
        %v617 = vmul.f32 %v598, %v612
        %v618 = vmul.f32 %v599, %v612
        %v619 = vmul.f32 %v601, %v606
        %v620 = vmul.f32 %v602, %v606
        %v621 = vadd.f32 %v617, %v619
        %v622 = vadd.f32 %v618, %v620
        %v623 = vadd.f32 %v589, %v615
        %v624 = vadd.f32 %v590, %v616
        %v625 = vadd.f32 %v595, %v621
        %v626 = vadd.f32 %v596, %v622
        %s627 = scalar_lea.vmem %s3, 32
        %v628 = vld [vmem:[%s627] sm:$0xff]
        %v629 = vld [vmem:[%s627 + $0x8] sm:$0xff]
        %s630 = scalar_lea.vmem %s4, 32
        %v631 = vld [vmem:[%s630] sm:$0xff]
        %v632 = vld [vmem:[%s630 + $0x8] sm:$0xff]
        %v633 = vlaneseq
        %v634 = vshrl.u32 %v633, 7
        %v635 = vsub.s32 2, %v634
        %v636 = vrot.slane %v458, %v635
        %v637 = vmul.f32 %v628, %v636
        %v638 = vmul.f32 %v629, %v636
        %v639 = vlaneseq
        %v640 = vshrl.u32 %v639, 7
        %v641 = vsub.s32 2, %v640
        %v642 = vrot.slane %v565, %v641
        %v643 = vmul.f32 %v631, %v642
        %v644 = vmul.f32 %v632, %v642
        %v645 = vsub.f32 %v637, %v643
        %v646 = vsub.f32 %v638, %v644
        %v647 = vmul.f32 %v628, %v642
        %v648 = vmul.f32 %v629, %v642
        %v649 = vmul.f32 %v631, %v636
        %v650 = vmul.f32 %v632, %v636
        %v651 = vadd.f32 %v647, %v649
        %v652 = vadd.f32 %v648, %v650
        %v653 = vadd.f32 %v623, %v645
        %v654 = vadd.f32 %v624, %v646
        %v655 = vadd.f32 %v625, %v651
        %v656 = vadd.f32 %v626, %v652
        %s657 = scalar_lea.vmem %s3, 48
        %v658 = vld [vmem:[%s657] sm:$0xff]
        %v659 = vld [vmem:[%s657 + $0x8] sm:$0xff]
        %s660 = scalar_lea.vmem %s4, 48
        %v661 = vld [vmem:[%s660] sm:$0xff]
        %v662 = vld [vmem:[%s660 + $0x8] sm:$0xff]
        %v663 = vlaneseq
        %v664 = vshrl.u32 %v663, 7
        %v665 = vsub.s32 3, %v664
        %v666 = vrot.slane %v458, %v665
        %v667 = vmul.f32 %v658, %v666
        %v668 = vmul.f32 %v659, %v666
        %v669 = vlaneseq
        %v670 = vshrl.u32 %v669, 7
        %v671 = vsub.s32 3, %v670
        %v672 = vrot.slane %v565, %v671
        %v673 = vmul.f32 %v661, %v672
        %v674 = vmul.f32 %v662, %v672
        %v675 = vsub.f32 %v667, %v673
        %v676 = vsub.f32 %v668, %v674
        %v677 = vmul.f32 %v658, %v672
        %v678 = vmul.f32 %v659, %v672
        %v679 = vmul.f32 %v661, %v666
        %v680 = vmul.f32 %v662, %v666
        %v681 = vadd.f32 %v677, %v679
        %v682 = vadd.f32 %v678, %v680
        %v683 = vadd.f32 %v653, %v675
        %v684 = vadd.f32 %v654, %v676
        %v685 = vadd.f32 %v655, %v681
        %v686 = vadd.f32 %v656, %v682
        %s687 = scalar_lea.vmem %s3, 64
        %v688 = vld [vmem:[%s687] sm:$0xff]
        %v689 = vld [vmem:[%s687 + $0x8] sm:$0xff]
        %s690 = scalar_lea.vmem %s4, 64
        %v691 = vld [vmem:[%s690] sm:$0xff]
        %v692 = vld [vmem:[%s690 + $0x8] sm:$0xff]
        %v693 = vlaneseq
        %v694 = vshrl.u32 %v693, 7
        %v695 = vsub.s32 4, %v694
        %v696 = vrot.slane %v458, %v695
        %v697 = vmul.f32 %v688, %v696
        %v698 = vmul.f32 %v689, %v696
        %v699 = vlaneseq
        %v700 = vshrl.u32 %v699, 7
        %v701 = vsub.s32 4, %v700
        %v702 = vrot.slane %v565, %v701
        %v703 = vmul.f32 %v691, %v702
        %v704 = vmul.f32 %v692, %v702
        %v705 = vsub.f32 %v697, %v703
        %v706 = vsub.f32 %v698, %v704
        %v707 = vmul.f32 %v688, %v702
        %v708 = vmul.f32 %v689, %v702
        %v709 = vmul.f32 %v691, %v696
        %v710 = vmul.f32 %v692, %v696
        %v711 = vadd.f32 %v707, %v709
        %v712 = vadd.f32 %v708, %v710
        %v713 = vadd.f32 %v683, %v705
        %v714 = vadd.f32 %v684, %v706
        %v715 = vadd.f32 %v685, %v711
        %v716 = vadd.f32 %v686, %v712
        %s717 = scalar_lea.vmem %s3, 80
        %v718 = vld [vmem:[%s717] sm:$0xff]
        %v719 = vld [vmem:[%s717 + $0x8] sm:$0xff]
        %s720 = scalar_lea.vmem %s4, 80
        %v721 = vld [vmem:[%s720] sm:$0xff]
        %v722 = vld [vmem:[%s720 + $0x8] sm:$0xff]
        %v723 = vlaneseq
        %v724 = vshrl.u32 %v723, 7
        %v725 = vsub.s32 5, %v724
        %v726 = vrot.slane %v458, %v725
        %v727 = vmul.f32 %v718, %v726
        %v728 = vmul.f32 %v719, %v726
        %v729 = vlaneseq
        %v730 = vshrl.u32 %v729, 7
        %v731 = vsub.s32 5, %v730
        %v732 = vrot.slane %v565, %v731
        %v733 = vmul.f32 %v721, %v732
        %v734 = vmul.f32 %v722, %v732
        %v735 = vsub.f32 %v727, %v733
        %v736 = vsub.f32 %v728, %v734
        %v737 = vmul.f32 %v718, %v732
        %v738 = vmul.f32 %v719, %v732
        %v739 = vmul.f32 %v721, %v726
        %v740 = vmul.f32 %v722, %v726
        %v741 = vadd.f32 %v737, %v739
        %v742 = vadd.f32 %v738, %v740
        %v743 = vadd.f32 %v713, %v735
        %v744 = vadd.f32 %v714, %v736
        %v745 = vadd.f32 %v715, %v741
        %v746 = vadd.f32 %v716, %v742
        %s747 = scalar_lea.vmem %s3, 96
        %v748 = vld [vmem:[%s747] sm:$0xff]
        %v749 = vld [vmem:[%s747 + $0x8] sm:$0xff]
        %s750 = scalar_lea.vmem %s4, 96
        %v751 = vld [vmem:[%s750] sm:$0xff]
        %v752 = vld [vmem:[%s750 + $0x8] sm:$0xff]
        %v753 = vlaneseq
        %v754 = vshrl.u32 %v753, 7
        %v755 = vsub.s32 6, %v754
        %v756 = vrot.slane %v458, %v755
        %v757 = vmul.f32 %v748, %v756
        %v758 = vmul.f32 %v749, %v756
        %v759 = vlaneseq
        %v760 = vshrl.u32 %v759, 7
        %v761 = vsub.s32 6, %v760
        %v762 = vrot.slane %v565, %v761
        %v763 = vmul.f32 %v751, %v762
        %v764 = vmul.f32 %v752, %v762
        %v765 = vsub.f32 %v757, %v763
        %v766 = vsub.f32 %v758, %v764
        %v767 = vmul.f32 %v748, %v762
        %v768 = vmul.f32 %v749, %v762
        %v769 = vmul.f32 %v751, %v756
        %v770 = vmul.f32 %v752, %v756
        %v771 = vadd.f32 %v767, %v769
        %v772 = vadd.f32 %v768, %v770
        %v773 = vadd.f32 %v743, %v765
        %v774 = vadd.f32 %v744, %v766
        %v775 = vadd.f32 %v745, %v771
        %v776 = vadd.f32 %v746, %v772
        %s777 = scalar_lea.vmem %s3, 112
        %v778 = vld [vmem:[%s777] sm:$0xff]
        %v779 = vld [vmem:[%s777 + $0x8] sm:$0xff]
        %s780 = scalar_lea.vmem %s4, 112
        %v781 = vld [vmem:[%s780] sm:$0xff]
        %v782 = vld [vmem:[%s780 + $0x8] sm:$0xff]
        %v783 = vlaneseq
        %v784 = vshrl.u32 %v783, 7
        %v785 = vsub.s32 7, %v784
        %v786 = vrot.slane %v458, %v785
        %v787 = vmul.f32 %v778, %v786
        %v788 = vmul.f32 %v779, %v786
        %v789 = vlaneseq
        %v790 = vshrl.u32 %v789, 7
        %v791 = vsub.s32 7, %v790
        %v792 = vrot.slane %v565, %v791
        %v793 = vmul.f32 %v781, %v792
        %v794 = vmul.f32 %v782, %v792
        %v795 = vsub.f32 %v787, %v793
        %v796 = vsub.f32 %v788, %v794
        %v797 = vmul.f32 %v778, %v792
        %v798 = vmul.f32 %v779, %v792
        %v799 = vmul.f32 %v781, %v786
        %v800 = vmul.f32 %v782, %v786
        %v801 = vadd.f32 %v797, %v799
        %v802 = vadd.f32 %v798, %v800
        %v803 = vadd.f32 %v773, %v795
        %v804 = vadd.f32 %v774, %v796
        %v805 = vadd.f32 %v775, %v801
        %v806 = vadd.f32 %v776, %v802
        %s807 = scalar_lea.vmem %s3, 128
        %v808 = vld [vmem:[%s807] sm:$0xff]
        %v809 = vld [vmem:[%s807 + $0x8] sm:$0xff]
        %s810 = scalar_lea.vmem %s4, 128
        %v811 = vld [vmem:[%s810] sm:$0xff]
        %v812 = vld [vmem:[%s810 + $0x8] sm:$0xff]
        %v813 = vlaneseq
        %v814 = vshrl.u32 %v813, 7
        %v815 = vsub.s32 0, %v814
        %v816 = vrot.slane %v463, %v815
        %v817 = vmul.f32 %v808, %v816
        %v818 = vmul.f32 %v809, %v816
        %v819 = vlaneseq
        %v820 = vshrl.u32 %v819, 7
        %v821 = vsub.s32 0, %v820
        %v822 = vrot.slane %v570, %v821
        %v823 = vmul.f32 %v811, %v822
        %v824 = vmul.f32 %v812, %v822
        %v825 = vsub.f32 %v817, %v823
        %v826 = vsub.f32 %v818, %v824
        %v827 = vmul.f32 %v808, %v822
        %v828 = vmul.f32 %v809, %v822
        %v829 = vmul.f32 %v811, %v816
        %v830 = vmul.f32 %v812, %v816
        %v831 = vadd.f32 %v827, %v829
        %v832 = vadd.f32 %v828, %v830
        %v833 = vadd.f32 %v803, %v825
        %v834 = vadd.f32 %v804, %v826
        %v835 = vadd.f32 %v805, %v831
        %v836 = vadd.f32 %v806, %v832
        %s837 = scalar_lea.vmem %s3, 144
        %v838 = vld [vmem:[%s837] sm:$0xff]
        %v839 = vld [vmem:[%s837 + $0x8] sm:$0xff]
        %s840 = scalar_lea.vmem %s4, 144
        %v841 = vld [vmem:[%s840] sm:$0xff]
        %v842 = vld [vmem:[%s840 + $0x8] sm:$0xff]
        %v843 = vlaneseq
        %v844 = vshrl.u32 %v843, 7
        %v845 = vsub.s32 1, %v844
        %v846 = vrot.slane %v463, %v845
        %v847 = vmul.f32 %v838, %v846
        %v848 = vmul.f32 %v839, %v846
        %v849 = vlaneseq
        %v850 = vshrl.u32 %v849, 7
        %v851 = vsub.s32 1, %v850
        %v852 = vrot.slane %v570, %v851
        %v853 = vmul.f32 %v841, %v852
        %v854 = vmul.f32 %v842, %v852
        %v855 = vsub.f32 %v847, %v853
        %v856 = vsub.f32 %v848, %v854
        %v857 = vmul.f32 %v838, %v852
        %v858 = vmul.f32 %v839, %v852
        %v859 = vmul.f32 %v841, %v846
        %v860 = vmul.f32 %v842, %v846
        %v861 = vadd.f32 %v857, %v859
        %v862 = vadd.f32 %v858, %v860
        %v863 = vadd.f32 %v833, %v855
        %v864 = vadd.f32 %v834, %v856
        %v865 = vadd.f32 %v835, %v861
        %v866 = vadd.f32 %v836, %v862
        %s867 = scalar_lea.vmem %s3, 160
        %v868 = vld [vmem:[%s867] sm:$0xff]
        %v869 = vld [vmem:[%s867 + $0x8] sm:$0xff]
        %s870 = scalar_lea.vmem %s4, 160
        %v871 = vld [vmem:[%s870] sm:$0xff]
        %v872 = vld [vmem:[%s870 + $0x8] sm:$0xff]
        %v873 = vlaneseq
        %v874 = vshrl.u32 %v873, 7
        %v875 = vsub.s32 2, %v874
        %v876 = vrot.slane %v463, %v875
        %v877 = vmul.f32 %v868, %v876
        %v878 = vmul.f32 %v869, %v876
        %v879 = vlaneseq
        %v880 = vshrl.u32 %v879, 7
        %v881 = vsub.s32 2, %v880
        %v882 = vrot.slane %v570, %v881
        %v883 = vmul.f32 %v871, %v882
        %v884 = vmul.f32 %v872, %v882
        %v885 = vsub.f32 %v877, %v883
        %v886 = vsub.f32 %v878, %v884
        %v887 = vmul.f32 %v868, %v882
        %v888 = vmul.f32 %v869, %v882
        %v889 = vmul.f32 %v871, %v876
        %v890 = vmul.f32 %v872, %v876
        %v891 = vadd.f32 %v887, %v889
        %v892 = vadd.f32 %v888, %v890
        %v893 = vadd.f32 %v863, %v885
        %v894 = vadd.f32 %v864, %v886
        %v895 = vadd.f32 %v865, %v891
        %v896 = vadd.f32 %v866, %v892
        %s897 = scalar_lea.vmem %s3, 176
        %v898 = vld [vmem:[%s897] sm:$0xff]
        %v899 = vld [vmem:[%s897 + $0x8] sm:$0xff]
        %s900 = scalar_lea.vmem %s4, 176
        %v901 = vld [vmem:[%s900] sm:$0xff]
        %v902 = vld [vmem:[%s900 + $0x8] sm:$0xff]
        %v903 = vlaneseq
        %v904 = vshrl.u32 %v903, 7
        %v905 = vsub.s32 3, %v904
        %v906 = vrot.slane %v463, %v905
        %v907 = vmul.f32 %v898, %v906
        %v908 = vmul.f32 %v899, %v906
        %v909 = vlaneseq
        %v910 = vshrl.u32 %v909, 7
        %v911 = vsub.s32 3, %v910
        %v912 = vrot.slane %v570, %v911
        %v913 = vmul.f32 %v901, %v912
        %v914 = vmul.f32 %v902, %v912
        %v915 = vsub.f32 %v907, %v913
        %v916 = vsub.f32 %v908, %v914
        %v917 = vmul.f32 %v898, %v912
        %v918 = vmul.f32 %v899, %v912
        %v919 = vmul.f32 %v901, %v906
        %v920 = vmul.f32 %v902, %v906
        %v921 = vadd.f32 %v917, %v919
        %v922 = vadd.f32 %v918, %v920
        %v923 = vadd.f32 %v893, %v915
        %v924 = vadd.f32 %v894, %v916
        %v925 = vadd.f32 %v895, %v921
        %v926 = vadd.f32 %v896, %v922
        %s927 = scalar_lea.vmem %s3, 192
        %v928 = vld [vmem:[%s927] sm:$0xff]
        %v929 = vld [vmem:[%s927 + $0x8] sm:$0xff]
        %s930 = scalar_lea.vmem %s4, 192
        %v931 = vld [vmem:[%s930] sm:$0xff]
        %v932 = vld [vmem:[%s930 + $0x8] sm:$0xff]
        %v933 = vlaneseq
        %v934 = vshrl.u32 %v933, 7
        %v935 = vsub.s32 4, %v934
        %v936 = vrot.slane %v463, %v935
        %v937 = vmul.f32 %v928, %v936
        %v938 = vmul.f32 %v929, %v936
        %v939 = vlaneseq
        %v940 = vshrl.u32 %v939, 7
        %v941 = vsub.s32 4, %v940
        %v942 = vrot.slane %v570, %v941
        %v943 = vmul.f32 %v931, %v942
        %v944 = vmul.f32 %v932, %v942
        %v945 = vsub.f32 %v937, %v943
        %v946 = vsub.f32 %v938, %v944
        %v947 = vmul.f32 %v928, %v942
        %v948 = vmul.f32 %v929, %v942
        %v949 = vmul.f32 %v931, %v936
        %v950 = vmul.f32 %v932, %v936
        %v951 = vadd.f32 %v947, %v949
        %v952 = vadd.f32 %v948, %v950
        %v953 = vadd.f32 %v923, %v945
        %v954 = vadd.f32 %v924, %v946
        %v955 = vadd.f32 %v925, %v951
        %v956 = vadd.f32 %v926, %v952
        %s957 = scalar_lea.vmem %s3, 208
        %v958 = vld [vmem:[%s957] sm:$0xff]
        %v959 = vld [vmem:[%s957 + $0x8] sm:$0xff]
        %s960 = scalar_lea.vmem %s4, 208
        %v961 = vld [vmem:[%s960] sm:$0xff]
        %v962 = vld [vmem:[%s960 + $0x8] sm:$0xff]
        %v963 = vlaneseq
        %v964 = vshrl.u32 %v963, 7
        %v965 = vsub.s32 5, %v964
        %v966 = vrot.slane %v463, %v965
        %v967 = vmul.f32 %v958, %v966
        %v968 = vmul.f32 %v959, %v966
        %v969 = vlaneseq
        %v970 = vshrl.u32 %v969, 7
        %v971 = vsub.s32 5, %v970
        %v972 = vrot.slane %v570, %v971
        %v973 = vmul.f32 %v961, %v972
        %v974 = vmul.f32 %v962, %v972
        %v975 = vsub.f32 %v967, %v973
        %v976 = vsub.f32 %v968, %v974
        %v977 = vmul.f32 %v958, %v972
        %v978 = vmul.f32 %v959, %v972
        %v979 = vmul.f32 %v961, %v966
        %v980 = vmul.f32 %v962, %v966
        %v981 = vadd.f32 %v977, %v979
        %v982 = vadd.f32 %v978, %v980
        %v983 = vadd.f32 %v953, %v975
        %v984 = vadd.f32 %v954, %v976
        %v985 = vadd.f32 %v955, %v981
        %v986 = vadd.f32 %v956, %v982
        %s987 = scalar_lea.vmem %s3, 224
        %v988 = vld [vmem:[%s987] sm:$0xff]
        %v989 = vld [vmem:[%s987 + $0x8] sm:$0xff]
        %s990 = scalar_lea.vmem %s4, 224
        %v991 = vld [vmem:[%s990] sm:$0xff]
        %v992 = vld [vmem:[%s990 + $0x8] sm:$0xff]
        %v993 = vlaneseq
        %v994 = vshrl.u32 %v993, 7
        %v995 = vsub.s32 6, %v994
        %v996 = vrot.slane %v463, %v995
        %v997 = vmul.f32 %v988, %v996
        %v998 = vmul.f32 %v989, %v996
        %v999 = vlaneseq
        %v1000 = vshrl.u32 %v999, 7
        %v1001 = vsub.s32 6, %v1000
        %v1002 = vrot.slane %v570, %v1001
        %v1003 = vmul.f32 %v991, %v1002
        %v1004 = vmul.f32 %v992, %v1002
        %v1005 = vsub.f32 %v997, %v1003
        %v1006 = vsub.f32 %v998, %v1004
        %v1007 = vmul.f32 %v988, %v1002
        %v1008 = vmul.f32 %v989, %v1002
        %v1009 = vmul.f32 %v991, %v996
        %v1010 = vmul.f32 %v992, %v996
        %v1011 = vadd.f32 %v1007, %v1009
        %v1012 = vadd.f32 %v1008, %v1010
        %v1013 = vadd.f32 %v983, %v1005
        %v1014 = vadd.f32 %v984, %v1006
        %v1015 = vadd.f32 %v985, %v1011
        %v1016 = vadd.f32 %v986, %v1012
        %s1017 = scalar_lea.vmem %s3, 240
        %v1018 = vld [vmem:[%s1017] sm:$0xff]
        %v1019 = vld [vmem:[%s1017 + $0x8] sm:$0xff]
        %s1020 = scalar_lea.vmem %s4, 240
        %v1021 = vld [vmem:[%s1020] sm:$0xff]
        %v1022 = vld [vmem:[%s1020 + $0x8] sm:$0xff]
        %v1023 = vlaneseq
        %v1024 = vshrl.u32 %v1023, 7
        %v1025 = vsub.s32 7, %v1024
        %v1026 = vrot.slane %v463, %v1025
        %v1027 = vmul.f32 %v1018, %v1026
        %v1028 = vmul.f32 %v1019, %v1026
        %v1029 = vlaneseq
        %v1030 = vshrl.u32 %v1029, 7
        %v1031 = vsub.s32 7, %v1030
        %v1032 = vrot.slane %v570, %v1031
        %v1033 = vmul.f32 %v1021, %v1032
        %v1034 = vmul.f32 %v1022, %v1032
        %v1035 = vsub.f32 %v1027, %v1033
        %v1036 = vsub.f32 %v1028, %v1034
        %v1037 = vmul.f32 %v1018, %v1032
        %v1038 = vmul.f32 %v1019, %v1032
        %v1039 = vmul.f32 %v1021, %v1026
        %v1040 = vmul.f32 %v1022, %v1026
        %v1041 = vadd.f32 %v1037, %v1039
        %v1042 = vadd.f32 %v1038, %v1040
        %v1043 = vadd.f32 %v1013, %v1035
        %v1044 = vadd.f32 %v1014, %v1036
        %v1045 = vadd.f32 %v1015, %v1041
        %v1046 = vadd.f32 %v1016, %v1042
        %v1047 = vld [vmem:[%s5] sm:$0xff]
        %v1048 = vld [vmem:[%s5 + $0x8] sm:$0xff]
        %v1049 = vld [vmem:[%s5 + $0x10] sm:$0xff]
        %v1050 = vld [vmem:[%s5 + $0x18] sm:$0xff]
        %v1051 = vld [vmem:[%s5 + $0x20] sm:$0xff]
        %v1052 = vld [vmem:[%s5 + $0x28] sm:$0xff]
        %v1053 = vld [vmem:[%s5 + $0x30] sm:$0xff]
        %v1054 = vld [vmem:[%s5 + $0x38] sm:$0xff]
        %v1055 = vld [vmem:[%s5 + $0x40] sm:$0xff]
        %v1056 = vld [vmem:[%s5 + $0x48] sm:$0xff]
        %v1057 = vld [vmem:[%s5 + $0x50] sm:$0xff]
        %v1058 = vld [vmem:[%s5 + $0x58] sm:$0xff]
        %v1059 = vld [vmem:[%s5 + $0x60] sm:$0xff]
        %v1060 = vld [vmem:[%s5 + $0x68] sm:$0xff]
        %v1061 = vld [vmem:[%s5 + $0x70] sm:$0xff]
        %v1062 = vld [vmem:[%s5 + $0x78] sm:$0xff]
        %v1063 = vld [vmem:[%s5 + $0x80] sm:$0xff]
        %v1064 = vld [vmem:[%s5 + $0x88] sm:$0xff]
        %v1065 = vld [vmem:[%s6] sm:$0xff]
        %v1066 = vld [vmem:[%s6 + $0x8] sm:$0xff]
        %v1067 = vld [vmem:[%s6 + $0x10] sm:$0xff]
        %v1068 = vld [vmem:[%s6 + $0x18] sm:$0xff]
        %v1069 = vld [vmem:[%s6 + $0x20] sm:$0xff]
        %v1070 = vld [vmem:[%s6 + $0x28] sm:$0xff]
        %v1071 = vld [vmem:[%s6 + $0x30] sm:$0xff]
        %v1072 = vld [vmem:[%s6 + $0x38] sm:$0xff]
        %v1073 = vld [vmem:[%s6 + $0x40] sm:$0xff]
        %v1074 = vld [vmem:[%s6 + $0x48] sm:$0xff]
        %v1075 = vld [vmem:[%s6 + $0x50] sm:$0xff]
        %v1076 = vld [vmem:[%s6 + $0x58] sm:$0xff]
        %v1077 = vld [vmem:[%s6 + $0x60] sm:$0xff]
        %v1078 = vld [vmem:[%s6 + $0x68] sm:$0xff]
        %v1079 = vld [vmem:[%s6 + $0x70] sm:$0xff]
        %v1080 = vld [vmem:[%s6 + $0x78] sm:$0xff]
        %v1081 = vld [vmem:[%s6 + $0x80] sm:$0xff]
        %v1082 = vld [vmem:[%s6 + $0x88] sm:$0xff]
        %vm1083 = vcmask 588800
        %v1085 = vsel %vm1083, %v1045, 0
        %v1088 = vsel %vm1083, %v1046, 0
        %1090 = vmatprep.subr.mxu0 %v1066
        %1091 = vmatpush1.msra.mxu0 %v1065
        %1092 = vmatprep.subr.mxu0 %v1068
        %1093 = vmatpush1.msra.mxu0 %v1067
        %1094 = vmatprep.subr.mxu0 %v1070
        %1095 = vmatpush1.msra.mxu0 %v1069
        %1096 = vmatprep.subr.mxu0 %v1072
        %1097 = vmatpush1.msra.mxu0 %v1071
        %1098 = vmatprep.subr.mxu0 %v1074
        %1099 = vmatpush1.msra.mxu0 %v1073
        %1100 = vmatprep.subr.mxu0 %v1076
        %1101 = vmatpush1.msra.mxu0 %v1075
        %1102 = vmatprep.subr.mxu0 %v1078
        %1103 = vmatpush1.msra.mxu0 %v1077
        %1104 = vmatprep.subr.mxu0 %v1080
        %1105 = vmatpush1.msra.mxu0 %v1079
        %1106 = vmatprep.subr.mxu0 %v1082
        %1107 = vmatpush1.msra.mxu0 %v1081
        %1108 = vmatprep.subr.mxu0 0.0
        %1109 = vmatpush1.msra.mxu0 0.0
        %1110 = vmatprep.subr.mxu0 0.0
        %1111 = vmatpush1.msra.mxu0 0.0
        %1112 = vmatprep.subr.mxu0 0.0
        %1113 = vmatpush1.msra.mxu0 0.0
        %1114 = vmatprep.subr.mxu0 0.0
        %1115 = vmatpush1.msra.mxu0 0.0
        %1116 = vmatprep.subr.mxu0 0.0
        %1117 = vmatpush1.msra.mxu0 0.0
        %1118 = vmatprep.subr.mxu0 0.0
        %1119 = vmatpush1.msra.mxu0 0.0
        %1120 = vmatprep.subr.mxu0 0.0
        %1121 = vmatpush1.msra.mxu0 0.0
        %1122 = vmatprep.subr.mxu0 0.0
        %1123 = vmatpush1.msra.mxu0 0.0
        %1124 = vmatprep.subr.mxu0 0.0
        %1125 = vmatpush1.msra.mxu0 0.0
        %1126 = vmatprep.subr.mxu0 0.0
        %1127 = vmatpush1.msra.mxu0 0.0
        %1128 = vmatprep.subr.mxu0 0.0
        %1129 = vmatpush1.msra.mxu0 0.0
        %1130 = vmatprep.subr.mxu0 0.0
        %1131 = vmatpush1.msra.mxu0 0.0
        %1132 = vmatprep.subr.mxu0 0.0
        %1133 = vmatpush1.msra.mxu0 0.0
        %1134 = vmatprep.subr.mxu0 0.0
        %1135 = vmatpush1.msra.mxu0 0.0
        %1136 = vmatprep.subr.mxu0 0.0
        %1137 = vmatpush1.msra.mxu0 0.0
        %1138 = vmatprep.subr.mxu0 0.0
        %1139 = vmatpush1.msra.mxu0 0.0
        %1140 = vmatprep.subr.mxu0 0.0
        %1141 = vmatpush1.msra.mxu0 0.0
        %1142 = vmatprep.subr.mxu0 0.0
        %1143 = vmatpush1.msra.mxu0 0.0
        %1144 = vmatprep.subr.mxu0 0.0
        %1145 = vmatpush1.msra.mxu0 0.0
        %1146 = vmatprep.subr.mxu0 0.0
        %1147 = vmatpush1.msra.mxu0 0.0
        %1148 = vmatprep.subr.mxu0 0.0
        %1149 = vmatpush1.msra.mxu0 0.0
        %1150 = vmatprep.subr.mxu0 0.0
        %1151 = vmatpush1.msra.mxu0 0.0
        %1152 = vmatprep.subr.mxu0 0.0
        %1153 = vmatpush1.msra.mxu0 0.0
        %1154 = vmatprep.mubr.f32.mxu0 0.0
        %1155 = vmatmul.mubr.f32.gmra.mrb[0].mxu0 %v1085
        %v1156 = vpop.f32.mrb[0].mxu0
        %v1157 = vadd.f32 0.0, %v1156
        %v1158 = vpop.f32.mrb[0].mxu0
        %v1159 = vadd.f32 0.0, %v1158
        %1160 = vmatprep.mubr.f32.mxu0 0.0
        %1161 = vmatmul.mubr.f32.gmra.mrb[0].mxu0 %v1088
        %v1162 = vpop.f32.mrb[0].mxu0
        %v1163 = vadd.f32 0.0, %v1162
        %v1164 = vpop.f32.mrb[0].mxu0
        %v1165 = vadd.f32 0.0, %v1164
        %1166 = vdwg.mxu0
        %v1168 = vsel %vm1083, %v1043, 0
        %v1171 = vsel %vm1083, %v1044, 0
        %1173 = vmatprep.subr.mxu0 %v1048
        %1174 = vmatpush1.msra.mxu0 %v1047
        %1175 = vmatprep.subr.mxu0 %v1050
        %1176 = vmatpush1.msra.mxu0 %v1049
        %1177 = vmatprep.subr.mxu0 %v1052
        %1178 = vmatpush1.msra.mxu0 %v1051
        %1179 = vmatprep.subr.mxu0 %v1054
        %1180 = vmatpush1.msra.mxu0 %v1053
        %1181 = vmatprep.subr.mxu0 %v1056
        %1182 = vmatpush1.msra.mxu0 %v1055
        %1183 = vmatprep.subr.mxu0 %v1058
        %1184 = vmatpush1.msra.mxu0 %v1057
        %1185 = vmatprep.subr.mxu0 %v1060
        %1186 = vmatpush1.msra.mxu0 %v1059
        %1187 = vmatprep.subr.mxu0 %v1062
        %1188 = vmatpush1.msra.mxu0 %v1061
        %1189 = vmatprep.subr.mxu0 %v1064
        %1190 = vmatpush1.msra.mxu0 %v1063
        %1191 = vmatprep.subr.mxu0 0.0
        %1192 = vmatpush1.msra.mxu0 0.0
        %1193 = vmatprep.subr.mxu0 0.0
        %1194 = vmatpush1.msra.mxu0 0.0
        %1195 = vmatprep.subr.mxu0 0.0
        %1196 = vmatpush1.msra.mxu0 0.0
        %1197 = vmatprep.subr.mxu0 0.0
        %1198 = vmatpush1.msra.mxu0 0.0
        %1199 = vmatprep.subr.mxu0 0.0
        %1200 = vmatpush1.msra.mxu0 0.0
        %1201 = vmatprep.subr.mxu0 0.0
        %1202 = vmatpush1.msra.mxu0 0.0
        %1203 = vmatprep.subr.mxu0 0.0
        %1204 = vmatpush1.msra.mxu0 0.0
        %1205 = vmatprep.subr.mxu0 0.0
        %1206 = vmatpush1.msra.mxu0 0.0
        %1207 = vmatprep.subr.mxu0 0.0
        %1208 = vmatpush1.msra.mxu0 0.0
        %1209 = vmatprep.subr.mxu0 0.0
        %1210 = vmatpush1.msra.mxu0 0.0
        %1211 = vmatprep.subr.mxu0 0.0
        %1212 = vmatpush1.msra.mxu0 0.0
        %1213 = vmatprep.subr.mxu0 0.0
        %1214 = vmatpush1.msra.mxu0 0.0
        %1215 = vmatprep.subr.mxu0 0.0
        %1216 = vmatpush1.msra.mxu0 0.0
        %1217 = vmatprep.subr.mxu0 0.0
        %1218 = vmatpush1.msra.mxu0 0.0
        %1219 = vmatprep.subr.mxu0 0.0
        %1220 = vmatpush1.msra.mxu0 0.0
        %1221 = vmatprep.subr.mxu0 0.0
        %1222 = vmatpush1.msra.mxu0 0.0
        %1223 = vmatprep.subr.mxu0 0.0
        %1224 = vmatpush1.msra.mxu0 0.0
        %1225 = vmatprep.subr.mxu0 0.0
        %1226 = vmatpush1.msra.mxu0 0.0
        %1227 = vmatprep.subr.mxu0 0.0
        %1228 = vmatpush1.msra.mxu0 0.0
        %1229 = vmatprep.subr.mxu0 0.0
        %1230 = vmatpush1.msra.mxu0 0.0
        %1231 = vmatprep.subr.mxu0 0.0
        %1232 = vmatpush1.msra.mxu0 0.0
        %1233 = vmatprep.subr.mxu0 0.0
        %1234 = vmatpush1.msra.mxu0 0.0
        %1235 = vmatprep.subr.mxu0 0.0
        %1236 = vmatpush1.msra.mxu0 0.0
        %1237 = vmatprep.mubr.f32.mxu0 0.0
        %1238 = vmatmul.mubr.f32.gmra.mrb[0].mxu0 %v1168
        %v1239 = vpop.f32.mrb[0].mxu0
        %v1240 = vadd.f32 %v1157, %v1239
        %v1241 = vpop.f32.mrb[0].mxu0
        %v1242 = vadd.f32 %v1159, %v1241
        %1243 = vmatprep.mubr.f32.mxu0 0.0
        %1244 = vmatmul.mubr.f32.gmra.mrb[0].mxu0 %v1171
        %v1245 = vpop.f32.mrb[0].mxu0
        %v1246 = vadd.f32 %v1163, %v1245
        %v1247 = vpop.f32.mrb[0].mxu0
        %v1248 = vadd.f32 %v1165, %v1247
        %1249 = vdwg.mxu0
        %v1250 = vld [vmem:[%s7] sm:$0xff]
        %v1251 = vld [vmem:[%s7 + $0x8] sm:$0xff]
        %v1252 = vld [vmem:[%s8] sm:$0xff]
        %v1253 = vld [vmem:[%s8 + $0x8] sm:$0xff]
        %1255 = vset.pattern.permute.xlu0 0
        %1256 = vperm.xlu0 %1255, %v1252
        %v1257 = vpop.permute.xlu0 %1256
        %1260 = vset.pattern.permute.xlu0 0
        %1261 = vperm.xlu0 %1260, %v1253
        %v1262 = vpop.permute.xlu0 %1261
        %vm1264 = vcmask 130048
        %v1266 = vsel %vm1264, %v1250, 0
        %v1269 = vsel %vm1264, %v1251, 0
        %1271 = vmatprep.subr.mxu0 %v356
        %1272 = vmatpush1.msra.mxu0 %v355
        %1273 = vmatprep.subr.mxu0 %v358
        %1274 = vmatpush1.msra.mxu0 %v357
        %1275 = vmatprep.subr.mxu0 0.0
        %1276 = vmatpush1.msra.mxu0 0.0
        %1277 = vmatprep.subr.mxu0 0.0
        %1278 = vmatpush1.msra.mxu0 0.0
        %1279 = vmatprep.subr.mxu0 0.0
        %1280 = vmatpush1.msra.mxu0 0.0
        %1281 = vmatprep.subr.mxu0 0.0
        %1282 = vmatpush1.msra.mxu0 0.0
        %1283 = vmatprep.subr.mxu0 0.0
        %1284 = vmatpush1.msra.mxu0 0.0
        %1285 = vmatprep.subr.mxu0 0.0
        %1286 = vmatpush1.msra.mxu0 0.0
        %1287 = vmatprep.subr.mxu0 0.0
        %1288 = vmatpush1.msra.mxu0 0.0
        %1289 = vmatprep.subr.mxu0 0.0
        %1290 = vmatpush1.msra.mxu0 0.0
        %1291 = vmatprep.subr.mxu0 0.0
        %1292 = vmatpush1.msra.mxu0 0.0
        %1293 = vmatprep.subr.mxu0 0.0
        %1294 = vmatpush1.msra.mxu0 0.0
        %1295 = vmatprep.subr.mxu0 0.0
        %1296 = vmatpush1.msra.mxu0 0.0
        %1297 = vmatprep.subr.mxu0 0.0
        %1298 = vmatpush1.msra.mxu0 0.0
        %1299 = vmatprep.subr.mxu0 0.0
        %1300 = vmatpush1.msra.mxu0 0.0
        %1301 = vmatprep.subr.mxu0 0.0
        %1302 = vmatpush1.msra.mxu0 0.0
        %1303 = vmatprep.subr.mxu0 0.0
        %1304 = vmatpush1.msra.mxu0 0.0
        %1305 = vmatprep.subr.mxu0 0.0
        %1306 = vmatpush1.msra.mxu0 0.0
        %1307 = vmatprep.subr.mxu0 0.0
        %1308 = vmatpush1.msra.mxu0 0.0
        %1309 = vmatprep.subr.mxu0 0.0
        %1310 = vmatpush1.msra.mxu0 0.0
        %1311 = vmatprep.subr.mxu0 0.0
        %1312 = vmatpush1.msra.mxu0 0.0
        %1313 = vmatprep.subr.mxu0 0.0
        %1314 = vmatpush1.msra.mxu0 0.0
        %1315 = vmatprep.subr.mxu0 0.0
        %1316 = vmatpush1.msra.mxu0 0.0
        %1317 = vmatprep.subr.mxu0 0.0
        %1318 = vmatpush1.msra.mxu0 0.0
        %1319 = vmatprep.subr.mxu0 0.0
        %1320 = vmatpush1.msra.mxu0 0.0
        %1321 = vmatprep.subr.mxu0 0.0
        %1322 = vmatpush1.msra.mxu0 0.0
        %1323 = vmatprep.subr.mxu0 0.0
        %1324 = vmatpush1.msra.mxu0 0.0
        %1325 = vmatprep.subr.mxu0 0.0
        %1326 = vmatpush1.msra.mxu0 0.0
        %1327 = vmatprep.subr.mxu0 0.0
        %1328 = vmatpush1.msra.mxu0 0.0
        %1329 = vmatprep.subr.mxu0 0.0
        %1330 = vmatpush1.msra.mxu0 0.0
        %1331 = vmatprep.subr.mxu0 0.0
        %1332 = vmatpush1.msra.mxu0 0.0
        %1333 = vmatprep.subr.mxu0 0.0
        %1334 = vmatpush1.msra.mxu0 0.0
        %1335 = vmatprep.mubr.f32.mxu0 0.0
        %1336 = vmatmul.mubr.f32.gmra.mrb[0].mxu0 %v1266
        %v1337 = vpop.f32.mrb[0].mxu0
        %v1338 = vadd.f32 %v1257, %v1337
        %v1339 = vpop.f32.mrb[0].mxu0
        %v1340 = vadd.f32 %v1257, %v1339
        %1341 = vmatprep.mubr.f32.mxu0 0.0
        %1342 = vmatmul.mubr.f32.gmra.mrb[0].mxu0 %v1269
        %v1343 = vpop.f32.mrb[0].mxu0
        %v1344 = vadd.f32 %v1262, %v1343
        %v1345 = vpop.f32.mrb[0].mxu0
        %v1346 = vadd.f32 %v1262, %v1345
        %1347 = vdwg.mxu0
        %v1348 = vadd.f32 %v1338, %v1240
        %v1349 = vadd.f32 %v1340, %v1242
        %v1350 = vadd.f32 %v1344, %v1246
        %v1351 = vadd.f32 %v1346, %v1248
        %1352 = vst [vmem:[%s352] sm:$0xff] %v1348
        %1353 = vst [vmem:[%s352 + $0x8] sm:$0xff] %v1349
        %1354 = vst [vmem:[%s352 + $0x10] sm:$0xff] %v1350
        %1355 = vst [vmem:[%s352 + $0x18] sm:$0xff] %v1351
        %s1356 = sand.u32 %s222, 1
        %s1357 = sand.u32 %s222, 1
        %s1358 = smul.addr %s1357, 32
        %s1359 = scalar_lea.vmem [#allocation3], %s1358
        // Predicated region
        $region80: #{fno2d_forward.10} parent=74 // pred_check
          %p1360 = pneg %p232
        $region81: #{fno2d_forward.10} parent=74 // pred_check_branch
          %1362 = sbr.rel (%p1360) target = $region83
        $region82: #{fno2d_forward.10} parent=74 // pred_region
          %s1363 = smul.u32 2, %s20
          %s1364 = smul.addr %s1363, 8
          %s1365 = scalar_lea.vmem %s9, %s1364
          // Predicated region
          $region84: #{fno2d_forward.10} parent=82 // pred_check
            _
          $region85: #{fno2d_forward.10} parent=82 // pred_check_branch
            %1367 = sbr.rel (0) target = $region87
          $region86: #{fno2d_forward.10} parent=82 // pred_region
            // Predicated region
            $region88: #{fno2d_forward.10} parent=86 // pred_check
              _
            $region89: #{fno2d_forward.10} parent=86 // pred_check_branch
              %1369 = sbr.rel (0) target = $region91
            $region90: #{fno2d_forward.10} parent=86 // pred_region
              loop: start=0, step=1, limit=1
              $region92: #{fno2d_forward.10} parent=90 // loop_pre_header
                _
              $region93: #{fno2d_forward.10} parent=90 // loop_header
                %s1371 = sphi 0, %s1375
                %p1372 = scmp.ge.s32.totalorder %s1371, 1
                %s1376 = sphi %s1359, %s1359
                %s1377 = sphi %s1365, %s1365
              $region94: #{fno2d_forward.10} parent=90 // loop_header_branch
                %1374 = sbr.rel (%p1372) target = $region98
              $region95: #{fno2d_forward.10} parent=90 // loop_body
                %v1378 = vld [vmem:[%s1376] sm:$0xff]
                %1379 = vst [vmem:[%s1377] sm:$0xff] %v1378
                %v1380 = vld [vmem:[%s1376 + $0x8] sm:$0xff]
                %1381 = vst [vmem:[%s1377 + $0x8] sm:$0xff] %v1380
                %v1382 = vld [vmem:[%s1376 + $0x10] sm:$0xff]
                %1383 = vst [vmem:[%s1377 + $0x20] sm:$0xff] %v1382
                %v1384 = vld [vmem:[%s1376 + $0x18] sm:$0xff]
                %1385 = vst [vmem:[%s1377 + $0x28] sm:$0xff] %v1384
              $region96: #{fno2d_forward.10} parent=90 // loop_footer
                %s1375 = sadd.s32 1, %s1371
              $region97: #{fno2d_forward.10} parent=90 // loop_footer_branch
                %1370 = sbr.rel target = $region93
              $region98: #{fno2d_forward.10} parent=90 // loop_exit
                _
            $region91: #{fno2d_forward.10} parent=86 // pred_fallthru
              _
            // Predicated region
            $region99: #{fno2d_forward.10} parent=86 // pred_check
              _
            $region100: #{fno2d_forward.10} parent=86 // pred_check_branch
              %1387 = sbr.rel target = $region102
            $region101: #{fno2d_forward.10} parent=86 // pred_region
              _
            $region102: #{fno2d_forward.10} parent=86 // pred_fallthru
              _
          $region87: #{fno2d_forward.10} parent=82 // pred_fallthru
            _
          %1388 = vnop
        $region83: #{fno2d_forward.10} parent=74 // pred_fallthru
          _
      $region75: #{fno2d_forward.10} parent=5 // pred_fallthru
        _
      %p1389 = scmp.le.s32.totalorder 2, %s15
      // Predicated region
      $region103: #{fno2d_forward.10} parent=5 // pred_check
        %p1390 = pneg %p1389
      $region104: #{fno2d_forward.10} parent=5 // pred_check_branch
        %1392 = sbr.rel (%p1390) target = $region106
      $region105: #{fno2d_forward.10} parent=5 // pred_region
        %s1393 = ssub.s32 %s15, 2
        // Predicated region
        $region107: #{fno2d_forward.10} parent=105 // pred_check
          %p1394 = pneg %p238
        $region108: #{fno2d_forward.10} parent=105 // pred_check_branch
          %1396 = sbr.rel (%p1394) target = $region110
        $region109: #{fno2d_forward.10} parent=105 // pred_region
          %s1397 = sand.u32 %s223, 1
          %s1398 = sand.u32 %s223, 1
          %s1399 = smul.addr %s1398, 32
          %s1400 = scalar_lea.vmem [#allocation3], %s1399
        $region110: #{fno2d_forward.10} parent=105 // pred_fallthru
          _
      $region106: #{fno2d_forward.10} parent=5 // pred_fallthru
        _
    $region6: #{fno2d_forward.10} parent=1 // loop_footer
      %s19 = sadd.s32 1, %s15
    $region7: #{fno2d_forward.10} parent=1 // loop_footer_branch
      %14 = sbr.rel target = $region3
    $region8: #{fno2d_forward.10} parent=1 // loop_exit
      _

// kernel: fno2d_forward.11
$region0: #{fno2d_forward.11}
  #allocation0 [shape = 'u32[]', space=smem, size = 0x4, offset = 0x4, fixed_abs, tag = 'smem constant byte address 0x4 - core index']
  #allocation1 [shape = 'u32[144,128]{1,0:T(1,128)}', space=vmem, size = 0x12000, scoped, tag = 'internal scratch']
  #allocation2 [shape = 'f32[1,1]{1,0:T(1,128)S(1)}', space=vmem, size = 0x200, scoped, tag = 'scoped memory for fno2d_forward.11']
  %s0 = inlined_call_operand.vmem [shape: f32[16,512], index: 0, kind: input, shape index: {}]
  %s1 = inlined_call_operand.vmem [shape: f32[64,16], index: 1, kind: input, shape index: {}]
  %s2 = inlined_call_operand.vmem [shape: f32[64,1], index: 2, kind: input, shape index: {}]
  %s3 = inlined_call_operand.vmem [shape: f32[1,64], index: 3, kind: input, shape index: {}]
  %s4 = inlined_call_operand.<no memory space> [shape: f32[1,1], index: 4, kind: input, shape index: {}]
  %s5 = inlined_call_operand.vmem [shape: f32[1,512], index: 5, kind: output, shape index: {}]
  %s6 = sld [smem:[#allocation0]]
  $region76: #{fno2d_forward.11} parent=0
    _
  %s8 = ssub.s32 1, %s6
  %s9 = scalar_select 0, %s8, %s6
  %v10 = vstv %s4
  %11 = vst [vmem:[#allocation2] sm:$0x1] %v10
  $region1: #{fno2d_forward.11} parent=0
    #allocation3 [shape = 'u8[32768]{0}', space=vmem, size = 0x8000, scoped, tag = 'input window, operand 0']
    loop: start=0, step=1, limit=4
    $region2: #{fno2d_forward.11} parent=1 // loop_pre_header
      _
    $region3: #{fno2d_forward.11} parent=1 // loop_header
      %s13 = sphi 0, %s17
      %p14 = scmp.ge.s32.totalorder %s13, 4
      %s23 = sphi 0, %s25
      %s26 = sphi 0, %s23
      %s27 = sphi 0, %s26
      %s43 = sphi 0, %s27
      %s47 = sphi 0, %s47
      %s49 = sphi 0, %s47
      %s50 = sphi 0, %s49
      %s64 = sphi 0, %s50
      %s68 = sphi 0, %s68
      %s70 = sphi 0, %s68
      %s71 = sphi 0, %s70
      %s85 = sphi 0, %s71
      %s89 = sphi 0, %s89
      %s91 = sphi 0, %s89
      %s92 = sphi 0, %s91
      %s106 = sphi 0, %s92
      %s110 = sphi 0, %s110
      %s112 = sphi 0, %s110
      %s113 = sphi 0, %s112
      %s127 = sphi 0, %s113
      %s133 = sphi 0, %s135
      %s136 = sphi 0, %s133
      %s137 = sphi 0, %s136
      %s153 = sphi 0, %s137
    $region4: #{fno2d_forward.11} parent=1 // loop_header_branch
      %16 = sbr.rel (%p14) target = $region8
    $region5: #{fno2d_forward.11} parent=1 // loop_body
      %s18 = ssub.s32 %s13, 1
      %s19 = ssub.s32 %s13, 2
      %s20 = sadd.s32 %s13, 1
      %s21 = ssub.s32 %s13, %s20
      %p22 = scmp.eq.s32.totalorder %s21, 0
      %s24 = sadd.s32 %s23, 1
      %s25 = scalar_select %p22, %s23, %s24
      %p28 = pneg %p22
      %p29 = scmp.eq.s32.totalorder %s13, 1
      %p30 = por %p28, %p29
      %p31 = scmp.ne.s32.totalorder %s23, %s26
      %p32 = scmp.eq.s32.totalorder %s13, 0
      %p33 = por %p31, %p32
      %p34 = scmp.ne.s32.totalorder %s23, %s26
      %p35 = scmp.eq.s32.totalorder %s18, 1
      %p36 = por %p34, %p35
      %p37 = scmp.ne.s32.totalorder %s26, %s27
      %p38 = scmp.eq.s32.totalorder %s18, 0
      %p39 = por %p37, %p38
      %p40 = scmp.ne.s32.totalorder %s26, %s27
      %p41 = scmp.eq.s32.totalorder %s19, 1
      %p42 = por %p40, %p41
      %p44 = scmp.ne.s32.totalorder %s27, %s43
      %p45 = scmp.eq.s32.totalorder %s19, 0
      %p46 = por %p44, %p45
      %s48 = sadd.s32 %s47, 1
      %p51 = scmp.eq.s32.totalorder %s13, 1
      %p52 = scmp.ne.s32.totalorder %s47, %s49
      %p53 = scmp.eq.s32.totalorder %s13, 0
      %p54 = por %p52, %p53
      %p55 = scmp.ne.s32.totalorder %s47, %s49
      %p56 = scmp.eq.s32.totalorder %s18, 1
      %p57 = por %p55, %p56
      %p58 = scmp.ne.s32.totalorder %s49, %s50
      %p59 = scmp.eq.s32.totalorder %s18, 0
      %p60 = por %p58, %p59
      %p61 = scmp.ne.s32.totalorder %s49, %s50
      %p62 = scmp.eq.s32.totalorder %s19, 1
      %p63 = por %p61, %p62
      %p65 = scmp.ne.s32.totalorder %s50, %s64
      %p66 = scmp.eq.s32.totalorder %s19, 0
      %p67 = por %p65, %p66
      %s69 = sadd.s32 %s68, 1
      %p72 = scmp.eq.s32.totalorder %s13, 1
      %p73 = scmp.ne.s32.totalorder %s68, %s70
      %p74 = scmp.eq.s32.totalorder %s13, 0
      %p75 = por %p73, %p74
      %p76 = scmp.ne.s32.totalorder %s68, %s70
      %p77 = scmp.eq.s32.totalorder %s18, 1
      %p78 = por %p76, %p77
      %p79 = scmp.ne.s32.totalorder %s70, %s71
      %p80 = scmp.eq.s32.totalorder %s18, 0
      %p81 = por %p79, %p80
      %p82 = scmp.ne.s32.totalorder %s70, %s71
      %p83 = scmp.eq.s32.totalorder %s19, 1
      %p84 = por %p82, %p83
      %p86 = scmp.ne.s32.totalorder %s71, %s85
      %p87 = scmp.eq.s32.totalorder %s19, 0
      %p88 = por %p86, %p87
      %s90 = sadd.s32 %s89, 1
      %p93 = scmp.eq.s32.totalorder %s13, 1
      %p94 = scmp.ne.s32.totalorder %s89, %s91
      %p95 = scmp.eq.s32.totalorder %s13, 0
      %p96 = por %p94, %p95
      %p97 = scmp.ne.s32.totalorder %s89, %s91
      %p98 = scmp.eq.s32.totalorder %s18, 1
      %p99 = por %p97, %p98
      %p100 = scmp.ne.s32.totalorder %s91, %s92
      %p101 = scmp.eq.s32.totalorder %s18, 0
      %p102 = por %p100, %p101
      %p103 = scmp.ne.s32.totalorder %s91, %s92
      %p104 = scmp.eq.s32.totalorder %s19, 1
      %p105 = por %p103, %p104
      %p107 = scmp.ne.s32.totalorder %s92, %s106
      %p108 = scmp.eq.s32.totalorder %s19, 0
      %p109 = por %p107, %p108
      %s111 = sadd.s32 %s110, 1
      %p114 = scmp.eq.s32.totalorder %s13, 1
      %p115 = scmp.ne.s32.totalorder %s110, %s112
      %p116 = scmp.eq.s32.totalorder %s13, 0
      %p117 = por %p115, %p116
      %p118 = scmp.ne.s32.totalorder %s110, %s112
      %p119 = scmp.eq.s32.totalorder %s18, 1
      %p120 = por %p118, %p119
      %p121 = scmp.ne.s32.totalorder %s112, %s113
      %p122 = scmp.eq.s32.totalorder %s18, 0
      %p123 = por %p121, %p122
      %p124 = scmp.ne.s32.totalorder %s112, %s113
      %p125 = scmp.eq.s32.totalorder %s19, 1
      %p126 = por %p124, %p125
      %p128 = scmp.ne.s32.totalorder %s113, %s127
      %p129 = scmp.eq.s32.totalorder %s19, 0
      %p130 = por %p128, %p129
      %s131 = ssub.s32 %s13, %s20
      %p132 = scmp.eq.s32.totalorder %s131, 0
      %s134 = sadd.s32 %s133, 1
      %s135 = scalar_select %p132, %s133, %s134
      %p138 = pneg %p132
      %p139 = scmp.eq.s32.totalorder %s13, 1
      %p140 = por %p138, %p139
      %p141 = scmp.ne.s32.totalorder %s133, %s136
      %p142 = scmp.eq.s32.totalorder %s13, 0
      %p143 = por %p141, %p142
      %p144 = scmp.ne.s32.totalorder %s133, %s136
      %p145 = scmp.eq.s32.totalorder %s18, 1
      %p146 = por %p144, %p145
      %p147 = scmp.ne.s32.totalorder %s136, %s137
      %p148 = scmp.eq.s32.totalorder %s18, 0
      %p149 = por %p147, %p148
      %p150 = scmp.ne.s32.totalorder %s136, %s137
      %p151 = scmp.eq.s32.totalorder %s19, 1
      %p152 = por %p150, %p151
      %p154 = scmp.ne.s32.totalorder %s137, %s153
      %p155 = scmp.eq.s32.totalorder %s19, 0
      %p156 = por %p154, %p155
      %p157 = scmp.le.s32.totalorder 1, %s13
      %p158 = scmp.lt.s32.totalorder %s13, 3
      %p159 = pnand %p157, %p158
      %p160 = pneg %p159
      // Predicated region
      $region9: #{fno2d_forward.11} parent=5 // pred_check
        _
      $region10: #{fno2d_forward.11} parent=5 // pred_check_branch
        %162 = sbr.rel (%p159) target = $region12
      $region11: #{fno2d_forward.11} parent=5 // pred_region
        %s163 = ssub.s32 %s13, 1
        // Predicated region
        $region13: #{fno2d_forward.11} parent=11 // pred_check
          %p164 = pneg %p60
        $region14: #{fno2d_forward.11} parent=11 // pred_check_branch
          %166 = sbr.rel (%p164) target = $region16
        $region15: #{fno2d_forward.11} parent=11 // pred_region
          _
        $region16: #{fno2d_forward.11} parent=11 // pred_fallthru
          _
        // Predicated region
        $region17: #{fno2d_forward.11} parent=11 // pred_check
          %p167 = pneg %p81
        $region18: #{fno2d_forward.11} parent=11 // pred_check_branch
          %169 = sbr.rel (%p167) target = $region20
        $region19: #{fno2d_forward.11} parent=11 // pred_region
          _
        $region20: #{fno2d_forward.11} parent=11 // pred_fallthru
          _
        // Predicated region
        $region21: #{fno2d_forward.11} parent=11 // pred_check
          %p170 = pneg %p102
        $region22: #{fno2d_forward.11} parent=11 // pred_check_branch
          %172 = sbr.rel (%p170) target = $region24
        $region23: #{fno2d_forward.11} parent=11 // pred_region
          _
        $region24: #{fno2d_forward.11} parent=11 // pred_fallthru
          _
        // Predicated region
        $region25: #{fno2d_forward.11} parent=11 // pred_check
          %p173 = pneg %p123
        $region26: #{fno2d_forward.11} parent=11 // pred_check_branch
          %175 = sbr.rel (%p173) target = $region28
        $region27: #{fno2d_forward.11} parent=11 // pred_region
          _
        $region28: #{fno2d_forward.11} parent=11 // pred_fallthru
          _
      $region12: #{fno2d_forward.11} parent=5 // pred_fallthru
        _
      %p176 = scmp.lt.s32.totalorder %s13, 2
      // Predicated region
      $region29: #{fno2d_forward.11} parent=5 // pred_check
        %p177 = pneg %p176
      $region30: #{fno2d_forward.11} parent=5 // pred_check_branch
        %179 = sbr.rel (%p177) target = $region32
      $region31: #{fno2d_forward.11} parent=5 // pred_region
        // Predicated region
        $region33: #{fno2d_forward.11} parent=31 // pred_check
          %p180 = pneg %p33
        $region34: #{fno2d_forward.11} parent=31 // pred_check_branch
          %182 = sbr.rel (%p180) target = $region36
        $region35: #{fno2d_forward.11} parent=31 // pred_region
          %s183 = sand.u32 %s23, 1
          %s184 = sand.u32 %s23, 1
          %s185 = smul.addr %s184, 32
          %s186 = scalar_lea.vmem [#allocation3], %s185
          %s187 = smul.u32 2, %s13
          %s188 = smul.addr %s187, 8
          %s189 = scalar_lea.vmem %s0, %s188
          // Predicated region
          $region37: #{fno2d_forward.11} parent=35 // pred_check
            _
          $region38: #{fno2d_forward.11} parent=35 // pred_check_branch
            %191 = sbr.rel (0) target = $region40
          $region39: #{fno2d_forward.11} parent=35 // pred_region
            // Predicated region
            $region41: #{fno2d_forward.11} parent=39 // pred_check
              _
            $region42: #{fno2d_forward.11} parent=39 // pred_check_branch
              %193 = sbr.rel (0) target = $region44
            $region43: #{fno2d_forward.11} parent=39 // pred_region
              loop: start=0, step=1, limit=1
              $region45: #{fno2d_forward.11} parent=43 // loop_pre_header
                _
              $region46: #{fno2d_forward.11} parent=43 // loop_header
                %s195 = sphi 0, %s199
                %p196 = scmp.ge.s32.totalorder %s195, 1
                %s200 = sphi %s189, %s189
                %s201 = sphi %s186, %s186
              $region47: #{fno2d_forward.11} parent=43 // loop_header_branch
                %198 = sbr.rel (%p196) target = $region51
              $region48: #{fno2d_forward.11} parent=43 // loop_body
                %v202 = vld [vmem:[%s200] sm:$0xff]
                %203 = vst [vmem:[%s201] sm:$0xff] %v202
                %v204 = vld [vmem:[%s200 + $0x8] sm:$0xff]
                %205 = vst [vmem:[%s201 + $0x8] sm:$0xff] %v204
                %v206 = vld [vmem:[%s200 + $0x20] sm:$0xff]
                %207 = vst [vmem:[%s201 + $0x10] sm:$0xff] %v206
                %v208 = vld [vmem:[%s200 + $0x28] sm:$0xff]
                %209 = vst [vmem:[%s201 + $0x18] sm:$0xff] %v208
              $region49: #{fno2d_forward.11} parent=43 // loop_footer
                %s199 = sadd.s32 1, %s195
              $region50: #{fno2d_forward.11} parent=43 // loop_footer_branch
                %194 = sbr.rel target = $region46
              $region51: #{fno2d_forward.11} parent=43 // loop_exit
                _
            $region44: #{fno2d_forward.11} parent=39 // pred_fallthru
              _
            // Predicated region
            $region52: #{fno2d_forward.11} parent=39 // pred_check
              _
            $region53: #{fno2d_forward.11} parent=39 // pred_check_branch
              %211 = sbr.rel target = $region55
            $region54: #{fno2d_forward.11} parent=39 // pred_region
              _
            $region55: #{fno2d_forward.11} parent=39 // pred_fallthru
              _
          $region40: #{fno2d_forward.11} parent=35 // pred_fallthru
            _
          %212 = vnop
        $region36: #{fno2d_forward.11} parent=31 // pred_fallthru
          _
      $region32: #{fno2d_forward.11} parent=5 // pred_fallthru
        _
      %p213 = scmp.le.s32.totalorder 1, %s13
      %p214 = scmp.lt.s32.totalorder %s13, 3
      %p215 = pnand %p213, %p214
      %p216 = pneg %p215
      // Predicated region
      $region56: #{fno2d_forward.11} parent=5 // pred_check
        _
      $region57: #{fno2d_forward.11} parent=5 // pred_check_branch
        %218 = sbr.rel (%p215) target = $region59
      $region58: #{fno2d_forward.11} parent=5 // pred_region
        %s219 = ssub.s32 %s13, 1
        %s220 = sand.u32 %s26, 1
        %s221 = sand.u32 %s26, 1
        %s222 = smul.addr %s221, 32
        %s223 = scalar_lea.vmem [#allocation3], %s222
        // Predicated region
        $region60: #{fno2d_forward.11} parent=58 // pred_check
          %p224 = pneg %p39
        $region61: #{fno2d_forward.11} parent=58 // pred_check_branch
          %226 = sbr.rel (%p224) target = $region63
        $region62: #{fno2d_forward.11} parent=58 // pred_region
          _
        $region63: #{fno2d_forward.11} parent=58 // pred_fallthru
          _
        %s227 = sand.u32 %s26, 1
        %s228 = sand.u32 %s26, 1
        %s229 = smul.addr %s228, 32
        %s230 = scalar_lea.vmem [#allocation3], %s229
        %p231 = pneg %p39
        %p232 = pneg %p36
        %p233 = pneg %p60
        %p234 = pneg %p57
        %p235 = pneg %p81
        %p236 = pneg %p78
        %p237 = pneg %p102
        %p238 = pneg %p99
        %p239 = pneg %p123
        %p240 = pneg %p120
        %p241 = pneg %p149
        %p242 = pneg %p146
        %s243 = smul.u32 2, %s18
        %p244 = scmp.lt.s32.totalorder %s243, 3
        %s245 = scalar_select %p244, %s243, 3
        %s246 = scalar_lea.vmem %s5, %s245
        %s247 = smul.u32 2, %s18
        %s248 = smul.u32 2, %s18
        %p249 = scmp.lt.s32.totalorder %s248, 3
        %s250 = scalar_select %p249, %s248, 3
        %s251 = scalar_lea.vmem %s5, %s250
        %s252 = smul.u32 2, %s18
        %v253 = vld [vmem:[%s1] sm:$0xff]
        %v254 = vld [vmem:[%s1 + $0x8] sm:$0xff]
        %v255 = vld [vmem:[%s1 + $0x10] sm:$0xff]
        %v256 = vld [vmem:[%s1 + $0x18] sm:$0xff]
        %v257 = vld [vmem:[%s1 + $0x20] sm:$0xff]
        %v258 = vld [vmem:[%s1 + $0x28] sm:$0xff]
        %v259 = vld [vmem:[%s1 + $0x30] sm:$0xff]
        %v260 = vld [vmem:[%s1 + $0x38] sm:$0xff]
        %v261 = vld [vmem:[%s223] sm:$0xff]
        %v262 = vld [vmem:[%s223 + $0x8] sm:$0xff]
        %v263 = vld [vmem:[%s223 + $0x10] sm:$0xff]
        %v264 = vld [vmem:[%s223 + $0x18] sm:$0xff]
        %v265 = vld [vmem:[%s2] sm:$0xff]
        %v266 = vld [vmem:[%s2 + $0x8] sm:$0xff]
        %v267 = vld [vmem:[%s2 + $0x10] sm:$0xff]
        %v268 = vld [vmem:[%s2 + $0x18] sm:$0xff]
        %v269 = vld [vmem:[%s2 + $0x20] sm:$0xff]
        %v270 = vld [vmem:[%s2 + $0x28] sm:$0xff]
        %v271 = vld [vmem:[%s2 + $0x30] sm:$0xff]
        %v272 = vld [vmem:[%s2 + $0x38] sm:$0xff]
        %274 = vset.pattern.permute.xlu0 0
        %275 = vperm.xlu0 %274, %v265
        %v276 = vpop.permute.xlu0 %275
        %279 = vset.pattern.permute.xlu0 0
        %280 = vperm.xlu0 %279, %v266
        %v281 = vpop.permute.xlu0 %280
        %284 = vset.pattern.permute.xlu0 0
        %285 = vperm.xlu0 %284, %v267
        %v286 = vpop.permute.xlu0 %285
        %289 = vset.pattern.permute.xlu0 0
        %290 = vperm.xlu0 %289, %v268
        %v291 = vpop.permute.xlu0 %290
        %294 = vset.pattern.permute.xlu0 0
        %295 = vperm.xlu0 %294, %v269
        %v296 = vpop.permute.xlu0 %295
        %299 = vset.pattern.permute.xlu0 0
        %300 = vperm.xlu0 %299, %v270
        %v301 = vpop.permute.xlu0 %300
        %304 = vset.pattern.permute.xlu0 0
        %305 = vperm.xlu0 %304, %v271
        %v306 = vpop.permute.xlu0 %305
        %309 = vset.pattern.permute.xlu0 0
        %310 = vperm.xlu0 %309, %v272
        %v311 = vpop.permute.xlu0 %310
        %vm313 = vcmask 130048
        %v315 = vsel %vm313, %v253, 0
        %v318 = vsel %vm313, %v254, 0
        %v321 = vsel %vm313, %v255, 0
        %v324 = vsel %vm313, %v256, 0
        %v327 = vsel %vm313, %v257, 0
        %v330 = vsel %vm313, %v258, 0
        %v333 = vsel %vm313, %v259, 0
        %v336 = vsel %vm313, %v260, 0
        %338 = vmatprep.subr.mxu0 %v262
        %339 = vmatpush1.msra.mxu0 %v261
        %340 = vmatprep.subr.mxu0 %v264
        %341 = vmatpush1.msra.mxu0 %v263
        %342 = vmatprep.subr.mxu0 0.0
        %343 = vmatpush1.msra.mxu0 0.0
        %344 = vmatprep.subr.mxu0 0.0
        %345 = vmatpush1.msra.mxu0 0.0
        %346 = vmatprep.subr.mxu0 0.0
        %347 = vmatpush1.msra.mxu0 0.0
        %348 = vmatprep.subr.mxu0 0.0
        %349 = vmatpush1.msra.mxu0 0.0
        %350 = vmatprep.subr.mxu0 0.0
        %351 = vmatpush1.msra.mxu0 0.0
        %352 = vmatprep.subr.mxu0 0.0
        %353 = vmatpush1.msra.mxu0 0.0
        %354 = vmatprep.subr.mxu0 0.0
        %355 = vmatpush1.msra.mxu0 0.0
        %356 = vmatprep.subr.mxu0 0.0
        %357 = vmatpush1.msra.mxu0 0.0
        %358 = vmatprep.subr.mxu0 0.0
        %359 = vmatpush1.msra.mxu0 0.0
        %360 = vmatprep.subr.mxu0 0.0
        %361 = vmatpush1.msra.mxu0 0.0
        %362 = vmatprep.subr.mxu0 0.0
        %363 = vmatpush1.msra.mxu0 0.0
        %364 = vmatprep.subr.mxu0 0.0
        %365 = vmatpush1.msra.mxu0 0.0
        %366 = vmatprep.subr.mxu0 0.0
        %367 = vmatpush1.msra.mxu0 0.0
        %368 = vmatprep.subr.mxu0 0.0
        %369 = vmatpush1.msra.mxu0 0.0
        %370 = vmatprep.subr.mxu0 0.0
        %371 = vmatpush1.msra.mxu0 0.0
        %372 = vmatprep.subr.mxu0 0.0
        %373 = vmatpush1.msra.mxu0 0.0
        %374 = vmatprep.subr.mxu0 0.0
        %375 = vmatpush1.msra.mxu0 0.0
        %376 = vmatprep.subr.mxu0 0.0
        %377 = vmatpush1.msra.mxu0 0.0
        %378 = vmatprep.subr.mxu0 0.0
        %379 = vmatpush1.msra.mxu0 0.0
        %380 = vmatprep.subr.mxu0 0.0
        %381 = vmatpush1.msra.mxu0 0.0
        %382 = vmatprep.subr.mxu0 0.0
        %383 = vmatpush1.msra.mxu0 0.0
        %384 = vmatprep.subr.mxu0 0.0
        %385 = vmatpush1.msra.mxu0 0.0
        %386 = vmatprep.subr.mxu0 0.0
        %387 = vmatpush1.msra.mxu0 0.0
        %388 = vmatprep.subr.mxu0 0.0
        %389 = vmatpush1.msra.mxu0 0.0
        %390 = vmatprep.subr.mxu0 0.0
        %391 = vmatpush1.msra.mxu0 0.0
        %392 = vmatprep.subr.mxu0 0.0
        %393 = vmatpush1.msra.mxu0 0.0
        %394 = vmatprep.subr.mxu0 0.0
        %395 = vmatpush1.msra.mxu0 0.0
        %396 = vmatprep.subr.mxu0 0.0
        %397 = vmatpush1.msra.mxu0 0.0
        %398 = vmatprep.subr.mxu0 0.0
        %399 = vmatpush1.msra.mxu0 0.0
        %400 = vmatprep.subr.mxu0 0.0
        %401 = vmatpush1.msra.mxu0 0.0
        %402 = vmatprep.mubr.f32.mxu0 0.0
        %403 = vmatmul.mubr.f32.gmra.mrb[0].mxu0 %v315
        %v404 = vpop.f32.mrb[0].mxu0
        %v405 = vadd.f32 %v276, %v404
        %v406 = vpop.f32.mrb[0].mxu0
        %v407 = vadd.f32 %v276, %v406
        %408 = vmatprep.mubr.f32.mxu0 0.0
        %409 = vmatmul.mubr.f32.gmra.mrb[0].mxu0 %v318
        %v410 = vpop.f32.mrb[0].mxu0
        %v411 = vadd.f32 %v281, %v410
        %v412 = vpop.f32.mrb[0].mxu0
        %v413 = vadd.f32 %v281, %v412
        %414 = vmatprep.mubr.f32.mxu0 0.0
        %415 = vmatmul.mubr.f32.gmra.mrb[0].mxu0 %v321
        %v416 = vpop.f32.mrb[0].mxu0
        %v417 = vadd.f32 %v286, %v416
        %v418 = vpop.f32.mrb[0].mxu0
        %v419 = vadd.f32 %v286, %v418
        %420 = vmatprep.mubr.f32.mxu0 0.0
        %421 = vmatmul.mubr.f32.gmra.mrb[0].mxu0 %v324
        %v422 = vpop.f32.mrb[0].mxu0
        %v423 = vadd.f32 %v291, %v422
        %v424 = vpop.f32.mrb[0].mxu0
        %v425 = vadd.f32 %v291, %v424
        %426 = vmatprep.mubr.f32.mxu0 0.0
        %427 = vmatmul.mubr.f32.gmra.mrb[0].mxu0 %v327
        %v428 = vpop.f32.mrb[0].mxu0
        %v429 = vadd.f32 %v296, %v428
        %v430 = vpop.f32.mrb[0].mxu0
        %v431 = vadd.f32 %v296, %v430
        %432 = vmatprep.mubr.f32.mxu0 0.0
        %433 = vmatmul.mubr.f32.gmra.mrb[0].mxu0 %v330
        %v434 = vpop.f32.mrb[0].mxu0
        %v435 = vadd.f32 %v301, %v434
        %v436 = vpop.f32.mrb[0].mxu0
        %v437 = vadd.f32 %v301, %v436
        %438 = vmatprep.mubr.f32.mxu0 0.0
        %439 = vmatmul.mubr.f32.gmra.mrb[0].mxu0 %v333
        %v440 = vpop.f32.mrb[0].mxu0
        %v441 = vadd.f32 %v306, %v440
        %v442 = vpop.f32.mrb[0].mxu0
        %v443 = vadd.f32 %v306, %v442
        %444 = vmatprep.mubr.f32.mxu0 0.0
        %445 = vmatmul.mubr.f32.gmra.mrb[0].mxu0 %v336
        %v446 = vpop.f32.mrb[0].mxu0
        %v447 = vadd.f32 %v311, %v446
        %v448 = vpop.f32.mrb[0].mxu0
        %v449 = vadd.f32 %v311, %v448
        %450 = vdwg.mxu0
        %v451 = vmax.f32 %v405, 0.0
        %v452 = vmax.f32 %v407, 0.0
        %v453 = vmax.f32 %v411, 0.0
        %v454 = vmax.f32 %v413, 0.0
        %v455 = vmax.f32 %v417, 0.0
        %v456 = vmax.f32 %v419, 0.0
        %v457 = vmax.f32 %v423, 0.0
        %v458 = vmax.f32 %v425, 0.0
        %v459 = vmax.f32 %v429, 0.0
        %v460 = vmax.f32 %v431, 0.0
        %v461 = vmax.f32 %v435, 0.0
        %v462 = vmax.f32 %v437, 0.0
        %v463 = vmax.f32 %v441, 0.0
        %v464 = vmax.f32 %v443, 0.0
        %v465 = vmax.f32 %v447, 0.0
        %v466 = vmax.f32 %v449, 0.0
        %v467 = vld [vmem:[%s3] sm:$0x1]
        %v468 = vld [vmem:[#allocation2] sm:$0x1]
        %470 = vset.pattern.permute.xlu0 0
        %471 = vperm.xlu0 %470, %v468
        %v472 = vpop.permute.xlu0 %471
        %v474 = vlaneseq
        %v475 = vshrl.u32 %v474, 7
        %v476 = vsub.s32 0, %v475
        %v477 = vrot.slane %v472, %v476
        %vm478 = vcmask 523264
        %v480 = vsel %vm478, %v467, 0
        %482 = vmatprep.subr.mxu0 %v452
        %483 = vmatpush1.msra.mxu0 %v451
        %484 = vmatprep.subr.mxu0 %v454
        %485 = vmatpush1.msra.mxu0 %v453
        %486 = vmatprep.subr.mxu0 %v456
        %487 = vmatpush1.msra.mxu0 %v455
        %488 = vmatprep.subr.mxu0 %v458
        %489 = vmatpush1.msra.mxu0 %v457
        %490 = vmatprep.subr.mxu0 %v460
        %491 = vmatpush1.msra.mxu0 %v459
        %492 = vmatprep.subr.mxu0 %v462
        %493 = vmatpush1.msra.mxu0 %v461
        %494 = vmatprep.subr.mxu0 %v464
        %495 = vmatpush1.msra.mxu0 %v463
        %496 = vmatprep.subr.mxu0 %v466
        %497 = vmatpush1.msra.mxu0 %v465
        %498 = vmatprep.subr.mxu0 0.0
        %499 = vmatpush1.msra.mxu0 0.0
        %500 = vmatprep.subr.mxu0 0.0
        %501 = vmatpush1.msra.mxu0 0.0
        %502 = vmatprep.subr.mxu0 0.0
        %503 = vmatpush1.msra.mxu0 0.0
        %504 = vmatprep.subr.mxu0 0.0
        %505 = vmatpush1.msra.mxu0 0.0
        %506 = vmatprep.subr.mxu0 0.0
        %507 = vmatpush1.msra.mxu0 0.0
        %508 = vmatprep.subr.mxu0 0.0
        %509 = vmatpush1.msra.mxu0 0.0
        %510 = vmatprep.subr.mxu0 0.0
        %511 = vmatpush1.msra.mxu0 0.0
        %512 = vmatprep.subr.mxu0 0.0
        %513 = vmatpush1.msra.mxu0 0.0
        %514 = vmatprep.subr.mxu0 0.0
        %515 = vmatpush1.msra.mxu0 0.0
        %516 = vmatprep.subr.mxu0 0.0
        %517 = vmatpush1.msra.mxu0 0.0
        %518 = vmatprep.subr.mxu0 0.0
        %519 = vmatpush1.msra.mxu0 0.0
        %520 = vmatprep.subr.mxu0 0.0
        %521 = vmatpush1.msra.mxu0 0.0
        %522 = vmatprep.subr.mxu0 0.0
        %523 = vmatpush1.msra.mxu0 0.0
        %524 = vmatprep.subr.mxu0 0.0
        %525 = vmatpush1.msra.mxu0 0.0
        %526 = vmatprep.subr.mxu0 0.0
        %527 = vmatpush1.msra.mxu0 0.0
        %528 = vmatprep.subr.mxu0 0.0
        %529 = vmatpush1.msra.mxu0 0.0
        %530 = vmatprep.subr.mxu0 0.0
        %531 = vmatpush1.msra.mxu0 0.0
        %532 = vmatprep.subr.mxu0 0.0
        %533 = vmatpush1.msra.mxu0 0.0
        %534 = vmatprep.subr.mxu0 0.0
        %535 = vmatpush1.msra.mxu0 0.0
        %536 = vmatprep.subr.mxu0 0.0
        %537 = vmatpush1.msra.mxu0 0.0
        %538 = vmatprep.subr.mxu0 0.0
        %539 = vmatpush1.msra.mxu0 0.0
        %540 = vmatprep.subr.mxu0 0.0
        %541 = vmatpush1.msra.mxu0 0.0
        %542 = vmatprep.subr.mxu0 0.0
        %543 = vmatpush1.msra.mxu0 0.0
        %544 = vmatprep.subr.mxu0 0.0
        %545 = vmatpush1.msra.mxu0 0.0
        %546 = vmatprep.mubr.f32.mxu0 0.0
        %547 = vmatmul.mubr.f32.gmra.mrb[0].mxu0 %v480
        %v548 = vpop.f32.mrb[0].mxu0
        %v549 = vadd.f32 %v477, %v548
        %v550 = vpop.f32.mrb[0].mxu0
        %v551 = vadd.f32 %v477, %v550
        %552 = vdwg.mxu0
        %v555 = vcombine.low %v549, %v551
        %v557 = vunpack.c.l.s4 1966171168
        %v558 = vunpack.c.0.s8 %v557
        %v559 = vlaneseq
        %v560 = vshrl.u32 %v559, 7
        %v561 = vsub.s32 %v558, %v560
        %v562 = vrot.slane %v555, %v561
        %v564 = vunpack.c.l.s4 1966171168
        %v565 = vunpack.c.0.s8 %v564
        %v566 = vlaneseq
        %v567 = vshrl.u32 %v566, 7
        %v568 = vsub.s32 %v565, %v567
        %v569 = vrot.slane %v562, %v568
        %v571 = vlaneseq
        %vm572 = vcmp.ge.s32.totalorder %v571, 0
        %vm573 = vcmp.lt.s32.totalorder %v571, 256
        %vm574 = vmand %vm572, %vm573
        %575 = vst.msk [vmem:[%s251] sm:$0x3] %vm574, %v569
        %s576 = smul.u32 2, %s18
        %p577 = scmp.lt.s32.totalorder %s576, 3
        %s578 = scalar_select %p577, %s576, 3
        %s579 = scalar_lea.vmem %s5, %s578
        // Predicated region
        $region64: #{fno2d_forward.11} parent=58 // pred_check
          %p580 = pneg %p146
        $region65: #{fno2d_forward.11} parent=58 // pred_check_branch
          %582 = sbr.rel (%p580) target = $region67
        $region66: #{fno2d_forward.11} parent=58 // pred_region
          %s583 = smul.u32 2, %s18
        $region67: #{fno2d_forward.11} parent=58 // pred_fallthru
          _
      $region59: #{fno2d_forward.11} parent=5 // pred_fallthru
        _
      %p584 = scmp.le.s32.totalorder 2, %s13
      // Predicated region
      $region68: #{fno2d_forward.11} parent=5 // pred_check
        %p585 = pneg %p584
      $region69: #{fno2d_forward.11} parent=5 // pred_check_branch
        %587 = sbr.rel (%p585) target = $region71
      $region70: #{fno2d_forward.11} parent=5 // pred_region
        %s588 = ssub.s32 %s13, 2
        // Predicated region
        $region72: #{fno2d_forward.11} parent=70 // pred_check
          %p589 = pneg %p152
        $region73: #{fno2d_forward.11} parent=70 // pred_check_branch
          %591 = sbr.rel (%p589) target = $region75
        $region74: #{fno2d_forward.11} parent=70 // pred_region
          %s592 = smul.u32 2, %s19
          %p593 = scmp.lt.s32.totalorder %s592, 3
          %s594 = scalar_select %p593, %s592, 3
          %s595 = scalar_lea.vmem %s5, %s594
        $region75: #{fno2d_forward.11} parent=70 // pred_fallthru
          _
      $region71: #{fno2d_forward.11} parent=5 // pred_fallthru
        _
    $region6: #{fno2d_forward.11} parent=1 // loop_footer
      %s17 = sadd.s32 1, %s13
    $region7: #{fno2d_forward.11} parent=1 // loop_footer_branch
      %12 = sbr.rel target = $region3
    $region8: #{fno2d_forward.11} parent=1 // loop_exit
      _

</llo_original>
